<compile_context>
chip_gen: v5e
topology: v5e:2x2
jax: 0.10.0
libtpu: 0.0.40
codegen_flags: <defaults>
</compile_context>

<pallas_src>
import jax
import jax.numpy as jnp
from jax import lax
from jax.experimental import pallas as pl
from jax.experimental.pallas import tpu as pltpu

_PAD = 8   # sublane-aligned offset of the image interior inside the padded scratch


# ----------------------------------------------------------------------------- #
# Fused ResnetBlock kernel (one grid step == one batch element)
# ----------------------------------------------------------------------------- #
def _resnet_block_kernel(x_ref, emb_ref,
                         w1_ref, b1_ref, g1_ref, be1_ref,
                         w2_ref, b2_ref, g2_ref, be2_ref,
                         wr_ref, br_ref, aggs_ref,
                         o_ref,
                         xp1_ref, xp2_ref):
    _, H, W, Cin = x_ref.shape
    Cout = o_ref.shape[2]
    HW = H * W

    # ---- precomputed embedding row: time_mlp(t) + class_mlp(c) -> (scale, shift) ----
    emb = emb_ref[0]                                              # (1, 2*Cout)
    scale = emb[:, :Cout]
    shift = emb[:, Cout:]

    def zero_halo(xp_ref):
        """Zero only the halo ring that the conv taps actually read."""
        C = xp_ref.shape[-1]
        zrow = jnp.zeros((1, W + 2, C), jnp.float32)
        zcol = jnp.zeros((H, 1, C), jnp.float32)
        xp_ref[0:1, _PAD - 1:_PAD + W + 1, :] = zrow              # top halo row
        xp_ref[H + 1:H + 2, _PAD - 1:_PAD + W + 1, :] = zrow      # bottom halo row
        xp_ref[1:H + 1, _PAD - 1:_PAD, :] = zcol                  # left halo column
        xp_ref[1:H + 1, _PAD + W:_PAD + W + 1, :] = zcol          # right halo column

    def conv3x3(xp_ref, w_ref, b):
        """3x3 SAME conv as 9 accumulating matmuls over shifted scratch views.
        w_ref is (9*C, Cout), row-blocked by tap index kh*3+kw."""
        C = xp_ref.shape[-1]
        acc = jnp.broadcast_to(b, (HW, Cout))                     # bias folded into init
        for kh in range(3):
            for kw in range(3):
                tap = xp_ref[kh:kh + H, _PAD - 1 + kw:_PAD - 1 + kw + W, :]
                wk = w_ref[(kh * 3 + kw) * C:(kh * 3 + kw + 1) * C, :]
                acc = acc + jnp.dot(tap.reshape(HW, C), wk,
                                    preferred_element_type=jnp.float32)
        return acc

    def gn_ss_silu(y, gamma, beta, sc=None, sh=None):
        """One-pass GroupNorm (eps=1e-5) folded with optional x*(scale+1)+shift, then SiLU."""
        aggs = aggs_ref[...]                                      # (Cout, Cout) / (HW*cpg)
        s1 = jnp.sum(y, axis=0, keepdims=True)                    # (1, Cout)
        s2 = jnp.sum(y * y, axis=0, keepdims=True)                # (1, Cout), same sweep
        mean = jnp.dot(s1, aggs, preferred_element_type=jnp.float32)
        var = jnp.dot(s2, aggs, preferred_element_type=jnp.float32) - mean * mean
        a = lax.rsqrt(var + 1e-5) * gamma                         # per-channel affine
        c = beta - mean * a
        if sc is not None:
            a = a * (sc + 1.0)
            c = c * (sc + 1.0) + sh
        y = y * a + c                                             # single pass over tile
        return y * jax.nn.sigmoid(y)

    x0 = x_ref[0]                                                 # (H, W, Cin)

    # ---- block1: WS-conv3x3 -> GroupNorm -> scale/shift -> SiLU --------------------
    zero_halo(xp1_ref)
    xp1_ref[1:H + 1, _PAD:_PAD + W, :] = x0
    h = gn_ss_silu(conv3x3(xp1_ref, w1_ref, b1_ref[...]),
                   g1_ref[...], be1_ref[...], scale, shift)       # (HW, Cout)

    # ---- block2: WS-conv3x3 -> GroupNorm -> SiLU (no scale/shift) ------------------
    zero_halo(xp2_ref)
    xp2_ref[1:H + 1, _PAD:_PAD + W, :] = h.reshape(H, W, Cout)
    h = gn_ss_silu(conv3x3(xp2_ref, w2_ref, b2_ref[...]),
                   g2_ref[...], be2_ref[...])                     # (HW, Cout)

    # ---- residual 1x1 conv (in_channels != out_channels case) ----------------------
    out = h + jnp.dot(x0.reshape(HW, Cin), wr_ref[...],
                      preferred_element_type=jnp.float32) + br_ref[...]

    o_ref[0] = out                                                # (HW, Cout), no transpose


# ----------------------------------------------------------------------------- #
# Wrapper (PyTorch-facing: NCHW in / NCHW out)
# ----------------------------------------------------------------------------- #
def _standardize(w):
    # WeightStandardizedConv2d per the given module: mean/var over (kh, kw, cin) per
    # output filter, biased variance.  NOTE: the provided torch code computes an eps
    # but never applies it (divides by sqrt(var) exactly) -- we mirror that behavior.
    m = jnp.mean(w, axis=(0, 1, 2), keepdims=True)
    v = jnp.mean((w - m) ** 2, axis=(0, 1, 2), keepdims=True)
    return (w - m) / jnp.sqrt(v)


def resnet_block_forward(p, x_nchw, time_emb, class_emb, groups=8):
    N, Cin, H, W = x_nchw.shape
    Cout = p["w1"].shape[-1]
    HW = H * W
    cpg = Cout // groups

    x = jnp.transpose(x_nchw, (0, 2, 3, 1))                       # NCHW -> NHWC

    # ---- grid-invariant / batch-level preprocessing hoisted out of the kernel ----
    w1f = _standardize(p["w1"]).reshape(9 * Cin, Cout)            # row = (kh*3+kw)*Cin+ci
    w2f = _standardize(p["w2"]).reshape(9 * Cout, Cout)
    gidx = jnp.arange(Cout, dtype=jnp.int32) // cpg
    aggs = (gidx[:, None] == gidx[None, :]).astype(jnp.float32) / float(HW * cpg)

    # time/class MLPs (SiLU -> Linear), summed: one batched matmul outside the kernel.
    emb = (jax.nn.silu(time_emb) @ p["wt"] + p["bt"]
           + jax.nn.silu(class_emb) @ p["wc"] + p["bc"])          # (N, 2*Cout)
    emb3 = emb.reshape(N, 1, 2 * Cout)

    row = lambda v: v.reshape(1, -1)
    const2 = lambda n: (0, 0)
    # Grid-invariant operands: single-buffered (no point double-buffering constants).
    wspec = lambda shape: pl.BlockSpec(shape, const2, pipeline_mode=pl.Buffered(1))

    out_flat = pl.pallas_call(
        _resnet_block_kernel,
        out_shape=jax.ShapeDtypeStruct((N, HW, Cout), jnp.float32),
        grid=(N,),
        in_specs=[
            pl.BlockSpec((1, H, W, Cin), lambda n: (n, 0, 0, 0)),   # x (this batch item)
            pl.BlockSpec((1, 1, 2 * Cout), lambda n: (n, 0, 0)),    # fused emb row
            wspec((9 * Cin, Cout)),                                 # w1 (standardized, flat)
            wspec((1, Cout)),                                       # b1
            wspec((1, Cout)),                                       # gamma1
            wspec((1, Cout)),                                       # beta1
            wspec((9 * Cout, Cout)),                                # w2 (standardized, flat)
            wspec((1, Cout)),                                       # b2
            wspec((1, Cout)),                                       # gamma2
            wspec((1, Cout)),                                       # beta2
            wspec((Cin, Cout)),                                     # wr (1x1 residual conv)
            wspec((1, Cout)),                                       # br
            wspec((Cout, Cout)),                                    # group aggregator
        ],
        out_specs=pl.BlockSpec((1, HW, Cout), lambda n: (n, 0, 0)),
        scratch_shapes=[
            pltpu.VMEM((H + 2, W + 2 * _PAD, Cin), jnp.float32),    # padded x
            pltpu.VMEM((H + 2, W + 2 * _PAD, Cout), jnp.float32),   # padded h (block2 in)
        ],
        compiler_params=pltpu.CompilerParams(
            dimension_semantics=("parallel",),
            vmem_limit_bytes=32 * 1024 * 1024),
    )(x, emb3,
      w1f, row(p["b1"]), row(p["g1"]), row(p["be1"]),
      w2f, row(p["b2"]), row(p["g2"]), row(p["be2"]),
      p["wr"], row(p["br"]), aggs)

    # NHWC-flat -> NCHW outside the kernel (cheap XLA transpose, no in-kernel XLU work).
    return jnp.transpose(out_flat.reshape(N, H, W, Cout), (0, 3, 1, 2))


# ----------------------------------------------------------------------------- #
# Pure-JAX reference for verification
# ----------------------------------------------------------------------------- #
def ref_forward(p, x_nchw, time_emb, class_emb, groups=8):
    Cout = p["w1"].shape[-1]
    x = jnp.transpose(x_nchw, (0, 2, 3, 1))

    def mlp(t, w, b):
        return jax.nn.silu(t) @ w + b

    emb = mlp(time_emb, p["wt"], p["bt"]) + mlp(class_emb, p["wc"], p["bc"])
    scale, shift = emb[:, :Cout], emb[:, Cout:]

    def ws_conv(xx, w, b):
        m = jnp.mean(w, axis=(0, 1, 2), keepdims=True)
        v = jnp.mean((w - m) ** 2, axis=(0, 1, 2), keepdims=True)
        wn = (w - m) / jnp.sqrt(v)
        y = lax.conv_general_dilated(xx, wn, (1, 1), "SAME",
                                     dimension_numbers=("NHWC", "HWIO", "NHWC"))
        return y + b

    def gnorm(y, gamma, beta):
        n_, h_, w_, c_ = y.shape
        yg = y.reshape(n_, h_, w_, groups, c_ // groups)
        m = jnp.mean(yg, axis=(1, 2, 4), keepdims=True)
        v = jnp.mean((yg - m) ** 2, axis=(1, 2, 4), keepdims=True)
        yn = ((yg - m) / jnp.sqrt(v + 1e-5)).reshape(n_, h_, w_, c_)
        return yn * gamma + beta

    h = ws_conv(x, p["w1"], p["b1"])
    h = gnorm(h, p["g1"], p["be1"])
    h = h * (scale[:, None, None, :] + 1.0) + shift[:, None, None, :]
    h = jax.nn.silu(h)
    h = ws_conv(h, p["w2"], p["b2"])
    h = gnorm(h, p["g2"], p["be2"])
    h = jax.nn.silu(h)
    res = jnp.einsum("nhwc,cd->nhwd", x, p["wr"]) + p["br"]
    return jnp.transpose(h + res, (0, 3, 1, 2))


# ----------------------------------------------------------------------------- #
if __name__ == "__main__":
    N, Cin, Cout, H, W = 2, 4, 16, 16, 16
    groups = 8
    time_dim, class_dim = 32, 16

    key = jax.random.PRNGKey(0)
    ks = jax.random.split(key, 20)
    nrm = lambda k, s: jax.random.normal(k, s, dtype=jnp.float32)

    params = {
        # time_mlp: SiLU -> Linear(time_dim, 2*Cout)
        "wt": 0.1 * nrm(ks[0], (time_dim, 2 * Cout)),
        "bt": 0.1 * nrm(ks[1], (2 * Cout,)),
        # class_mlp: SiLU -> Linear(class_dim, 2*Cout)
        "wc": 0.1 * nrm(ks[2], (class_dim, 2 * Cout)),
        "bc": 0.1 * nrm(ks[3], (2 * Cout,)),
        # block1: WS-Conv 3x3 (Cin->Cout) + GroupNorm(groups, Cout)   [HWIO]
        "w1": 0.2 * nrm(ks[4], (3, 3, Cin, Cout)),
        "b1": 0.1 * nrm(ks[5], (Cout,)),
        "g1": 1.0 + 0.1 * nrm(ks[6], (Cout,)),
        "be1": 0.1 * nrm(ks[7], (Cout,)),
        # block2: WS-Conv 3x3 (Cout->Cout) + GroupNorm(groups, Cout)  [HWIO]
        "w2": 0.2 * nrm(ks[8], (3, 3, Cout, Cout)),
        "b2": 0.1 * nrm(ks[9], (Cout,)),
        "g2": 1.0 + 0.1 * nrm(ks[10], (Cout,)),
        "be2": 0.1 * nrm(ks[11], (Cout,)),
        # res_conv: 1x1 conv (Cin->Cout), weight stored as (Cin, Cout)
        "wr": 0.2 * nrm(ks[12], (Cin, Cout)),
        "br": 0.1 * nrm(ks[13], (Cout,)),
    }

    x = nrm(ks[14], (N, Cin, H, W))            # NCHW, like the PyTorch module
    time_emb = nrm(ks[15], (N, time_dim))
    class_emb = nrm(ks[16], (N, class_dim))

    out = resnet_block_forward(params, x, time_emb, class_emb, groups=groups)
    out = jax.block_until_ready(out)

    ref = jax.block_until_ready(ref_forward(params, x, time_emb, class_emb, groups=groups))
    assert out.shape == (N, Cout, H, W)
    assert jnp.allclose(out, ref, atol=1e-4, rtol=1e-4), float(jnp.max(jnp.abs(out - ref)))

    print("KERNEL_OK")
</pallas_src>

<mosaic_0001>
module attributes {stable_mosaic.version = 11 : i64} {
  func.func @_resnet_block_kernel(%arg0: i32, %arg1: memref<1x16x16x4xf32, #tpu.memory_space<vmem>>, %arg2: memref<1x1x32xf32, #tpu.memory_space<vmem>>, %arg3: memref<36x16xf32, #tpu.memory_space<vmem>>, %arg4: memref<1x16xf32, #tpu.memory_space<vmem>>, %arg5: memref<1x16xf32, #tpu.memory_space<vmem>>, %arg6: memref<1x16xf32, #tpu.memory_space<vmem>>, %arg7: memref<144x16xf32, #tpu.memory_space<vmem>>, %arg8: memref<1x16xf32, #tpu.memory_space<vmem>>, %arg9: memref<1x16xf32, #tpu.memory_space<vmem>>, %arg10: memref<1x16xf32, #tpu.memory_space<vmem>>, %arg11: memref<4x16xf32, #tpu.memory_space<vmem>>, %arg12: memref<1x16xf32, #tpu.memory_space<vmem>>, %arg13: memref<16x16xf32, #tpu.memory_space<vmem>>, %arg14: memref<1x256x16xf32, #tpu.memory_space<vmem>>, %arg15: memref<18x32x4xf32, #tpu.memory_space<vmem>>, %arg16: memref<18x32x16xf32, #tpu.memory_space<vmem>>) attributes {dimension_semantics = [#tpu.dimension_semantics<parallel>], iteration_bounds = array<i64: 2>, scalar_prefetch = 0 : i64, scratch_operands = 2 : i64, tpu.core_type = #tpu.core_type<tc>, window_params = [{transform_indices = @transform_0, window_bounds = array<i64: 1, 16, 16, 4>}, {transform_indices = @transform_1, window_bounds = array<i64: 1, 1, 32>}, {pipeline_mode = #tpu.pipeline_mode<synchronous>, transform_indices = @transform_2, window_bounds = array<i64: 36, 16>}, {pipeline_mode = #tpu.pipeline_mode<synchronous>, transform_indices = @transform_3, window_bounds = array<i64: 1, 16>}, {pipeline_mode = #tpu.pipeline_mode<synchronous>, transform_indices = @transform_4, window_bounds = array<i64: 1, 16>}, {pipeline_mode = #tpu.pipeline_mode<synchronous>, transform_indices = @transform_5, window_bounds = array<i64: 1, 16>}, {pipeline_mode = #tpu.pipeline_mode<synchronous>, transform_indices = @transform_6, window_bounds = array<i64: 144, 16>}, {pipeline_mode = #tpu.pipeline_mode<synchronous>, transform_indices = @transform_7, window_bounds = array<i64: 1, 16>}, {pipeline_mode = #tpu.pipeline_mode<synchronous>, transform_indices = @transform_8, window_bounds = array<i64: 1, 16>}, {pipeline_mode = #tpu.pipeline_mode<synchronous>, transform_indices = @transform_9, window_bounds = array<i64: 1, 16>}, {pipeline_mode = #tpu.pipeline_mode<synchronous>, transform_indices = @transform_10, window_bounds = array<i64: 4, 16>}, {pipeline_mode = #tpu.pipeline_mode<synchronous>, transform_indices = @transform_11, window_bounds = array<i64: 1, 16>}, {pipeline_mode = #tpu.pipeline_mode<synchronous>, transform_indices = @transform_12, window_bounds = array<i64: 16, 16>}, {transform_indices = @transform_13, window_bounds = array<i64: 1, 256, 16>}]} {
    %c0 = arith.constant 0 : index
    %c0_0 = arith.constant 0 : index
    %c0_1 = arith.constant 0 : index
    %0 = vector.load %arg2[%c0, %c0_0, %c0_1] : memref<1x1x32xf32, #tpu.memory_space<vmem>>, vector<1x1x32xf32>
    %1 = vector.shape_cast %0 : vector<1x1x32xf32> to vector<1x32xf32>
    %2 = vector.extract_strided_slice %1 {offsets = [0, 0], sizes = [1, 16], strides = [1, 1]} : vector<1x32xf32> to vector<1x16xf32>
    %3 = vector.extract_strided_slice %1 {offsets = [0, 16], sizes = [1, 16], strides = [1, 1]} : vector<1x32xf32> to vector<1x16xf32>
    %c0_2 = arith.constant 0 : index
    %c0_3 = arith.constant 0 : index
    %c0_4 = arith.constant 0 : index
    %c0_5 = arith.constant 0 : index
    %4 = vector.load %arg1[%c0_2, %c0_3, %c0_4, %c0_5] : memref<1x16x16x4xf32, #tpu.memory_space<vmem>>, vector<1x16x16x4xf32>
    %5 = vector.shape_cast %4 : vector<1x16x16x4xf32> to vector<16x16x4xf32>
    %cst = arith.constant 0.000000e+00 : f32
    %6 = vector.broadcast %cst : f32 to vector<1x18x4xf32>
    %cst_6 = arith.constant 0.000000e+00 : f32
    %7 = vector.broadcast %cst_6 : f32 to vector<16x1x4xf32>
    %c0_7 = arith.constant 0 : index
    %c7 = arith.constant 7 : index
    %c0_8 = arith.constant 0 : index
    %8 = vector.load %arg15[%c0_7, %c7, %c0_8] : memref<18x32x4xf32, #tpu.memory_space<vmem>>, vector<1x18x4xf32>
    tpu.vector_store %arg15[%c0_7, %c7, %c0_8], %6 {strides = array<i32>} : memref<18x32x4xf32, #tpu.memory_space<vmem>>, vector<1x18x4xf32>,
    %c17 = arith.constant 17 : index
    %c7_9 = arith.constant 7 : index
    %c0_10 = arith.constant 0 : index
    %9 = vector.load %arg15[%c17, %c7_9, %c0_10] : memref<18x32x4xf32, #tpu.memory_space<vmem>>, vector<1x18x4xf32>
    tpu.vector_store %arg15[%c17, %c7_9, %c0_10], %6 {strides = array<i32>} : memref<18x32x4xf32, #tpu.memory_space<vmem>>, vector<1x18x4xf32>,
    %c1 = arith.constant 1 : index
    %c7_11 = arith.constant 7 : index
    %c0_12 = arith.constant 0 : index
    %10 = vector.load %arg15[%c1, %c7_11, %c0_12] : memref<18x32x4xf32, #tpu.memory_space<vmem>>, vector<16x1x4xf32>
    tpu.vector_store %arg15[%c1, %c7_11, %c0_12], %7 {strides = array<i32>} : memref<18x32x4xf32, #tpu.memory_space<vmem>>, vector<16x1x4xf32>,
    %c1_13 = arith.constant 1 : index
    %c24 = arith.constant 24 : index
    %c0_14 = arith.constant 0 : index
    %11 = vector.load %arg15[%c1_13, %c24, %c0_14] : memref<18x32x4xf32, #tpu.memory_space<vmem>>, vector<16x1x4xf32>
    tpu.vector_store %arg15[%c1_13, %c24, %c0_14], %7 {strides = array<i32>} : memref<18x32x4xf32, #tpu.memory_space<vmem>>, vector<16x1x4xf32>,
    %c1_15 = arith.constant 1 : index
    %c8 = arith.constant 8 : index
    %c0_16 = arith.constant 0 : index
    %12 = vector.load %arg15[%c1_15, %c8, %c0_16] : memref<18x32x4xf32, #tpu.memory_space<vmem>>, vector<16x16x4xf32>
    tpu.vector_store %arg15[%c1_15, %c8, %c0_16], %5 {strides = array<i32>} : memref<18x32x4xf32, #tpu.memory_space<vmem>>, vector<16x16x4xf32>,
    %c0_17 = arith.constant 0 : index
    %c0_18 = arith.constant 0 : index
    %13 = vector.load %arg4[%c0_17, %c0_18] : memref<1x16xf32, #tpu.memory_space<vmem>>, vector<1x16xf32>
    %14 = vector.shape_cast %13 : vector<1x16xf32> to vector<1x16xf32>
    %15 = vector.broadcast %14 : vector<1x16xf32> to vector<256x16xf32>
    %c0_19 = arith.constant 0 : index
    %c7_20 = arith.constant 7 : index
    %c0_21 = arith.constant 0 : index
    %16 = vector.load %arg15[%c0_19, %c7_20, %c0_21] : memref<18x32x4xf32, #tpu.memory_space<vmem>>, vector<16x16x4xf32>
    %c0_22 = arith.constant 0 : index
    %c0_23 = arith.constant 0 : index
    %17 = vector.load %arg3[%c0_22, %c0_23] : memref<36x16xf32, #tpu.memory_space<vmem>>, vector<4x16xf32>
    %18 = vector.shape_cast %16 : vector<16x16x4xf32> to vector<256x4xf32>
    %cst_24 = arith.constant dense<0.000000e+00> : vector<256x16xf32>
    %19 = tpu.matmul %18, %17, %cst_24 {dimension_numbers = #tpu.dot_dimension_numbers<[1], [0], [0], [1], [0, 0, 1, 1], [], []>} : vector<256x4xf32>, vector<4x16xf32>, vector<256x16xf32> -> vector<256x16xf32>
    %20 = arith.addf %15, %19 : vector<256x16xf32>
    %c0_25 = arith.constant 0 : index
    %c8_26 = arith.constant 8 : index
    %c0_27 = arith.constant 0 : index
    %21 = vector.load %arg15[%c0_25, %c8_26, %c0_27] : memref<18x32x4xf32, #tpu.memory_space<vmem>>, vector<16x16x4xf32>
    %c4 = arith.constant 4 : index
    %c0_28 = arith.constant 0 : index
    %22 = vector.load %arg3[%c4, %c0_28] : memref<36x16xf32, #tpu.memory_space<vmem>>, vector<4x16xf32>
    %23 = vector.shape_cast %21 : vector<16x16x4xf32> to vector<256x4xf32>
    %cst_29 = arith.constant dense<0.000000e+00> : vector<256x16xf32>
    %24 = tpu.matmul %23, %22, %cst_29 {dimension_numbers = #tpu.dot_dimension_numbers<[1], [0], [0], [1], [0, 0, 1, 1], [], []>} : vector<256x4xf32>, vector<4x16xf32>, vector<256x16xf32> -> vector<256x16xf32>
    %25 = arith.addf %20, %24 : vector<256x16xf32>
    %c0_30 = arith.constant 0 : index
    %c9 = arith.constant 9 : index
    %c0_31 = arith.constant 0 : index
    %26 = vector.load %arg15[%c0_30, %c9, %c0_31] : memref<18x32x4xf32, #tpu.memory_space<vmem>>, vector<16x16x4xf32>
    %c8_32 = arith.constant 8 : index
    %c0_33 = arith.constant 0 : index
    %27 = vector.load %arg3[%c8_32, %c0_33] : memref<36x16xf32, #tpu.memory_space<vmem>>, vector<4x16xf32>
    %28 = vector.shape_cast %26 : vector<16x16x4xf32> to vector<256x4xf32>
    %cst_34 = arith.constant dense<0.000000e+00> : vector<256x16xf32>
    %29 = tpu.matmul %28, %27, %cst_34 {dimension_numbers = #tpu.dot_dimension_numbers<[1], [0], [0], [1], [0, 0, 1, 1], [], []>} : vector<256x4xf32>, vector<4x16xf32>, vector<256x16xf32> -> vector<256x16xf32>
    %30 = arith.addf %25, %29 : vector<256x16xf32>
    %c1_35 = arith.constant 1 : index
    %c7_36 = arith.constant 7 : index
    %c0_37 = arith.constant 0 : index
    %31 = vector.load %arg15[%c1_35, %c7_36, %c0_37] : memref<18x32x4xf32, #tpu.memory_space<vmem>>, vector<16x16x4xf32>
    %c12 = arith.constant 12 : index
    %c0_38 = arith.constant 0 : index
    %32 = vector.load %arg3[%c12, %c0_38] : memref<36x16xf32, #tpu.memory_space<vmem>>, vector<4x16xf32>
    %33 = vector.shape_cast %31 : vector<16x16x4xf32> to vector<256x4xf32>
    %cst_39 = arith.constant dense<0.000000e+00> : vector<256x16xf32>
    %34 = tpu.matmul %33, %32, %cst_39 {dimension_numbers = #tpu.dot_dimension_numbers<[1], [0], [0], [1], [0, 0, 1, 1], [], []>} : vector<256x4xf32>, vector<4x16xf32>, vector<256x16xf32> -> vector<256x16xf32>
    %35 = arith.addf %30, %34 : vector<256x16xf32>
    %c1_40 = arith.constant 1 : index
    %c8_41 = arith.constant 8 : index
    %c0_42 = arith.constant 0 : index
    %36 = vector.load %arg15[%c1_40, %c8_41, %c0_42] : memref<18x32x4xf32, #tpu.memory_space<vmem>>, vector<16x16x4xf32>
    %c16 = arith.constant 16 : index
    %c0_43 = arith.constant 0 : index
    %37 = vector.load %arg3[%c16, %c0_43] : memref<36x16xf32, #tpu.memory_space<vmem>>, vector<4x16xf32>
    %38 = vector.shape_cast %36 : vector<16x16x4xf32> to vector<256x4xf32>
    %cst_44 = arith.constant dense<0.000000e+00> : vector<256x16xf32>
    %39 = tpu.matmul %38, %37, %cst_44 {dimension_numbers = #tpu.dot_dimension_numbers<[1], [0], [0], [1], [0, 0, 1, 1], [], []>} : vector<256x4xf32>, vector<4x16xf32>, vector<256x16xf32> -> vector<256x16xf32>
    %40 = arith.addf %35, %39 : vector<256x16xf32>
    %c1_45 = arith.constant 1 : index
    %c9_46 = arith.constant 9 : index
    %c0_47 = arith.constant 0 : index
    %41 = vector.load %arg15[%c1_45, %c9_46, %c0_47] : memref<18x32x4xf32, #tpu.memory_space<vmem>>, vector<16x16x4xf32>
    %c20 = arith.constant 20 : index
    %c0_48 = arith.constant 0 : index
    %42 = vector.load %arg3[%c20, %c0_48] : memref<36x16xf32, #tpu.memory_space<vmem>>, vector<4x16xf32>
    %43 = vector.shape_cast %41 : vector<16x16x4xf32> to vector<256x4xf32>
    %cst_49 = arith.constant dense<0.000000e+00> : vector<256x16xf32>
    %44 = tpu.matmul %43, %42, %cst_49 {dimension_numbers = #tpu.dot_dimension_numbers<[1], [0], [0], [1], [0, 0, 1, 1], [], []>} : vector<256x4xf32>, vector<4x16xf32>, vector<256x16xf32> -> vector<256x16xf32>
    %45 = arith.addf %40, %44 : vector<256x16xf32>
    %c2 = arith.constant 2 : index
    %c7_50 = arith.constant 7 : index
    %c0_51 = arith.constant 0 : index
    %46 = vector.load %arg15[%c2, %c7_50, %c0_51] : memref<18x32x4xf32, #tpu.memory_space<vmem>>, vector<16x16x4xf32>
    %c24_52 = arith.constant 24 : index
    %c0_53 = arith.constant 0 : index
    %47 = vector.load %arg3[%c24_52, %c0_53] : memref<36x16xf32, #tpu.memory_space<vmem>>, vector<4x16xf32>
    %48 = vector.shape_cast %46 : vector<16x16x4xf32> to vector<256x4xf32>
    %cst_54 = arith.constant dense<0.000000e+00> : vector<256x16xf32>
    %49 = tpu.matmul %48, %47, %cst_54 {dimension_numbers = #tpu.dot_dimension_numbers<[1], [0], [0], [1], [0, 0, 1, 1], [], []>} : vector<256x4xf32>, vector<4x16xf32>, vector<256x16xf32> -> vector<256x16xf32>
    %50 = arith.addf %45, %49 : vector<256x16xf32>
    %c2_55 = arith.constant 2 : index
    %c8_56 = arith.constant 8 : index
    %c0_57 = arith.constant 0 : index
    %51 = vector.load %arg15[%c2_55, %c8_56, %c0_57] : memref<18x32x4xf32, #tpu.memory_space<vmem>>, vector<16x16x4xf32>
    %c28 = arith.constant 28 : index
    %c0_58 = arith.constant 0 : index
    %52 = vector.load %arg3[%c28, %c0_58] : memref<36x16xf32, #tpu.memory_space<vmem>>, vector<4x16xf32>
    %53 = vector.shape_cast %51 : vector<16x16x4xf32> to vector<256x4xf32>
    %cst_59 = arith.constant dense<0.000000e+00> : vector<256x16xf32>
    %54 = tpu.matmul %53, %52, %cst_59 {dimension_numbers = #tpu.dot_dimension_numbers<[1], [0], [0], [1], [0, 0, 1, 1], [], []>} : vector<256x4xf32>, vector<4x16xf32>, vector<256x16xf32> -> vector<256x16xf32>
    %55 = arith.addf %50, %54 : vector<256x16xf32>
    %c2_60 = arith.constant 2 : index
    %c9_61 = arith.constant 9 : index
    %c0_62 = arith.constant 0 : index
    %56 = vector.load %arg15[%c2_60, %c9_61, %c0_62] : memref<18x32x4xf32, #tpu.memory_space<vmem>>, vector<16x16x4xf32>
    %c32 = arith.constant 32 : index
    %c0_63 = arith.constant 0 : index
    %57 = vector.load %arg3[%c32, %c0_63] : memref<36x16xf32, #tpu.memory_space<vmem>>, vector<4x16xf32>
    %58 = vector.shape_cast %56 : vector<16x16x4xf32> to vector<256x4xf32>
    %cst_64 = arith.constant dense<0.000000e+00> : vector<256x16xf32>
    %59 = tpu.matmul %58, %57, %cst_64 {dimension_numbers = #tpu.dot_dimension_numbers<[1], [0], [0], [1], [0, 0, 1, 1], [], []>} : vector<256x4xf32>, vector<4x16xf32>, vector<256x16xf32> -> vector<256x16xf32>
    %60 = arith.addf %55, %59 : vector<256x16xf32>
    %c0_65 = arith.constant 0 : index
    %c0_66 = arith.constant 0 : index
    %61 = vector.load %arg5[%c0_65, %c0_66] : memref<1x16xf32, #tpu.memory_space<vmem>>, vector<1x16xf32>
    %c0_67 = arith.constant 0 : index
    %c0_68 = arith.constant 0 : index
    %62 = vector.load %arg6[%c0_67, %c0_68] : memref<1x16xf32, #tpu.memory_space<vmem>>, vector<1x16xf32>
    %c0_69 = arith.constant 0 : index
    %c0_70 = arith.constant 0 : index
    %63 = vector.load %arg13[%c0_69, %c0_70] : memref<16x16xf32, #tpu.memory_space<vmem>>, vector<16x16xf32>
    %cst_71 = arith.constant dense<0.000000e+00> : vector<16xf32>
    %64 = vector.multi_reduction <add>, %60, %cst_71 [0] : vector<256x16xf32> to vector<16xf32>
    %65 = vector.shape_cast %64 : vector<16xf32> to vector<1x16xf32>
    %66 = arith.mulf %60, %60 : vector<256x16xf32>
    %cst_72 = arith.constant dense<0.000000e+00> : vector<16xf32>
    %67 = vector.multi_reduction <add>, %66, %cst_72 [0] : vector<256x16xf32> to vector<16xf32>
    %68 = vector.shape_cast %67 : vector<16xf32> to vector<1x16xf32>
    %cst_73 = arith.constant dense<0.000000e+00> : vector<1x16xf32>
    %69 = tpu.matmul %65, %63, %cst_73 {dimension_numbers = #tpu.dot_dimension_numbers<[1], [0], [0], [1], [0, 0, 1, 1], [], []>} : vector<1x16xf32>, vector<16x16xf32>, vector<1x16xf32> -> vector<1x16xf32>
    %cst_74 = arith.constant dense<0.000000e+00> : vector<1x16xf32>
    %70 = tpu.matmul %68, %63, %cst_74 {dimension_numbers = #tpu.dot_dimension_numbers<[1], [0], [0], [1], [0, 0, 1, 1], [], []>} : vector<1x16xf32>, vector<16x16xf32>, vector<1x16xf32> -> vector<1x16xf32>
    %71 = arith.mulf %69, %69 : vector<1x16xf32>
    %72 = arith.subf %70, %71 : vector<1x16xf32>
    %cst_75 = arith.constant 9.99999974E-6 : f32
    %73 = vector.broadcast %cst_75 : f32 to vector<1x16xf32>
    %74 = arith.addf %72, %73 : vector<1x16xf32>
    %75 = math.rsqrt %74 : vector<1x16xf32>
    %76 = arith.mulf %75, %61 : vector<1x16xf32>
    %77 = arith.mulf %69, %76 : vector<1x16xf32>
    %78 = arith.subf %62, %77 : vector<1x16xf32>
    %cst_76 = arith.constant 1.000000e+00 : f32
    %79 = vector.broadcast %cst_76 : f32 to vector<1x16xf32>
    %80 = arith.addf %2, %79 : vector<1x16xf32>
    %81 = arith.mulf %76, %80 : vector<1x16xf32>
    %cst_77 = arith.constant 1.000000e+00 : f32
    %82 = vector.broadcast %cst_77 : f32 to vector<1x16xf32>
    %83 = arith.addf %2, %82 : vector<1x16xf32>
    %84 = arith.mulf %78, %83 : vector<1x16xf32>
    %85 = arith.addf %84, %3 : vector<1x16xf32>
    %86 = vector.broadcast %81 : vector<1x16xf32> to vector<256x16xf32>
    %87 = arith.mulf %60, %86 : vector<256x16xf32>
    %88 = vector.broadcast %85 : vector<1x16xf32> to vector<256x16xf32>
    %89 = arith.addf %87, %88 : vector<256x16xf32>
    %90 = arith.negf %89 : vector<256x16xf32>
    %91 = math.exp %90 : vector<256x16xf32>
    %cst_78 = arith.constant 1.000000e+00 : f32
    %92 = vector.broadcast %cst_78 : f32 to vector<256x16xf32>
    %93 = arith.addf %92, %91 : vector<256x16xf32>
    %94 = arith.divf %92, %93 : vector<256x16xf32>
    %95 = arith.mulf %89, %94 : vector<256x16xf32>
    %cst_79 = arith.constant 0.000000e+00 : f32
    %96 = vector.broadcast %cst_79 : f32 to vector<1x18x16xf32>
    %cst_80 = arith.constant 0.000000e+00 : f32
    %97 = vector.broadcast %cst_80 : f32 to vector<16x1x16xf32>
    %c0_81 = arith.constant 0 : index
    %c7_82 = arith.constant 7 : index
    %c0_83 = arith.constant 0 : index
    %98 = vector.load %arg16[%c0_81, %c7_82, %c0_83] : memref<18x32x16xf32, #tpu.memory_space<vmem>>, vector<1x18x16xf32>
    tpu.vector_store %arg16[%c0_81, %c7_82, %c0_83], %96 {strides = array<i32>} : memref<18x32x16xf32, #tpu.memory_space<vmem>>, vector<1x18x16xf32>,
    %c17_84 = arith.constant 17 : index
    %c7_85 = arith.constant 7 : index
    %c0_86 = arith.constant 0 : index
    %99 = vector.load %arg16[%c17_84, %c7_85, %c0_86] : memref<18x32x16xf32, #tpu.memory_space<vmem>>, vector<1x18x16xf32>
    tpu.vector_store %arg16[%c17_84, %c7_85, %c0_86], %96 {strides = array<i32>} : memref<18x32x16xf32, #tpu.memory_space<vmem>>, vector<1x18x16xf32>,
    %c1_87 = arith.constant 1 : index
    %c7_88 = arith.constant 7 : index
    %c0_89 = arith.constant 0 : index
    %100 = vector.load %arg16[%c1_87, %c7_88, %c0_89] : memref<18x32x16xf32, #tpu.memory_space<vmem>>, vector<16x1x16xf32>
    tpu.vector_store %arg16[%c1_87, %c7_88, %c0_89], %97 {strides = array<i32>} : memref<18x32x16xf32, #tpu.memory_space<vmem>>, vector<16x1x16xf32>,
    %c1_90 = arith.constant 1 : index
    %c24_91 = arith.constant 24 : index
    %c0_92 = arith.constant 0 : index
    %101 = vector.load %arg16[%c1_90, %c24_91, %c0_92] : memref<18x32x16xf32, #tpu.memory_space<vmem>>, vector<16x1x16xf32>
    tpu.vector_store %arg16[%c1_90, %c24_91, %c0_92], %97 {strides = array<i32>} : memref<18x32x16xf32, #tpu.memory_space<vmem>>, vector<16x1x16xf32>,
    %102 = vector.shape_cast %95 : vector<256x16xf32> to vector<16x16x16xf32>
    %c1_93 = arith.constant 1 : index
    %c8_94 = arith.constant 8 : index
    %c0_95 = arith.constant 0 : index
    %103 = vector.load %arg16[%c1_93, %c8_94, %c0_95] : memref<18x32x16xf32, #tpu.memory_space<vmem>>, vector<16x16x16xf32>
    tpu.vector_store %arg16[%c1_93, %c8_94, %c0_95], %102 {strides = array<i32>} : memref<18x32x16xf32, #tpu.memory_space<vmem>>, vector<16x16x16xf32>,
    %c0_96 = arith.constant 0 : index
    %c0_97 = arith.constant 0 : index
    %104 = vector.load %arg8[%c0_96, %c0_97] : memref<1x16xf32, #tpu.memory_space<vmem>>, vector<1x16xf32>
    %105 = vector.shape_cast %104 : vector<1x16xf32> to vector<1x16xf32>
    %106 = vector.broadcast %105 : vector<1x16xf32> to vector<256x16xf32>
    %c0_98 = arith.constant 0 : index
    %c7_99 = arith.constant 7 : index
    %c0_100 = arith.constant 0 : index
    %107 = vector.load %arg16[%c0_98, %c7_99, %c0_100] : memref<18x32x16xf32, #tpu.memory_space<vmem>>, vector<16x16x16xf32>
    %c0_101 = arith.constant 0 : index
    %c0_102 = arith.constant 0 : index
    %108 = vector.load %arg7[%c0_101, %c0_102] : memref<144x16xf32, #tpu.memory_space<vmem>>, vector<16x16xf32>
    %109 = vector.shape_cast %107 : vector<16x16x16xf32> to vector<256x16xf32>
    %cst_103 = arith.constant dense<0.000000e+00> : vector<256x16xf32>
    %110 = tpu.matmul %109, %108, %cst_103 {dimension_numbers = #tpu.dot_dimension_numbers<[1], [0], [0], [1], [0, 0, 1, 1], [], []>} : vector<256x16xf32>, vector<16x16xf32>, vector<256x16xf32> -> vector<256x16xf32>
    %111 = arith.addf %106, %110 : vector<256x16xf32>
    %c0_104 = arith.constant 0 : index
    %c8_105 = arith.constant 8 : index
    %c0_106 = arith.constant 0 : index
    %112 = vector.load %arg16[%c0_104, %c8_105, %c0_106] : memref<18x32x16xf32, #tpu.memory_space<vmem>>, vector<16x16x16xf32>
    %c16_107 = arith.constant 16 : index
    %c0_108 = arith.constant 0 : index
    %113 = vector.load %arg7[%c16_107, %c0_108] : memref<144x16xf32, #tpu.memory_space<vmem>>, vector<16x16xf32>
    %114 = vector.shape_cast %112 : vector<16x16x16xf32> to vector<256x16xf32>
    %cst_109 = arith.constant dense<0.000000e+00> : vector<256x16xf32>
    %115 = tpu.matmul %114, %113, %cst_109 {dimension_numbers = #tpu.dot_dimension_numbers<[1], [0], [0], [1], [0, 0, 1, 1], [], []>} : vector<256x16xf32>, vector<16x16xf32>, vector<256x16xf32> -> vector<256x16xf32>
    %116 = arith.addf %111, %115 : vector<256x16xf32>
    %c0_110 = arith.constant 0 : index
    %c9_111 = arith.constant 9 : index
    %c0_112 = arith.constant 0 : index
    %117 = vector.load %arg16[%c0_110, %c9_111, %c0_112] : memref<18x32x16xf32, #tpu.memory_space<vmem>>, vector<16x16x16xf32>
    %c32_113 = arith.constant 32 : index
    %c0_114 = arith.constant 0 : index
    %118 = vector.load %arg7[%c32_113, %c0_114] : memref<144x16xf32, #tpu.memory_space<vmem>>, vector<16x16xf32>
    %119 = vector.shape_cast %117 : vector<16x16x16xf32> to vector<256x16xf32>
    %cst_115 = arith.constant dense<0.000000e+00> : vector<256x16xf32>
    %120 = tpu.matmul %119, %118, %cst_115 {dimension_numbers = #tpu.dot_dimension_numbers<[1], [0], [0], [1], [0, 0, 1, 1], [], []>} : vector<256x16xf32>, vector<16x16xf32>, vector<256x16xf32> -> vector<256x16xf32>
    %121 = arith.addf %116, %120 : vector<256x16xf32>
    %c1_116 = arith.constant 1 : index
    %c7_117 = arith.constant 7 : index
    %c0_118 = arith.constant 0 : index
    %122 = vector.load %arg16[%c1_116, %c7_117, %c0_118] : memref<18x32x16xf32, #tpu.memory_space<vmem>>, vector<16x16x16xf32>
    %c48 = arith.constant 48 : index
    %c0_119 = arith.constant 0 : index
    %123 = vector.load %arg7[%c48, %c0_119] : memref<144x16xf32, #tpu.memory_space<vmem>>, vector<16x16xf32>
    %124 = vector.shape_cast %122 : vector<16x16x16xf32> to vector<256x16xf32>
    %cst_120 = arith.constant dense<0.000000e+00> : vector<256x16xf32>
    %125 = tpu.matmul %124, %123, %cst_120 {dimension_numbers = #tpu.dot_dimension_numbers<[1], [0], [0], [1], [0, 0, 1, 1], [], []>} : vector<256x16xf32>, vector<16x16xf32>, vector<256x16xf32> -> vector<256x16xf32>
    %126 = arith.addf %121, %125 : vector<256x16xf32>
    %c1_121 = arith.constant 1 : index
    %c8_122 = arith.constant 8 : index
    %c0_123 = arith.constant 0 : index
    %127 = vector.load %arg16[%c1_121, %c8_122, %c0_123] : memref<18x32x16xf32, #tpu.memory_space<vmem>>, vector<16x16x16xf32>
    %c64 = arith.constant 64 : index
    %c0_124 = arith.constant 0 : index
    %128 = vector.load %arg7[%c64, %c0_124] : memref<144x16xf32, #tpu.memory_space<vmem>>, vector<16x16xf32>
    %129 = vector.shape_cast %127 : vector<16x16x16xf32> to vector<256x16xf32>
    %cst_125 = arith.constant dense<0.000000e+00> : vector<256x16xf32>
    %130 = tpu.matmul %129, %128, %cst_125 {dimension_numbers = #tpu.dot_dimension_numbers<[1], [0], [0], [1], [0, 0, 1, 1], [], []>} : vector<256x16xf32>, vector<16x16xf32>, vector<256x16xf32> -> vector<256x16xf32>
    %131 = arith.addf %126, %130 : vector<256x16xf32>
    %c1_126 = arith.constant 1 : index
    %c9_127 = arith.constant 9 : index
    %c0_128 = arith.constant 0 : index
    %132 = vector.load %arg16[%c1_126, %c9_127, %c0_128] : memref<18x32x16xf32, #tpu.memory_space<vmem>>, vector<16x16x16xf32>
    %c80 = arith.constant 80 : index
    %c0_129 = arith.constant 0 : index
    %133 = vector.load %arg7[%c80, %c0_129] : memref<144x16xf32, #tpu.memory_space<vmem>>, vector<16x16xf32>
    %134 = vector.shape_cast %132 : vector<16x16x16xf32> to vector<256x16xf32>
    %cst_130 = arith.constant dense<0.000000e+00> : vector<256x16xf32>
    %135 = tpu.matmul %134, %133, %cst_130 {dimension_numbers = #tpu.dot_dimension_numbers<[1], [0], [0], [1], [0, 0, 1, 1], [], []>} : vector<256x16xf32>, vector<16x16xf32>, vector<256x16xf32> -> vector<256x16xf32>
    %136 = arith.addf %131, %135 : vector<256x16xf32>
    %c2_131 = arith.constant 2 : index
    %c7_132 = arith.constant 7 : index
    %c0_133 = arith.constant 0 : index
    %137 = vector.load %arg16[%c2_131, %c7_132, %c0_133] : memref<18x32x16xf32, #tpu.memory_space<vmem>>, vector<16x16x16xf32>
    %c96 = arith.constant 96 : index
    %c0_134 = arith.constant 0 : index
    %138 = vector.load %arg7[%c96, %c0_134] : memref<144x16xf32, #tpu.memory_space<vmem>>, vector<16x16xf32>
    %139 = vector.shape_cast %137 : vector<16x16x16xf32> to vector<256x16xf32>
    %cst_135 = arith.constant dense<0.000000e+00> : vector<256x16xf32>
    %140 = tpu.matmul %139, %138, %cst_135 {dimension_numbers = #tpu.dot_dimension_numbers<[1], [0], [0], [1], [0, 0, 1, 1], [], []>} : vector<256x16xf32>, vector<16x16xf32>, vector<256x16xf32> -> vector<256x16xf32>
    %141 = arith.addf %136, %140 : vector<256x16xf32>
    %c2_136 = arith.constant 2 : index
    %c8_137 = arith.constant 8 : index
    %c0_138 = arith.constant 0 : index
    %142 = vector.load %arg16[%c2_136, %c8_137, %c0_138] : memref<18x32x16xf32, #tpu.memory_space<vmem>>, vector<16x16x16xf32>
    %c112 = arith.constant 112 : index
    %c0_139 = arith.constant 0 : index
    %143 = vector.load %arg7[%c112, %c0_139] : memref<144x16xf32, #tpu.memory_space<vmem>>, vector<16x16xf32>
    %144 = vector.shape_cast %142 : vector<16x16x16xf32> to vector<256x16xf32>
    %cst_140 = arith.constant dense<0.000000e+00> : vector<256x16xf32>
    %145 = tpu.matmul %144, %143, %cst_140 {dimension_numbers = #tpu.dot_dimension_numbers<[1], [0], [0], [1], [0, 0, 1, 1], [], []>} : vector<256x16xf32>, vector<16x16xf32>, vector<256x16xf32> -> vector<256x16xf32>
    %146 = arith.addf %141, %145 : vector<256x16xf32>
    %c2_141 = arith.constant 2 : index
    %c9_142 = arith.constant 9 : index
    %c0_143 = arith.constant 0 : index
    %147 = vector.load %arg16[%c2_141, %c9_142, %c0_143] : memref<18x32x16xf32, #tpu.memory_space<vmem>>, vector<16x16x16xf32>
    %c128 = arith.constant 128 : index
    %c0_144 = arith.constant 0 : index
    %148 = vector.load %arg7[%c128, %c0_144] : memref<144x16xf32, #tpu.memory_space<vmem>>, vector<16x16xf32>
    %149 = vector.shape_cast %147 : vector<16x16x16xf32> to vector<256x16xf32>
    %cst_145 = arith.constant dense<0.000000e+00> : vector<256x16xf32>
    %150 = tpu.matmul %149, %148, %cst_145 {dimension_numbers = #tpu.dot_dimension_numbers<[1], [0], [0], [1], [0, 0, 1, 1], [], []>} : vector<256x16xf32>, vector<16x16xf32>, vector<256x16xf32> -> vector<256x16xf32>
    %151 = arith.addf %146, %150 : vector<256x16xf32>
    %c0_146 = arith.constant 0 : index
    %c0_147 = arith.constant 0 : index
    %152 = vector.load %arg9[%c0_146, %c0_147] : memref<1x16xf32, #tpu.memory_space<vmem>>, vector<1x16xf32>
    %c0_148 = arith.constant 0 : index
    %c0_149 = arith.constant 0 : index
    %153 = vector.load %arg10[%c0_148, %c0_149] : memref<1x16xf32, #tpu.memory_space<vmem>>, vector<1x16xf32>
    %c0_150 = arith.constant 0 : index
    %c0_151 = arith.constant 0 : index
    %154 = vector.load %arg13[%c0_150, %c0_151] : memref<16x16xf32, #tpu.memory_space<vmem>>, vector<16x16xf32>
    %cst_152 = arith.constant dense<0.000000e+00> : vector<16xf32>
    %155 = vector.multi_reduction <add>, %151, %cst_152 [0] : vector<256x16xf32> to vector<16xf32>
    %156 = vector.shape_cast %155 : vector<16xf32> to vector<1x16xf32>
    %157 = arith.mulf %151, %151 : vector<256x16xf32>
    %cst_153 = arith.constant dense<0.000000e+00> : vector<16xf32>
    %158 = vector.multi_reduction <add>, %157, %cst_153 [0] : vector<256x16xf32> to vector<16xf32>
    %159 = vector.shape_cast %158 : vector<16xf32> to vector<1x16xf32>
    %cst_154 = arith.constant dense<0.000000e+00> : vector<1x16xf32>
    %160 = tpu.matmul %156, %154, %cst_154 {dimension_numbers = #tpu.dot_dimension_numbers<[1], [0], [0], [1], [0, 0, 1, 1], [], []>} : vector<1x16xf32>, vector<16x16xf32>, vector<1x16xf32> -> vector<1x16xf32>
    %cst_155 = arith.constant dense<0.000000e+00> : vector<1x16xf32>
    %161 = tpu.matmul %159, %154, %cst_155 {dimension_numbers = #tpu.dot_dimension_numbers<[1], [0], [0], [1], [0, 0, 1, 1], [], []>} : vector<1x16xf32>, vector<16x16xf32>, vector<1x16xf32> -> vector<1x16xf32>
    %162 = arith.mulf %160, %160 : vector<1x16xf32>
    %163 = arith.subf %161, %162 : vector<1x16xf32>
    %cst_156 = arith.constant 9.99999974E-6 : f32
    %164 = vector.broadcast %cst_156 : f32 to vector<1x16xf32>
    %165 = arith.addf %163, %164 : vector<1x16xf32>
    %166 = math.rsqrt %165 : vector<1x16xf32>
    %167 = arith.mulf %166, %152 : vector<1x16xf32>
    %168 = arith.mulf %160, %167 : vector<1x16xf32>
    %169 = arith.subf %153, %168 : vector<1x16xf32>
    %170 = vector.broadcast %167 : vector<1x16xf32> to vector<256x16xf32>
    %171 = arith.mulf %151, %170 : vector<256x16xf32>
    %172 = vector.broadcast %169 : vector<1x16xf32> to vector<256x16xf32>
    %173 = arith.addf %171, %172 : vector<256x16xf32>
    %174 = arith.negf %173 : vector<256x16xf32>
    %175 = math.exp %174 : vector<256x16xf32>
    %cst_157 = arith.constant 1.000000e+00 : f32
    %176 = vector.broadcast %cst_157 : f32 to vector<256x16xf32>
    %177 = arith.addf %176, %175 : vector<256x16xf32>
    %178 = arith.divf %176, %177 : vector<256x16xf32>
    %179 = arith.mulf %173, %178 : vector<256x16xf32>
    %180 = vector.shape_cast %5 : vector<16x16x4xf32> to vector<256x4xf32>
    %c0_158 = arith.constant 0 : index
    %c0_159 = arith.constant 0 : index
    %181 = vector.load %arg11[%c0_158, %c0_159] : memref<4x16xf32, #tpu.memory_space<vmem>>, vector<4x16xf32>
    %cst_160 = arith.constant dense<0.000000e+00> : vector<256x16xf32>
    %182 = tpu.matmul %180, %181, %cst_160 {dimension_numbers = #tpu.dot_dimension_numbers<[1], [0], [0], [1], [0, 0, 1, 1], [], []>} : vector<256x4xf32>, vector<4x16xf32>, vector<256x16xf32> -> vector<256x16xf32>
    %183 = arith.addf %179, %182 : vector<256x16xf32>
    %c0_161 = arith.constant 0 : index
    %c0_162 = arith.constant 0 : index
    %184 = vector.load %arg12[%c0_161, %c0_162] : memref<1x16xf32, #tpu.memory_space<vmem>>, vector<1x16xf32>
    %185 = vector.broadcast %184 : vector<1x16xf32> to vector<256x16xf32>
    %186 = arith.addf %183, %185 : vector<256x16xf32>
    %c0_163 = arith.constant 0 : index
    %c0_164 = arith.constant 0 : index
    %c0_165 = arith.constant 0 : index
    %187 = vector.load %arg14[%c0_163, %c0_164, %c0_165] : memref<1x256x16xf32, #tpu.memory_space<vmem>>, vector<1x256x16xf32>
    %188 = vector.shape_cast %187 : vector<1x256x16xf32> to vector<256x16xf32>
    %189 = vector.shape_cast %186 : vector<256x16xf32> to vector<1x256x16xf32>
    tpu.vector_store %arg14[%c0_163, %c0_164, %c0_165], %189 {strides = array<i32>} : memref<1x256x16xf32, #tpu.memory_space<vmem>>, vector<1x256x16xf32>,
    return
  }
  func.func @transform_0(%arg0: i32) -> (i32, i32, i32, i32) {
    %c0_i32 = arith.constant 0 : i32
    %c0_i32_0 = arith.constant 0 : i32
    %c0_i32_1 = arith.constant 0 : i32
    %c0_i32_2 = arith.constant 0 : i32
    return %arg0, %c0_i32, %c0_i32_0, %c0_i32_1 : i32, i32, i32, i32
  }
  func.func @transform_1(%arg0: i32) -> (i32, i32, i32) {
    %c0_i32 = arith.constant 0 : i32
    %c0_i32_0 = arith.constant 0 : i32
    %c0_i32_1 = arith.constant 0 : i32
    return %arg0, %c0_i32, %c0_i32_0 : i32, i32, i32
  }
  func.func @transform_2(%arg0: i32) -> (i32, i32) {
    %c0_i32 = arith.constant 0 : i32
    %c0_i32_0 = arith.constant 0 : i32
    %c0_i32_1 = arith.constant 0 : i32
    return %c0_i32, %c0_i32_0 : i32, i32
  }
  func.func @transform_3(%arg0: i32) -> (i32, i32) {
    %c0_i32 = arith.constant 0 : i32
    %c0_i32_0 = arith.constant 0 : i32
    %c0_i32_1 = arith.constant 0 : i32
    return %c0_i32, %c0_i32_0 : i32, i32
  }
  func.func @transform_4(%arg0: i32) -> (i32, i32) {
    %c0_i32 = arith.constant 0 : i32
    %c0_i32_0 = arith.constant 0 : i32
    %c0_i32_1 = arith.constant 0 : i32
    return %c0_i32, %c0_i32_0 : i32, i32
  }
  func.func @transform_5(%arg0: i32) -> (i32, i32) {
    %c0_i32 = arith.constant 0 : i32
    %c0_i32_0 = arith.constant 0 : i32
    %c0_i32_1 = arith.constant 0 : i32
    return %c0_i32, %c0_i32_0 : i32, i32
  }
  func.func @transform_6(%arg0: i32) -> (i32, i32) {
    %c0_i32 = arith.constant 0 : i32
    %c0_i32_0 = arith.constant 0 : i32
    %c0_i32_1 = arith.constant 0 : i32
    return %c0_i32, %c0_i32_0 : i32, i32
  }
  func.func @transform_7(%arg0: i32) -> (i32, i32) {
    %c0_i32 = arith.constant 0 : i32
    %c0_i32_0 = arith.constant 0 : i32
    %c0_i32_1 = arith.constant 0 : i32
    return %c0_i32, %c0_i32_0 : i32, i32
  }
  func.func @transform_8(%arg0: i32) -> (i32, i32) {
    %c0_i32 = arith.constant 0 : i32
    %c0_i32_0 = arith.constant 0 : i32
    %c0_i32_1 = arith.constant 0 : i32
    return %c0_i32, %c0_i32_0 : i32, i32
  }
  func.func @transform_9(%arg0: i32) -> (i32, i32) {
    %c0_i32 = arith.constant 0 : i32
    %c0_i32_0 = arith.constant 0 : i32
    %c0_i32_1 = arith.constant 0 : i32
    return %c0_i32, %c0_i32_0 : i32, i32
  }
  func.func @transform_10(%arg0: i32) -> (i32, i32) {
    %c0_i32 = arith.constant 0 : i32
    %c0_i32_0 = arith.constant 0 : i32
    %c0_i32_1 = arith.constant 0 : i32
    return %c0_i32, %c0_i32_0 : i32, i32
  }
  func.func @transform_11(%arg0: i32) -> (i32, i32) {
    %c0_i32 = arith.constant 0 : i32
    %c0_i32_0 = arith.constant 0 : i32
    %c0_i32_1 = arith.constant 0 : i32
    return %c0_i32, %c0_i32_0 : i32, i32
  }
  func.func @transform_12(%arg0: i32) -> (i32, i32) {
    %c0_i32 = arith.constant 0 : i32
    %c0_i32_0 = arith.constant 0 : i32
    %c0_i32_1 = arith.constant 0 : i32
    return %c0_i32, %c0_i32_0 : i32, i32
  }
  func.func @transform_13(%arg0: i32) -> (i32, i32, i32) {
    %c0_i32 = arith.constant 0 : i32
    %c0_i32_0 = arith.constant 0 : i32
    %c0_i32_1 = arith.constant 0 : i32
    return %arg0, %c0_i32, %c0_i32_0 : i32, i32, i32
  }
}

</mosaic_0001>

<llo_original>
// kernel: tpu_custom_call.1
$region0: #{tpu_custom_call.1}
  #allocation0 [shape = 'u32[]', space=smem, size = 0x4, offset = 0x4, fixed_abs, tag = 'smem constant byte address 0x4 - core index']
  #allocation1 [shape = 'u32[72,128]{1,0:T(1,128)}', space=vmem, size = 0x9000, scoped, tag = 'internal scratch']
  #allocation2 [shape = 'f32[18,32,4]{2,1,0:T(8,128)}', space=vmem, size = 0x48000, scoped, tag = 'scratch operand']
  #allocation3 [shape = 'f32[18,32,16]{2,1,0:T(8,128)}', space=vmem, size = 0x48000, scoped, tag = 'scratch operand']
  %s0 = inlined_call_operand.vmem [shape: f32[2,16,16,4], index: 0, kind: input, shape index: {}]
  %s1 = inlined_call_operand.vmem [shape: f32[2,1,32], index: 1, kind: input, shape index: {}]
  %s2 = inlined_call_operand.vmem [shape: f32[36,16], index: 2, kind: input, shape index: {}]
  %s3 = inlined_call_operand.vmem [shape: f32[1,16], index: 3, kind: input, shape index: {}]
  %s4 = inlined_call_operand.vmem [shape: f32[1,16], index: 4, kind: input, shape index: {}]
  %s5 = inlined_call_operand.vmem [shape: f32[1,16], index: 5, kind: input, shape index: {}]
  %s6 = inlined_call_operand.vmem [shape: f32[144,16], index: 6, kind: input, shape index: {}]
  %s7 = inlined_call_operand.vmem [shape: f32[1,16], index: 7, kind: input, shape index: {}]
  %s8 = inlined_call_operand.vmem [shape: f32[1,16], index: 8, kind: input, shape index: {}]
  %s9 = inlined_call_operand.vmem [shape: f32[1,16], index: 9, kind: input, shape index: {}]
  %s10 = inlined_call_operand.vmem [shape: f32[4,16], index: 10, kind: input, shape index: {}]
  %s11 = inlined_call_operand.vmem [shape: f32[1,16], index: 11, kind: input, shape index: {}]
  %s12 = inlined_call_operand.vmem [shape: f32[16,16], index: 12, kind: input, shape index: {}]
  %s13 = inlined_call_operand.vmem [shape: f32[2,256,16], index: 13, kind: output, shape index: {}]
  %s14 = sld [smem:[#allocation0]]
  $region85: #{tpu_custom_call.1} parent=0
    _
  %s16 = ssub.s32 1, %s14
  %s17 = scalar_select 0, %s16, %s14
  loop: start=0, step=1, limit=4
  $region2: #{tpu_custom_call.1} parent=0 // loop_pre_header
    _
  $region3: #{tpu_custom_call.1} parent=0 // loop_header
    %s19 = sphi 0, %s23
    %p20 = scmp.ge.s32.totalorder %s19, 4
    %s29 = sphi 0, %s31
    %s32 = sphi 0, %s29
    %s33 = sphi 0, %s32
    %s49 = sphi 0, %s33
    %s55 = sphi 0, %s57
    %s58 = sphi 0, %s55
    %s59 = sphi 0, %s58
    %s75 = sphi 0, %s59
    %s79 = sphi 0, %s79
    %s81 = sphi 0, %s79
    %s82 = sphi 0, %s81
    %s96 = sphi 0, %s82
    %s100 = sphi 0, %s100
    %s102 = sphi 0, %s100
    %s103 = sphi 0, %s102
    %s117 = sphi 0, %s103
    %s121 = sphi 0, %s121
    %s123 = sphi 0, %s121
    %s124 = sphi 0, %s123
    %s138 = sphi 0, %s124
    %s142 = sphi 0, %s142
    %s144 = sphi 0, %s142
    %s145 = sphi 0, %s144
    %s159 = sphi 0, %s145
    %s163 = sphi 0, %s163
    %s165 = sphi 0, %s163
    %s166 = sphi 0, %s165
    %s180 = sphi 0, %s166
    %s184 = sphi 0, %s184
    %s186 = sphi 0, %s184
    %s187 = sphi 0, %s186
    %s201 = sphi 0, %s187
    %s205 = sphi 0, %s205
    %s207 = sphi 0, %s205
    %s208 = sphi 0, %s207
    %s222 = sphi 0, %s208
    %s226 = sphi 0, %s226
    %s228 = sphi 0, %s226
    %s229 = sphi 0, %s228
    %s243 = sphi 0, %s229
    %s247 = sphi 0, %s247
    %s249 = sphi 0, %s247
    %s250 = sphi 0, %s249
    %s264 = sphi 0, %s250
    %s268 = sphi 0, %s268
    %s270 = sphi 0, %s268
    %s271 = sphi 0, %s270
    %s285 = sphi 0, %s271
    %s289 = sphi 0, %s289
    %s291 = sphi 0, %s289
    %s292 = sphi 0, %s291
    %s306 = sphi 0, %s292
    %s312 = sphi 0, %s314
    %s315 = sphi 0, %s312
    %s316 = sphi 0, %s315
    %s332 = sphi 0, %s316
  $region4: #{tpu_custom_call.1} parent=0 // loop_header_branch
    %22 = sbr.rel (%p20) target = $region8
  $region5: #{tpu_custom_call.1} parent=0 // loop_body
    %s24 = ssub.s32 %s19, 1
    %s25 = ssub.s32 %s19, 2
    %s26 = sadd.s32 %s19, 1
    %s27 = ssub.s32 %s19, %s26
    %p28 = scmp.eq.s32.totalorder %s27, 0
    %s30 = sadd.s32 %s29, 1
    %s31 = scalar_select %p28, %s29, %s30
    %p34 = pneg %p28
    %p35 = scmp.eq.s32.totalorder %s19, 1
    %p36 = por %p34, %p35
    %p37 = scmp.ne.s32.totalorder %s29, %s32
    %p38 = scmp.eq.s32.totalorder %s19, 0
    %p39 = por %p37, %p38
    %p40 = scmp.ne.s32.totalorder %s29, %s32
    %p41 = scmp.eq.s32.totalorder %s24, 1
    %p42 = por %p40, %p41
    %p43 = scmp.ne.s32.totalorder %s32, %s33
    %p44 = scmp.eq.s32.totalorder %s24, 0
    %p45 = por %p43, %p44
    %p46 = scmp.ne.s32.totalorder %s32, %s33
    %p47 = scmp.eq.s32.totalorder %s25, 1
    %p48 = por %p46, %p47
    %p50 = scmp.ne.s32.totalorder %s33, %s49
    %p51 = scmp.eq.s32.totalorder %s25, 0
    %p52 = por %p50, %p51
    %s53 = ssub.s32 %s19, %s26
    %p54 = scmp.eq.s32.totalorder %s53, 0
    %s56 = sadd.s32 %s55, 1
    %s57 = scalar_select %p54, %s55, %s56
    %p60 = pneg %p54
    %p61 = scmp.eq.s32.totalorder %s19, 1
    %p62 = por %p60, %p61
    %p63 = scmp.ne.s32.totalorder %s55, %s58
    %p64 = scmp.eq.s32.totalorder %s19, 0
    %p65 = por %p63, %p64
    %p66 = scmp.ne.s32.totalorder %s55, %s58
    %p67 = scmp.eq.s32.totalorder %s24, 1
    %p68 = por %p66, %p67
    %p69 = scmp.ne.s32.totalorder %s58, %s59
    %p70 = scmp.eq.s32.totalorder %s24, 0
    %p71 = por %p69, %p70
    %p72 = scmp.ne.s32.totalorder %s58, %s59
    %p73 = scmp.eq.s32.totalorder %s25, 1
    %p74 = por %p72, %p73
    %p76 = scmp.ne.s32.totalorder %s59, %s75
    %p77 = scmp.eq.s32.totalorder %s25, 0
    %p78 = por %p76, %p77
    %s80 = sadd.s32 %s79, 1
    %p83 = scmp.eq.s32.totalorder %s19, 1
    %p84 = scmp.ne.s32.totalorder %s79, %s81
    %p85 = scmp.eq.s32.totalorder %s19, 0
    %p86 = por %p84, %p85
    %p87 = scmp.ne.s32.totalorder %s79, %s81
    %p88 = scmp.eq.s32.totalorder %s24, 1
    %p89 = por %p87, %p88
    %p90 = scmp.ne.s32.totalorder %s81, %s82
    %p91 = scmp.eq.s32.totalorder %s24, 0
    %p92 = por %p90, %p91
    %p93 = scmp.ne.s32.totalorder %s81, %s82
    %p94 = scmp.eq.s32.totalorder %s25, 1
    %p95 = por %p93, %p94
    %p97 = scmp.ne.s32.totalorder %s82, %s96
    %p98 = scmp.eq.s32.totalorder %s25, 0
    %p99 = por %p97, %p98
    %s101 = sadd.s32 %s100, 1
    %p104 = scmp.eq.s32.totalorder %s19, 1
    %p105 = scmp.ne.s32.totalorder %s100, %s102
    %p106 = scmp.eq.s32.totalorder %s19, 0
    %p107 = por %p105, %p106
    %p108 = scmp.ne.s32.totalorder %s100, %s102
    %p109 = scmp.eq.s32.totalorder %s24, 1
    %p110 = por %p108, %p109
    %p111 = scmp.ne.s32.totalorder %s102, %s103
    %p112 = scmp.eq.s32.totalorder %s24, 0
    %p113 = por %p111, %p112
    %p114 = scmp.ne.s32.totalorder %s102, %s103
    %p115 = scmp.eq.s32.totalorder %s25, 1
    %p116 = por %p114, %p115
    %p118 = scmp.ne.s32.totalorder %s103, %s117
    %p119 = scmp.eq.s32.totalorder %s25, 0
    %p120 = por %p118, %p119
    %s122 = sadd.s32 %s121, 1
    %p125 = scmp.eq.s32.totalorder %s19, 1
    %p126 = scmp.ne.s32.totalorder %s121, %s123
    %p127 = scmp.eq.s32.totalorder %s19, 0
    %p128 = por %p126, %p127
    %p129 = scmp.ne.s32.totalorder %s121, %s123
    %p130 = scmp.eq.s32.totalorder %s24, 1
    %p131 = por %p129, %p130
    %p132 = scmp.ne.s32.totalorder %s123, %s124
    %p133 = scmp.eq.s32.totalorder %s24, 0
    %p134 = por %p132, %p133
    %p135 = scmp.ne.s32.totalorder %s123, %s124
    %p136 = scmp.eq.s32.totalorder %s25, 1
    %p137 = por %p135, %p136
    %p139 = scmp.ne.s32.totalorder %s124, %s138
    %p140 = scmp.eq.s32.totalorder %s25, 0
    %p141 = por %p139, %p140
    %s143 = sadd.s32 %s142, 1
    %p146 = scmp.eq.s32.totalorder %s19, 1
    %p147 = scmp.ne.s32.totalorder %s142, %s144
    %p148 = scmp.eq.s32.totalorder %s19, 0
    %p149 = por %p147, %p148
    %p150 = scmp.ne.s32.totalorder %s142, %s144
    %p151 = scmp.eq.s32.totalorder %s24, 1
    %p152 = por %p150, %p151
    %p153 = scmp.ne.s32.totalorder %s144, %s145
    %p154 = scmp.eq.s32.totalorder %s24, 0
    %p155 = por %p153, %p154
    %p156 = scmp.ne.s32.totalorder %s144, %s145
    %p157 = scmp.eq.s32.totalorder %s25, 1
    %p158 = por %p156, %p157
    %p160 = scmp.ne.s32.totalorder %s145, %s159
    %p161 = scmp.eq.s32.totalorder %s25, 0
    %p162 = por %p160, %p161
    %s164 = sadd.s32 %s163, 1
    %p167 = scmp.eq.s32.totalorder %s19, 1
    %p168 = scmp.ne.s32.totalorder %s163, %s165
    %p169 = scmp.eq.s32.totalorder %s19, 0
    %p170 = por %p168, %p169
    %p171 = scmp.ne.s32.totalorder %s163, %s165
    %p172 = scmp.eq.s32.totalorder %s24, 1
    %p173 = por %p171, %p172
    %p174 = scmp.ne.s32.totalorder %s165, %s166
    %p175 = scmp.eq.s32.totalorder %s24, 0
    %p176 = por %p174, %p175
    %p177 = scmp.ne.s32.totalorder %s165, %s166
    %p178 = scmp.eq.s32.totalorder %s25, 1
    %p179 = por %p177, %p178
    %p181 = scmp.ne.s32.totalorder %s166, %s180
    %p182 = scmp.eq.s32.totalorder %s25, 0
    %p183 = por %p181, %p182
    %s185 = sadd.s32 %s184, 1
    %p188 = scmp.eq.s32.totalorder %s19, 1
    %p189 = scmp.ne.s32.totalorder %s184, %s186
    %p190 = scmp.eq.s32.totalorder %s19, 0
    %p191 = por %p189, %p190
    %p192 = scmp.ne.s32.totalorder %s184, %s186
    %p193 = scmp.eq.s32.totalorder %s24, 1
    %p194 = por %p192, %p193
    %p195 = scmp.ne.s32.totalorder %s186, %s187
    %p196 = scmp.eq.s32.totalorder %s24, 0
    %p197 = por %p195, %p196
    %p198 = scmp.ne.s32.totalorder %s186, %s187
    %p199 = scmp.eq.s32.totalorder %s25, 1
    %p200 = por %p198, %p199
    %p202 = scmp.ne.s32.totalorder %s187, %s201
    %p203 = scmp.eq.s32.totalorder %s25, 0
    %p204 = por %p202, %p203
    %s206 = sadd.s32 %s205, 1
    %p209 = scmp.eq.s32.totalorder %s19, 1
    %p210 = scmp.ne.s32.totalorder %s205, %s207
    %p211 = scmp.eq.s32.totalorder %s19, 0
    %p212 = por %p210, %p211
    %p213 = scmp.ne.s32.totalorder %s205, %s207
    %p214 = scmp.eq.s32.totalorder %s24, 1
    %p215 = por %p213, %p214
    %p216 = scmp.ne.s32.totalorder %s207, %s208
    %p217 = scmp.eq.s32.totalorder %s24, 0
    %p218 = por %p216, %p217
    %p219 = scmp.ne.s32.totalorder %s207, %s208
    %p220 = scmp.eq.s32.totalorder %s25, 1
    %p221 = por %p219, %p220
    %p223 = scmp.ne.s32.totalorder %s208, %s222
    %p224 = scmp.eq.s32.totalorder %s25, 0
    %p225 = por %p223, %p224
    %s227 = sadd.s32 %s226, 1
    %p230 = scmp.eq.s32.totalorder %s19, 1
    %p231 = scmp.ne.s32.totalorder %s226, %s228
    %p232 = scmp.eq.s32.totalorder %s19, 0
    %p233 = por %p231, %p232
    %p234 = scmp.ne.s32.totalorder %s226, %s228
    %p235 = scmp.eq.s32.totalorder %s24, 1
    %p236 = por %p234, %p235
    %p237 = scmp.ne.s32.totalorder %s228, %s229
    %p238 = scmp.eq.s32.totalorder %s24, 0
    %p239 = por %p237, %p238
    %p240 = scmp.ne.s32.totalorder %s228, %s229
    %p241 = scmp.eq.s32.totalorder %s25, 1
    %p242 = por %p240, %p241
    %p244 = scmp.ne.s32.totalorder %s229, %s243
    %p245 = scmp.eq.s32.totalorder %s25, 0
    %p246 = por %p244, %p245
    %s248 = sadd.s32 %s247, 1
    %p251 = scmp.eq.s32.totalorder %s19, 1
    %p252 = scmp.ne.s32.totalorder %s247, %s249
    %p253 = scmp.eq.s32.totalorder %s19, 0
    %p254 = por %p252, %p253
    %p255 = scmp.ne.s32.totalorder %s247, %s249
    %p256 = scmp.eq.s32.totalorder %s24, 1
    %p257 = por %p255, %p256
    %p258 = scmp.ne.s32.totalorder %s249, %s250
    %p259 = scmp.eq.s32.totalorder %s24, 0
    %p260 = por %p258, %p259
    %p261 = scmp.ne.s32.totalorder %s249, %s250
    %p262 = scmp.eq.s32.totalorder %s25, 1
    %p263 = por %p261, %p262
    %p265 = scmp.ne.s32.totalorder %s250, %s264
    %p266 = scmp.eq.s32.totalorder %s25, 0
    %p267 = por %p265, %p266
    %s269 = sadd.s32 %s268, 1
    %p272 = scmp.eq.s32.totalorder %s19, 1
    %p273 = scmp.ne.s32.totalorder %s268, %s270
    %p274 = scmp.eq.s32.totalorder %s19, 0
    %p275 = por %p273, %p274
    %p276 = scmp.ne.s32.totalorder %s268, %s270
    %p277 = scmp.eq.s32.totalorder %s24, 1
    %p278 = por %p276, %p277
    %p279 = scmp.ne.s32.totalorder %s270, %s271
    %p280 = scmp.eq.s32.totalorder %s24, 0
    %p281 = por %p279, %p280
    %p282 = scmp.ne.s32.totalorder %s270, %s271
    %p283 = scmp.eq.s32.totalorder %s25, 1
    %p284 = por %p282, %p283
    %p286 = scmp.ne.s32.totalorder %s271, %s285
    %p287 = scmp.eq.s32.totalorder %s25, 0
    %p288 = por %p286, %p287
    %s290 = sadd.s32 %s289, 1
    %p293 = scmp.eq.s32.totalorder %s19, 1
    %p294 = scmp.ne.s32.totalorder %s289, %s291
    %p295 = scmp.eq.s32.totalorder %s19, 0
    %p296 = por %p294, %p295
    %p297 = scmp.ne.s32.totalorder %s289, %s291
    %p298 = scmp.eq.s32.totalorder %s24, 1
    %p299 = por %p297, %p298
    %p300 = scmp.ne.s32.totalorder %s291, %s292
    %p301 = scmp.eq.s32.totalorder %s24, 0
    %p302 = por %p300, %p301
    %p303 = scmp.ne.s32.totalorder %s291, %s292
    %p304 = scmp.eq.s32.totalorder %s25, 1
    %p305 = por %p303, %p304
    %p307 = scmp.ne.s32.totalorder %s292, %s306
    %p308 = scmp.eq.s32.totalorder %s25, 0
    %p309 = por %p307, %p308
    %s310 = ssub.s32 %s19, %s26
    %p311 = scmp.eq.s32.totalorder %s310, 0
    %s313 = sadd.s32 %s312, 1
    %s314 = scalar_select %p311, %s312, %s313
    %p317 = pneg %p311
    %p318 = scmp.eq.s32.totalorder %s19, 1
    %p319 = por %p317, %p318
    %p320 = scmp.ne.s32.totalorder %s312, %s315
    %p321 = scmp.eq.s32.totalorder %s19, 0
    %p322 = por %p320, %p321
    %p323 = scmp.ne.s32.totalorder %s312, %s315
    %p324 = scmp.eq.s32.totalorder %s24, 1
    %p325 = por %p323, %p324
    %p326 = scmp.ne.s32.totalorder %s315, %s316
    %p327 = scmp.eq.s32.totalorder %s24, 0
    %p328 = por %p326, %p327
    %p329 = scmp.ne.s32.totalorder %s315, %s316
    %p330 = scmp.eq.s32.totalorder %s25, 1
    %p331 = por %p329, %p330
    %p333 = scmp.ne.s32.totalorder %s316, %s332
    %p334 = scmp.eq.s32.totalorder %s25, 0
    %p335 = por %p333, %p334
    %p336 = scmp.le.s32.totalorder 1, %s19
    %p337 = scmp.lt.s32.totalorder %s19, 3
    %p338 = pnand %p336, %p337
    %p339 = pneg %p338
    // Predicated region
    $region9: #{tpu_custom_call.1} parent=5 // pred_check
      _
    $region10: #{tpu_custom_call.1} parent=5 // pred_check_branch
      %341 = sbr.rel (%p338) target = $region12
    $region11: #{tpu_custom_call.1} parent=5 // pred_region
      %s342 = ssub.s32 %s19, 1
      // Predicated region
      $region13: #{tpu_custom_call.1} parent=11 // pred_check
        %p343 = pneg %p92
      $region14: #{tpu_custom_call.1} parent=11 // pred_check_branch
        %345 = sbr.rel (%p343) target = $region16
      $region15: #{tpu_custom_call.1} parent=11 // pred_region
        _
      $region16: #{tpu_custom_call.1} parent=11 // pred_fallthru
        _
      // Predicated region
      $region17: #{tpu_custom_call.1} parent=11 // pred_check
        %p346 = pneg %p113
      $region18: #{tpu_custom_call.1} parent=11 // pred_check_branch
        %348 = sbr.rel (%p346) target = $region20
      $region19: #{tpu_custom_call.1} parent=11 // pred_region
        _
      $region20: #{tpu_custom_call.1} parent=11 // pred_fallthru
        _
      // Predicated region
      $region21: #{tpu_custom_call.1} parent=11 // pred_check
        %p349 = pneg %p134
      $region22: #{tpu_custom_call.1} parent=11 // pred_check_branch
        %351 = sbr.rel (%p349) target = $region24
      $region23: #{tpu_custom_call.1} parent=11 // pred_region
        _
      $region24: #{tpu_custom_call.1} parent=11 // pred_fallthru
        _
      // Predicated region
      $region25: #{tpu_custom_call.1} parent=11 // pred_check
        %p352 = pneg %p155
      $region26: #{tpu_custom_call.1} parent=11 // pred_check_branch
        %354 = sbr.rel (%p352) target = $region28
      $region27: #{tpu_custom_call.1} parent=11 // pred_region
        _
      $region28: #{tpu_custom_call.1} parent=11 // pred_fallthru
        _
      // Predicated region
      $region29: #{tpu_custom_call.1} parent=11 // pred_check
        %p355 = pneg %p176
      $region30: #{tpu_custom_call.1} parent=11 // pred_check_branch
        %357 = sbr.rel (%p355) target = $region32
      $region31: #{tpu_custom_call.1} parent=11 // pred_region
        _
      $region32: #{tpu_custom_call.1} parent=11 // pred_fallthru
        _
      // Predicated region
      $region33: #{tpu_custom_call.1} parent=11 // pred_check
        %p358 = pneg %p197
      $region34: #{tpu_custom_call.1} parent=11 // pred_check_branch
        %360 = sbr.rel (%p358) target = $region36
      $region35: #{tpu_custom_call.1} parent=11 // pred_region
        _
      $region36: #{tpu_custom_call.1} parent=11 // pred_fallthru
        _
      // Predicated region
      $region37: #{tpu_custom_call.1} parent=11 // pred_check
        %p361 = pneg %p218
      $region38: #{tpu_custom_call.1} parent=11 // pred_check_branch
        %363 = sbr.rel (%p361) target = $region40
      $region39: #{tpu_custom_call.1} parent=11 // pred_region
        _
      $region40: #{tpu_custom_call.1} parent=11 // pred_fallthru
        _
      // Predicated region
      $region41: #{tpu_custom_call.1} parent=11 // pred_check
        %p364 = pneg %p239
      $region42: #{tpu_custom_call.1} parent=11 // pred_check_branch
        %366 = sbr.rel (%p364) target = $region44
      $region43: #{tpu_custom_call.1} parent=11 // pred_region
        _
      $region44: #{tpu_custom_call.1} parent=11 // pred_fallthru
        _
      // Predicated region
      $region45: #{tpu_custom_call.1} parent=11 // pred_check
        %p367 = pneg %p260
      $region46: #{tpu_custom_call.1} parent=11 // pred_check_branch
        %369 = sbr.rel (%p367) target = $region48
      $region47: #{tpu_custom_call.1} parent=11 // pred_region
        _
      $region48: #{tpu_custom_call.1} parent=11 // pred_fallthru
        _
      // Predicated region
      $region49: #{tpu_custom_call.1} parent=11 // pred_check
        %p370 = pneg %p281
      $region50: #{tpu_custom_call.1} parent=11 // pred_check_branch
        %372 = sbr.rel (%p370) target = $region52
      $region51: #{tpu_custom_call.1} parent=11 // pred_region
        _
      $region52: #{tpu_custom_call.1} parent=11 // pred_fallthru
        _
      // Predicated region
      $region53: #{tpu_custom_call.1} parent=11 // pred_check
        %p373 = pneg %p302
      $region54: #{tpu_custom_call.1} parent=11 // pred_check_branch
        %375 = sbr.rel (%p373) target = $region56
      $region55: #{tpu_custom_call.1} parent=11 // pred_region
        _
      $region56: #{tpu_custom_call.1} parent=11 // pred_fallthru
        _
    $region12: #{tpu_custom_call.1} parent=5 // pred_fallthru
      _
    %p376 = scmp.lt.s32.totalorder %s19, 2
    // Predicated region
    $region57: #{tpu_custom_call.1} parent=5 // pred_check
      %p377 = pneg %p376
    $region58: #{tpu_custom_call.1} parent=5 // pred_check_branch
      %379 = sbr.rel (%p377) target = $region60
    $region59: #{tpu_custom_call.1} parent=5 // pred_region
      // Predicated region
      $region61: #{tpu_custom_call.1} parent=59 // pred_check
        %p380 = pneg %p39
      $region62: #{tpu_custom_call.1} parent=59 // pred_check_branch
        %382 = sbr.rel (%p380) target = $region64
      $region63: #{tpu_custom_call.1} parent=59 // pred_region
        %p383 = scmp.lt.s32.totalorder %s19, 1
        %s384 = scalar_select %p383, %s19, 1
        %s385 = smul.addr %s384, 32
        %s386 = smul.addr %s385, 8
        %s387 = scalar_lea.vmem %s0, %s386
      $region64: #{tpu_custom_call.1} parent=59 // pred_fallthru
        _
      // Predicated region
      $region65: #{tpu_custom_call.1} parent=59 // pred_check
        %p388 = pneg %p65
      $region66: #{tpu_custom_call.1} parent=59 // pred_check_branch
        %390 = sbr.rel (%p388) target = $region68
      $region67: #{tpu_custom_call.1} parent=59 // pred_region
        %p391 = scmp.lt.s32.totalorder %s19, 1
        %s392 = scalar_select %p391, %s19, 1
        %s393 = scalar_lea.vmem %s1, %s392
      $region68: #{tpu_custom_call.1} parent=59 // pred_fallthru
        _
    $region60: #{tpu_custom_call.1} parent=5 // pred_fallthru
      _
    %p394 = scmp.le.s32.totalorder 1, %s19
    %p395 = scmp.lt.s32.totalorder %s19, 3
    %p396 = pnand %p394, %p395
    %p397 = pneg %p396
    // Predicated region
    $region69: #{tpu_custom_call.1} parent=5 // pred_check
      _
    $region70: #{tpu_custom_call.1} parent=5 // pred_check_branch
      %399 = sbr.rel (%p396) target = $region72
    $region71: #{tpu_custom_call.1} parent=5 // pred_region
      %s400 = ssub.s32 %s19, 1
      %p401 = scmp.lt.s32.totalorder %s24, 1
      %s402 = scalar_select %p401, %s24, 1
      %s403 = smul.addr %s402, 32
      %s404 = smul.addr %s403, 8
      %s405 = scalar_lea.vmem %s0, %s404
      %p406 = pneg %p45
      %p407 = pneg %p42
      %p408 = scmp.lt.s32.totalorder %s24, 1
      %s409 = scalar_select %p408, %s24, 1
      %s410 = scalar_lea.vmem %s1, %s409
      %p411 = pneg %p71
      %p412 = pneg %p68
      %p413 = pneg %p92
      %p414 = pneg %p89
      %p415 = pneg %p113
      %p416 = pneg %p110
      %p417 = pneg %p134
      %p418 = pneg %p131
      %p419 = pneg %p155
      %p420 = pneg %p152
      %p421 = pneg %p176
      %p422 = pneg %p173
      %p423 = pneg %p197
      %p424 = pneg %p194
      %p425 = pneg %p218
      %p426 = pneg %p215
      %p427 = pneg %p239
      %p428 = pneg %p236
      %p429 = pneg %p260
      %p430 = pneg %p257
      %p431 = pneg %p281
      %p432 = pneg %p278
      %p433 = pneg %p302
      %p434 = pneg %p299
      %p435 = pneg %p328
      %p436 = pneg %p325
      %p437 = scmp.lt.s32.totalorder %s24, 1
      %s438 = scalar_select %p437, %s24, 1
      %s439 = smul.addr %s438, 32
      %s440 = smul.addr %s439, 8
      %s441 = scalar_lea.vmem %s13, %s440
      %p442 = scmp.lt.s32.totalorder %s24, 1
      %s443 = scalar_select %p442, %s24, 1
      %s444 = smul.addr %s443, 32
      %s445 = smul.addr %s444, 8
      %s446 = scalar_lea.vmem %s0, %s445
      %p447 = scmp.lt.s32.totalorder %s24, 1
      %s448 = scalar_select %p447, %s24, 1
      %s449 = scalar_lea.vmem %s1, %s448
      %p450 = scmp.lt.s32.totalorder %s24, 1
      %s451 = scalar_select %p450, %s24, 1
      %s452 = smul.addr %s451, 32
      %s453 = smul.addr %s452, 8
      %s454 = scalar_lea.vmem %s13, %s453
      %v455 = vld [vmem:[%s449] sm:$0x1]
      %v456 = vld [vmem:[%s446] sm:$0xff]
      %v457 = vld [vmem:[%s446 + $0x8] sm:$0xff]
      %v458 = vld [vmem:[%s446 + $0x10] sm:$0xff]
      %v459 = vld [vmem:[%s446 + $0x18] sm:$0xff]
      %v460 = vld [vmem:[%s446 + $0x20] sm:$0xff]
      %v461 = vld [vmem:[%s446 + $0x28] sm:$0xff]
      %v462 = vld [vmem:[%s446 + $0x30] sm:$0xff]
      %v463 = vld [vmem:[%s446 + $0x38] sm:$0xff]
      %v464 = vld [vmem:[%s446 + $0x40] sm:$0xff]
      %v465 = vld [vmem:[%s446 + $0x48] sm:$0xff]
      %v466 = vld [vmem:[%s446 + $0x50] sm:$0xff]
      %v467 = vld [vmem:[%s446 + $0x58] sm:$0xff]
      %v468 = vld [vmem:[%s446 + $0x60] sm:$0xff]
      %v469 = vld [vmem:[%s446 + $0x68] sm:$0xff]
      %v470 = vld [vmem:[%s446 + $0x70] sm:$0xff]
      %v471 = vld [vmem:[%s446 + $0x78] sm:$0xff]
      %v472 = vld [vmem:[%s446 + $0x80] sm:$0xff]
      %v473 = vld [vmem:[%s446 + $0x88] sm:$0xff]
      %v474 = vld [vmem:[%s446 + $0x90] sm:$0xff]
      %v475 = vld [vmem:[%s446 + $0x98] sm:$0xff]
      %v476 = vld [vmem:[%s446 + $0xa0] sm:$0xff]
      %v477 = vld [vmem:[%s446 + $0xa8] sm:$0xff]
      %v478 = vld [vmem:[%s446 + $0xb0] sm:$0xff]
      %v479 = vld [vmem:[%s446 + $0xb8] sm:$0xff]
      %v480 = vld [vmem:[%s446 + $0xc0] sm:$0xff]
      %v481 = vld [vmem:[%s446 + $0xc8] sm:$0xff]
      %v482 = vld [vmem:[%s446 + $0xd0] sm:$0xff]
      %v483 = vld [vmem:[%s446 + $0xd8] sm:$0xff]
      %v484 = vld [vmem:[%s446 + $0xe0] sm:$0xff]
      %v485 = vld [vmem:[%s446 + $0xe8] sm:$0xff]
      %v486 = vld [vmem:[%s446 + $0xf0] sm:$0xff]
      %v487 = vld [vmem:[%s446 + $0xf8] sm:$0xff]
      %vm488 = vcmask 31744
      %489 = vst.msk [vmem:[#allocation2 + $0x7] sm:$0xff] %vm488, 0.0
      %490 = vst.msk [vmem:[#allocation2 + $0xf] sm:$0xff] %vm488, 0.0
      %vm491 = vcmask 25600
      %492 = vst.msk [vmem:[#allocation2 + $0x17] sm:$0x3] %vm491, 0.0
      %s493 = scalar_lea.vmem [#allocation2], 544
      %494 = vst.msk [vmem:[%s493 + $0x7] sm:$0xff] %vm488, 0.0
      %495 = vst.msk [vmem:[%s493 + $0xf] sm:$0xff] %vm488, 0.0
      %496 = vst.msk [vmem:[%s493 + $0x17] sm:$0x3] %vm491, 0.0
      %s497 = scalar_lea.vmem [#allocation2], 32
      %vm498 = vcmask 24576
      %499 = vst.msk [vmem:[%s497 + $0x7] sm:$0x1] %vm498, 0.0
      %500 = vst.msk [vmem:[%s497 + $0x27] sm:$0x1] %vm498, 0.0
      %501 = vst.msk [vmem:[%s497 + $0x47] sm:$0x1] %vm498, 0.0
      %502 = vst.msk [vmem:[%s497 + $0x67] sm:$0x1] %vm498, 0.0
      %503 = vst.msk [vmem:[%s497 + $0x87] sm:$0x1] %vm498, 0.0
      %504 = vst.msk [vmem:[%s497 + $0xa7] sm:$0x1] %vm498, 0.0
      %505 = vst.msk [vmem:[%s497 + $0xc7] sm:$0x1] %vm498, 0.0
      %506 = vst.msk [vmem:[%s497 + $0xe7] sm:$0x1] %vm498, 0.0
      %507 = vst.msk [vmem:[%s497 + $0x107] sm:$0x1] %vm498, 0.0
      %508 = vst.msk [vmem:[%s497 + $0x127] sm:$0x1] %vm498, 0.0
      %509 = vst.msk [vmem:[%s497 + $0x147] sm:$0x1] %vm498, 0.0
      %510 = vst.msk [vmem:[%s497 + $0x167] sm:$0x1] %vm498, 0.0
      %511 = vst.msk [vmem:[%s497 + $0x187] sm:$0x1] %vm498, 0.0
      %512 = vst.msk [vmem:[%s497 + $0x1a7] sm:$0x1] %vm498, 0.0
      %513 = vst.msk [vmem:[%s497 + $0x1c7] sm:$0x1] %vm498, 0.0
      %514 = vst.msk [vmem:[%s497 + $0x1e7] sm:$0x1] %vm498, 0.0
      %515 = vst.msk [vmem:[%s497 + $0x18] sm:$0x1] %vm498, 0.0
      %516 = vst.msk [vmem:[%s497 + $0x38] sm:$0x1] %vm498, 0.0
      %517 = vst.msk [vmem:[%s497 + $0x58] sm:$0x1] %vm498, 0.0
      %518 = vst.msk [vmem:[%s497 + $0x78] sm:$0x1] %vm498, 0.0
      %519 = vst.msk [vmem:[%s497 + $0x98] sm:$0x1] %vm498, 0.0
      %520 = vst.msk [vmem:[%s497 + $0xb8] sm:$0x1] %vm498, 0.0
      %521 = vst.msk [vmem:[%s497 + $0xd8] sm:$0x1] %vm498, 0.0
      %522 = vst.msk [vmem:[%s497 + $0xf8] sm:$0x1] %vm498, 0.0
      %523 = vst.msk [vmem:[%s497 + $0x118] sm:$0x1] %vm498, 0.0
      %524 = vst.msk [vmem:[%s497 + $0x138] sm:$0x1] %vm498, 0.0
      %525 = vst.msk [vmem:[%s497 + $0x158] sm:$0x1] %vm498, 0.0
      %526 = vst.msk [vmem:[%s497 + $0x178] sm:$0x1] %vm498, 0.0
      %527 = vst.msk [vmem:[%s497 + $0x198] sm:$0x1] %vm498, 0.0
      %528 = vst.msk [vmem:[%s497 + $0x1b8] sm:$0x1] %vm498, 0.0
      %529 = vst.msk [vmem:[%s497 + $0x1d8] sm:$0x1] %vm498, 0.0
      %530 = vst.msk [vmem:[%s497 + $0x1f8] sm:$0x1] %vm498, 0.0
      %531 = vst.msk [vmem:[%s497 + $0x8] sm:$0xff] %vm488, %v456
      %532 = vst.msk [vmem:[%s497 + $0x10] sm:$0xff] %vm488, %v457
      %533 = vst.msk [vmem:[%s497 + $0x28] sm:$0xff] %vm488, %v458
      %534 = vst.msk [vmem:[%s497 + $0x30] sm:$0xff] %vm488, %v459
      %535 = vst.msk [vmem:[%s497 + $0x48] sm:$0xff] %vm488, %v460
      %536 = vst.msk [vmem:[%s497 + $0x50] sm:$0xff] %vm488, %v461
      %537 = vst.msk [vmem:[%s497 + $0x68] sm:$0xff] %vm488, %v462
      %538 = vst.msk [vmem:[%s497 + $0x70] sm:$0xff] %vm488, %v463
      %539 = vst.msk [vmem:[%s497 + $0x88] sm:$0xff] %vm488, %v464
      %540 = vst.msk [vmem:[%s497 + $0x90] sm:$0xff] %vm488, %v465
      %541 = vst.msk [vmem:[%s497 + $0xa8] sm:$0xff] %vm488, %v466
      %542 = vst.msk [vmem:[%s497 + $0xb0] sm:$0xff] %vm488, %v467
      %543 = vst.msk [vmem:[%s497 + $0xc8] sm:$0xff] %vm488, %v468
      %544 = vst.msk [vmem:[%s497 + $0xd0] sm:$0xff] %vm488, %v469
      %545 = vst.msk [vmem:[%s497 + $0xe8] sm:$0xff] %vm488, %v470
      %546 = vst.msk [vmem:[%s497 + $0xf0] sm:$0xff] %vm488, %v471
      %547 = vst.msk [vmem:[%s497 + $0x108] sm:$0xff] %vm488, %v472
      %548 = vst.msk [vmem:[%s497 + $0x110] sm:$0xff] %vm488, %v473
      %549 = vst.msk [vmem:[%s497 + $0x128] sm:$0xff] %vm488, %v474
      %550 = vst.msk [vmem:[%s497 + $0x130] sm:$0xff] %vm488, %v475
      %551 = vst.msk [vmem:[%s497 + $0x148] sm:$0xff] %vm488, %v476
      %552 = vst.msk [vmem:[%s497 + $0x150] sm:$0xff] %vm488, %v477
      %553 = vst.msk [vmem:[%s497 + $0x168] sm:$0xff] %vm488, %v478
      %554 = vst.msk [vmem:[%s497 + $0x170] sm:$0xff] %vm488, %v479
      %555 = vst.msk [vmem:[%s497 + $0x188] sm:$0xff] %vm488, %v480
      %556 = vst.msk [vmem:[%s497 + $0x190] sm:$0xff] %vm488, %v481
      %557 = vst.msk [vmem:[%s497 + $0x1a8] sm:$0xff] %vm488, %v482
      %558 = vst.msk [vmem:[%s497 + $0x1b0] sm:$0xff] %vm488, %v483
      %559 = vst.msk [vmem:[%s497 + $0x1c8] sm:$0xff] %vm488, %v484
      %560 = vst.msk [vmem:[%s497 + $0x1d0] sm:$0xff] %vm488, %v485
      %561 = vst.msk [vmem:[%s497 + $0x1e8] sm:$0xff] %vm488, %v486
      %562 = vst.msk [vmem:[%s497 + $0x1f0] sm:$0xff] %vm488, %v487
      %v563 = vld [vmem:[%s3] sm:$0x1]
      %v565 = vperm.slane %v563, 0
      %v567 = vld [vmem:[#allocation2 + $0x7] sm:$0xff]
      %v568 = vld [vmem:[#allocation2 + $0xf] sm:$0xff]
      %v569 = vld [vmem:[#allocation2 + $0x27] sm:$0xff]
      %v570 = vld [vmem:[#allocation2 + $0x2f] sm:$0xff]
      %v571 = vld [vmem:[#allocation2 + $0x47] sm:$0xff]
      %v572 = vld [vmem:[#allocation2 + $0x4f] sm:$0xff]
      %v573 = vld [vmem:[#allocation2 + $0x67] sm:$0xff]
      %v574 = vld [vmem:[#allocation2 + $0x6f] sm:$0xff]
      %v575 = vld [vmem:[#allocation2 + $0x87] sm:$0xff]
      %v576 = vld [vmem:[#allocation2 + $0x8f] sm:$0xff]
      %v577 = vld [vmem:[#allocation2 + $0xa7] sm:$0xff]
      %v578 = vld [vmem:[#allocation2 + $0xaf] sm:$0xff]
      %v579 = vld [vmem:[#allocation2 + $0xc7] sm:$0xff]
      %v580 = vld [vmem:[#allocation2 + $0xcf] sm:$0xff]
      %v581 = vld [vmem:[#allocation2 + $0xe7] sm:$0xff]
      %v582 = vld [vmem:[#allocation2 + $0xef] sm:$0xff]
      %v583 = vld [vmem:[#allocation2 + $0x107] sm:$0xff]
      %v584 = vld [vmem:[#allocation2 + $0x10f] sm:$0xff]
      %v585 = vld [vmem:[#allocation2 + $0x127] sm:$0xff]
      %v586 = vld [vmem:[#allocation2 + $0x12f] sm:$0xff]
      %v587 = vld [vmem:[#allocation2 + $0x147] sm:$0xff]
      %v588 = vld [vmem:[#allocation2 + $0x14f] sm:$0xff]
      %v589 = vld [vmem:[#allocation2 + $0x167] sm:$0xff]
      %v590 = vld [vmem:[#allocation2 + $0x16f] sm:$0xff]
      %v591 = vld [vmem:[#allocation2 + $0x187] sm:$0xff]
      %v592 = vld [vmem:[#allocation2 + $0x18f] sm:$0xff]
      %v593 = vld [vmem:[#allocation2 + $0x1a7] sm:$0xff]
      %v594 = vld [vmem:[#allocation2 + $0x1af] sm:$0xff]
      %v595 = vld [vmem:[#allocation2 + $0x1c7] sm:$0xff]
      %v596 = vld [vmem:[#allocation2 + $0x1cf] sm:$0xff]
      %v597 = vld [vmem:[#allocation2 + $0x1e7] sm:$0xff]
      %v598 = vld [vmem:[#allocation2 + $0x1ef] sm:$0xff]
      %v599 = vld [vmem:[%s2] sm:$0xf]
      %v601 = vsel %vm488, %v567, 0
      %v604 = vsel %vm488, %v568, 0
      %v607 = vsel %vm488, %v569, 0
      %v610 = vsel %vm488, %v570, 0
      %v613 = vsel %vm488, %v571, 0
      %v616 = vsel %vm488, %v572, 0
      %v619 = vsel %vm488, %v573, 0
      %v622 = vsel %vm488, %v574, 0
      %v625 = vsel %vm488, %v575, 0
      %v628 = vsel %vm488, %v576, 0
      %v631 = vsel %vm488, %v577, 0
      %v634 = vsel %vm488, %v578, 0
      %v637 = vsel %vm488, %v579, 0
      %v640 = vsel %vm488, %v580, 0
      %v643 = vsel %vm488, %v581, 0
      %v646 = vsel %vm488, %v582, 0
      %v649 = vsel %vm488, %v583, 0
      %v652 = vsel %vm488, %v584, 0
      %v655 = vsel %vm488, %v585, 0
      %v658 = vsel %vm488, %v586, 0
      %v661 = vsel %vm488, %v587, 0
      %v664 = vsel %vm488, %v588, 0
      %v667 = vsel %vm488, %v589, 0
      %v670 = vsel %vm488, %v590, 0
      %v673 = vsel %vm488, %v591, 0
      %v676 = vsel %vm488, %v592, 0
      %v679 = vsel %vm488, %v593, 0
      %v682 = vsel %vm488, %v594, 0
      %v685 = vsel %vm488, %v595, 0
      %v688 = vsel %vm488, %v596, 0
      %v691 = vsel %vm488, %v597, 0
      %v694 = vsel %vm488, %v598, 0
      %vm696 = vcmask 1043456
      %v698 = vsel %vm696, %v599, 0
      %700 = vmatpush.msra.mxu0 0.0
      %701 = vmatpush.msra.mxu0 0.0
      %702 = vmatpush.msra.mxu0 0.0
      %703 = vmatpush.msra.mxu0 0.0
      %704 = vmatpush.msra.mxu0 0.0
      %705 = vmatpush.msra.mxu0 0.0
      %706 = vmatpush.msra.mxu0 0.0
      %707 = vmatpush.msra.mxu0 0.0
      %708 = vmatpush.msra.mxu0 0.0
      %709 = vmatpush.msra.mxu0 0.0
      %710 = vmatpush.msra.mxu0 0.0
      %711 = vmatpush.msra.mxu0 0.0
      %712 = vmatpush.msra.mxu0 0.0
      %713 = vmatpush.msra.mxu0 0.0
      %714 = vmatpush.msra.mxu0 0.0
      %715 = vmatpush.msra.mxu0 %v698
      %716 = vmatmul.f32.gmra.mxu0 %v601
      %v717 = vpop.f32.mrf.mxu0
      %v718 = vadd.f32 0.0, %v717
      %719 = vmatmul.f32.gmra.mxu0 %v604
      %v720 = vpop.f32.mrf.mxu0
      %v721 = vadd.f32 0.0, %v720
      %722 = vmatmul.f32.gmra.mxu0 %v607
      %v723 = vpop.f32.mrf.mxu0
      %v724 = vadd.f32 0.0, %v723
      %725 = vmatmul.f32.gmra.mxu0 %v610
      %v726 = vpop.f32.mrf.mxu0
      %v727 = vadd.f32 0.0, %v726
      %728 = vmatmul.f32.gmra.mxu0 %v613
      %v729 = vpop.f32.mrf.mxu0
      %v730 = vadd.f32 0.0, %v729
      %731 = vmatmul.f32.gmra.mxu0 %v616
      %v732 = vpop.f32.mrf.mxu0
      %v733 = vadd.f32 0.0, %v732
      %734 = vmatmul.f32.gmra.mxu0 %v619
      %v735 = vpop.f32.mrf.mxu0
      %v736 = vadd.f32 0.0, %v735
      %737 = vmatmul.f32.gmra.mxu0 %v622
      %v738 = vpop.f32.mrf.mxu0
      %v739 = vadd.f32 0.0, %v738
      %740 = vmatmul.f32.gmra.mxu0 %v625
      %v741 = vpop.f32.mrf.mxu0
      %v742 = vadd.f32 0.0, %v741
      %743 = vmatmul.f32.gmra.mxu0 %v628
      %v744 = vpop.f32.mrf.mxu0
      %v745 = vadd.f32 0.0, %v744
      %746 = vmatmul.f32.gmra.mxu0 %v631
      %v747 = vpop.f32.mrf.mxu0
      %v748 = vadd.f32 0.0, %v747
      %749 = vmatmul.f32.gmra.mxu0 %v634
      %v750 = vpop.f32.mrf.mxu0
      %v751 = vadd.f32 0.0, %v750
      %752 = vmatmul.f32.gmra.mxu0 %v637
      %v753 = vpop.f32.mrf.mxu0
      %v754 = vadd.f32 0.0, %v753
      %755 = vmatmul.f32.gmra.mxu0 %v640
      %v756 = vpop.f32.mrf.mxu0
      %v757 = vadd.f32 0.0, %v756
      %758 = vmatmul.f32.gmra.mxu0 %v643
      %v759 = vpop.f32.mrf.mxu0
      %v760 = vadd.f32 0.0, %v759
      %761 = vmatmul.f32.gmra.mxu0 %v646
      %v762 = vpop.f32.mrf.mxu0
      %v763 = vadd.f32 0.0, %v762
      %764 = vmatmul.f32.gmra.mxu0 %v649
      %v765 = vpop.f32.mrf.mxu0
      %v766 = vadd.f32 0.0, %v765
      %767 = vmatmul.f32.gmra.mxu0 %v652
      %v768 = vpop.f32.mrf.mxu0
      %v769 = vadd.f32 0.0, %v768
      %770 = vmatmul.f32.gmra.mxu0 %v655
      %v771 = vpop.f32.mrf.mxu0
      %v772 = vadd.f32 0.0, %v771
      %773 = vmatmul.f32.gmra.mxu0 %v658
      %v774 = vpop.f32.mrf.mxu0
      %v775 = vadd.f32 0.0, %v774
      %776 = vmatmul.f32.gmra.mxu0 %v661
      %v777 = vpop.f32.mrf.mxu0
      %v778 = vadd.f32 0.0, %v777
      %779 = vmatmul.f32.gmra.mxu0 %v664
      %v780 = vpop.f32.mrf.mxu0
      %v781 = vadd.f32 0.0, %v780
      %782 = vmatmul.f32.gmra.mxu0 %v667
      %v783 = vpop.f32.mrf.mxu0
      %v784 = vadd.f32 0.0, %v783
      %785 = vmatmul.f32.gmra.mxu0 %v670
      %v786 = vpop.f32.mrf.mxu0
      %v787 = vadd.f32 0.0, %v786
      %788 = vmatmul.f32.gmra.mxu0 %v673
      %v789 = vpop.f32.mrf.mxu0
      %v790 = vadd.f32 0.0, %v789
      %791 = vmatmul.f32.gmra.mxu0 %v676
      %v792 = vpop.f32.mrf.mxu0
      %v793 = vadd.f32 0.0, %v792
      %794 = vmatmul.f32.gmra.mxu0 %v679
      %v795 = vpop.f32.mrf.mxu0
      %v796 = vadd.f32 0.0, %v795
      %797 = vmatmul.f32.gmra.mxu0 %v682
      %v798 = vpop.f32.mrf.mxu0
      %v799 = vadd.f32 0.0, %v798
      %800 = vmatmul.f32.gmra.mxu0 %v685
      %v801 = vpop.f32.mrf.mxu0
      %v802 = vadd.f32 0.0, %v801
      %803 = vmatmul.f32.gmra.mxu0 %v688
      %v804 = vpop.f32.mrf.mxu0
      %v805 = vadd.f32 0.0, %v804
      %806 = vmatmul.f32.gmra.mxu0 %v691
      %v807 = vpop.f32.mrf.mxu0
      %v808 = vadd.f32 0.0, %v807
      %809 = vmatmul.f32.gmra.mxu0 %v694
      %v810 = vpop.f32.mrf.mxu0
      %v811 = vadd.f32 0.0, %v810
      %812 = vdwg.mxu0
      %v813 = vadd.f32 %v565, %v718
      %v814 = vadd.f32 %v565, %v721
      %v815 = vadd.f32 %v565, %v724
      %v816 = vadd.f32 %v565, %v727
      %v817 = vadd.f32 %v565, %v730
      %v818 = vadd.f32 %v565, %v733
      %v819 = vadd.f32 %v565, %v736
      %v820 = vadd.f32 %v565, %v739
      %v821 = vadd.f32 %v565, %v742
      %v822 = vadd.f32 %v565, %v745
      %v823 = vadd.f32 %v565, %v748
      %v824 = vadd.f32 %v565, %v751
      %v825 = vadd.f32 %v565, %v754
      %v826 = vadd.f32 %v565, %v757
      %v827 = vadd.f32 %v565, %v760
      %v828 = vadd.f32 %v565, %v763
      %v829 = vadd.f32 %v565, %v766
      %v830 = vadd.f32 %v565, %v769
      %v831 = vadd.f32 %v565, %v772
      %v832 = vadd.f32 %v565, %v775
      %v833 = vadd.f32 %v565, %v778
      %v834 = vadd.f32 %v565, %v781
      %v835 = vadd.f32 %v565, %v784
      %v836 = vadd.f32 %v565, %v787
      %v837 = vadd.f32 %v565, %v790
      %v838 = vadd.f32 %v565, %v793
      %v839 = vadd.f32 %v565, %v796
      %v840 = vadd.f32 %v565, %v799
      %v841 = vadd.f32 %v565, %v802
      %v842 = vadd.f32 %v565, %v805
      %v843 = vadd.f32 %v565, %v808
      %v844 = vadd.f32 %v565, %v811
      %v845 = vld [vmem:[#allocation2 + $0x8] sm:$0xff]
      %v846 = vld [vmem:[#allocation2 + $0x10] sm:$0xff]
      %v847 = vld [vmem:[#allocation2 + $0x28] sm:$0xff]
      %v848 = vld [vmem:[#allocation2 + $0x30] sm:$0xff]
      %v849 = vld [vmem:[#allocation2 + $0x48] sm:$0xff]
      %v850 = vld [vmem:[#allocation2 + $0x50] sm:$0xff]
      %v851 = vld [vmem:[#allocation2 + $0x68] sm:$0xff]
      %v852 = vld [vmem:[#allocation2 + $0x70] sm:$0xff]
      %v853 = vld [vmem:[#allocation2 + $0x88] sm:$0xff]
      %v854 = vld [vmem:[#allocation2 + $0x90] sm:$0xff]
      %v855 = vld [vmem:[#allocation2 + $0xa8] sm:$0xff]
      %v856 = vld [vmem:[#allocation2 + $0xb0] sm:$0xff]
      %v857 = vld [vmem:[#allocation2 + $0xc8] sm:$0xff]
      %v858 = vld [vmem:[#allocation2 + $0xd0] sm:$0xff]
      %v859 = vld [vmem:[#allocation2 + $0xe8] sm:$0xff]
      %v860 = vld [vmem:[#allocation2 + $0xf0] sm:$0xff]
      %v861 = vld [vmem:[#allocation2 + $0x108] sm:$0xff]
      %v862 = vld [vmem:[#allocation2 + $0x110] sm:$0xff]
      %v863 = vld [vmem:[#allocation2 + $0x128] sm:$0xff]
      %v864 = vld [vmem:[#allocation2 + $0x130] sm:$0xff]
      %v865 = vld [vmem:[#allocation2 + $0x148] sm:$0xff]
      %v866 = vld [vmem:[#allocation2 + $0x150] sm:$0xff]
      %v867 = vld [vmem:[#allocation2 + $0x168] sm:$0xff]
      %v868 = vld [vmem:[#allocation2 + $0x170] sm:$0xff]
      %v869 = vld [vmem:[#allocation2 + $0x188] sm:$0xff]
      %v870 = vld [vmem:[#allocation2 + $0x190] sm:$0xff]
      %v871 = vld [vmem:[#allocation2 + $0x1a8] sm:$0xff]
      %v872 = vld [vmem:[#allocation2 + $0x1b0] sm:$0xff]
      %v873 = vld [vmem:[#allocation2 + $0x1c8] sm:$0xff]
      %v874 = vld [vmem:[#allocation2 + $0x1d0] sm:$0xff]
      %v875 = vld [vmem:[#allocation2 + $0x1e8] sm:$0xff]
      %v876 = vld [vmem:[#allocation2 + $0x1f0] sm:$0xff]
      %v877 = vld [vmem:[%s2 + $0x4] sm:$0xf]
      %v879 = vsel %vm488, %v845, 0
      %v882 = vsel %vm488, %v846, 0
      %v885 = vsel %vm488, %v847, 0
      %v888 = vsel %vm488, %v848, 0
      %v891 = vsel %vm488, %v849, 0
      %v894 = vsel %vm488, %v850, 0
      %v897 = vsel %vm488, %v851, 0
      %v900 = vsel %vm488, %v852, 0
      %v903 = vsel %vm488, %v853, 0
      %v906 = vsel %vm488, %v854, 0
      %v909 = vsel %vm488, %v855, 0
      %v912 = vsel %vm488, %v856, 0
      %v915 = vsel %vm488, %v857, 0
      %v918 = vsel %vm488, %v858, 0
      %v921 = vsel %vm488, %v859, 0
      %v924 = vsel %vm488, %v860, 0
      %v927 = vsel %vm488, %v861, 0
      %v930 = vsel %vm488, %v862, 0
      %v933 = vsel %vm488, %v863, 0
      %v936 = vsel %vm488, %v864, 0
      %v939 = vsel %vm488, %v865, 0
      %v942 = vsel %vm488, %v866, 0
      %v945 = vsel %vm488, %v867, 0
      %v948 = vsel %vm488, %v868, 0
      %v951 = vsel %vm488, %v869, 0
      %v954 = vsel %vm488, %v870, 0
      %v957 = vsel %vm488, %v871, 0
      %v960 = vsel %vm488, %v872, 0
      %v963 = vsel %vm488, %v873, 0
      %v966 = vsel %vm488, %v874, 0
      %v969 = vsel %vm488, %v875, 0
      %v972 = vsel %vm488, %v876, 0
      %v975 = vsel %vm696, %v877, 0
      %977 = vmatpush.msra.mxu0 0.0
      %978 = vmatpush.msra.mxu0 0.0
      %979 = vmatpush.msra.mxu0 0.0
      %980 = vmatpush.msra.mxu0 0.0
      %981 = vmatpush.msra.mxu0 0.0
      %982 = vmatpush.msra.mxu0 0.0
      %983 = vmatpush.msra.mxu0 0.0
      %984 = vmatpush.msra.mxu0 0.0
      %985 = vmatpush.msra.mxu0 0.0
      %986 = vmatpush.msra.mxu0 0.0
      %987 = vmatpush.msra.mxu0 0.0
      %988 = vmatpush.msra.mxu0 0.0
      %989 = vmatpush.msra.mxu0 0.0
      %990 = vmatpush.msra.mxu0 0.0
      %991 = vmatpush.msra.mxu0 0.0
      %992 = vmatpush.msra.mxu0 %v975
      %993 = vmatmul.f32.gmra.mxu0 %v879
      %v994 = vpop.f32.mrf.mxu0
      %v995 = vadd.f32 0.0, %v994
      %996 = vmatmul.f32.gmra.mxu0 %v882
      %v997 = vpop.f32.mrf.mxu0
      %v998 = vadd.f32 0.0, %v997
      %999 = vmatmul.f32.gmra.mxu0 %v885
      %v1000 = vpop.f32.mrf.mxu0
      %v1001 = vadd.f32 0.0, %v1000
      %1002 = vmatmul.f32.gmra.mxu0 %v888
      %v1003 = vpop.f32.mrf.mxu0
      %v1004 = vadd.f32 0.0, %v1003
      %1005 = vmatmul.f32.gmra.mxu0 %v891
      %v1006 = vpop.f32.mrf.mxu0
      %v1007 = vadd.f32 0.0, %v1006
      %1008 = vmatmul.f32.gmra.mxu0 %v894
      %v1009 = vpop.f32.mrf.mxu0
      %v1010 = vadd.f32 0.0, %v1009
      %1011 = vmatmul.f32.gmra.mxu0 %v897
      %v1012 = vpop.f32.mrf.mxu0
      %v1013 = vadd.f32 0.0, %v1012
      %1014 = vmatmul.f32.gmra.mxu0 %v900
      %v1015 = vpop.f32.mrf.mxu0
      %v1016 = vadd.f32 0.0, %v1015
      %1017 = vmatmul.f32.gmra.mxu0 %v903
      %v1018 = vpop.f32.mrf.mxu0
      %v1019 = vadd.f32 0.0, %v1018
      %1020 = vmatmul.f32.gmra.mxu0 %v906
      %v1021 = vpop.f32.mrf.mxu0
      %v1022 = vadd.f32 0.0, %v1021
      %1023 = vmatmul.f32.gmra.mxu0 %v909
      %v1024 = vpop.f32.mrf.mxu0
      %v1025 = vadd.f32 0.0, %v1024
      %1026 = vmatmul.f32.gmra.mxu0 %v912
      %v1027 = vpop.f32.mrf.mxu0
      %v1028 = vadd.f32 0.0, %v1027
      %1029 = vmatmul.f32.gmra.mxu0 %v915
      %v1030 = vpop.f32.mrf.mxu0
      %v1031 = vadd.f32 0.0, %v1030
      %1032 = vmatmul.f32.gmra.mxu0 %v918
      %v1033 = vpop.f32.mrf.mxu0
      %v1034 = vadd.f32 0.0, %v1033
      %1035 = vmatmul.f32.gmra.mxu0 %v921
      %v1036 = vpop.f32.mrf.mxu0
      %v1037 = vadd.f32 0.0, %v1036
      %1038 = vmatmul.f32.gmra.mxu0 %v924
      %v1039 = vpop.f32.mrf.mxu0
      %v1040 = vadd.f32 0.0, %v1039
      %1041 = vmatmul.f32.gmra.mxu0 %v927
      %v1042 = vpop.f32.mrf.mxu0
      %v1043 = vadd.f32 0.0, %v1042
      %1044 = vmatmul.f32.gmra.mxu0 %v930
      %v1045 = vpop.f32.mrf.mxu0
      %v1046 = vadd.f32 0.0, %v1045
      %1047 = vmatmul.f32.gmra.mxu0 %v933
      %v1048 = vpop.f32.mrf.mxu0
      %v1049 = vadd.f32 0.0, %v1048
      %1050 = vmatmul.f32.gmra.mxu0 %v936
      %v1051 = vpop.f32.mrf.mxu0
      %v1052 = vadd.f32 0.0, %v1051
      %1053 = vmatmul.f32.gmra.mxu0 %v939
      %v1054 = vpop.f32.mrf.mxu0
      %v1055 = vadd.f32 0.0, %v1054
      %1056 = vmatmul.f32.gmra.mxu0 %v942
      %v1057 = vpop.f32.mrf.mxu0
      %v1058 = vadd.f32 0.0, %v1057
      %1059 = vmatmul.f32.gmra.mxu0 %v945
      %v1060 = vpop.f32.mrf.mxu0
      %v1061 = vadd.f32 0.0, %v1060
      %1062 = vmatmul.f32.gmra.mxu0 %v948
      %v1063 = vpop.f32.mrf.mxu0
      %v1064 = vadd.f32 0.0, %v1063
      %1065 = vmatmul.f32.gmra.mxu0 %v951
      %v1066 = vpop.f32.mrf.mxu0
      %v1067 = vadd.f32 0.0, %v1066
      %1068 = vmatmul.f32.gmra.mxu0 %v954
      %v1069 = vpop.f32.mrf.mxu0
      %v1070 = vadd.f32 0.0, %v1069
      %1071 = vmatmul.f32.gmra.mxu0 %v957
      %v1072 = vpop.f32.mrf.mxu0
      %v1073 = vadd.f32 0.0, %v1072
      %1074 = vmatmul.f32.gmra.mxu0 %v960
      %v1075 = vpop.f32.mrf.mxu0
      %v1076 = vadd.f32 0.0, %v1075
      %1077 = vmatmul.f32.gmra.mxu0 %v963
      %v1078 = vpop.f32.mrf.mxu0
      %v1079 = vadd.f32 0.0, %v1078
      %1080 = vmatmul.f32.gmra.mxu0 %v966
      %v1081 = vpop.f32.mrf.mxu0
      %v1082 = vadd.f32 0.0, %v1081
      %1083 = vmatmul.f32.gmra.mxu0 %v969
      %v1084 = vpop.f32.mrf.mxu0
      %v1085 = vadd.f32 0.0, %v1084
      %1086 = vmatmul.f32.gmra.mxu0 %v972
      %v1087 = vpop.f32.mrf.mxu0
      %v1088 = vadd.f32 0.0, %v1087
      %1089 = vdwg.mxu0
      %v1090 = vadd.f32 %v813, %v995
      %v1091 = vadd.f32 %v814, %v998
      %v1092 = vadd.f32 %v815, %v1001
      %v1093 = vadd.f32 %v816, %v1004
      %v1094 = vadd.f32 %v817, %v1007
      %v1095 = vadd.f32 %v818, %v1010
      %v1096 = vadd.f32 %v819, %v1013
      %v1097 = vadd.f32 %v820, %v1016
      %v1098 = vadd.f32 %v821, %v1019
      %v1099 = vadd.f32 %v822, %v1022
      %v1100 = vadd.f32 %v823, %v1025
      %v1101 = vadd.f32 %v824, %v1028
      %v1102 = vadd.f32 %v825, %v1031
      %v1103 = vadd.f32 %v826, %v1034
      %v1104 = vadd.f32 %v827, %v1037
      %v1105 = vadd.f32 %v828, %v1040
      %v1106 = vadd.f32 %v829, %v1043
      %v1107 = vadd.f32 %v830, %v1046
      %v1108 = vadd.f32 %v831, %v1049
      %v1109 = vadd.f32 %v832, %v1052
      %v1110 = vadd.f32 %v833, %v1055
      %v1111 = vadd.f32 %v834, %v1058
      %v1112 = vadd.f32 %v835, %v1061
      %v1113 = vadd.f32 %v836, %v1064
      %v1114 = vadd.f32 %v837, %v1067
      %v1115 = vadd.f32 %v838, %v1070
      %v1116 = vadd.f32 %v839, %v1073
      %v1117 = vadd.f32 %v840, %v1076
      %v1118 = vadd.f32 %v841, %v1079
      %v1119 = vadd.f32 %v842, %v1082
      %v1120 = vadd.f32 %v843, %v1085
      %v1121 = vadd.f32 %v844, %v1088
      %v1122 = vld [vmem:[#allocation2 + $0x9] sm:$0xff]
      %v1123 = vld [vmem:[#allocation2 + $0x11] sm:$0xff]
      %v1124 = vld [vmem:[#allocation2 + $0x29] sm:$0xff]
      %v1125 = vld [vmem:[#allocation2 + $0x31] sm:$0xff]
      %v1126 = vld [vmem:[#allocation2 + $0x49] sm:$0xff]
      %v1127 = vld [vmem:[#allocation2 + $0x51] sm:$0xff]
      %v1128 = vld [vmem:[#allocation2 + $0x69] sm:$0xff]
      %v1129 = vld [vmem:[#allocation2 + $0x71] sm:$0xff]
      %v1130 = vld [vmem:[#allocation2 + $0x89] sm:$0xff]
      %v1131 = vld [vmem:[#allocation2 + $0x91] sm:$0xff]
      %v1132 = vld [vmem:[#allocation2 + $0xa9] sm:$0xff]
      %v1133 = vld [vmem:[#allocation2 + $0xb1] sm:$0xff]
      %v1134 = vld [vmem:[#allocation2 + $0xc9] sm:$0xff]
      %v1135 = vld [vmem:[#allocation2 + $0xd1] sm:$0xff]
      %v1136 = vld [vmem:[#allocation2 + $0xe9] sm:$0xff]
      %v1137 = vld [vmem:[#allocation2 + $0xf1] sm:$0xff]
      %v1138 = vld [vmem:[#allocation2 + $0x109] sm:$0xff]
      %v1139 = vld [vmem:[#allocation2 + $0x111] sm:$0xff]
      %v1140 = vld [vmem:[#allocation2 + $0x129] sm:$0xff]
      %v1141 = vld [vmem:[#allocation2 + $0x131] sm:$0xff]
      %v1142 = vld [vmem:[#allocation2 + $0x149] sm:$0xff]
      %v1143 = vld [vmem:[#allocation2 + $0x151] sm:$0xff]
      %v1144 = vld [vmem:[#allocation2 + $0x169] sm:$0xff]
      %v1145 = vld [vmem:[#allocation2 + $0x171] sm:$0xff]
      %v1146 = vld [vmem:[#allocation2 + $0x189] sm:$0xff]
      %v1147 = vld [vmem:[#allocation2 + $0x191] sm:$0xff]
      %v1148 = vld [vmem:[#allocation2 + $0x1a9] sm:$0xff]
      %v1149 = vld [vmem:[#allocation2 + $0x1b1] sm:$0xff]
      %v1150 = vld [vmem:[#allocation2 + $0x1c9] sm:$0xff]
      %v1151 = vld [vmem:[#allocation2 + $0x1d1] sm:$0xff]
      %v1152 = vld [vmem:[#allocation2 + $0x1e9] sm:$0xff]
      %v1153 = vld [vmem:[#allocation2 + $0x1f1] sm:$0xff]
      %v1154 = vld [vmem:[%s2 + $0x8] sm:$0xf]
      %v1156 = vsel %vm488, %v1122, 0
      %v1159 = vsel %vm488, %v1123, 0
      %v1162 = vsel %vm488, %v1124, 0
      %v1165 = vsel %vm488, %v1125, 0
      %v1168 = vsel %vm488, %v1126, 0
      %v1171 = vsel %vm488, %v1127, 0
      %v1174 = vsel %vm488, %v1128, 0
      %v1177 = vsel %vm488, %v1129, 0
      %v1180 = vsel %vm488, %v1130, 0
      %v1183 = vsel %vm488, %v1131, 0
      %v1186 = vsel %vm488, %v1132, 0
      %v1189 = vsel %vm488, %v1133, 0
      %v1192 = vsel %vm488, %v1134, 0
      %v1195 = vsel %vm488, %v1135, 0
      %v1198 = vsel %vm488, %v1136, 0
      %v1201 = vsel %vm488, %v1137, 0
      %v1204 = vsel %vm488, %v1138, 0
      %v1207 = vsel %vm488, %v1139, 0
      %v1210 = vsel %vm488, %v1140, 0
      %v1213 = vsel %vm488, %v1141, 0
      %v1216 = vsel %vm488, %v1142, 0
      %v1219 = vsel %vm488, %v1143, 0
      %v1222 = vsel %vm488, %v1144, 0
      %v1225 = vsel %vm488, %v1145, 0
      %v1228 = vsel %vm488, %v1146, 0
      %v1231 = vsel %vm488, %v1147, 0
      %v1234 = vsel %vm488, %v1148, 0
      %v1237 = vsel %vm488, %v1149, 0
      %v1240 = vsel %vm488, %v1150, 0
      %v1243 = vsel %vm488, %v1151, 0
      %v1246 = vsel %vm488, %v1152, 0
      %v1249 = vsel %vm488, %v1153, 0
      %v1252 = vsel %vm696, %v1154, 0
      %1254 = vmatpush.msra.mxu0 0.0
      %1255 = vmatpush.msra.mxu0 0.0
      %1256 = vmatpush.msra.mxu0 0.0
      %1257 = vmatpush.msra.mxu0 0.0
      %1258 = vmatpush.msra.mxu0 0.0
      %1259 = vmatpush.msra.mxu0 0.0
      %1260 = vmatpush.msra.mxu0 0.0
      %1261 = vmatpush.msra.mxu0 0.0
      %1262 = vmatpush.msra.mxu0 0.0
      %1263 = vmatpush.msra.mxu0 0.0
      %1264 = vmatpush.msra.mxu0 0.0
      %1265 = vmatpush.msra.mxu0 0.0
      %1266 = vmatpush.msra.mxu0 0.0
      %1267 = vmatpush.msra.mxu0 0.0
      %1268 = vmatpush.msra.mxu0 0.0
      %1269 = vmatpush.msra.mxu0 %v1252
      %1270 = vmatmul.f32.gmra.mxu0 %v1156
      %v1271 = vpop.f32.mrf.mxu0
      %v1272 = vadd.f32 0.0, %v1271
      %1273 = vmatmul.f32.gmra.mxu0 %v1159
      %v1274 = vpop.f32.mrf.mxu0
      %v1275 = vadd.f32 0.0, %v1274
      %1276 = vmatmul.f32.gmra.mxu0 %v1162
      %v1277 = vpop.f32.mrf.mxu0
      %v1278 = vadd.f32 0.0, %v1277
      %1279 = vmatmul.f32.gmra.mxu0 %v1165
      %v1280 = vpop.f32.mrf.mxu0
      %v1281 = vadd.f32 0.0, %v1280
      %1282 = vmatmul.f32.gmra.mxu0 %v1168
      %v1283 = vpop.f32.mrf.mxu0
      %v1284 = vadd.f32 0.0, %v1283
      %1285 = vmatmul.f32.gmra.mxu0 %v1171
      %v1286 = vpop.f32.mrf.mxu0
      %v1287 = vadd.f32 0.0, %v1286
      %1288 = vmatmul.f32.gmra.mxu0 %v1174
      %v1289 = vpop.f32.mrf.mxu0
      %v1290 = vadd.f32 0.0, %v1289
      %1291 = vmatmul.f32.gmra.mxu0 %v1177
      %v1292 = vpop.f32.mrf.mxu0
      %v1293 = vadd.f32 0.0, %v1292
      %1294 = vmatmul.f32.gmra.mxu0 %v1180
      %v1295 = vpop.f32.mrf.mxu0
      %v1296 = vadd.f32 0.0, %v1295
      %1297 = vmatmul.f32.gmra.mxu0 %v1183
      %v1298 = vpop.f32.mrf.mxu0
      %v1299 = vadd.f32 0.0, %v1298
      %1300 = vmatmul.f32.gmra.mxu0 %v1186
      %v1301 = vpop.f32.mrf.mxu0
      %v1302 = vadd.f32 0.0, %v1301
      %1303 = vmatmul.f32.gmra.mxu0 %v1189
      %v1304 = vpop.f32.mrf.mxu0
      %v1305 = vadd.f32 0.0, %v1304
      %1306 = vmatmul.f32.gmra.mxu0 %v1192
      %v1307 = vpop.f32.mrf.mxu0
      %v1308 = vadd.f32 0.0, %v1307
      %1309 = vmatmul.f32.gmra.mxu0 %v1195
      %v1310 = vpop.f32.mrf.mxu0
      %v1311 = vadd.f32 0.0, %v1310
      %1312 = vmatmul.f32.gmra.mxu0 %v1198
      %v1313 = vpop.f32.mrf.mxu0
      %v1314 = vadd.f32 0.0, %v1313
      %1315 = vmatmul.f32.gmra.mxu0 %v1201
      %v1316 = vpop.f32.mrf.mxu0
      %v1317 = vadd.f32 0.0, %v1316
      %1318 = vmatmul.f32.gmra.mxu0 %v1204
      %v1319 = vpop.f32.mrf.mxu0
      %v1320 = vadd.f32 0.0, %v1319
      %1321 = vmatmul.f32.gmra.mxu0 %v1207
      %v1322 = vpop.f32.mrf.mxu0
      %v1323 = vadd.f32 0.0, %v1322
      %1324 = vmatmul.f32.gmra.mxu0 %v1210
      %v1325 = vpop.f32.mrf.mxu0
      %v1326 = vadd.f32 0.0, %v1325
      %1327 = vmatmul.f32.gmra.mxu0 %v1213
      %v1328 = vpop.f32.mrf.mxu0
      %v1329 = vadd.f32 0.0, %v1328
      %1330 = vmatmul.f32.gmra.mxu0 %v1216
      %v1331 = vpop.f32.mrf.mxu0
      %v1332 = vadd.f32 0.0, %v1331
      %1333 = vmatmul.f32.gmra.mxu0 %v1219
      %v1334 = vpop.f32.mrf.mxu0
      %v1335 = vadd.f32 0.0, %v1334
      %1336 = vmatmul.f32.gmra.mxu0 %v1222
      %v1337 = vpop.f32.mrf.mxu0
      %v1338 = vadd.f32 0.0, %v1337
      %1339 = vmatmul.f32.gmra.mxu0 %v1225
      %v1340 = vpop.f32.mrf.mxu0
      %v1341 = vadd.f32 0.0, %v1340
      %1342 = vmatmul.f32.gmra.mxu0 %v1228
      %v1343 = vpop.f32.mrf.mxu0
      %v1344 = vadd.f32 0.0, %v1343
      %1345 = vmatmul.f32.gmra.mxu0 %v1231
      %v1346 = vpop.f32.mrf.mxu0
      %v1347 = vadd.f32 0.0, %v1346
      %1348 = vmatmul.f32.gmra.mxu0 %v1234
      %v1349 = vpop.f32.mrf.mxu0
      %v1350 = vadd.f32 0.0, %v1349
      %1351 = vmatmul.f32.gmra.mxu0 %v1237
      %v1352 = vpop.f32.mrf.mxu0
      %v1353 = vadd.f32 0.0, %v1352
      %1354 = vmatmul.f32.gmra.mxu0 %v1240
      %v1355 = vpop.f32.mrf.mxu0
      %v1356 = vadd.f32 0.0, %v1355
      %1357 = vmatmul.f32.gmra.mxu0 %v1243
      %v1358 = vpop.f32.mrf.mxu0
      %v1359 = vadd.f32 0.0, %v1358
      %1360 = vmatmul.f32.gmra.mxu0 %v1246
      %v1361 = vpop.f32.mrf.mxu0
      %v1362 = vadd.f32 0.0, %v1361
      %1363 = vmatmul.f32.gmra.mxu0 %v1249
      %v1364 = vpop.f32.mrf.mxu0
      %v1365 = vadd.f32 0.0, %v1364
      %1366 = vdwg.mxu0
      %v1367 = vadd.f32 %v1090, %v1272
      %v1368 = vadd.f32 %v1091, %v1275
      %v1369 = vadd.f32 %v1092, %v1278
      %v1370 = vadd.f32 %v1093, %v1281
      %v1371 = vadd.f32 %v1094, %v1284
      %v1372 = vadd.f32 %v1095, %v1287
      %v1373 = vadd.f32 %v1096, %v1290
      %v1374 = vadd.f32 %v1097, %v1293
      %v1375 = vadd.f32 %v1098, %v1296
      %v1376 = vadd.f32 %v1099, %v1299
      %v1377 = vadd.f32 %v1100, %v1302
      %v1378 = vadd.f32 %v1101, %v1305
      %v1379 = vadd.f32 %v1102, %v1308
      %v1380 = vadd.f32 %v1103, %v1311
      %v1381 = vadd.f32 %v1104, %v1314
      %v1382 = vadd.f32 %v1105, %v1317
      %v1383 = vadd.f32 %v1106, %v1320
      %v1384 = vadd.f32 %v1107, %v1323
      %v1385 = vadd.f32 %v1108, %v1326
      %v1386 = vadd.f32 %v1109, %v1329
      %v1387 = vadd.f32 %v1110, %v1332
      %v1388 = vadd.f32 %v1111, %v1335
      %v1389 = vadd.f32 %v1112, %v1338
      %v1390 = vadd.f32 %v1113, %v1341
      %v1391 = vadd.f32 %v1114, %v1344
      %v1392 = vadd.f32 %v1115, %v1347
      %v1393 = vadd.f32 %v1116, %v1350
      %v1394 = vadd.f32 %v1117, %v1353
      %v1395 = vadd.f32 %v1118, %v1356
      %v1396 = vadd.f32 %v1119, %v1359
      %v1397 = vadd.f32 %v1120, %v1362
      %v1398 = vadd.f32 %v1121, %v1365
      %v1399 = vld [vmem:[%s497 + $0x7] sm:$0xff]
      %v1400 = vld [vmem:[%s497 + $0xf] sm:$0xff]
      %v1401 = vld [vmem:[%s497 + $0x27] sm:$0xff]
      %v1402 = vld [vmem:[%s497 + $0x2f] sm:$0xff]
      %v1403 = vld [vmem:[%s497 + $0x47] sm:$0xff]
      %v1404 = vld [vmem:[%s497 + $0x4f] sm:$0xff]
      %v1405 = vld [vmem:[%s497 + $0x67] sm:$0xff]
      %v1406 = vld [vmem:[%s497 + $0x6f] sm:$0xff]
      %v1407 = vld [vmem:[%s497 + $0x87] sm:$0xff]
      %v1408 = vld [vmem:[%s497 + $0x8f] sm:$0xff]
      %v1409 = vld [vmem:[%s497 + $0xa7] sm:$0xff]
      %v1410 = vld [vmem:[%s497 + $0xaf] sm:$0xff]
      %v1411 = vld [vmem:[%s497 + $0xc7] sm:$0xff]
      %v1412 = vld [vmem:[%s497 + $0xcf] sm:$0xff]
      %v1413 = vld [vmem:[%s497 + $0xe7] sm:$0xff]
      %v1414 = vld [vmem:[%s497 + $0xef] sm:$0xff]
      %v1415 = vld [vmem:[%s497 + $0x107] sm:$0xff]
      %v1416 = vld [vmem:[%s497 + $0x10f] sm:$0xff]
      %v1417 = vld [vmem:[%s497 + $0x127] sm:$0xff]
      %v1418 = vld [vmem:[%s497 + $0x12f] sm:$0xff]
      %v1419 = vld [vmem:[%s497 + $0x147] sm:$0xff]
      %v1420 = vld [vmem:[%s497 + $0x14f] sm:$0xff]
      %v1421 = vld [vmem:[%s497 + $0x167] sm:$0xff]
      %v1422 = vld [vmem:[%s497 + $0x16f] sm:$0xff]
      %v1423 = vld [vmem:[%s497 + $0x187] sm:$0xff]
      %v1424 = vld [vmem:[%s497 + $0x18f] sm:$0xff]
      %v1425 = vld [vmem:[%s497 + $0x1a7] sm:$0xff]
      %v1426 = vld [vmem:[%s497 + $0x1af] sm:$0xff]
      %v1427 = vld [vmem:[%s497 + $0x1c7] sm:$0xff]
      %v1428 = vld [vmem:[%s497 + $0x1cf] sm:$0xff]
      %v1429 = vld [vmem:[%s497 + $0x1e7] sm:$0xff]
      %v1430 = vld [vmem:[%s497 + $0x1ef] sm:$0xff]
      %v1431 = vld [vmem:[%s2 + $0xc] sm:$0xf]
      %v1433 = vsel %vm488, %v1399, 0
      %v1436 = vsel %vm488, %v1400, 0
      %v1439 = vsel %vm488, %v1401, 0
      %v1442 = vsel %vm488, %v1402, 0
      %v1445 = vsel %vm488, %v1403, 0
      %v1448 = vsel %vm488, %v1404, 0
      %v1451 = vsel %vm488, %v1405, 0
      %v1454 = vsel %vm488, %v1406, 0
      %v1457 = vsel %vm488, %v1407, 0
      %v1460 = vsel %vm488, %v1408, 0
      %v1463 = vsel %vm488, %v1409, 0
      %v1466 = vsel %vm488, %v1410, 0
      %v1469 = vsel %vm488, %v1411, 0
      %v1472 = vsel %vm488, %v1412, 0
      %v1475 = vsel %vm488, %v1413, 0
      %v1478 = vsel %vm488, %v1414, 0
      %v1481 = vsel %vm488, %v1415, 0
      %v1484 = vsel %vm488, %v1416, 0
      %v1487 = vsel %vm488, %v1417, 0
      %v1490 = vsel %vm488, %v1418, 0
      %v1493 = vsel %vm488, %v1419, 0
      %v1496 = vsel %vm488, %v1420, 0
      %v1499 = vsel %vm488, %v1421, 0
      %v1502 = vsel %vm488, %v1422, 0
      %v1505 = vsel %vm488, %v1423, 0
      %v1508 = vsel %vm488, %v1424, 0
      %v1511 = vsel %vm488, %v1425, 0
      %v1514 = vsel %vm488, %v1426, 0
      %v1517 = vsel %vm488, %v1427, 0
      %v1520 = vsel %vm488, %v1428, 0
      %v1523 = vsel %vm488, %v1429, 0
      %v1526 = vsel %vm488, %v1430, 0
      %v1529 = vsel %vm696, %v1431, 0
      %1531 = vmatpush.msra.mxu0 0.0
      %1532 = vmatpush.msra.mxu0 0.0
      %1533 = vmatpush.msra.mxu0 0.0
      %1534 = vmatpush.msra.mxu0 0.0
      %1535 = vmatpush.msra.mxu0 0.0
      %1536 = vmatpush.msra.mxu0 0.0
      %1537 = vmatpush.msra.mxu0 0.0
      %1538 = vmatpush.msra.mxu0 0.0
      %1539 = vmatpush.msra.mxu0 0.0
      %1540 = vmatpush.msra.mxu0 0.0
      %1541 = vmatpush.msra.mxu0 0.0
      %1542 = vmatpush.msra.mxu0 0.0
      %1543 = vmatpush.msra.mxu0 0.0
      %1544 = vmatpush.msra.mxu0 0.0
      %1545 = vmatpush.msra.mxu0 0.0
      %1546 = vmatpush.msra.mxu0 %v1529
      %1547 = vmatmul.f32.gmra.mxu0 %v1433
      %v1548 = vpop.f32.mrf.mxu0
      %v1549 = vadd.f32 0.0, %v1548
      %1550 = vmatmul.f32.gmra.mxu0 %v1436
      %v1551 = vpop.f32.mrf.mxu0
      %v1552 = vadd.f32 0.0, %v1551
      %1553 = vmatmul.f32.gmra.mxu0 %v1439
      %v1554 = vpop.f32.mrf.mxu0
      %v1555 = vadd.f32 0.0, %v1554
      %1556 = vmatmul.f32.gmra.mxu0 %v1442
      %v1557 = vpop.f32.mrf.mxu0
      %v1558 = vadd.f32 0.0, %v1557
      %1559 = vmatmul.f32.gmra.mxu0 %v1445
      %v1560 = vpop.f32.mrf.mxu0
      %v1561 = vadd.f32 0.0, %v1560
      %1562 = vmatmul.f32.gmra.mxu0 %v1448
      %v1563 = vpop.f32.mrf.mxu0
      %v1564 = vadd.f32 0.0, %v1563
      %1565 = vmatmul.f32.gmra.mxu0 %v1451
      %v1566 = vpop.f32.mrf.mxu0
      %v1567 = vadd.f32 0.0, %v1566
      %1568 = vmatmul.f32.gmra.mxu0 %v1454
      %v1569 = vpop.f32.mrf.mxu0
      %v1570 = vadd.f32 0.0, %v1569
      %1571 = vmatmul.f32.gmra.mxu0 %v1457
      %v1572 = vpop.f32.mrf.mxu0
      %v1573 = vadd.f32 0.0, %v1572
      %1574 = vmatmul.f32.gmra.mxu0 %v1460
      %v1575 = vpop.f32.mrf.mxu0
      %v1576 = vadd.f32 0.0, %v1575
      %1577 = vmatmul.f32.gmra.mxu0 %v1463
      %v1578 = vpop.f32.mrf.mxu0
      %v1579 = vadd.f32 0.0, %v1578
      %1580 = vmatmul.f32.gmra.mxu0 %v1466
      %v1581 = vpop.f32.mrf.mxu0
      %v1582 = vadd.f32 0.0, %v1581
      %1583 = vmatmul.f32.gmra.mxu0 %v1469
      %v1584 = vpop.f32.mrf.mxu0
      %v1585 = vadd.f32 0.0, %v1584
      %1586 = vmatmul.f32.gmra.mxu0 %v1472
      %v1587 = vpop.f32.mrf.mxu0
      %v1588 = vadd.f32 0.0, %v1587
      %1589 = vmatmul.f32.gmra.mxu0 %v1475
      %v1590 = vpop.f32.mrf.mxu0
      %v1591 = vadd.f32 0.0, %v1590
      %1592 = vmatmul.f32.gmra.mxu0 %v1478
      %v1593 = vpop.f32.mrf.mxu0
      %v1594 = vadd.f32 0.0, %v1593
      %1595 = vmatmul.f32.gmra.mxu0 %v1481
      %v1596 = vpop.f32.mrf.mxu0
      %v1597 = vadd.f32 0.0, %v1596
      %1598 = vmatmul.f32.gmra.mxu0 %v1484
      %v1599 = vpop.f32.mrf.mxu0
      %v1600 = vadd.f32 0.0, %v1599
      %1601 = vmatmul.f32.gmra.mxu0 %v1487
      %v1602 = vpop.f32.mrf.mxu0
      %v1603 = vadd.f32 0.0, %v1602
      %1604 = vmatmul.f32.gmra.mxu0 %v1490
      %v1605 = vpop.f32.mrf.mxu0
      %v1606 = vadd.f32 0.0, %v1605
      %1607 = vmatmul.f32.gmra.mxu0 %v1493
      %v1608 = vpop.f32.mrf.mxu0
      %v1609 = vadd.f32 0.0, %v1608
      %1610 = vmatmul.f32.gmra.mxu0 %v1496
      %v1611 = vpop.f32.mrf.mxu0
      %v1612 = vadd.f32 0.0, %v1611
      %1613 = vmatmul.f32.gmra.mxu0 %v1499
      %v1614 = vpop.f32.mrf.mxu0
      %v1615 = vadd.f32 0.0, %v1614
      %1616 = vmatmul.f32.gmra.mxu0 %v1502
      %v1617 = vpop.f32.mrf.mxu0
      %v1618 = vadd.f32 0.0, %v1617
      %1619 = vmatmul.f32.gmra.mxu0 %v1505
      %v1620 = vpop.f32.mrf.mxu0
      %v1621 = vadd.f32 0.0, %v1620
      %1622 = vmatmul.f32.gmra.mxu0 %v1508
      %v1623 = vpop.f32.mrf.mxu0
      %v1624 = vadd.f32 0.0, %v1623
      %1625 = vmatmul.f32.gmra.mxu0 %v1511
      %v1626 = vpop.f32.mrf.mxu0
      %v1627 = vadd.f32 0.0, %v1626
      %1628 = vmatmul.f32.gmra.mxu0 %v1514
      %v1629 = vpop.f32.mrf.mxu0
      %v1630 = vadd.f32 0.0, %v1629
      %1631 = vmatmul.f32.gmra.mxu0 %v1517
      %v1632 = vpop.f32.mrf.mxu0
      %v1633 = vadd.f32 0.0, %v1632
      %1634 = vmatmul.f32.gmra.mxu0 %v1520
      %v1635 = vpop.f32.mrf.mxu0
      %v1636 = vadd.f32 0.0, %v1635
      %1637 = vmatmul.f32.gmra.mxu0 %v1523
      %v1638 = vpop.f32.mrf.mxu0
      %v1639 = vadd.f32 0.0, %v1638
      %1640 = vmatmul.f32.gmra.mxu0 %v1526
      %v1641 = vpop.f32.mrf.mxu0
      %v1642 = vadd.f32 0.0, %v1641
      %1643 = vdwg.mxu0
      %v1644 = vadd.f32 %v1367, %v1549
      %v1645 = vadd.f32 %v1368, %v1552
      %v1646 = vadd.f32 %v1369, %v1555
      %v1647 = vadd.f32 %v1370, %v1558
      %v1648 = vadd.f32 %v1371, %v1561
      %v1649 = vadd.f32 %v1372, %v1564
      %v1650 = vadd.f32 %v1373, %v1567
      %v1651 = vadd.f32 %v1374, %v1570
      %v1652 = vadd.f32 %v1375, %v1573
      %v1653 = vadd.f32 %v1376, %v1576
      %v1654 = vadd.f32 %v1377, %v1579
      %v1655 = vadd.f32 %v1378, %v1582
      %v1656 = vadd.f32 %v1379, %v1585
      %v1657 = vadd.f32 %v1380, %v1588
      %v1658 = vadd.f32 %v1381, %v1591
      %v1659 = vadd.f32 %v1382, %v1594
      %v1660 = vadd.f32 %v1383, %v1597
      %v1661 = vadd.f32 %v1384, %v1600
      %v1662 = vadd.f32 %v1385, %v1603
      %v1663 = vadd.f32 %v1386, %v1606
      %v1664 = vadd.f32 %v1387, %v1609
      %v1665 = vadd.f32 %v1388, %v1612
      %v1666 = vadd.f32 %v1389, %v1615
      %v1667 = vadd.f32 %v1390, %v1618
      %v1668 = vadd.f32 %v1391, %v1621
      %v1669 = vadd.f32 %v1392, %v1624
      %v1670 = vadd.f32 %v1393, %v1627
      %v1671 = vadd.f32 %v1394, %v1630
      %v1672 = vadd.f32 %v1395, %v1633
      %v1673 = vadd.f32 %v1396, %v1636
      %v1674 = vadd.f32 %v1397, %v1639
      %v1675 = vadd.f32 %v1398, %v1642
      %v1676 = vld [vmem:[%s497 + $0x8] sm:$0xff]
      %v1677 = vld [vmem:[%s497 + $0x10] sm:$0xff]
      %v1678 = vld [vmem:[%s497 + $0x28] sm:$0xff]
      %v1679 = vld [vmem:[%s497 + $0x30] sm:$0xff]
      %v1680 = vld [vmem:[%s497 + $0x48] sm:$0xff]
      %v1681 = vld [vmem:[%s497 + $0x50] sm:$0xff]
      %v1682 = vld [vmem:[%s497 + $0x68] sm:$0xff]
      %v1683 = vld [vmem:[%s497 + $0x70] sm:$0xff]
      %v1684 = vld [vmem:[%s497 + $0x88] sm:$0xff]
      %v1685 = vld [vmem:[%s497 + $0x90] sm:$0xff]
      %v1686 = vld [vmem:[%s497 + $0xa8] sm:$0xff]
      %v1687 = vld [vmem:[%s497 + $0xb0] sm:$0xff]
      %v1688 = vld [vmem:[%s497 + $0xc8] sm:$0xff]
      %v1689 = vld [vmem:[%s497 + $0xd0] sm:$0xff]
      %v1690 = vld [vmem:[%s497 + $0xe8] sm:$0xff]
      %v1691 = vld [vmem:[%s497 + $0xf0] sm:$0xff]
      %v1692 = vld [vmem:[%s497 + $0x108] sm:$0xff]
      %v1693 = vld [vmem:[%s497 + $0x110] sm:$0xff]
      %v1694 = vld [vmem:[%s497 + $0x128] sm:$0xff]
      %v1695 = vld [vmem:[%s497 + $0x130] sm:$0xff]
      %v1696 = vld [vmem:[%s497 + $0x148] sm:$0xff]
      %v1697 = vld [vmem:[%s497 + $0x150] sm:$0xff]
      %v1698 = vld [vmem:[%s497 + $0x168] sm:$0xff]
      %v1699 = vld [vmem:[%s497 + $0x170] sm:$0xff]
      %v1700 = vld [vmem:[%s497 + $0x188] sm:$0xff]
      %v1701 = vld [vmem:[%s497 + $0x190] sm:$0xff]
      %v1702 = vld [vmem:[%s497 + $0x1a8] sm:$0xff]
      %v1703 = vld [vmem:[%s497 + $0x1b0] sm:$0xff]
      %v1704 = vld [vmem:[%s497 + $0x1c8] sm:$0xff]
      %v1705 = vld [vmem:[%s497 + $0x1d0] sm:$0xff]
      %v1706 = vld [vmem:[%s497 + $0x1e8] sm:$0xff]
      %v1707 = vld [vmem:[%s497 + $0x1f0] sm:$0xff]
      %v1708 = vld [vmem:[%s2 + $0x10] sm:$0xf]
      %v1710 = vsel %vm488, %v1676, 0
      %v1713 = vsel %vm488, %v1677, 0
      %v1716 = vsel %vm488, %v1678, 0
      %v1719 = vsel %vm488, %v1679, 0
      %v1722 = vsel %vm488, %v1680, 0
      %v1725 = vsel %vm488, %v1681, 0
      %v1728 = vsel %vm488, %v1682, 0
      %v1731 = vsel %vm488, %v1683, 0
      %v1734 = vsel %vm488, %v1684, 0
      %v1737 = vsel %vm488, %v1685, 0
      %v1740 = vsel %vm488, %v1686, 0
      %v1743 = vsel %vm488, %v1687, 0
      %v1746 = vsel %vm488, %v1688, 0
      %v1749 = vsel %vm488, %v1689, 0
      %v1752 = vsel %vm488, %v1690, 0
      %v1755 = vsel %vm488, %v1691, 0
      %v1758 = vsel %vm488, %v1692, 0
      %v1761 = vsel %vm488, %v1693, 0
      %v1764 = vsel %vm488, %v1694, 0
      %v1767 = vsel %vm488, %v1695, 0
      %v1770 = vsel %vm488, %v1696, 0
      %v1773 = vsel %vm488, %v1697, 0
      %v1776 = vsel %vm488, %v1698, 0
      %v1779 = vsel %vm488, %v1699, 0
      %v1782 = vsel %vm488, %v1700, 0
      %v1785 = vsel %vm488, %v1701, 0
      %v1788 = vsel %vm488, %v1702, 0
      %v1791 = vsel %vm488, %v1703, 0
      %v1794 = vsel %vm488, %v1704, 0
      %v1797 = vsel %vm488, %v1705, 0
      %v1800 = vsel %vm488, %v1706, 0
      %v1803 = vsel %vm488, %v1707, 0
      %v1806 = vsel %vm696, %v1708, 0
      %1808 = vmatpush.msra.mxu0 0.0
      %1809 = vmatpush.msra.mxu0 0.0
      %1810 = vmatpush.msra.mxu0 0.0
      %1811 = vmatpush.msra.mxu0 0.0
      %1812 = vmatpush.msra.mxu0 0.0
      %1813 = vmatpush.msra.mxu0 0.0
      %1814 = vmatpush.msra.mxu0 0.0
      %1815 = vmatpush.msra.mxu0 0.0
      %1816 = vmatpush.msra.mxu0 0.0
      %1817 = vmatpush.msra.mxu0 0.0
      %1818 = vmatpush.msra.mxu0 0.0
      %1819 = vmatpush.msra.mxu0 0.0
      %1820 = vmatpush.msra.mxu0 0.0
      %1821 = vmatpush.msra.mxu0 0.0
      %1822 = vmatpush.msra.mxu0 0.0
      %1823 = vmatpush.msra.mxu0 %v1806
      %1824 = vmatmul.f32.gmra.mxu0 %v1710
      %v1825 = vpop.f32.mrf.mxu0
      %v1826 = vadd.f32 0.0, %v1825
      %1827 = vmatmul.f32.gmra.mxu0 %v1713
      %v1828 = vpop.f32.mrf.mxu0
      %v1829 = vadd.f32 0.0, %v1828
      %1830 = vmatmul.f32.gmra.mxu0 %v1716
      %v1831 = vpop.f32.mrf.mxu0
      %v1832 = vadd.f32 0.0, %v1831
      %1833 = vmatmul.f32.gmra.mxu0 %v1719
      %v1834 = vpop.f32.mrf.mxu0
      %v1835 = vadd.f32 0.0, %v1834
      %1836 = vmatmul.f32.gmra.mxu0 %v1722
      %v1837 = vpop.f32.mrf.mxu0
      %v1838 = vadd.f32 0.0, %v1837
      %1839 = vmatmul.f32.gmra.mxu0 %v1725
      %v1840 = vpop.f32.mrf.mxu0
      %v1841 = vadd.f32 0.0, %v1840
      %1842 = vmatmul.f32.gmra.mxu0 %v1728
      %v1843 = vpop.f32.mrf.mxu0
      %v1844 = vadd.f32 0.0, %v1843
      %1845 = vmatmul.f32.gmra.mxu0 %v1731
      %v1846 = vpop.f32.mrf.mxu0
      %v1847 = vadd.f32 0.0, %v1846
      %1848 = vmatmul.f32.gmra.mxu0 %v1734
      %v1849 = vpop.f32.mrf.mxu0
      %v1850 = vadd.f32 0.0, %v1849
      %1851 = vmatmul.f32.gmra.mxu0 %v1737
      %v1852 = vpop.f32.mrf.mxu0
      %v1853 = vadd.f32 0.0, %v1852
      %1854 = vmatmul.f32.gmra.mxu0 %v1740
      %v1855 = vpop.f32.mrf.mxu0
      %v1856 = vadd.f32 0.0, %v1855
      %1857 = vmatmul.f32.gmra.mxu0 %v1743
      %v1858 = vpop.f32.mrf.mxu0
      %v1859 = vadd.f32 0.0, %v1858
      %1860 = vmatmul.f32.gmra.mxu0 %v1746
      %v1861 = vpop.f32.mrf.mxu0
      %v1862 = vadd.f32 0.0, %v1861
      %1863 = vmatmul.f32.gmra.mxu0 %v1749
      %v1864 = vpop.f32.mrf.mxu0
      %v1865 = vadd.f32 0.0, %v1864
      %1866 = vmatmul.f32.gmra.mxu0 %v1752
      %v1867 = vpop.f32.mrf.mxu0
      %v1868 = vadd.f32 0.0, %v1867
      %1869 = vmatmul.f32.gmra.mxu0 %v1755
      %v1870 = vpop.f32.mrf.mxu0
      %v1871 = vadd.f32 0.0, %v1870
      %1872 = vmatmul.f32.gmra.mxu0 %v1758
      %v1873 = vpop.f32.mrf.mxu0
      %v1874 = vadd.f32 0.0, %v1873
      %1875 = vmatmul.f32.gmra.mxu0 %v1761
      %v1876 = vpop.f32.mrf.mxu0
      %v1877 = vadd.f32 0.0, %v1876
      %1878 = vmatmul.f32.gmra.mxu0 %v1764
      %v1879 = vpop.f32.mrf.mxu0
      %v1880 = vadd.f32 0.0, %v1879
      %1881 = vmatmul.f32.gmra.mxu0 %v1767
      %v1882 = vpop.f32.mrf.mxu0
      %v1883 = vadd.f32 0.0, %v1882
      %1884 = vmatmul.f32.gmra.mxu0 %v1770
      %v1885 = vpop.f32.mrf.mxu0
      %v1886 = vadd.f32 0.0, %v1885
      %1887 = vmatmul.f32.gmra.mxu0 %v1773
      %v1888 = vpop.f32.mrf.mxu0
      %v1889 = vadd.f32 0.0, %v1888
      %1890 = vmatmul.f32.gmra.mxu0 %v1776
      %v1891 = vpop.f32.mrf.mxu0
      %v1892 = vadd.f32 0.0, %v1891
      %1893 = vmatmul.f32.gmra.mxu0 %v1779
      %v1894 = vpop.f32.mrf.mxu0
      %v1895 = vadd.f32 0.0, %v1894
      %1896 = vmatmul.f32.gmra.mxu0 %v1782
      %v1897 = vpop.f32.mrf.mxu0
      %v1898 = vadd.f32 0.0, %v1897
      %1899 = vmatmul.f32.gmra.mxu0 %v1785
      %v1900 = vpop.f32.mrf.mxu0
      %v1901 = vadd.f32 0.0, %v1900
      %1902 = vmatmul.f32.gmra.mxu0 %v1788
      %v1903 = vpop.f32.mrf.mxu0
      %v1904 = vadd.f32 0.0, %v1903
      %1905 = vmatmul.f32.gmra.mxu0 %v1791
      %v1906 = vpop.f32.mrf.mxu0
      %v1907 = vadd.f32 0.0, %v1906
      %1908 = vmatmul.f32.gmra.mxu0 %v1794
      %v1909 = vpop.f32.mrf.mxu0
      %v1910 = vadd.f32 0.0, %v1909
      %1911 = vmatmul.f32.gmra.mxu0 %v1797
      %v1912 = vpop.f32.mrf.mxu0
      %v1913 = vadd.f32 0.0, %v1912
      %1914 = vmatmul.f32.gmra.mxu0 %v1800
      %v1915 = vpop.f32.mrf.mxu0
      %v1916 = vadd.f32 0.0, %v1915
      %1917 = vmatmul.f32.gmra.mxu0 %v1803
      %v1918 = vpop.f32.mrf.mxu0
      %v1919 = vadd.f32 0.0, %v1918
      %1920 = vdwg.mxu0
      %v1921 = vadd.f32 %v1644, %v1826
      %v1922 = vadd.f32 %v1645, %v1829
      %v1923 = vadd.f32 %v1646, %v1832
      %v1924 = vadd.f32 %v1647, %v1835
      %v1925 = vadd.f32 %v1648, %v1838
      %v1926 = vadd.f32 %v1649, %v1841
      %v1927 = vadd.f32 %v1650, %v1844
      %v1928 = vadd.f32 %v1651, %v1847
      %v1929 = vadd.f32 %v1652, %v1850
      %v1930 = vadd.f32 %v1653, %v1853
      %v1931 = vadd.f32 %v1654, %v1856
      %v1932 = vadd.f32 %v1655, %v1859
      %v1933 = vadd.f32 %v1656, %v1862
      %v1934 = vadd.f32 %v1657, %v1865
      %v1935 = vadd.f32 %v1658, %v1868
      %v1936 = vadd.f32 %v1659, %v1871
      %v1937 = vadd.f32 %v1660, %v1874
      %v1938 = vadd.f32 %v1661, %v1877
      %v1939 = vadd.f32 %v1662, %v1880
      %v1940 = vadd.f32 %v1663, %v1883
      %v1941 = vadd.f32 %v1664, %v1886
      %v1942 = vadd.f32 %v1665, %v1889
      %v1943 = vadd.f32 %v1666, %v1892
      %v1944 = vadd.f32 %v1667, %v1895
      %v1945 = vadd.f32 %v1668, %v1898
      %v1946 = vadd.f32 %v1669, %v1901
      %v1947 = vadd.f32 %v1670, %v1904
      %v1948 = vadd.f32 %v1671, %v1907
      %v1949 = vadd.f32 %v1672, %v1910
      %v1950 = vadd.f32 %v1673, %v1913
      %v1951 = vadd.f32 %v1674, %v1916
      %v1952 = vadd.f32 %v1675, %v1919
      %v1953 = vld [vmem:[%s497 + $0x9] sm:$0xff]
      %v1954 = vld [vmem:[%s497 + $0x11] sm:$0xff]
      %v1955 = vld [vmem:[%s497 + $0x29] sm:$0xff]
      %v1956 = vld [vmem:[%s497 + $0x31] sm:$0xff]
      %v1957 = vld [vmem:[%s497 + $0x49] sm:$0xff]
      %v1958 = vld [vmem:[%s497 + $0x51] sm:$0xff]
      %v1959 = vld [vmem:[%s497 + $0x69] sm:$0xff]
      %v1960 = vld [vmem:[%s497 + $0x71] sm:$0xff]
      %v1961 = vld [vmem:[%s497 + $0x89] sm:$0xff]
      %v1962 = vld [vmem:[%s497 + $0x91] sm:$0xff]
      %v1963 = vld [vmem:[%s497 + $0xa9] sm:$0xff]
      %v1964 = vld [vmem:[%s497 + $0xb1] sm:$0xff]
      %v1965 = vld [vmem:[%s497 + $0xc9] sm:$0xff]
      %v1966 = vld [vmem:[%s497 + $0xd1] sm:$0xff]
      %v1967 = vld [vmem:[%s497 + $0xe9] sm:$0xff]
      %v1968 = vld [vmem:[%s497 + $0xf1] sm:$0xff]
      %v1969 = vld [vmem:[%s497 + $0x109] sm:$0xff]
      %v1970 = vld [vmem:[%s497 + $0x111] sm:$0xff]
      %v1971 = vld [vmem:[%s497 + $0x129] sm:$0xff]
      %v1972 = vld [vmem:[%s497 + $0x131] sm:$0xff]
      %v1973 = vld [vmem:[%s497 + $0x149] sm:$0xff]
      %v1974 = vld [vmem:[%s497 + $0x151] sm:$0xff]
      %v1975 = vld [vmem:[%s497 + $0x169] sm:$0xff]
      %v1976 = vld [vmem:[%s497 + $0x171] sm:$0xff]
      %v1977 = vld [vmem:[%s497 + $0x189] sm:$0xff]
      %v1978 = vld [vmem:[%s497 + $0x191] sm:$0xff]
      %v1979 = vld [vmem:[%s497 + $0x1a9] sm:$0xff]
      %v1980 = vld [vmem:[%s497 + $0x1b1] sm:$0xff]
      %v1981 = vld [vmem:[%s497 + $0x1c9] sm:$0xff]
      %v1982 = vld [vmem:[%s497 + $0x1d1] sm:$0xff]
      %v1983 = vld [vmem:[%s497 + $0x1e9] sm:$0xff]
      %v1984 = vld [vmem:[%s497 + $0x1f1] sm:$0xff]
      %v1985 = vld [vmem:[%s2 + $0x14] sm:$0xf]
      %v1987 = vsel %vm488, %v1953, 0
      %v1990 = vsel %vm488, %v1954, 0
      %v1993 = vsel %vm488, %v1955, 0
      %v1996 = vsel %vm488, %v1956, 0
      %v1999 = vsel %vm488, %v1957, 0
      %v2002 = vsel %vm488, %v1958, 0
      %v2005 = vsel %vm488, %v1959, 0
      %v2008 = vsel %vm488, %v1960, 0
      %v2011 = vsel %vm488, %v1961, 0
      %v2014 = vsel %vm488, %v1962, 0
      %v2017 = vsel %vm488, %v1963, 0
      %v2020 = vsel %vm488, %v1964, 0
      %v2023 = vsel %vm488, %v1965, 0
      %v2026 = vsel %vm488, %v1966, 0
      %v2029 = vsel %vm488, %v1967, 0
      %v2032 = vsel %vm488, %v1968, 0
      %v2035 = vsel %vm488, %v1969, 0
      %v2038 = vsel %vm488, %v1970, 0
      %v2041 = vsel %vm488, %v1971, 0
      %v2044 = vsel %vm488, %v1972, 0
      %v2047 = vsel %vm488, %v1973, 0
      %v2050 = vsel %vm488, %v1974, 0
      %v2053 = vsel %vm488, %v1975, 0
      %v2056 = vsel %vm488, %v1976, 0
      %v2059 = vsel %vm488, %v1977, 0
      %v2062 = vsel %vm488, %v1978, 0
      %v2065 = vsel %vm488, %v1979, 0
      %v2068 = vsel %vm488, %v1980, 0
      %v2071 = vsel %vm488, %v1981, 0
      %v2074 = vsel %vm488, %v1982, 0
      %v2077 = vsel %vm488, %v1983, 0
      %v2080 = vsel %vm488, %v1984, 0
      %v2083 = vsel %vm696, %v1985, 0
      %2085 = vmatpush.msra.mxu0 0.0
      %2086 = vmatpush.msra.mxu0 0.0
      %2087 = vmatpush.msra.mxu0 0.0
      %2088 = vmatpush.msra.mxu0 0.0
      %2089 = vmatpush.msra.mxu0 0.0
      %2090 = vmatpush.msra.mxu0 0.0
      %2091 = vmatpush.msra.mxu0 0.0
      %2092 = vmatpush.msra.mxu0 0.0
      %2093 = vmatpush.msra.mxu0 0.0
      %2094 = vmatpush.msra.mxu0 0.0
      %2095 = vmatpush.msra.mxu0 0.0
      %2096 = vmatpush.msra.mxu0 0.0
      %2097 = vmatpush.msra.mxu0 0.0
      %2098 = vmatpush.msra.mxu0 0.0
      %2099 = vmatpush.msra.mxu0 0.0
      %2100 = vmatpush.msra.mxu0 %v2083
      %2101 = vmatmul.f32.gmra.mxu0 %v1987
      %v2102 = vpop.f32.mrf.mxu0
      %v2103 = vadd.f32 0.0, %v2102
      %2104 = vmatmul.f32.gmra.mxu0 %v1990
      %v2105 = vpop.f32.mrf.mxu0
      %v2106 = vadd.f32 0.0, %v2105
      %2107 = vmatmul.f32.gmra.mxu0 %v1993
      %v2108 = vpop.f32.mrf.mxu0
      %v2109 = vadd.f32 0.0, %v2108
      %2110 = vmatmul.f32.gmra.mxu0 %v1996
      %v2111 = vpop.f32.mrf.mxu0
      %v2112 = vadd.f32 0.0, %v2111
      %2113 = vmatmul.f32.gmra.mxu0 %v1999
      %v2114 = vpop.f32.mrf.mxu0
      %v2115 = vadd.f32 0.0, %v2114
      %2116 = vmatmul.f32.gmra.mxu0 %v2002
      %v2117 = vpop.f32.mrf.mxu0
      %v2118 = vadd.f32 0.0, %v2117
      %2119 = vmatmul.f32.gmra.mxu0 %v2005
      %v2120 = vpop.f32.mrf.mxu0
      %v2121 = vadd.f32 0.0, %v2120
      %2122 = vmatmul.f32.gmra.mxu0 %v2008
      %v2123 = vpop.f32.mrf.mxu0
      %v2124 = vadd.f32 0.0, %v2123
      %2125 = vmatmul.f32.gmra.mxu0 %v2011
      %v2126 = vpop.f32.mrf.mxu0
      %v2127 = vadd.f32 0.0, %v2126
      %2128 = vmatmul.f32.gmra.mxu0 %v2014
      %v2129 = vpop.f32.mrf.mxu0
      %v2130 = vadd.f32 0.0, %v2129
      %2131 = vmatmul.f32.gmra.mxu0 %v2017
      %v2132 = vpop.f32.mrf.mxu0
      %v2133 = vadd.f32 0.0, %v2132
      %2134 = vmatmul.f32.gmra.mxu0 %v2020
      %v2135 = vpop.f32.mrf.mxu0
      %v2136 = vadd.f32 0.0, %v2135
      %2137 = vmatmul.f32.gmra.mxu0 %v2023
      %v2138 = vpop.f32.mrf.mxu0
      %v2139 = vadd.f32 0.0, %v2138
      %2140 = vmatmul.f32.gmra.mxu0 %v2026
      %v2141 = vpop.f32.mrf.mxu0
      %v2142 = vadd.f32 0.0, %v2141
      %2143 = vmatmul.f32.gmra.mxu0 %v2029
      %v2144 = vpop.f32.mrf.mxu0
      %v2145 = vadd.f32 0.0, %v2144
      %2146 = vmatmul.f32.gmra.mxu0 %v2032
      %v2147 = vpop.f32.mrf.mxu0
      %v2148 = vadd.f32 0.0, %v2147
      %2149 = vmatmul.f32.gmra.mxu0 %v2035
      %v2150 = vpop.f32.mrf.mxu0
      %v2151 = vadd.f32 0.0, %v2150
      %2152 = vmatmul.f32.gmra.mxu0 %v2038
      %v2153 = vpop.f32.mrf.mxu0
      %v2154 = vadd.f32 0.0, %v2153
      %2155 = vmatmul.f32.gmra.mxu0 %v2041
      %v2156 = vpop.f32.mrf.mxu0
      %v2157 = vadd.f32 0.0, %v2156
      %2158 = vmatmul.f32.gmra.mxu0 %v2044
      %v2159 = vpop.f32.mrf.mxu0
      %v2160 = vadd.f32 0.0, %v2159
      %2161 = vmatmul.f32.gmra.mxu0 %v2047
      %v2162 = vpop.f32.mrf.mxu0
      %v2163 = vadd.f32 0.0, %v2162
      %2164 = vmatmul.f32.gmra.mxu0 %v2050
      %v2165 = vpop.f32.mrf.mxu0
      %v2166 = vadd.f32 0.0, %v2165
      %2167 = vmatmul.f32.gmra.mxu0 %v2053
      %v2168 = vpop.f32.mrf.mxu0
      %v2169 = vadd.f32 0.0, %v2168
      %2170 = vmatmul.f32.gmra.mxu0 %v2056
      %v2171 = vpop.f32.mrf.mxu0
      %v2172 = vadd.f32 0.0, %v2171
      %2173 = vmatmul.f32.gmra.mxu0 %v2059
      %v2174 = vpop.f32.mrf.mxu0
      %v2175 = vadd.f32 0.0, %v2174
      %2176 = vmatmul.f32.gmra.mxu0 %v2062
      %v2177 = vpop.f32.mrf.mxu0
      %v2178 = vadd.f32 0.0, %v2177
      %2179 = vmatmul.f32.gmra.mxu0 %v2065
      %v2180 = vpop.f32.mrf.mxu0
      %v2181 = vadd.f32 0.0, %v2180
      %2182 = vmatmul.f32.gmra.mxu0 %v2068
      %v2183 = vpop.f32.mrf.mxu0
      %v2184 = vadd.f32 0.0, %v2183
      %2185 = vmatmul.f32.gmra.mxu0 %v2071
      %v2186 = vpop.f32.mrf.mxu0
      %v2187 = vadd.f32 0.0, %v2186
      %2188 = vmatmul.f32.gmra.mxu0 %v2074
      %v2189 = vpop.f32.mrf.mxu0
      %v2190 = vadd.f32 0.0, %v2189
      %2191 = vmatmul.f32.gmra.mxu0 %v2077
      %v2192 = vpop.f32.mrf.mxu0
      %v2193 = vadd.f32 0.0, %v2192
      %2194 = vmatmul.f32.gmra.mxu0 %v2080
      %v2195 = vpop.f32.mrf.mxu0
      %v2196 = vadd.f32 0.0, %v2195
      %2197 = vdwg.mxu0
      %v2198 = vadd.f32 %v1921, %v2103
      %v2199 = vadd.f32 %v1922, %v2106
      %v2200 = vadd.f32 %v1923, %v2109
      %v2201 = vadd.f32 %v1924, %v2112
      %v2202 = vadd.f32 %v1925, %v2115
      %v2203 = vadd.f32 %v1926, %v2118
      %v2204 = vadd.f32 %v1927, %v2121
      %v2205 = vadd.f32 %v1928, %v2124
      %v2206 = vadd.f32 %v1929, %v2127
      %v2207 = vadd.f32 %v1930, %v2130
      %v2208 = vadd.f32 %v1931, %v2133
      %v2209 = vadd.f32 %v1932, %v2136
      %v2210 = vadd.f32 %v1933, %v2139
      %v2211 = vadd.f32 %v1934, %v2142
      %v2212 = vadd.f32 %v1935, %v2145
      %v2213 = vadd.f32 %v1936, %v2148
      %v2214 = vadd.f32 %v1937, %v2151
      %v2215 = vadd.f32 %v1938, %v2154
      %v2216 = vadd.f32 %v1939, %v2157
      %v2217 = vadd.f32 %v1940, %v2160
      %v2218 = vadd.f32 %v1941, %v2163
      %v2219 = vadd.f32 %v1942, %v2166
      %v2220 = vadd.f32 %v1943, %v2169
      %v2221 = vadd.f32 %v1944, %v2172
      %v2222 = vadd.f32 %v1945, %v2175
      %v2223 = vadd.f32 %v1946, %v2178
      %v2224 = vadd.f32 %v1947, %v2181
      %v2225 = vadd.f32 %v1948, %v2184
      %v2226 = vadd.f32 %v1949, %v2187
      %v2227 = vadd.f32 %v1950, %v2190
      %v2228 = vadd.f32 %v1951, %v2193
      %v2229 = vadd.f32 %v1952, %v2196
      %s2230 = scalar_lea.vmem [#allocation2], 64
      %v2231 = vld [vmem:[%s2230 + $0x7] sm:$0xff]
      %v2232 = vld [vmem:[%s2230 + $0xf] sm:$0xff]
      %v2233 = vld [vmem:[%s2230 + $0x27] sm:$0xff]
      %v2234 = vld [vmem:[%s2230 + $0x2f] sm:$0xff]
      %v2235 = vld [vmem:[%s2230 + $0x47] sm:$0xff]
      %v2236 = vld [vmem:[%s2230 + $0x4f] sm:$0xff]
      %v2237 = vld [vmem:[%s2230 + $0x67] sm:$0xff]
      %v2238 = vld [vmem:[%s2230 + $0x6f] sm:$0xff]
      %v2239 = vld [vmem:[%s2230 + $0x87] sm:$0xff]
      %v2240 = vld [vmem:[%s2230 + $0x8f] sm:$0xff]
      %v2241 = vld [vmem:[%s2230 + $0xa7] sm:$0xff]
      %v2242 = vld [vmem:[%s2230 + $0xaf] sm:$0xff]
      %v2243 = vld [vmem:[%s2230 + $0xc7] sm:$0xff]
      %v2244 = vld [vmem:[%s2230 + $0xcf] sm:$0xff]
      %v2245 = vld [vmem:[%s2230 + $0xe7] sm:$0xff]
      %v2246 = vld [vmem:[%s2230 + $0xef] sm:$0xff]
      %v2247 = vld [vmem:[%s2230 + $0x107] sm:$0xff]
      %v2248 = vld [vmem:[%s2230 + $0x10f] sm:$0xff]
      %v2249 = vld [vmem:[%s2230 + $0x127] sm:$0xff]
      %v2250 = vld [vmem:[%s2230 + $0x12f] sm:$0xff]
      %v2251 = vld [vmem:[%s2230 + $0x147] sm:$0xff]
      %v2252 = vld [vmem:[%s2230 + $0x14f] sm:$0xff]
      %v2253 = vld [vmem:[%s2230 + $0x167] sm:$0xff]
      %v2254 = vld [vmem:[%s2230 + $0x16f] sm:$0xff]
      %v2255 = vld [vmem:[%s2230 + $0x187] sm:$0xff]
      %v2256 = vld [vmem:[%s2230 + $0x18f] sm:$0xff]
      %v2257 = vld [vmem:[%s2230 + $0x1a7] sm:$0xff]
      %v2258 = vld [vmem:[%s2230 + $0x1af] sm:$0xff]
      %v2259 = vld [vmem:[%s2230 + $0x1c7] sm:$0xff]
      %v2260 = vld [vmem:[%s2230 + $0x1cf] sm:$0xff]
      %v2261 = vld [vmem:[%s2230 + $0x1e7] sm:$0xff]
      %v2262 = vld [vmem:[%s2230 + $0x1ef] sm:$0xff]
      %v2263 = vld [vmem:[%s2 + $0x18] sm:$0xf]
      %v2265 = vsel %vm488, %v2231, 0
      %v2268 = vsel %vm488, %v2232, 0
      %v2271 = vsel %vm488, %v2233, 0
      %v2274 = vsel %vm488, %v2234, 0
      %v2277 = vsel %vm488, %v2235, 0
      %v2280 = vsel %vm488, %v2236, 0
      %v2283 = vsel %vm488, %v2237, 0
      %v2286 = vsel %vm488, %v2238, 0
      %v2289 = vsel %vm488, %v2239, 0
      %v2292 = vsel %vm488, %v2240, 0
      %v2295 = vsel %vm488, %v2241, 0
      %v2298 = vsel %vm488, %v2242, 0
      %v2301 = vsel %vm488, %v2243, 0
      %v2304 = vsel %vm488, %v2244, 0
      %v2307 = vsel %vm488, %v2245, 0
      %v2310 = vsel %vm488, %v2246, 0
      %v2313 = vsel %vm488, %v2247, 0
      %v2316 = vsel %vm488, %v2248, 0
      %v2319 = vsel %vm488, %v2249, 0
      %v2322 = vsel %vm488, %v2250, 0
      %v2325 = vsel %vm488, %v2251, 0
      %v2328 = vsel %vm488, %v2252, 0
      %v2331 = vsel %vm488, %v2253, 0
      %v2334 = vsel %vm488, %v2254, 0
      %v2337 = vsel %vm488, %v2255, 0
      %v2340 = vsel %vm488, %v2256, 0
      %v2343 = vsel %vm488, %v2257, 0
      %v2346 = vsel %vm488, %v2258, 0
      %v2349 = vsel %vm488, %v2259, 0
      %v2352 = vsel %vm488, %v2260, 0
      %v2355 = vsel %vm488, %v2261, 0
      %v2358 = vsel %vm488, %v2262, 0
      %v2361 = vsel %vm696, %v2263, 0
      %2363 = vmatpush.msra.mxu0 0.0
      %2364 = vmatpush.msra.mxu0 0.0
      %2365 = vmatpush.msra.mxu0 0.0
      %2366 = vmatpush.msra.mxu0 0.0
      %2367 = vmatpush.msra.mxu0 0.0
      %2368 = vmatpush.msra.mxu0 0.0
      %2369 = vmatpush.msra.mxu0 0.0
      %2370 = vmatpush.msra.mxu0 0.0
      %2371 = vmatpush.msra.mxu0 0.0
      %2372 = vmatpush.msra.mxu0 0.0
      %2373 = vmatpush.msra.mxu0 0.0
      %2374 = vmatpush.msra.mxu0 0.0
      %2375 = vmatpush.msra.mxu0 0.0
      %2376 = vmatpush.msra.mxu0 0.0
      %2377 = vmatpush.msra.mxu0 0.0
      %2378 = vmatpush.msra.mxu0 %v2361
      %2379 = vmatmul.f32.gmra.mxu0 %v2265
      %v2380 = vpop.f32.mrf.mxu0
      %v2381 = vadd.f32 0.0, %v2380
      %2382 = vmatmul.f32.gmra.mxu0 %v2268
      %v2383 = vpop.f32.mrf.mxu0
      %v2384 = vadd.f32 0.0, %v2383
      %2385 = vmatmul.f32.gmra.mxu0 %v2271
      %v2386 = vpop.f32.mrf.mxu0
      %v2387 = vadd.f32 0.0, %v2386
      %2388 = vmatmul.f32.gmra.mxu0 %v2274
      %v2389 = vpop.f32.mrf.mxu0
      %v2390 = vadd.f32 0.0, %v2389
      %2391 = vmatmul.f32.gmra.mxu0 %v2277
      %v2392 = vpop.f32.mrf.mxu0
      %v2393 = vadd.f32 0.0, %v2392
      %2394 = vmatmul.f32.gmra.mxu0 %v2280
      %v2395 = vpop.f32.mrf.mxu0
      %v2396 = vadd.f32 0.0, %v2395
      %2397 = vmatmul.f32.gmra.mxu0 %v2283
      %v2398 = vpop.f32.mrf.mxu0
      %v2399 = vadd.f32 0.0, %v2398
      %2400 = vmatmul.f32.gmra.mxu0 %v2286
      %v2401 = vpop.f32.mrf.mxu0
      %v2402 = vadd.f32 0.0, %v2401
      %2403 = vmatmul.f32.gmra.mxu0 %v2289
      %v2404 = vpop.f32.mrf.mxu0
      %v2405 = vadd.f32 0.0, %v2404
      %2406 = vmatmul.f32.gmra.mxu0 %v2292
      %v2407 = vpop.f32.mrf.mxu0
      %v2408 = vadd.f32 0.0, %v2407
      %2409 = vmatmul.f32.gmra.mxu0 %v2295
      %v2410 = vpop.f32.mrf.mxu0
      %v2411 = vadd.f32 0.0, %v2410
      %2412 = vmatmul.f32.gmra.mxu0 %v2298
      %v2413 = vpop.f32.mrf.mxu0
      %v2414 = vadd.f32 0.0, %v2413
      %2415 = vmatmul.f32.gmra.mxu0 %v2301
      %v2416 = vpop.f32.mrf.mxu0
      %v2417 = vadd.f32 0.0, %v2416
      %2418 = vmatmul.f32.gmra.mxu0 %v2304
      %v2419 = vpop.f32.mrf.mxu0
      %v2420 = vadd.f32 0.0, %v2419
      %2421 = vmatmul.f32.gmra.mxu0 %v2307
      %v2422 = vpop.f32.mrf.mxu0
      %v2423 = vadd.f32 0.0, %v2422
      %2424 = vmatmul.f32.gmra.mxu0 %v2310
      %v2425 = vpop.f32.mrf.mxu0
      %v2426 = vadd.f32 0.0, %v2425
      %2427 = vmatmul.f32.gmra.mxu0 %v2313
      %v2428 = vpop.f32.mrf.mxu0
      %v2429 = vadd.f32 0.0, %v2428
      %2430 = vmatmul.f32.gmra.mxu0 %v2316
      %v2431 = vpop.f32.mrf.mxu0
      %v2432 = vadd.f32 0.0, %v2431
      %2433 = vmatmul.f32.gmra.mxu0 %v2319
      %v2434 = vpop.f32.mrf.mxu0
      %v2435 = vadd.f32 0.0, %v2434
      %2436 = vmatmul.f32.gmra.mxu0 %v2322
      %v2437 = vpop.f32.mrf.mxu0
      %v2438 = vadd.f32 0.0, %v2437
      %2439 = vmatmul.f32.gmra.mxu0 %v2325
      %v2440 = vpop.f32.mrf.mxu0
      %v2441 = vadd.f32 0.0, %v2440
      %2442 = vmatmul.f32.gmra.mxu0 %v2328
      %v2443 = vpop.f32.mrf.mxu0
      %v2444 = vadd.f32 0.0, %v2443
      %2445 = vmatmul.f32.gmra.mxu0 %v2331
      %v2446 = vpop.f32.mrf.mxu0
      %v2447 = vadd.f32 0.0, %v2446
      %2448 = vmatmul.f32.gmra.mxu0 %v2334
      %v2449 = vpop.f32.mrf.mxu0
      %v2450 = vadd.f32 0.0, %v2449
      %2451 = vmatmul.f32.gmra.mxu0 %v2337
      %v2452 = vpop.f32.mrf.mxu0
      %v2453 = vadd.f32 0.0, %v2452
      %2454 = vmatmul.f32.gmra.mxu0 %v2340
      %v2455 = vpop.f32.mrf.mxu0
      %v2456 = vadd.f32 0.0, %v2455
      %2457 = vmatmul.f32.gmra.mxu0 %v2343
      %v2458 = vpop.f32.mrf.mxu0
      %v2459 = vadd.f32 0.0, %v2458
      %2460 = vmatmul.f32.gmra.mxu0 %v2346
      %v2461 = vpop.f32.mrf.mxu0
      %v2462 = vadd.f32 0.0, %v2461
      %2463 = vmatmul.f32.gmra.mxu0 %v2349
      %v2464 = vpop.f32.mrf.mxu0
      %v2465 = vadd.f32 0.0, %v2464
      %2466 = vmatmul.f32.gmra.mxu0 %v2352
      %v2467 = vpop.f32.mrf.mxu0
      %v2468 = vadd.f32 0.0, %v2467
      %2469 = vmatmul.f32.gmra.mxu0 %v2355
      %v2470 = vpop.f32.mrf.mxu0
      %v2471 = vadd.f32 0.0, %v2470
      %2472 = vmatmul.f32.gmra.mxu0 %v2358
      %v2473 = vpop.f32.mrf.mxu0
      %v2474 = vadd.f32 0.0, %v2473
      %2475 = vdwg.mxu0
      %v2476 = vadd.f32 %v2198, %v2381
      %v2477 = vadd.f32 %v2199, %v2384
      %v2478 = vadd.f32 %v2200, %v2387
      %v2479 = vadd.f32 %v2201, %v2390
      %v2480 = vadd.f32 %v2202, %v2393
      %v2481 = vadd.f32 %v2203, %v2396
      %v2482 = vadd.f32 %v2204, %v2399
      %v2483 = vadd.f32 %v2205, %v2402
      %v2484 = vadd.f32 %v2206, %v2405
      %v2485 = vadd.f32 %v2207, %v2408
      %v2486 = vadd.f32 %v2208, %v2411
      %v2487 = vadd.f32 %v2209, %v2414
      %v2488 = vadd.f32 %v2210, %v2417
      %v2489 = vadd.f32 %v2211, %v2420
      %v2490 = vadd.f32 %v2212, %v2423
      %v2491 = vadd.f32 %v2213, %v2426
      %v2492 = vadd.f32 %v2214, %v2429
      %v2493 = vadd.f32 %v2215, %v2432
      %v2494 = vadd.f32 %v2216, %v2435
      %v2495 = vadd.f32 %v2217, %v2438
      %v2496 = vadd.f32 %v2218, %v2441
      %v2497 = vadd.f32 %v2219, %v2444
      %v2498 = vadd.f32 %v2220, %v2447
      %v2499 = vadd.f32 %v2221, %v2450
      %v2500 = vadd.f32 %v2222, %v2453
      %v2501 = vadd.f32 %v2223, %v2456
      %v2502 = vadd.f32 %v2224, %v2459
      %v2503 = vadd.f32 %v2225, %v2462
      %v2504 = vadd.f32 %v2226, %v2465
      %v2505 = vadd.f32 %v2227, %v2468
      %v2506 = vadd.f32 %v2228, %v2471
      %v2507 = vadd.f32 %v2229, %v2474
      %v2508 = vld [vmem:[%s2230 + $0x8] sm:$0xff]
      %v2509 = vld [vmem:[%s2230 + $0x10] sm:$0xff]
      %v2510 = vld [vmem:[%s2230 + $0x28] sm:$0xff]
      %v2511 = vld [vmem:[%s2230 + $0x30] sm:$0xff]
      %v2512 = vld [vmem:[%s2230 + $0x48] sm:$0xff]
      %v2513 = vld [vmem:[%s2230 + $0x50] sm:$0xff]
      %v2514 = vld [vmem:[%s2230 + $0x68] sm:$0xff]
      %v2515 = vld [vmem:[%s2230 + $0x70] sm:$0xff]
      %v2516 = vld [vmem:[%s2230 + $0x88] sm:$0xff]
      %v2517 = vld [vmem:[%s2230 + $0x90] sm:$0xff]
      %v2518 = vld [vmem:[%s2230 + $0xa8] sm:$0xff]
      %v2519 = vld [vmem:[%s2230 + $0xb0] sm:$0xff]
      %v2520 = vld [vmem:[%s2230 + $0xc8] sm:$0xff]
      %v2521 = vld [vmem:[%s2230 + $0xd0] sm:$0xff]
      %v2522 = vld [vmem:[%s2230 + $0xe8] sm:$0xff]
      %v2523 = vld [vmem:[%s2230 + $0xf0] sm:$0xff]
      %v2524 = vld [vmem:[%s2230 + $0x108] sm:$0xff]
      %v2525 = vld [vmem:[%s2230 + $0x110] sm:$0xff]
      %v2526 = vld [vmem:[%s2230 + $0x128] sm:$0xff]
      %v2527 = vld [vmem:[%s2230 + $0x130] sm:$0xff]
      %v2528 = vld [vmem:[%s2230 + $0x148] sm:$0xff]
      %v2529 = vld [vmem:[%s2230 + $0x150] sm:$0xff]
      %v2530 = vld [vmem:[%s2230 + $0x168] sm:$0xff]
      %v2531 = vld [vmem:[%s2230 + $0x170] sm:$0xff]
      %v2532 = vld [vmem:[%s2230 + $0x188] sm:$0xff]
      %v2533 = vld [vmem:[%s2230 + $0x190] sm:$0xff]
      %v2534 = vld [vmem:[%s2230 + $0x1a8] sm:$0xff]
      %v2535 = vld [vmem:[%s2230 + $0x1b0] sm:$0xff]
      %v2536 = vld [vmem:[%s2230 + $0x1c8] sm:$0xff]
      %v2537 = vld [vmem:[%s2230 + $0x1d0] sm:$0xff]
      %v2538 = vld [vmem:[%s2230 + $0x1e8] sm:$0xff]
      %v2539 = vld [vmem:[%s2230 + $0x1f0] sm:$0xff]
      %v2540 = vld [vmem:[%s2 + $0x1c] sm:$0xf]
      %v2542 = vsel %vm488, %v2508, 0
      %v2545 = vsel %vm488, %v2509, 0
      %v2548 = vsel %vm488, %v2510, 0
      %v2551 = vsel %vm488, %v2511, 0
      %v2554 = vsel %vm488, %v2512, 0
      %v2557 = vsel %vm488, %v2513, 0
      %v2560 = vsel %vm488, %v2514, 0
      %v2563 = vsel %vm488, %v2515, 0
      %v2566 = vsel %vm488, %v2516, 0
      %v2569 = vsel %vm488, %v2517, 0
      %v2572 = vsel %vm488, %v2518, 0
      %v2575 = vsel %vm488, %v2519, 0
      %v2578 = vsel %vm488, %v2520, 0
      %v2581 = vsel %vm488, %v2521, 0
      %v2584 = vsel %vm488, %v2522, 0
      %v2587 = vsel %vm488, %v2523, 0
      %v2590 = vsel %vm488, %v2524, 0
      %v2593 = vsel %vm488, %v2525, 0
      %v2596 = vsel %vm488, %v2526, 0
      %v2599 = vsel %vm488, %v2527, 0
      %v2602 = vsel %vm488, %v2528, 0
      %v2605 = vsel %vm488, %v2529, 0
      %v2608 = vsel %vm488, %v2530, 0
      %v2611 = vsel %vm488, %v2531, 0
      %v2614 = vsel %vm488, %v2532, 0
      %v2617 = vsel %vm488, %v2533, 0
      %v2620 = vsel %vm488, %v2534, 0
      %v2623 = vsel %vm488, %v2535, 0
      %v2626 = vsel %vm488, %v2536, 0
      %v2629 = vsel %vm488, %v2537, 0
      %v2632 = vsel %vm488, %v2538, 0
      %v2635 = vsel %vm488, %v2539, 0
      %v2638 = vsel %vm696, %v2540, 0
      %2640 = vmatpush.msra.mxu0 0.0
      %2641 = vmatpush.msra.mxu0 0.0
      %2642 = vmatpush.msra.mxu0 0.0
      %2643 = vmatpush.msra.mxu0 0.0
      %2644 = vmatpush.msra.mxu0 0.0
      %2645 = vmatpush.msra.mxu0 0.0
      %2646 = vmatpush.msra.mxu0 0.0
      %2647 = vmatpush.msra.mxu0 0.0
      %2648 = vmatpush.msra.mxu0 0.0
      %2649 = vmatpush.msra.mxu0 0.0
      %2650 = vmatpush.msra.mxu0 0.0
      %2651 = vmatpush.msra.mxu0 0.0
      %2652 = vmatpush.msra.mxu0 0.0
      %2653 = vmatpush.msra.mxu0 0.0
      %2654 = vmatpush.msra.mxu0 0.0
      %2655 = vmatpush.msra.mxu0 %v2638
      %2656 = vmatmul.f32.gmra.mxu0 %v2542
      %v2657 = vpop.f32.mrf.mxu0
      %v2658 = vadd.f32 0.0, %v2657
      %2659 = vmatmul.f32.gmra.mxu0 %v2545
      %v2660 = vpop.f32.mrf.mxu0
      %v2661 = vadd.f32 0.0, %v2660
      %2662 = vmatmul.f32.gmra.mxu0 %v2548
      %v2663 = vpop.f32.mrf.mxu0
      %v2664 = vadd.f32 0.0, %v2663
      %2665 = vmatmul.f32.gmra.mxu0 %v2551
      %v2666 = vpop.f32.mrf.mxu0
      %v2667 = vadd.f32 0.0, %v2666
      %2668 = vmatmul.f32.gmra.mxu0 %v2554
      %v2669 = vpop.f32.mrf.mxu0
      %v2670 = vadd.f32 0.0, %v2669
      %2671 = vmatmul.f32.gmra.mxu0 %v2557
      %v2672 = vpop.f32.mrf.mxu0
      %v2673 = vadd.f32 0.0, %v2672
      %2674 = vmatmul.f32.gmra.mxu0 %v2560
      %v2675 = vpop.f32.mrf.mxu0
      %v2676 = vadd.f32 0.0, %v2675
      %2677 = vmatmul.f32.gmra.mxu0 %v2563
      %v2678 = vpop.f32.mrf.mxu0
      %v2679 = vadd.f32 0.0, %v2678
      %2680 = vmatmul.f32.gmra.mxu0 %v2566
      %v2681 = vpop.f32.mrf.mxu0
      %v2682 = vadd.f32 0.0, %v2681
      %2683 = vmatmul.f32.gmra.mxu0 %v2569
      %v2684 = vpop.f32.mrf.mxu0
      %v2685 = vadd.f32 0.0, %v2684
      %2686 = vmatmul.f32.gmra.mxu0 %v2572
      %v2687 = vpop.f32.mrf.mxu0
      %v2688 = vadd.f32 0.0, %v2687
      %2689 = vmatmul.f32.gmra.mxu0 %v2575
      %v2690 = vpop.f32.mrf.mxu0
      %v2691 = vadd.f32 0.0, %v2690
      %2692 = vmatmul.f32.gmra.mxu0 %v2578
      %v2693 = vpop.f32.mrf.mxu0
      %v2694 = vadd.f32 0.0, %v2693
      %2695 = vmatmul.f32.gmra.mxu0 %v2581
      %v2696 = vpop.f32.mrf.mxu0
      %v2697 = vadd.f32 0.0, %v2696
      %2698 = vmatmul.f32.gmra.mxu0 %v2584
      %v2699 = vpop.f32.mrf.mxu0
      %v2700 = vadd.f32 0.0, %v2699
      %2701 = vmatmul.f32.gmra.mxu0 %v2587
      %v2702 = vpop.f32.mrf.mxu0
      %v2703 = vadd.f32 0.0, %v2702
      %2704 = vmatmul.f32.gmra.mxu0 %v2590
      %v2705 = vpop.f32.mrf.mxu0
      %v2706 = vadd.f32 0.0, %v2705
      %2707 = vmatmul.f32.gmra.mxu0 %v2593
      %v2708 = vpop.f32.mrf.mxu0
      %v2709 = vadd.f32 0.0, %v2708
      %2710 = vmatmul.f32.gmra.mxu0 %v2596
      %v2711 = vpop.f32.mrf.mxu0
      %v2712 = vadd.f32 0.0, %v2711
      %2713 = vmatmul.f32.gmra.mxu0 %v2599
      %v2714 = vpop.f32.mrf.mxu0
      %v2715 = vadd.f32 0.0, %v2714
      %2716 = vmatmul.f32.gmra.mxu0 %v2602
      %v2717 = vpop.f32.mrf.mxu0
      %v2718 = vadd.f32 0.0, %v2717
      %2719 = vmatmul.f32.gmra.mxu0 %v2605
      %v2720 = vpop.f32.mrf.mxu0
      %v2721 = vadd.f32 0.0, %v2720
      %2722 = vmatmul.f32.gmra.mxu0 %v2608
      %v2723 = vpop.f32.mrf.mxu0
      %v2724 = vadd.f32 0.0, %v2723
      %2725 = vmatmul.f32.gmra.mxu0 %v2611
      %v2726 = vpop.f32.mrf.mxu0
      %v2727 = vadd.f32 0.0, %v2726
      %2728 = vmatmul.f32.gmra.mxu0 %v2614
      %v2729 = vpop.f32.mrf.mxu0
      %v2730 = vadd.f32 0.0, %v2729
      %2731 = vmatmul.f32.gmra.mxu0 %v2617
      %v2732 = vpop.f32.mrf.mxu0
      %v2733 = vadd.f32 0.0, %v2732
      %2734 = vmatmul.f32.gmra.mxu0 %v2620
      %v2735 = vpop.f32.mrf.mxu0
      %v2736 = vadd.f32 0.0, %v2735
      %2737 = vmatmul.f32.gmra.mxu0 %v2623
      %v2738 = vpop.f32.mrf.mxu0
      %v2739 = vadd.f32 0.0, %v2738
      %2740 = vmatmul.f32.gmra.mxu0 %v2626
      %v2741 = vpop.f32.mrf.mxu0
      %v2742 = vadd.f32 0.0, %v2741
      %2743 = vmatmul.f32.gmra.mxu0 %v2629
      %v2744 = vpop.f32.mrf.mxu0
      %v2745 = vadd.f32 0.0, %v2744
      %2746 = vmatmul.f32.gmra.mxu0 %v2632
      %v2747 = vpop.f32.mrf.mxu0
      %v2748 = vadd.f32 0.0, %v2747
      %2749 = vmatmul.f32.gmra.mxu0 %v2635
      %v2750 = vpop.f32.mrf.mxu0
      %v2751 = vadd.f32 0.0, %v2750
      %2752 = vdwg.mxu0
      %v2753 = vadd.f32 %v2476, %v2658
      %v2754 = vadd.f32 %v2477, %v2661
      %v2755 = vadd.f32 %v2478, %v2664
      %v2756 = vadd.f32 %v2479, %v2667
      %v2757 = vadd.f32 %v2480, %v2670
      %v2758 = vadd.f32 %v2481, %v2673
      %v2759 = vadd.f32 %v2482, %v2676
      %v2760 = vadd.f32 %v2483, %v2679
      %v2761 = vadd.f32 %v2484, %v2682
      %v2762 = vadd.f32 %v2485, %v2685
      %v2763 = vadd.f32 %v2486, %v2688
      %v2764 = vadd.f32 %v2487, %v2691
      %v2765 = vadd.f32 %v2488, %v2694
      %v2766 = vadd.f32 %v2489, %v2697
      %v2767 = vadd.f32 %v2490, %v2700
      %v2768 = vadd.f32 %v2491, %v2703
      %v2769 = vadd.f32 %v2492, %v2706
      %v2770 = vadd.f32 %v2493, %v2709
      %v2771 = vadd.f32 %v2494, %v2712
      %v2772 = vadd.f32 %v2495, %v2715
      %v2773 = vadd.f32 %v2496, %v2718
      %v2774 = vadd.f32 %v2497, %v2721
      %v2775 = vadd.f32 %v2498, %v2724
      %v2776 = vadd.f32 %v2499, %v2727
      %v2777 = vadd.f32 %v2500, %v2730
      %v2778 = vadd.f32 %v2501, %v2733
      %v2779 = vadd.f32 %v2502, %v2736
      %v2780 = vadd.f32 %v2503, %v2739
      %v2781 = vadd.f32 %v2504, %v2742
      %v2782 = vadd.f32 %v2505, %v2745
      %v2783 = vadd.f32 %v2506, %v2748
      %v2784 = vadd.f32 %v2507, %v2751
      %v2785 = vld [vmem:[%s2230 + $0x9] sm:$0xff]
      %v2786 = vld [vmem:[%s2230 + $0x11] sm:$0xff]
      %v2787 = vld [vmem:[%s2230 + $0x29] sm:$0xff]
      %v2788 = vld [vmem:[%s2230 + $0x31] sm:$0xff]
      %v2789 = vld [vmem:[%s2230 + $0x49] sm:$0xff]
      %v2790 = vld [vmem:[%s2230 + $0x51] sm:$0xff]
      %v2791 = vld [vmem:[%s2230 + $0x69] sm:$0xff]
      %v2792 = vld [vmem:[%s2230 + $0x71] sm:$0xff]
      %v2793 = vld [vmem:[%s2230 + $0x89] sm:$0xff]
      %v2794 = vld [vmem:[%s2230 + $0x91] sm:$0xff]
      %v2795 = vld [vmem:[%s2230 + $0xa9] sm:$0xff]
      %v2796 = vld [vmem:[%s2230 + $0xb1] sm:$0xff]
      %v2797 = vld [vmem:[%s2230 + $0xc9] sm:$0xff]
      %v2798 = vld [vmem:[%s2230 + $0xd1] sm:$0xff]
      %v2799 = vld [vmem:[%s2230 + $0xe9] sm:$0xff]
      %v2800 = vld [vmem:[%s2230 + $0xf1] sm:$0xff]
      %v2801 = vld [vmem:[%s2230 + $0x109] sm:$0xff]
      %v2802 = vld [vmem:[%s2230 + $0x111] sm:$0xff]
      %v2803 = vld [vmem:[%s2230 + $0x129] sm:$0xff]
      %v2804 = vld [vmem:[%s2230 + $0x131] sm:$0xff]
      %v2805 = vld [vmem:[%s2230 + $0x149] sm:$0xff]
      %v2806 = vld [vmem:[%s2230 + $0x151] sm:$0xff]
      %v2807 = vld [vmem:[%s2230 + $0x169] sm:$0xff]
      %v2808 = vld [vmem:[%s2230 + $0x171] sm:$0xff]
      %v2809 = vld [vmem:[%s2230 + $0x189] sm:$0xff]
      %v2810 = vld [vmem:[%s2230 + $0x191] sm:$0xff]
      %v2811 = vld [vmem:[%s2230 + $0x1a9] sm:$0xff]
      %v2812 = vld [vmem:[%s2230 + $0x1b1] sm:$0xff]
      %v2813 = vld [vmem:[%s2230 + $0x1c9] sm:$0xff]
      %v2814 = vld [vmem:[%s2230 + $0x1d1] sm:$0xff]
      %v2815 = vld [vmem:[%s2230 + $0x1e9] sm:$0xff]
      %v2816 = vld [vmem:[%s2230 + $0x1f1] sm:$0xff]
      %v2817 = vld [vmem:[%s2 + $0x20] sm:$0xf]
      %v2819 = vsel %vm488, %v2785, 0
      %v2822 = vsel %vm488, %v2786, 0
      %v2825 = vsel %vm488, %v2787, 0
      %v2828 = vsel %vm488, %v2788, 0
      %v2831 = vsel %vm488, %v2789, 0
      %v2834 = vsel %vm488, %v2790, 0
      %v2837 = vsel %vm488, %v2791, 0
      %v2840 = vsel %vm488, %v2792, 0
      %v2843 = vsel %vm488, %v2793, 0
      %v2846 = vsel %vm488, %v2794, 0
      %v2849 = vsel %vm488, %v2795, 0
      %v2852 = vsel %vm488, %v2796, 0
      %v2855 = vsel %vm488, %v2797, 0
      %v2858 = vsel %vm488, %v2798, 0
      %v2861 = vsel %vm488, %v2799, 0
      %v2864 = vsel %vm488, %v2800, 0
      %v2867 = vsel %vm488, %v2801, 0
      %v2870 = vsel %vm488, %v2802, 0
      %v2873 = vsel %vm488, %v2803, 0
      %v2876 = vsel %vm488, %v2804, 0
      %v2879 = vsel %vm488, %v2805, 0
      %v2882 = vsel %vm488, %v2806, 0
      %v2885 = vsel %vm488, %v2807, 0
      %v2888 = vsel %vm488, %v2808, 0
      %v2891 = vsel %vm488, %v2809, 0
      %v2894 = vsel %vm488, %v2810, 0
      %v2897 = vsel %vm488, %v2811, 0
      %v2900 = vsel %vm488, %v2812, 0
      %v2903 = vsel %vm488, %v2813, 0
      %v2906 = vsel %vm488, %v2814, 0
      %v2909 = vsel %vm488, %v2815, 0
      %v2912 = vsel %vm488, %v2816, 0
      %v2915 = vsel %vm696, %v2817, 0
      %2917 = vmatpush.msra.mxu0 0.0
      %2918 = vmatpush.msra.mxu0 0.0
      %2919 = vmatpush.msra.mxu0 0.0
      %2920 = vmatpush.msra.mxu0 0.0
      %2921 = vmatpush.msra.mxu0 0.0
      %2922 = vmatpush.msra.mxu0 0.0
      %2923 = vmatpush.msra.mxu0 0.0
      %2924 = vmatpush.msra.mxu0 0.0
      %2925 = vmatpush.msra.mxu0 0.0
      %2926 = vmatpush.msra.mxu0 0.0
      %2927 = vmatpush.msra.mxu0 0.0
      %2928 = vmatpush.msra.mxu0 0.0
      %2929 = vmatpush.msra.mxu0 0.0
      %2930 = vmatpush.msra.mxu0 0.0
      %2931 = vmatpush.msra.mxu0 0.0
      %2932 = vmatpush.msra.mxu0 %v2915
      %2933 = vmatmul.f32.gmra.mxu0 %v2819
      %v2934 = vpop.f32.mrf.mxu0
      %v2935 = vadd.f32 0.0, %v2934
      %2936 = vmatmul.f32.gmra.mxu0 %v2822
      %v2937 = vpop.f32.mrf.mxu0
      %v2938 = vadd.f32 0.0, %v2937
      %2939 = vmatmul.f32.gmra.mxu0 %v2825
      %v2940 = vpop.f32.mrf.mxu0
      %v2941 = vadd.f32 0.0, %v2940
      %2942 = vmatmul.f32.gmra.mxu0 %v2828
      %v2943 = vpop.f32.mrf.mxu0
      %v2944 = vadd.f32 0.0, %v2943
      %2945 = vmatmul.f32.gmra.mxu0 %v2831
      %v2946 = vpop.f32.mrf.mxu0
      %v2947 = vadd.f32 0.0, %v2946
      %2948 = vmatmul.f32.gmra.mxu0 %v2834
      %v2949 = vpop.f32.mrf.mxu0
      %v2950 = vadd.f32 0.0, %v2949
      %2951 = vmatmul.f32.gmra.mxu0 %v2837
      %v2952 = vpop.f32.mrf.mxu0
      %v2953 = vadd.f32 0.0, %v2952
      %2954 = vmatmul.f32.gmra.mxu0 %v2840
      %v2955 = vpop.f32.mrf.mxu0
      %v2956 = vadd.f32 0.0, %v2955
      %2957 = vmatmul.f32.gmra.mxu0 %v2843
      %v2958 = vpop.f32.mrf.mxu0
      %v2959 = vadd.f32 0.0, %v2958
      %2960 = vmatmul.f32.gmra.mxu0 %v2846
      %v2961 = vpop.f32.mrf.mxu0
      %v2962 = vadd.f32 0.0, %v2961
      %2963 = vmatmul.f32.gmra.mxu0 %v2849
      %v2964 = vpop.f32.mrf.mxu0
      %v2965 = vadd.f32 0.0, %v2964
      %2966 = vmatmul.f32.gmra.mxu0 %v2852
      %v2967 = vpop.f32.mrf.mxu0
      %v2968 = vadd.f32 0.0, %v2967
      %2969 = vmatmul.f32.gmra.mxu0 %v2855
      %v2970 = vpop.f32.mrf.mxu0
      %v2971 = vadd.f32 0.0, %v2970
      %2972 = vmatmul.f32.gmra.mxu0 %v2858
      %v2973 = vpop.f32.mrf.mxu0
      %v2974 = vadd.f32 0.0, %v2973
      %2975 = vmatmul.f32.gmra.mxu0 %v2861
      %v2976 = vpop.f32.mrf.mxu0
      %v2977 = vadd.f32 0.0, %v2976
      %2978 = vmatmul.f32.gmra.mxu0 %v2864
      %v2979 = vpop.f32.mrf.mxu0
      %v2980 = vadd.f32 0.0, %v2979
      %2981 = vmatmul.f32.gmra.mxu0 %v2867
      %v2982 = vpop.f32.mrf.mxu0
      %v2983 = vadd.f32 0.0, %v2982
      %2984 = vmatmul.f32.gmra.mxu0 %v2870
      %v2985 = vpop.f32.mrf.mxu0
      %v2986 = vadd.f32 0.0, %v2985
      %2987 = vmatmul.f32.gmra.mxu0 %v2873
      %v2988 = vpop.f32.mrf.mxu0
      %v2989 = vadd.f32 0.0, %v2988
      %2990 = vmatmul.f32.gmra.mxu0 %v2876
      %v2991 = vpop.f32.mrf.mxu0
      %v2992 = vadd.f32 0.0, %v2991
      %2993 = vmatmul.f32.gmra.mxu0 %v2879
      %v2994 = vpop.f32.mrf.mxu0
      %v2995 = vadd.f32 0.0, %v2994
      %2996 = vmatmul.f32.gmra.mxu0 %v2882
      %v2997 = vpop.f32.mrf.mxu0
      %v2998 = vadd.f32 0.0, %v2997
      %2999 = vmatmul.f32.gmra.mxu0 %v2885
      %v3000 = vpop.f32.mrf.mxu0
      %v3001 = vadd.f32 0.0, %v3000
      %3002 = vmatmul.f32.gmra.mxu0 %v2888
      %v3003 = vpop.f32.mrf.mxu0
      %v3004 = vadd.f32 0.0, %v3003
      %3005 = vmatmul.f32.gmra.mxu0 %v2891
      %v3006 = vpop.f32.mrf.mxu0
      %v3007 = vadd.f32 0.0, %v3006
      %3008 = vmatmul.f32.gmra.mxu0 %v2894
      %v3009 = vpop.f32.mrf.mxu0
      %v3010 = vadd.f32 0.0, %v3009
      %3011 = vmatmul.f32.gmra.mxu0 %v2897
      %v3012 = vpop.f32.mrf.mxu0
      %v3013 = vadd.f32 0.0, %v3012
      %3014 = vmatmul.f32.gmra.mxu0 %v2900
      %v3015 = vpop.f32.mrf.mxu0
      %v3016 = vadd.f32 0.0, %v3015
      %3017 = vmatmul.f32.gmra.mxu0 %v2903
      %v3018 = vpop.f32.mrf.mxu0
      %v3019 = vadd.f32 0.0, %v3018
      %3020 = vmatmul.f32.gmra.mxu0 %v2906
      %v3021 = vpop.f32.mrf.mxu0
      %v3022 = vadd.f32 0.0, %v3021
      %3023 = vmatmul.f32.gmra.mxu0 %v2909
      %v3024 = vpop.f32.mrf.mxu0
      %v3025 = vadd.f32 0.0, %v3024
      %3026 = vmatmul.f32.gmra.mxu0 %v2912
      %v3027 = vpop.f32.mrf.mxu0
      %v3028 = vadd.f32 0.0, %v3027
      %3029 = vdwg.mxu0
      %v3030 = vadd.f32 %v2753, %v2935
      %v3031 = vadd.f32 %v2754, %v2938
      %v3032 = vadd.f32 %v2755, %v2941
      %v3033 = vadd.f32 %v2756, %v2944
      %v3034 = vadd.f32 %v2757, %v2947
      %v3035 = vadd.f32 %v2758, %v2950
      %v3036 = vadd.f32 %v2759, %v2953
      %v3037 = vadd.f32 %v2760, %v2956
      %v3038 = vadd.f32 %v2761, %v2959
      %v3039 = vadd.f32 %v2762, %v2962
      %v3040 = vadd.f32 %v2763, %v2965
      %v3041 = vadd.f32 %v2764, %v2968
      %v3042 = vadd.f32 %v2765, %v2971
      %v3043 = vadd.f32 %v2766, %v2974
      %v3044 = vadd.f32 %v2767, %v2977
      %v3045 = vadd.f32 %v2768, %v2980
      %v3046 = vadd.f32 %v2769, %v2983
      %v3047 = vadd.f32 %v2770, %v2986
      %v3048 = vadd.f32 %v2771, %v2989
      %v3049 = vadd.f32 %v2772, %v2992
      %v3050 = vadd.f32 %v2773, %v2995
      %v3051 = vadd.f32 %v2774, %v2998
      %v3052 = vadd.f32 %v2775, %v3001
      %v3053 = vadd.f32 %v2776, %v3004
      %v3054 = vadd.f32 %v2777, %v3007
      %v3055 = vadd.f32 %v2778, %v3010
      %v3056 = vadd.f32 %v2779, %v3013
      %v3057 = vadd.f32 %v2780, %v3016
      %v3058 = vadd.f32 %v2781, %v3019
      %v3059 = vadd.f32 %v2782, %v3022
      %v3060 = vadd.f32 %v2783, %v3025
      %v3061 = vadd.f32 %v2784, %v3028
      %v3062 = vld [vmem:[%s4] sm:$0x1]
      %v3063 = vld [vmem:[%s5] sm:$0x1]
      %v3064 = vld [vmem:[%s12] sm:$0xff]
      %v3065 = vld [vmem:[%s12 + $0x8] sm:$0xff]
      %vm3066 = vcmask 130048
      %v3067 = vsel %vm3066, %v3030, 0.0
      %v3068 = vsel %vm3066, %v3031, 0.0
      %v3069 = vadd.f32 %v3067, %v3068
      %v3070 = vsel %vm3066, %v3032, 0.0
      %v3071 = vadd.f32 %v3069, %v3070
      %v3072 = vsel %vm3066, %v3033, 0.0
      %v3073 = vadd.f32 %v3071, %v3072
      %v3074 = vsel %vm3066, %v3034, 0.0
      %v3075 = vadd.f32 %v3073, %v3074
      %v3076 = vsel %vm3066, %v3035, 0.0
      %v3077 = vadd.f32 %v3075, %v3076
      %v3078 = vsel %vm3066, %v3036, 0.0
      %v3079 = vadd.f32 %v3077, %v3078
      %v3080 = vsel %vm3066, %v3037, 0.0
      %v3081 = vadd.f32 %v3079, %v3080
      %v3082 = vsel %vm3066, %v3038, 0.0
      %v3083 = vadd.f32 %v3081, %v3082
      %v3084 = vsel %vm3066, %v3039, 0.0
      %v3085 = vadd.f32 %v3083, %v3084
      %v3086 = vsel %vm3066, %v3040, 0.0
      %v3087 = vadd.f32 %v3085, %v3086
      %v3088 = vsel %vm3066, %v3041, 0.0
      %v3089 = vadd.f32 %v3087, %v3088
      %v3090 = vsel %vm3066, %v3042, 0.0
      %v3091 = vadd.f32 %v3089, %v3090
      %v3092 = vsel %vm3066, %v3043, 0.0
      %v3093 = vadd.f32 %v3091, %v3092
      %v3094 = vsel %vm3066, %v3044, 0.0
      %v3095 = vadd.f32 %v3093, %v3094
      %v3096 = vsel %vm3066, %v3045, 0.0
      %v3097 = vadd.f32 %v3095, %v3096
      %v3098 = vsel %vm3066, %v3046, 0.0
      %v3099 = vadd.f32 %v3097, %v3098
      %v3100 = vsel %vm3066, %v3047, 0.0
      %v3101 = vadd.f32 %v3099, %v3100
      %v3102 = vsel %vm3066, %v3048, 0.0
      %v3103 = vadd.f32 %v3101, %v3102
      %v3104 = vsel %vm3066, %v3049, 0.0
      %v3105 = vadd.f32 %v3103, %v3104
      %v3106 = vsel %vm3066, %v3050, 0.0
      %v3107 = vadd.f32 %v3105, %v3106
      %v3108 = vsel %vm3066, %v3051, 0.0
      %v3109 = vadd.f32 %v3107, %v3108
      %v3110 = vsel %vm3066, %v3052, 0.0
      %v3111 = vadd.f32 %v3109, %v3110
      %v3112 = vsel %vm3066, %v3053, 0.0
      %v3113 = vadd.f32 %v3111, %v3112
      %v3114 = vsel %vm3066, %v3054, 0.0
      %v3115 = vadd.f32 %v3113, %v3114
      %v3116 = vsel %vm3066, %v3055, 0.0
      %v3117 = vadd.f32 %v3115, %v3116
      %v3118 = vsel %vm3066, %v3056, 0.0
      %v3119 = vadd.f32 %v3117, %v3118
      %v3120 = vsel %vm3066, %v3057, 0.0
      %v3121 = vadd.f32 %v3119, %v3120
      %v3122 = vsel %vm3066, %v3058, 0.0
      %v3123 = vadd.f32 %v3121, %v3122
      %v3124 = vsel %vm3066, %v3059, 0.0
      %v3125 = vadd.f32 %v3123, %v3124
      %v3126 = vsel %vm3066, %v3060, 0.0
      %v3127 = vadd.f32 %v3125, %v3126
      %v3128 = vsel %vm3066, %v3061, 0.0
      %v3129 = vadd.f32 %v3127, %v3128
      %v3130 = vrot.slane %v3129, 4
      %v3131 = vadd.f32 %v3129, %v3130
      %v3132 = vrot.slane %v3131, 2
      %v3133 = vadd.f32 %v3131, %v3132
      %v3134 = vrot.slane %v3133, 1
      %v3135 = vadd.f32 %v3133, %v3134
      %v3136 = vmul.f32 %v3030, %v3030
      %v3137 = vmul.f32 %v3031, %v3031
      %v3138 = vmul.f32 %v3032, %v3032
      %v3139 = vmul.f32 %v3033, %v3033
      %v3140 = vmul.f32 %v3034, %v3034
      %v3141 = vmul.f32 %v3035, %v3035
      %v3142 = vmul.f32 %v3036, %v3036
      %v3143 = vmul.f32 %v3037, %v3037
      %v3144 = vmul.f32 %v3038, %v3038
      %v3145 = vmul.f32 %v3039, %v3039
      %v3146 = vmul.f32 %v3040, %v3040
      %v3147 = vmul.f32 %v3041, %v3041
      %v3148 = vmul.f32 %v3042, %v3042
      %v3149 = vmul.f32 %v3043, %v3043
      %v3150 = vmul.f32 %v3044, %v3044
      %v3151 = vmul.f32 %v3045, %v3045
      %v3152 = vmul.f32 %v3046, %v3046
      %v3153 = vmul.f32 %v3047, %v3047
      %v3154 = vmul.f32 %v3048, %v3048
      %v3155 = vmul.f32 %v3049, %v3049
      %v3156 = vmul.f32 %v3050, %v3050
      %v3157 = vmul.f32 %v3051, %v3051
      %v3158 = vmul.f32 %v3052, %v3052
      %v3159 = vmul.f32 %v3053, %v3053
      %v3160 = vmul.f32 %v3054, %v3054
      %v3161 = vmul.f32 %v3055, %v3055
      %v3162 = vmul.f32 %v3056, %v3056
      %v3163 = vmul.f32 %v3057, %v3057
      %v3164 = vmul.f32 %v3058, %v3058
      %v3165 = vmul.f32 %v3059, %v3059
      %v3166 = vmul.f32 %v3060, %v3060
      %v3167 = vmul.f32 %v3061, %v3061
      %v3168 = vsel %vm3066, %v3136, 0.0
      %v3169 = vsel %vm3066, %v3137, 0.0
      %v3170 = vadd.f32 %v3168, %v3169
      %v3171 = vsel %vm3066, %v3138, 0.0
      %v3172 = vadd.f32 %v3170, %v3171
      %v3173 = vsel %vm3066, %v3139, 0.0
      %v3174 = vadd.f32 %v3172, %v3173
      %v3175 = vsel %vm3066, %v3140, 0.0
      %v3176 = vadd.f32 %v3174, %v3175
      %v3177 = vsel %vm3066, %v3141, 0.0
      %v3178 = vadd.f32 %v3176, %v3177
      %v3179 = vsel %vm3066, %v3142, 0.0
      %v3180 = vadd.f32 %v3178, %v3179
      %v3181 = vsel %vm3066, %v3143, 0.0
      %v3182 = vadd.f32 %v3180, %v3181
      %v3183 = vsel %vm3066, %v3144, 0.0
      %v3184 = vadd.f32 %v3182, %v3183
      %v3185 = vsel %vm3066, %v3145, 0.0
      %v3186 = vadd.f32 %v3184, %v3185
      %v3187 = vsel %vm3066, %v3146, 0.0
      %v3188 = vadd.f32 %v3186, %v3187
      %v3189 = vsel %vm3066, %v3147, 0.0
      %v3190 = vadd.f32 %v3188, %v3189
      %v3191 = vsel %vm3066, %v3148, 0.0
      %v3192 = vadd.f32 %v3190, %v3191
      %v3193 = vsel %vm3066, %v3149, 0.0
      %v3194 = vadd.f32 %v3192, %v3193
      %v3195 = vsel %vm3066, %v3150, 0.0
      %v3196 = vadd.f32 %v3194, %v3195
      %v3197 = vsel %vm3066, %v3151, 0.0
      %v3198 = vadd.f32 %v3196, %v3197
      %v3199 = vsel %vm3066, %v3152, 0.0
      %v3200 = vadd.f32 %v3198, %v3199
      %v3201 = vsel %vm3066, %v3153, 0.0
      %v3202 = vadd.f32 %v3200, %v3201
      %v3203 = vsel %vm3066, %v3154, 0.0
      %v3204 = vadd.f32 %v3202, %v3203
      %v3205 = vsel %vm3066, %v3155, 0.0
      %v3206 = vadd.f32 %v3204, %v3205
      %v3207 = vsel %vm3066, %v3156, 0.0
      %v3208 = vadd.f32 %v3206, %v3207
      %v3209 = vsel %vm3066, %v3157, 0.0
      %v3210 = vadd.f32 %v3208, %v3209
      %v3211 = vsel %vm3066, %v3158, 0.0
      %v3212 = vadd.f32 %v3210, %v3211
      %v3213 = vsel %vm3066, %v3159, 0.0
      %v3214 = vadd.f32 %v3212, %v3213
      %v3215 = vsel %vm3066, %v3160, 0.0
      %v3216 = vadd.f32 %v3214, %v3215
      %v3217 = vsel %vm3066, %v3161, 0.0
      %v3218 = vadd.f32 %v3216, %v3217
      %v3219 = vsel %vm3066, %v3162, 0.0
      %v3220 = vadd.f32 %v3218, %v3219
      %v3221 = vsel %vm3066, %v3163, 0.0
      %v3222 = vadd.f32 %v3220, %v3221
      %v3223 = vsel %vm3066, %v3164, 0.0
      %v3224 = vadd.f32 %v3222, %v3223
      %v3225 = vsel %vm3066, %v3165, 0.0
      %v3226 = vadd.f32 %v3224, %v3225
      %v3227 = vsel %vm3066, %v3166, 0.0
      %v3228 = vadd.f32 %v3226, %v3227
      %v3229 = vsel %vm3066, %v3167, 0.0
      %v3230 = vadd.f32 %v3228, %v3229
      %v3231 = vrot.slane %v3230, 4
      %v3232 = vadd.f32 %v3230, %v3231
      %v3233 = vrot.slane %v3232, 2
      %v3234 = vadd.f32 %v3232, %v3233
      %v3235 = vrot.slane %v3234, 1
      %v3236 = vadd.f32 %v3234, %v3235
      %v3238 = vsel %vm3066, %v3135, 0
      %3240 = vmatpush.msra.mxu0 0.0
      %3241 = vmatpush.msra.mxu0 0.0
      %3242 = vmatpush.msra.mxu0 0.0
      %3243 = vmatpush.msra.mxu0 0.0
      %3244 = vmatpush.msra.mxu0 0.0
      %3245 = vmatpush.msra.mxu0 0.0
      %3246 = vmatpush.msra.mxu0 0.0
      %3247 = vmatpush.msra.mxu0 0.0
      %3248 = vmatpush.msra.mxu0 0.0
      %3249 = vmatpush.msra.mxu0 0.0
      %3250 = vmatpush.msra.mxu0 0.0
      %3251 = vmatpush.msra.mxu0 0.0
      %3252 = vmatpush.msra.mxu0 0.0
      %3253 = vmatpush.msra.mxu0 0.0
      %3254 = vmatpush.msra.mxu0 %v3065
      %3255 = vmatpush.msra.mxu0 %v3064
      %3256 = vmatmul.f32.gmra.mxu0 %v3238
      %v3257 = vpop.f32.mrf.mxu0
      %v3258 = vadd.f32 0.0, %v3257
      %3259 = vdwg.mxu0
      %v3261 = vsel %vm3066, %v3236, 0
      %3263 = vmatpush.msra.mxu0 0.0
      %3264 = vmatpush.msra.mxu0 0.0
      %3265 = vmatpush.msra.mxu0 0.0
      %3266 = vmatpush.msra.mxu0 0.0
      %3267 = vmatpush.msra.mxu0 0.0
      %3268 = vmatpush.msra.mxu0 0.0
      %3269 = vmatpush.msra.mxu0 0.0
      %3270 = vmatpush.msra.mxu0 0.0
      %3271 = vmatpush.msra.mxu0 0.0
      %3272 = vmatpush.msra.mxu0 0.0
      %3273 = vmatpush.msra.mxu0 0.0
      %3274 = vmatpush.msra.mxu0 0.0
      %3275 = vmatpush.msra.mxu0 0.0
      %3276 = vmatpush.msra.mxu0 0.0
      %3277 = vmatpush.msra.mxu0 %v3065
      %3278 = vmatpush.msra.mxu0 %v3064
      %3279 = vmatmul.f32.gmra.mxu0 %v3261
      %v3280 = vpop.f32.mrf.mxu0
      %v3281 = vadd.f32 0.0, %v3280
      %3282 = vdwg.mxu0
      %v3283 = vmul.f32 %v3258, %v3258
      %v3284 = vsub.f32 %v3281, %v3283
      %v3285 = vadd.f32 %v3284, 1e-05
      %v3286 = vrsqrt.pop %v3285
      %v3287 = vmul.f32 %v3286, %v3285
      %v3288 = vmul.f32 %v3287, %v3286
      %v3289 = vmul.f32 0.5, %v3288
      %v3290 = vsub.f32 1.5, %v3289
      %v3291 = vmul.f32 %v3286, %v3290
      %vm3292 = vweird.f32 %v3285
      %vm3293 = vweird.f32 %v3286
      %vm3294 = vmor %vm3292, %vm3293
      %v3295 = vsel %vm3294, %v3286, %v3291
      %v3296 = vmul.f32 %v3295, %v3062
      %v3297 = vmul.f32 %v3258, %v3296
      %v3298 = vsub.f32 %v3063, %v3297
      %v3299 = vadd.f32 %v455, 1.0
      %v3300 = vmul.f32 %v3296, %v3299
      %v3301 = vmul.f32 %v3298, %v3299
      %3303 = vrot.lane.b32.xlu0 %v455, 112
      %v3304 = vpop.permute.xlu0 %3303
      %v3306 = vadd.f32 %v3301, %v3304
      %v3307 = vperm.slane %v3300, 0
      %v3308 = vmul.f32 %v3030, %v3307
      %v3309 = vmul.f32 %v3031, %v3307
      %v3310 = vmul.f32 %v3032, %v3307
      %v3311 = vmul.f32 %v3033, %v3307
      %v3312 = vmul.f32 %v3034, %v3307
      %v3313 = vmul.f32 %v3035, %v3307
      %v3314 = vmul.f32 %v3036, %v3307
      %v3315 = vmul.f32 %v3037, %v3307
      %v3316 = vmul.f32 %v3038, %v3307
      %v3317 = vmul.f32 %v3039, %v3307
      %v3318 = vmul.f32 %v3040, %v3307
      %v3319 = vmul.f32 %v3041, %v3307
      %v3320 = vmul.f32 %v3042, %v3307
      %v3321 = vmul.f32 %v3043, %v3307
      %v3322 = vmul.f32 %v3044, %v3307
      %v3323 = vmul.f32 %v3045, %v3307
      %v3324 = vmul.f32 %v3046, %v3307
      %v3325 = vmul.f32 %v3047, %v3307
      %v3326 = vmul.f32 %v3048, %v3307
      %v3327 = vmul.f32 %v3049, %v3307
      %v3328 = vmul.f32 %v3050, %v3307
      %v3329 = vmul.f32 %v3051, %v3307
      %v3330 = vmul.f32 %v3052, %v3307
      %v3331 = vmul.f32 %v3053, %v3307
      %v3332 = vmul.f32 %v3054, %v3307
      %v3333 = vmul.f32 %v3055, %v3307
      %v3334 = vmul.f32 %v3056, %v3307
      %v3335 = vmul.f32 %v3057, %v3307
      %v3336 = vmul.f32 %v3058, %v3307
      %v3337 = vmul.f32 %v3059, %v3307
      %v3338 = vmul.f32 %v3060, %v3307
      %v3339 = vmul.f32 %v3061, %v3307
      %v3341 = vperm.slane %v3306, 0
      %v3343 = vadd.f32 %v3308, %v3341
      %v3344 = vadd.f32 %v3309, %v3341
      %v3345 = vadd.f32 %v3310, %v3341
      %v3346 = vadd.f32 %v3311, %v3341
      %v3347 = vadd.f32 %v3312, %v3341
      %v3348 = vadd.f32 %v3313, %v3341
      %v3349 = vadd.f32 %v3314, %v3341
      %v3350 = vadd.f32 %v3315, %v3341
      %v3351 = vadd.f32 %v3316, %v3341
      %v3352 = vadd.f32 %v3317, %v3341
      %v3353 = vadd.f32 %v3318, %v3341
      %v3354 = vadd.f32 %v3319, %v3341
      %v3355 = vadd.f32 %v3320, %v3341
      %v3356 = vadd.f32 %v3321, %v3341
      %v3357 = vadd.f32 %v3322, %v3341
      %v3358 = vadd.f32 %v3323, %v3341
      %v3359 = vadd.f32 %v3324, %v3341
      %v3360 = vadd.f32 %v3325, %v3341
      %v3361 = vadd.f32 %v3326, %v3341
      %v3362 = vadd.f32 %v3327, %v3341
      %v3363 = vadd.f32 %v3328, %v3341
      %v3364 = vadd.f32 %v3329, %v3341
      %v3365 = vadd.f32 %v3330, %v3341
      %v3366 = vadd.f32 %v3331, %v3341
      %v3367 = vadd.f32 %v3332, %v3341
      %v3368 = vadd.f32 %v3333, %v3341
      %v3369 = vadd.f32 %v3334, %v3341
      %v3370 = vadd.f32 %v3335, %v3341
      %v3371 = vadd.f32 %v3336, %v3341
      %v3372 = vadd.f32 %v3337, %v3341
      %v3373 = vadd.f32 %v3338, %v3341
      %v3374 = vadd.f32 %v3339, %v3341
      %v3375 = vxor.u32 %v3343, 2147483648
      %v3376 = vxor.u32 %v3344, 2147483648
      %v3377 = vxor.u32 %v3345, 2147483648
      %v3378 = vxor.u32 %v3346, 2147483648
      %v3379 = vxor.u32 %v3347, 2147483648
      %v3380 = vxor.u32 %v3348, 2147483648
      %v3381 = vxor.u32 %v3349, 2147483648
      %v3382 = vxor.u32 %v3350, 2147483648
      %v3383 = vxor.u32 %v3351, 2147483648
      %v3384 = vxor.u32 %v3352, 2147483648
      %v3385 = vxor.u32 %v3353, 2147483648
      %v3386 = vxor.u32 %v3354, 2147483648
      %v3387 = vxor.u32 %v3355, 2147483648
      %v3388 = vxor.u32 %v3356, 2147483648
      %v3389 = vxor.u32 %v3357, 2147483648
      %v3390 = vxor.u32 %v3358, 2147483648
      %v3391 = vxor.u32 %v3359, 2147483648
      %v3392 = vxor.u32 %v3360, 2147483648
      %v3393 = vxor.u32 %v3361, 2147483648
      %v3394 = vxor.u32 %v3362, 2147483648
      %v3395 = vxor.u32 %v3363, 2147483648
      %v3396 = vxor.u32 %v3364, 2147483648
      %v3397 = vxor.u32 %v3365, 2147483648
      %v3398 = vxor.u32 %v3366, 2147483648
      %v3399 = vxor.u32 %v3367, 2147483648
      %v3400 = vxor.u32 %v3368, 2147483648
      %v3401 = vxor.u32 %v3369, 2147483648
      %v3402 = vxor.u32 %v3370, 2147483648
      %v3403 = vxor.u32 %v3371, 2147483648
      %v3404 = vxor.u32 %v3372, 2147483648
      %v3405 = vxor.u32 %v3373, 2147483648
      %v3406 = vxor.u32 %v3374, 2147483648
      %v3407 = vmul.f32 %v3375, 1.442695
      %v3408 = vpow.pop %v3407
      %v3409 = vmul.f32 %v3376, 1.442695
      %v3410 = vpow.pop %v3409
      %v3411 = vmul.f32 %v3377, 1.442695
      %v3412 = vpow.pop %v3411
      %v3413 = vmul.f32 %v3378, 1.442695
      %v3414 = vpow.pop %v3413
      %v3415 = vmul.f32 %v3379, 1.442695
      %v3416 = vpow.pop %v3415
      %v3417 = vmul.f32 %v3380, 1.442695
      %v3418 = vpow.pop %v3417
      %v3419 = vmul.f32 %v3381, 1.442695
      %v3420 = vpow.pop %v3419
      %v3421 = vmul.f32 %v3382, 1.442695
      %v3422 = vpow.pop %v3421
      %v3423 = vmul.f32 %v3383, 1.442695
      %v3424 = vpow.pop %v3423
      %v3425 = vmul.f32 %v3384, 1.442695
      %v3426 = vpow.pop %v3425
      %v3427 = vmul.f32 %v3385, 1.442695
      %v3428 = vpow.pop %v3427
      %v3429 = vmul.f32 %v3386, 1.442695
      %v3430 = vpow.pop %v3429
      %v3431 = vmul.f32 %v3387, 1.442695
      %v3432 = vpow.pop %v3431
      %v3433 = vmul.f32 %v3388, 1.442695
      %v3434 = vpow.pop %v3433
      %v3435 = vmul.f32 %v3389, 1.442695
      %v3436 = vpow.pop %v3435
      %v3437 = vmul.f32 %v3390, 1.442695
      %v3438 = vpow.pop %v3437
      %v3439 = vmul.f32 %v3391, 1.442695
      %v3440 = vpow.pop %v3439
      %v3441 = vmul.f32 %v3392, 1.442695
      %v3442 = vpow.pop %v3441
      %v3443 = vmul.f32 %v3393, 1.442695
      %v3444 = vpow.pop %v3443
      %v3445 = vmul.f32 %v3394, 1.442695
      %v3446 = vpow.pop %v3445
      %v3447 = vmul.f32 %v3395, 1.442695
      %v3448 = vpow.pop %v3447
      %v3449 = vmul.f32 %v3396, 1.442695
      %v3450 = vpow.pop %v3449
      %v3451 = vmul.f32 %v3397, 1.442695
      %v3452 = vpow.pop %v3451
      %v3453 = vmul.f32 %v3398, 1.442695
      %v3454 = vpow.pop %v3453
      %v3455 = vmul.f32 %v3399, 1.442695
      %v3456 = vpow.pop %v3455
      %v3457 = vmul.f32 %v3400, 1.442695
      %v3458 = vpow.pop %v3457
      %v3459 = vmul.f32 %v3401, 1.442695
      %v3460 = vpow.pop %v3459
      %v3461 = vmul.f32 %v3402, 1.442695
      %v3462 = vpow.pop %v3461
      %v3463 = vmul.f32 %v3403, 1.442695
      %v3464 = vpow.pop %v3463
      %v3465 = vmul.f32 %v3404, 1.442695
      %v3466 = vpow.pop %v3465
      %v3467 = vmul.f32 %v3405, 1.442695
      %v3468 = vpow.pop %v3467
      %v3469 = vmul.f32 %v3406, 1.442695
      %v3470 = vpow.pop %v3469
      %v3471 = vadd.f32 %v3408, 1.0
      %v3472 = vadd.f32 %v3410, 1.0
      %v3473 = vadd.f32 %v3412, 1.0
      %v3474 = vadd.f32 %v3414, 1.0
      %v3475 = vadd.f32 %v3416, 1.0
      %v3476 = vadd.f32 %v3418, 1.0
      %v3477 = vadd.f32 %v3420, 1.0
      %v3478 = vadd.f32 %v3422, 1.0
      %v3479 = vadd.f32 %v3424, 1.0
      %v3480 = vadd.f32 %v3426, 1.0
      %v3481 = vadd.f32 %v3428, 1.0
      %v3482 = vadd.f32 %v3430, 1.0
      %v3483 = vadd.f32 %v3432, 1.0
      %v3484 = vadd.f32 %v3434, 1.0
      %v3485 = vadd.f32 %v3436, 1.0
      %v3486 = vadd.f32 %v3438, 1.0
      %v3487 = vadd.f32 %v3440, 1.0
      %v3488 = vadd.f32 %v3442, 1.0
      %v3489 = vadd.f32 %v3444, 1.0
      %v3490 = vadd.f32 %v3446, 1.0
      %v3491 = vadd.f32 %v3448, 1.0
      %v3492 = vadd.f32 %v3450, 1.0
      %v3493 = vadd.f32 %v3452, 1.0
      %v3494 = vadd.f32 %v3454, 1.0
      %v3495 = vadd.f32 %v3456, 1.0
      %v3496 = vadd.f32 %v3458, 1.0
      %v3497 = vadd.f32 %v3460, 1.0
      %v3498 = vadd.f32 %v3462, 1.0
      %v3499 = vadd.f32 %v3464, 1.0
      %v3500 = vadd.f32 %v3466, 1.0
      %v3501 = vadd.f32 %v3468, 1.0
      %v3502 = vadd.f32 %v3470, 1.0
      %v3503 = vrcp.pop %v3471
      %v3504 = vmul.f32 %v3471, %v3503
      %v3505 = vsub.f32 1.0, %v3504
      %v3506 = vmul.f32 %v3503, %v3505
      %v3507 = vadd.f32 %v3503, %v3506
      %vm3508 = vweird.f32 %v3471
      %vm3509 = vweird.f32 %v3503
      %vm3510 = vmor %vm3508, %vm3509
      %v3511 = vsel %vm3510, %v3503, %v3507
      %v3512 = vand.u32 2147483647, %v3471
      %vm3513 = vcmp.eq.f32.partialorder %v3512, 8.507059e+37
      %v3514 = vand.u32 %v3471, 2147483648
      %v3515 = vor.u32 1.1754944e-38, %v3514
      %v3516 = vsel %vm3513, %v3515, %v3511
      %v3517 = vmul.f32 1.0, %v3516
      %v3518 = vrcp.pop %v3472
      %v3519 = vmul.f32 %v3472, %v3518
      %v3520 = vsub.f32 1.0, %v3519
      %v3521 = vmul.f32 %v3518, %v3520
      %v3522 = vadd.f32 %v3518, %v3521
      %vm3523 = vweird.f32 %v3472
      %vm3524 = vweird.f32 %v3518
      %vm3525 = vmor %vm3523, %vm3524
      %v3526 = vsel %vm3525, %v3518, %v3522
      %v3527 = vand.u32 2147483647, %v3472
      %vm3528 = vcmp.eq.f32.partialorder %v3527, 8.507059e+37
      %v3529 = vand.u32 %v3472, 2147483648
      %v3530 = vor.u32 1.1754944e-38, %v3529
      %v3531 = vsel %vm3528, %v3530, %v3526
      %v3532 = vmul.f32 1.0, %v3531
      %v3533 = vrcp.pop %v3473
      %v3534 = vmul.f32 %v3473, %v3533
      %v3535 = vsub.f32 1.0, %v3534
      %v3536 = vmul.f32 %v3533, %v3535
      %v3537 = vadd.f32 %v3533, %v3536
      %vm3538 = vweird.f32 %v3473
      %vm3539 = vweird.f32 %v3533
      %vm3540 = vmor %vm3538, %vm3539
      %v3541 = vsel %vm3540, %v3533, %v3537
      %v3542 = vand.u32 2147483647, %v3473
      %vm3543 = vcmp.eq.f32.partialorder %v3542, 8.507059e+37
      %v3544 = vand.u32 %v3473, 2147483648
      %v3545 = vor.u32 1.1754944e-38, %v3544
      %v3546 = vsel %vm3543, %v3545, %v3541
      %v3547 = vmul.f32 1.0, %v3546
      %v3548 = vrcp.pop %v3474
      %v3549 = vmul.f32 %v3474, %v3548
      %v3550 = vsub.f32 1.0, %v3549
      %v3551 = vmul.f32 %v3548, %v3550
      %v3552 = vadd.f32 %v3548, %v3551
      %vm3553 = vweird.f32 %v3474
      %vm3554 = vweird.f32 %v3548
      %vm3555 = vmor %vm3553, %vm3554
      %v3556 = vsel %vm3555, %v3548, %v3552
      %v3557 = vand.u32 2147483647, %v3474
      %vm3558 = vcmp.eq.f32.partialorder %v3557, 8.507059e+37
      %v3559 = vand.u32 %v3474, 2147483648
      %v3560 = vor.u32 1.1754944e-38, %v3559
      %v3561 = vsel %vm3558, %v3560, %v3556
      %v3562 = vmul.f32 1.0, %v3561
      %v3563 = vrcp.pop %v3475
      %v3564 = vmul.f32 %v3475, %v3563
      %v3565 = vsub.f32 1.0, %v3564
      %v3566 = vmul.f32 %v3563, %v3565
      %v3567 = vadd.f32 %v3563, %v3566
      %vm3568 = vweird.f32 %v3475
      %vm3569 = vweird.f32 %v3563
      %vm3570 = vmor %vm3568, %vm3569
      %v3571 = vsel %vm3570, %v3563, %v3567
      %v3572 = vand.u32 2147483647, %v3475
      %vm3573 = vcmp.eq.f32.partialorder %v3572, 8.507059e+37
      %v3574 = vand.u32 %v3475, 2147483648
      %v3575 = vor.u32 1.1754944e-38, %v3574
      %v3576 = vsel %vm3573, %v3575, %v3571
      %v3577 = vmul.f32 1.0, %v3576
      %v3578 = vrcp.pop %v3476
      %v3579 = vmul.f32 %v3476, %v3578
      %v3580 = vsub.f32 1.0, %v3579
      %v3581 = vmul.f32 %v3578, %v3580
      %v3582 = vadd.f32 %v3578, %v3581
      %vm3583 = vweird.f32 %v3476
      %vm3584 = vweird.f32 %v3578
      %vm3585 = vmor %vm3583, %vm3584
      %v3586 = vsel %vm3585, %v3578, %v3582
      %v3587 = vand.u32 2147483647, %v3476
      %vm3588 = vcmp.eq.f32.partialorder %v3587, 8.507059e+37
      %v3589 = vand.u32 %v3476, 2147483648
      %v3590 = vor.u32 1.1754944e-38, %v3589
      %v3591 = vsel %vm3588, %v3590, %v3586
      %v3592 = vmul.f32 1.0, %v3591
      %v3593 = vrcp.pop %v3477
      %v3594 = vmul.f32 %v3477, %v3593
      %v3595 = vsub.f32 1.0, %v3594
      %v3596 = vmul.f32 %v3593, %v3595
      %v3597 = vadd.f32 %v3593, %v3596
      %vm3598 = vweird.f32 %v3477
      %vm3599 = vweird.f32 %v3593
      %vm3600 = vmor %vm3598, %vm3599
      %v3601 = vsel %vm3600, %v3593, %v3597
      %v3602 = vand.u32 2147483647, %v3477
      %vm3603 = vcmp.eq.f32.partialorder %v3602, 8.507059e+37
      %v3604 = vand.u32 %v3477, 2147483648
      %v3605 = vor.u32 1.1754944e-38, %v3604
      %v3606 = vsel %vm3603, %v3605, %v3601
      %v3607 = vmul.f32 1.0, %v3606
      %v3608 = vrcp.pop %v3478
      %v3609 = vmul.f32 %v3478, %v3608
      %v3610 = vsub.f32 1.0, %v3609
      %v3611 = vmul.f32 %v3608, %v3610
      %v3612 = vadd.f32 %v3608, %v3611
      %vm3613 = vweird.f32 %v3478
      %vm3614 = vweird.f32 %v3608
      %vm3615 = vmor %vm3613, %vm3614
      %v3616 = vsel %vm3615, %v3608, %v3612
      %v3617 = vand.u32 2147483647, %v3478
      %vm3618 = vcmp.eq.f32.partialorder %v3617, 8.507059e+37
      %v3619 = vand.u32 %v3478, 2147483648
      %v3620 = vor.u32 1.1754944e-38, %v3619
      %v3621 = vsel %vm3618, %v3620, %v3616
      %v3622 = vmul.f32 1.0, %v3621
      %v3623 = vrcp.pop %v3479
      %v3624 = vmul.f32 %v3479, %v3623
      %v3625 = vsub.f32 1.0, %v3624
      %v3626 = vmul.f32 %v3623, %v3625
      %v3627 = vadd.f32 %v3623, %v3626
      %vm3628 = vweird.f32 %v3479
      %vm3629 = vweird.f32 %v3623
      %vm3630 = vmor %vm3628, %vm3629
      %v3631 = vsel %vm3630, %v3623, %v3627
      %v3632 = vand.u32 2147483647, %v3479
      %vm3633 = vcmp.eq.f32.partialorder %v3632, 8.507059e+37
      %v3634 = vand.u32 %v3479, 2147483648
      %v3635 = vor.u32 1.1754944e-38, %v3634
      %v3636 = vsel %vm3633, %v3635, %v3631
      %v3637 = vmul.f32 1.0, %v3636
      %v3638 = vrcp.pop %v3480
      %v3639 = vmul.f32 %v3480, %v3638
      %v3640 = vsub.f32 1.0, %v3639
      %v3641 = vmul.f32 %v3638, %v3640
      %v3642 = vadd.f32 %v3638, %v3641
      %vm3643 = vweird.f32 %v3480
      %vm3644 = vweird.f32 %v3638
      %vm3645 = vmor %vm3643, %vm3644
      %v3646 = vsel %vm3645, %v3638, %v3642
      %v3647 = vand.u32 2147483647, %v3480
      %vm3648 = vcmp.eq.f32.partialorder %v3647, 8.507059e+37
      %v3649 = vand.u32 %v3480, 2147483648
      %v3650 = vor.u32 1.1754944e-38, %v3649
      %v3651 = vsel %vm3648, %v3650, %v3646
      %v3652 = vmul.f32 1.0, %v3651
      %v3653 = vrcp.pop %v3481
      %v3654 = vmul.f32 %v3481, %v3653
      %v3655 = vsub.f32 1.0, %v3654
      %v3656 = vmul.f32 %v3653, %v3655
      %v3657 = vadd.f32 %v3653, %v3656
      %vm3658 = vweird.f32 %v3481
      %vm3659 = vweird.f32 %v3653
      %vm3660 = vmor %vm3658, %vm3659
      %v3661 = vsel %vm3660, %v3653, %v3657
      %v3662 = vand.u32 2147483647, %v3481
      %vm3663 = vcmp.eq.f32.partialorder %v3662, 8.507059e+37
      %v3664 = vand.u32 %v3481, 2147483648
      %v3665 = vor.u32 1.1754944e-38, %v3664
      %v3666 = vsel %vm3663, %v3665, %v3661
      %v3667 = vmul.f32 1.0, %v3666
      %v3668 = vrcp.pop %v3482
      %v3669 = vmul.f32 %v3482, %v3668
      %v3670 = vsub.f32 1.0, %v3669
      %v3671 = vmul.f32 %v3668, %v3670
      %v3672 = vadd.f32 %v3668, %v3671
      %vm3673 = vweird.f32 %v3482
      %vm3674 = vweird.f32 %v3668
      %vm3675 = vmor %vm3673, %vm3674
      %v3676 = vsel %vm3675, %v3668, %v3672
      %v3677 = vand.u32 2147483647, %v3482
      %vm3678 = vcmp.eq.f32.partialorder %v3677, 8.507059e+37
      %v3679 = vand.u32 %v3482, 2147483648
      %v3680 = vor.u32 1.1754944e-38, %v3679
      %v3681 = vsel %vm3678, %v3680, %v3676
      %v3682 = vmul.f32 1.0, %v3681
      %v3683 = vrcp.pop %v3483
      %v3684 = vmul.f32 %v3483, %v3683
      %v3685 = vsub.f32 1.0, %v3684
      %v3686 = vmul.f32 %v3683, %v3685
      %v3687 = vadd.f32 %v3683, %v3686
      %vm3688 = vweird.f32 %v3483
      %vm3689 = vweird.f32 %v3683
      %vm3690 = vmor %vm3688, %vm3689
      %v3691 = vsel %vm3690, %v3683, %v3687
      %v3692 = vand.u32 2147483647, %v3483
      %vm3693 = vcmp.eq.f32.partialorder %v3692, 8.507059e+37
      %v3694 = vand.u32 %v3483, 2147483648
      %v3695 = vor.u32 1.1754944e-38, %v3694
      %v3696 = vsel %vm3693, %v3695, %v3691
      %v3697 = vmul.f32 1.0, %v3696
      %v3698 = vrcp.pop %v3484
      %v3699 = vmul.f32 %v3484, %v3698
      %v3700 = vsub.f32 1.0, %v3699
      %v3701 = vmul.f32 %v3698, %v3700
      %v3702 = vadd.f32 %v3698, %v3701
      %vm3703 = vweird.f32 %v3484
      %vm3704 = vweird.f32 %v3698
      %vm3705 = vmor %vm3703, %vm3704
      %v3706 = vsel %vm3705, %v3698, %v3702
      %v3707 = vand.u32 2147483647, %v3484
      %vm3708 = vcmp.eq.f32.partialorder %v3707, 8.507059e+37
      %v3709 = vand.u32 %v3484, 2147483648
      %v3710 = vor.u32 1.1754944e-38, %v3709
      %v3711 = vsel %vm3708, %v3710, %v3706
      %v3712 = vmul.f32 1.0, %v3711
      %v3713 = vrcp.pop %v3485
      %v3714 = vmul.f32 %v3485, %v3713
      %v3715 = vsub.f32 1.0, %v3714
      %v3716 = vmul.f32 %v3713, %v3715
      %v3717 = vadd.f32 %v3713, %v3716
      %vm3718 = vweird.f32 %v3485
      %vm3719 = vweird.f32 %v3713
      %vm3720 = vmor %vm3718, %vm3719
      %v3721 = vsel %vm3720, %v3713, %v3717
      %v3722 = vand.u32 2147483647, %v3485
      %vm3723 = vcmp.eq.f32.partialorder %v3722, 8.507059e+37
      %v3724 = vand.u32 %v3485, 2147483648
      %v3725 = vor.u32 1.1754944e-38, %v3724
      %v3726 = vsel %vm3723, %v3725, %v3721
      %v3727 = vmul.f32 1.0, %v3726
      %v3728 = vrcp.pop %v3486
      %v3729 = vmul.f32 %v3486, %v3728
      %v3730 = vsub.f32 1.0, %v3729
      %v3731 = vmul.f32 %v3728, %v3730
      %v3732 = vadd.f32 %v3728, %v3731
      %vm3733 = vweird.f32 %v3486
      %vm3734 = vweird.f32 %v3728
      %vm3735 = vmor %vm3733, %vm3734
      %v3736 = vsel %vm3735, %v3728, %v3732
      %v3737 = vand.u32 2147483647, %v3486
      %vm3738 = vcmp.eq.f32.partialorder %v3737, 8.507059e+37
      %v3739 = vand.u32 %v3486, 2147483648
      %v3740 = vor.u32 1.1754944e-38, %v3739
      %v3741 = vsel %vm3738, %v3740, %v3736
      %v3742 = vmul.f32 1.0, %v3741
      %v3743 = vrcp.pop %v3487
      %v3744 = vmul.f32 %v3487, %v3743
      %v3745 = vsub.f32 1.0, %v3744
      %v3746 = vmul.f32 %v3743, %v3745
      %v3747 = vadd.f32 %v3743, %v3746
      %vm3748 = vweird.f32 %v3487
      %vm3749 = vweird.f32 %v3743
      %vm3750 = vmor %vm3748, %vm3749
      %v3751 = vsel %vm3750, %v3743, %v3747
      %v3752 = vand.u32 2147483647, %v3487
      %vm3753 = vcmp.eq.f32.partialorder %v3752, 8.507059e+37
      %v3754 = vand.u32 %v3487, 2147483648
      %v3755 = vor.u32 1.1754944e-38, %v3754
      %v3756 = vsel %vm3753, %v3755, %v3751
      %v3757 = vmul.f32 1.0, %v3756
      %v3758 = vrcp.pop %v3488
      %v3759 = vmul.f32 %v3488, %v3758
      %v3760 = vsub.f32 1.0, %v3759
      %v3761 = vmul.f32 %v3758, %v3760
      %v3762 = vadd.f32 %v3758, %v3761
      %vm3763 = vweird.f32 %v3488
      %vm3764 = vweird.f32 %v3758
      %vm3765 = vmor %vm3763, %vm3764
      %v3766 = vsel %vm3765, %v3758, %v3762
      %v3767 = vand.u32 2147483647, %v3488
      %vm3768 = vcmp.eq.f32.partialorder %v3767, 8.507059e+37
      %v3769 = vand.u32 %v3488, 2147483648
      %v3770 = vor.u32 1.1754944e-38, %v3769
      %v3771 = vsel %vm3768, %v3770, %v3766
      %v3772 = vmul.f32 1.0, %v3771
      %v3773 = vrcp.pop %v3489
      %v3774 = vmul.f32 %v3489, %v3773
      %v3775 = vsub.f32 1.0, %v3774
      %v3776 = vmul.f32 %v3773, %v3775
      %v3777 = vadd.f32 %v3773, %v3776
      %vm3778 = vweird.f32 %v3489
      %vm3779 = vweird.f32 %v3773
      %vm3780 = vmor %vm3778, %vm3779
      %v3781 = vsel %vm3780, %v3773, %v3777
      %v3782 = vand.u32 2147483647, %v3489
      %vm3783 = vcmp.eq.f32.partialorder %v3782, 8.507059e+37
      %v3784 = vand.u32 %v3489, 2147483648
      %v3785 = vor.u32 1.1754944e-38, %v3784
      %v3786 = vsel %vm3783, %v3785, %v3781
      %v3787 = vmul.f32 1.0, %v3786
      %v3788 = vrcp.pop %v3490
      %v3789 = vmul.f32 %v3490, %v3788
      %v3790 = vsub.f32 1.0, %v3789
      %v3791 = vmul.f32 %v3788, %v3790
      %v3792 = vadd.f32 %v3788, %v3791
      %vm3793 = vweird.f32 %v3490
      %vm3794 = vweird.f32 %v3788
      %vm3795 = vmor %vm3793, %vm3794
      %v3796 = vsel %vm3795, %v3788, %v3792
      %v3797 = vand.u32 2147483647, %v3490
      %vm3798 = vcmp.eq.f32.partialorder %v3797, 8.507059e+37
      %v3799 = vand.u32 %v3490, 2147483648
      %v3800 = vor.u32 1.1754944e-38, %v3799
      %v3801 = vsel %vm3798, %v3800, %v3796
      %v3802 = vmul.f32 1.0, %v3801
      %v3803 = vrcp.pop %v3491
      %v3804 = vmul.f32 %v3491, %v3803
      %v3805 = vsub.f32 1.0, %v3804
      %v3806 = vmul.f32 %v3803, %v3805
      %v3807 = vadd.f32 %v3803, %v3806
      %vm3808 = vweird.f32 %v3491
      %vm3809 = vweird.f32 %v3803
      %vm3810 = vmor %vm3808, %vm3809
      %v3811 = vsel %vm3810, %v3803, %v3807
      %v3812 = vand.u32 2147483647, %v3491
      %vm3813 = vcmp.eq.f32.partialorder %v3812, 8.507059e+37
      %v3814 = vand.u32 %v3491, 2147483648
      %v3815 = vor.u32 1.1754944e-38, %v3814
      %v3816 = vsel %vm3813, %v3815, %v3811
      %v3817 = vmul.f32 1.0, %v3816
      %v3818 = vrcp.pop %v3492
      %v3819 = vmul.f32 %v3492, %v3818
      %v3820 = vsub.f32 1.0, %v3819
      %v3821 = vmul.f32 %v3818, %v3820
      %v3822 = vadd.f32 %v3818, %v3821
      %vm3823 = vweird.f32 %v3492
      %vm3824 = vweird.f32 %v3818
      %vm3825 = vmor %vm3823, %vm3824
      %v3826 = vsel %vm3825, %v3818, %v3822
      %v3827 = vand.u32 2147483647, %v3492
      %vm3828 = vcmp.eq.f32.partialorder %v3827, 8.507059e+37
      %v3829 = vand.u32 %v3492, 2147483648
      %v3830 = vor.u32 1.1754944e-38, %v3829
      %v3831 = vsel %vm3828, %v3830, %v3826
      %v3832 = vmul.f32 1.0, %v3831
      %v3833 = vrcp.pop %v3493
      %v3834 = vmul.f32 %v3493, %v3833
      %v3835 = vsub.f32 1.0, %v3834
      %v3836 = vmul.f32 %v3833, %v3835
      %v3837 = vadd.f32 %v3833, %v3836
      %vm3838 = vweird.f32 %v3493
      %vm3839 = vweird.f32 %v3833
      %vm3840 = vmor %vm3838, %vm3839
      %v3841 = vsel %vm3840, %v3833, %v3837
      %v3842 = vand.u32 2147483647, %v3493
      %vm3843 = vcmp.eq.f32.partialorder %v3842, 8.507059e+37
      %v3844 = vand.u32 %v3493, 2147483648
      %v3845 = vor.u32 1.1754944e-38, %v3844
      %v3846 = vsel %vm3843, %v3845, %v3841
      %v3847 = vmul.f32 1.0, %v3846
      %v3848 = vrcp.pop %v3494
      %v3849 = vmul.f32 %v3494, %v3848
      %v3850 = vsub.f32 1.0, %v3849
      %v3851 = vmul.f32 %v3848, %v3850
      %v3852 = vadd.f32 %v3848, %v3851
      %vm3853 = vweird.f32 %v3494
      %vm3854 = vweird.f32 %v3848
      %vm3855 = vmor %vm3853, %vm3854
      %v3856 = vsel %vm3855, %v3848, %v3852
      %v3857 = vand.u32 2147483647, %v3494
      %vm3858 = vcmp.eq.f32.partialorder %v3857, 8.507059e+37
      %v3859 = vand.u32 %v3494, 2147483648
      %v3860 = vor.u32 1.1754944e-38, %v3859
      %v3861 = vsel %vm3858, %v3860, %v3856
      %v3862 = vmul.f32 1.0, %v3861
      %v3863 = vrcp.pop %v3495
      %v3864 = vmul.f32 %v3495, %v3863
      %v3865 = vsub.f32 1.0, %v3864
      %v3866 = vmul.f32 %v3863, %v3865
      %v3867 = vadd.f32 %v3863, %v3866
      %vm3868 = vweird.f32 %v3495
      %vm3869 = vweird.f32 %v3863
      %vm3870 = vmor %vm3868, %vm3869
      %v3871 = vsel %vm3870, %v3863, %v3867
      %v3872 = vand.u32 2147483647, %v3495
      %vm3873 = vcmp.eq.f32.partialorder %v3872, 8.507059e+37
      %v3874 = vand.u32 %v3495, 2147483648
      %v3875 = vor.u32 1.1754944e-38, %v3874
      %v3876 = vsel %vm3873, %v3875, %v3871
      %v3877 = vmul.f32 1.0, %v3876
      %v3878 = vrcp.pop %v3496
      %v3879 = vmul.f32 %v3496, %v3878
      %v3880 = vsub.f32 1.0, %v3879
      %v3881 = vmul.f32 %v3878, %v3880
      %v3882 = vadd.f32 %v3878, %v3881
      %vm3883 = vweird.f32 %v3496
      %vm3884 = vweird.f32 %v3878
      %vm3885 = vmor %vm3883, %vm3884
      %v3886 = vsel %vm3885, %v3878, %v3882
      %v3887 = vand.u32 2147483647, %v3496
      %vm3888 = vcmp.eq.f32.partialorder %v3887, 8.507059e+37
      %v3889 = vand.u32 %v3496, 2147483648
      %v3890 = vor.u32 1.1754944e-38, %v3889
      %v3891 = vsel %vm3888, %v3890, %v3886
      %v3892 = vmul.f32 1.0, %v3891
      %v3893 = vrcp.pop %v3497
      %v3894 = vmul.f32 %v3497, %v3893
      %v3895 = vsub.f32 1.0, %v3894
      %v3896 = vmul.f32 %v3893, %v3895
      %v3897 = vadd.f32 %v3893, %v3896
      %vm3898 = vweird.f32 %v3497
      %vm3899 = vweird.f32 %v3893
      %vm3900 = vmor %vm3898, %vm3899
      %v3901 = vsel %vm3900, %v3893, %v3897
      %v3902 = vand.u32 2147483647, %v3497
      %vm3903 = vcmp.eq.f32.partialorder %v3902, 8.507059e+37
      %v3904 = vand.u32 %v3497, 2147483648
      %v3905 = vor.u32 1.1754944e-38, %v3904
      %v3906 = vsel %vm3903, %v3905, %v3901
      %v3907 = vmul.f32 1.0, %v3906
      %v3908 = vrcp.pop %v3498
      %v3909 = vmul.f32 %v3498, %v3908
      %v3910 = vsub.f32 1.0, %v3909
      %v3911 = vmul.f32 %v3908, %v3910
      %v3912 = vadd.f32 %v3908, %v3911
      %vm3913 = vweird.f32 %v3498
      %vm3914 = vweird.f32 %v3908
      %vm3915 = vmor %vm3913, %vm3914
      %v3916 = vsel %vm3915, %v3908, %v3912
      %v3917 = vand.u32 2147483647, %v3498
      %vm3918 = vcmp.eq.f32.partialorder %v3917, 8.507059e+37
      %v3919 = vand.u32 %v3498, 2147483648
      %v3920 = vor.u32 1.1754944e-38, %v3919
      %v3921 = vsel %vm3918, %v3920, %v3916
      %v3922 = vmul.f32 1.0, %v3921
      %v3923 = vrcp.pop %v3499
      %v3924 = vmul.f32 %v3499, %v3923
      %v3925 = vsub.f32 1.0, %v3924
      %v3926 = vmul.f32 %v3923, %v3925
      %v3927 = vadd.f32 %v3923, %v3926
      %vm3928 = vweird.f32 %v3499
      %vm3929 = vweird.f32 %v3923
      %vm3930 = vmor %vm3928, %vm3929
      %v3931 = vsel %vm3930, %v3923, %v3927
      %v3932 = vand.u32 2147483647, %v3499
      %vm3933 = vcmp.eq.f32.partialorder %v3932, 8.507059e+37
      %v3934 = vand.u32 %v3499, 2147483648
      %v3935 = vor.u32 1.1754944e-38, %v3934
      %v3936 = vsel %vm3933, %v3935, %v3931
      %v3937 = vmul.f32 1.0, %v3936
      %v3938 = vrcp.pop %v3500
      %v3939 = vmul.f32 %v3500, %v3938
      %v3940 = vsub.f32 1.0, %v3939
      %v3941 = vmul.f32 %v3938, %v3940
      %v3942 = vadd.f32 %v3938, %v3941
      %vm3943 = vweird.f32 %v3500
      %vm3944 = vweird.f32 %v3938
      %vm3945 = vmor %vm3943, %vm3944
      %v3946 = vsel %vm3945, %v3938, %v3942
      %v3947 = vand.u32 2147483647, %v3500
      %vm3948 = vcmp.eq.f32.partialorder %v3947, 8.507059e+37
      %v3949 = vand.u32 %v3500, 2147483648
      %v3950 = vor.u32 1.1754944e-38, %v3949
      %v3951 = vsel %vm3948, %v3950, %v3946
      %v3952 = vmul.f32 1.0, %v3951
      %v3953 = vrcp.pop %v3501
      %v3954 = vmul.f32 %v3501, %v3953
      %v3955 = vsub.f32 1.0, %v3954
      %v3956 = vmul.f32 %v3953, %v3955
      %v3957 = vadd.f32 %v3953, %v3956
      %vm3958 = vweird.f32 %v3501
      %vm3959 = vweird.f32 %v3953
      %vm3960 = vmor %vm3958, %vm3959
      %v3961 = vsel %vm3960, %v3953, %v3957
      %v3962 = vand.u32 2147483647, %v3501
      %vm3963 = vcmp.eq.f32.partialorder %v3962, 8.507059e+37
      %v3964 = vand.u32 %v3501, 2147483648
      %v3965 = vor.u32 1.1754944e-38, %v3964
      %v3966 = vsel %vm3963, %v3965, %v3961
      %v3967 = vmul.f32 1.0, %v3966
      %v3968 = vrcp.pop %v3502
      %v3969 = vmul.f32 %v3502, %v3968
      %v3970 = vsub.f32 1.0, %v3969
      %v3971 = vmul.f32 %v3968, %v3970
      %v3972 = vadd.f32 %v3968, %v3971
      %vm3973 = vweird.f32 %v3502
      %vm3974 = vweird.f32 %v3968
      %vm3975 = vmor %vm3973, %vm3974
      %v3976 = vsel %vm3975, %v3968, %v3972
      %v3977 = vand.u32 2147483647, %v3502
      %vm3978 = vcmp.eq.f32.partialorder %v3977, 8.507059e+37
      %v3979 = vand.u32 %v3502, 2147483648
      %v3980 = vor.u32 1.1754944e-38, %v3979
      %v3981 = vsel %vm3978, %v3980, %v3976
      %v3982 = vmul.f32 1.0, %v3981
      %v3983 = vmul.f32 %v3343, %v3517
      %v3984 = vmul.f32 %v3344, %v3532
      %v3985 = vmul.f32 %v3345, %v3547
      %v3986 = vmul.f32 %v3346, %v3562
      %v3987 = vmul.f32 %v3347, %v3577
      %v3988 = vmul.f32 %v3348, %v3592
      %v3989 = vmul.f32 %v3349, %v3607
      %v3990 = vmul.f32 %v3350, %v3622
      %v3991 = vmul.f32 %v3351, %v3637
      %v3992 = vmul.f32 %v3352, %v3652
      %v3993 = vmul.f32 %v3353, %v3667
      %v3994 = vmul.f32 %v3354, %v3682
      %v3995 = vmul.f32 %v3355, %v3697
      %v3996 = vmul.f32 %v3356, %v3712
      %v3997 = vmul.f32 %v3357, %v3727
      %v3998 = vmul.f32 %v3358, %v3742
      %v3999 = vmul.f32 %v3359, %v3757
      %v4000 = vmul.f32 %v3360, %v3772
      %v4001 = vmul.f32 %v3361, %v3787
      %v4002 = vmul.f32 %v3362, %v3802
      %v4003 = vmul.f32 %v3363, %v3817
      %v4004 = vmul.f32 %v3364, %v3832
      %v4005 = vmul.f32 %v3365, %v3847
      %v4006 = vmul.f32 %v3366, %v3862
      %v4007 = vmul.f32 %v3367, %v3877
      %v4008 = vmul.f32 %v3368, %v3892
      %v4009 = vmul.f32 %v3369, %v3907
      %v4010 = vmul.f32 %v3370, %v3922
      %v4011 = vmul.f32 %v3371, %v3937
      %v4012 = vmul.f32 %v3372, %v3952
      %v4013 = vmul.f32 %v3373, %v3967
      %v4014 = vmul.f32 %v3374, %v3982
      %4015 = vst.msk [vmem:[#allocation3 + $0x7] sm:$0xff] %vm3066, 0.0
      %4016 = vst.msk [vmem:[#allocation3 + $0xf] sm:$0xff] %vm3066, 0.0
      %vm4017 = vcmask 123904
      %4018 = vst.msk [vmem:[#allocation3 + $0x17] sm:$0x3] %vm4017, 0.0
      %s4019 = scalar_lea.vmem [#allocation3], 544
      %4020 = vst.msk [vmem:[%s4019 + $0x7] sm:$0xff] %vm3066, 0.0
      %4021 = vst.msk [vmem:[%s4019 + $0xf] sm:$0xff] %vm3066, 0.0
      %4022 = vst.msk [vmem:[%s4019 + $0x17] sm:$0x3] %vm4017, 0.0
      %s4023 = scalar_lea.vmem [#allocation3], 32
      %vm4024 = vcmask 122880
      %4025 = vst.msk [vmem:[%s4023 + $0x7] sm:$0x1] %vm4024, 0.0
      %4026 = vst.msk [vmem:[%s4023 + $0x27] sm:$0x1] %vm4024, 0.0
      %4027 = vst.msk [vmem:[%s4023 + $0x47] sm:$0x1] %vm4024, 0.0
      %4028 = vst.msk [vmem:[%s4023 + $0x67] sm:$0x1] %vm4024, 0.0
      %4029 = vst.msk [vmem:[%s4023 + $0x87] sm:$0x1] %vm4024, 0.0
      %4030 = vst.msk [vmem:[%s4023 + $0xa7] sm:$0x1] %vm4024, 0.0
      %4031 = vst.msk [vmem:[%s4023 + $0xc7] sm:$0x1] %vm4024, 0.0
      %4032 = vst.msk [vmem:[%s4023 + $0xe7] sm:$0x1] %vm4024, 0.0
      %4033 = vst.msk [vmem:[%s4023 + $0x107] sm:$0x1] %vm4024, 0.0
      %4034 = vst.msk [vmem:[%s4023 + $0x127] sm:$0x1] %vm4024, 0.0
      %4035 = vst.msk [vmem:[%s4023 + $0x147] sm:$0x1] %vm4024, 0.0
      %4036 = vst.msk [vmem:[%s4023 + $0x167] sm:$0x1] %vm4024, 0.0
      %4037 = vst.msk [vmem:[%s4023 + $0x187] sm:$0x1] %vm4024, 0.0
      %4038 = vst.msk [vmem:[%s4023 + $0x1a7] sm:$0x1] %vm4024, 0.0
      %4039 = vst.msk [vmem:[%s4023 + $0x1c7] sm:$0x1] %vm4024, 0.0
      %4040 = vst.msk [vmem:[%s4023 + $0x1e7] sm:$0x1] %vm4024, 0.0
      %4041 = vst.msk [vmem:[%s4023 + $0x18] sm:$0x1] %vm4024, 0.0
      %4042 = vst.msk [vmem:[%s4023 + $0x38] sm:$0x1] %vm4024, 0.0
      %4043 = vst.msk [vmem:[%s4023 + $0x58] sm:$0x1] %vm4024, 0.0
      %4044 = vst.msk [vmem:[%s4023 + $0x78] sm:$0x1] %vm4024, 0.0
      %4045 = vst.msk [vmem:[%s4023 + $0x98] sm:$0x1] %vm4024, 0.0
      %4046 = vst.msk [vmem:[%s4023 + $0xb8] sm:$0x1] %vm4024, 0.0
      %4047 = vst.msk [vmem:[%s4023 + $0xd8] sm:$0x1] %vm4024, 0.0
      %4048 = vst.msk [vmem:[%s4023 + $0xf8] sm:$0x1] %vm4024, 0.0
      %4049 = vst.msk [vmem:[%s4023 + $0x118] sm:$0x1] %vm4024, 0.0
      %4050 = vst.msk [vmem:[%s4023 + $0x138] sm:$0x1] %vm4024, 0.0
      %4051 = vst.msk [vmem:[%s4023 + $0x158] sm:$0x1] %vm4024, 0.0
      %4052 = vst.msk [vmem:[%s4023 + $0x178] sm:$0x1] %vm4024, 0.0
      %4053 = vst.msk [vmem:[%s4023 + $0x198] sm:$0x1] %vm4024, 0.0
      %4054 = vst.msk [vmem:[%s4023 + $0x1b8] sm:$0x1] %vm4024, 0.0
      %4055 = vst.msk [vmem:[%s4023 + $0x1d8] sm:$0x1] %vm4024, 0.0
      %4056 = vst.msk [vmem:[%s4023 + $0x1f8] sm:$0x1] %vm4024, 0.0
      %4057 = vst.msk [vmem:[%s4023 + $0x8] sm:$0xff] %vm3066, %v3983
      %4058 = vst.msk [vmem:[%s4023 + $0x10] sm:$0xff] %vm3066, %v3984
      %4059 = vst.msk [vmem:[%s4023 + $0x28] sm:$0xff] %vm3066, %v3985
      %4060 = vst.msk [vmem:[%s4023 + $0x30] sm:$0xff] %vm3066, %v3986
      %4061 = vst.msk [vmem:[%s4023 + $0x48] sm:$0xff] %vm3066, %v3987
      %4062 = vst.msk [vmem:[%s4023 + $0x50] sm:$0xff] %vm3066, %v3988
      %4063 = vst.msk [vmem:[%s4023 + $0x68] sm:$0xff] %vm3066, %v3989
      %4064 = vst.msk [vmem:[%s4023 + $0x70] sm:$0xff] %vm3066, %v3990
      %4065 = vst.msk [vmem:[%s4023 + $0x88] sm:$0xff] %vm3066, %v3991
      %4066 = vst.msk [vmem:[%s4023 + $0x90] sm:$0xff] %vm3066, %v3992
      %4067 = vst.msk [vmem:[%s4023 + $0xa8] sm:$0xff] %vm3066, %v3993
      %4068 = vst.msk [vmem:[%s4023 + $0xb0] sm:$0xff] %vm3066, %v3994
      %4069 = vst.msk [vmem:[%s4023 + $0xc8] sm:$0xff] %vm3066, %v3995
      %4070 = vst.msk [vmem:[%s4023 + $0xd0] sm:$0xff] %vm3066, %v3996
      %4071 = vst.msk [vmem:[%s4023 + $0xe8] sm:$0xff] %vm3066, %v3997
      %4072 = vst.msk [vmem:[%s4023 + $0xf0] sm:$0xff] %vm3066, %v3998
      %4073 = vst.msk [vmem:[%s4023 + $0x108] sm:$0xff] %vm3066, %v3999
      %4074 = vst.msk [vmem:[%s4023 + $0x110] sm:$0xff] %vm3066, %v4000
      %4075 = vst.msk [vmem:[%s4023 + $0x128] sm:$0xff] %vm3066, %v4001
      %4076 = vst.msk [vmem:[%s4023 + $0x130] sm:$0xff] %vm3066, %v4002
      %4077 = vst.msk [vmem:[%s4023 + $0x148] sm:$0xff] %vm3066, %v4003
      %4078 = vst.msk [vmem:[%s4023 + $0x150] sm:$0xff] %vm3066, %v4004
      %4079 = vst.msk [vmem:[%s4023 + $0x168] sm:$0xff] %vm3066, %v4005
      %4080 = vst.msk [vmem:[%s4023 + $0x170] sm:$0xff] %vm3066, %v4006
      %4081 = vst.msk [vmem:[%s4023 + $0x188] sm:$0xff] %vm3066, %v4007
      %4082 = vst.msk [vmem:[%s4023 + $0x190] sm:$0xff] %vm3066, %v4008
      %4083 = vst.msk [vmem:[%s4023 + $0x1a8] sm:$0xff] %vm3066, %v4009
      %4084 = vst.msk [vmem:[%s4023 + $0x1b0] sm:$0xff] %vm3066, %v4010
      %4085 = vst.msk [vmem:[%s4023 + $0x1c8] sm:$0xff] %vm3066, %v4011
      %4086 = vst.msk [vmem:[%s4023 + $0x1d0] sm:$0xff] %vm3066, %v4012
      %4087 = vst.msk [vmem:[%s4023 + $0x1e8] sm:$0xff] %vm3066, %v4013
      %4088 = vst.msk [vmem:[%s4023 + $0x1f0] sm:$0xff] %vm3066, %v4014
      %v4089 = vld [vmem:[%s7] sm:$0x1]
      %v4091 = vperm.slane %v4089, 0
      %v4093 = vld [vmem:[#allocation3 + $0x7] sm:$0xff]
      %v4094 = vld [vmem:[#allocation3 + $0xf] sm:$0xff]
      %v4095 = vld [vmem:[#allocation3 + $0x27] sm:$0xff]
      %v4096 = vld [vmem:[#allocation3 + $0x2f] sm:$0xff]
      %v4097 = vld [vmem:[#allocation3 + $0x47] sm:$0xff]
      %v4098 = vld [vmem:[#allocation3 + $0x4f] sm:$0xff]
      %v4099 = vld [vmem:[#allocation3 + $0x67] sm:$0xff]
      %v4100 = vld [vmem:[#allocation3 + $0x6f] sm:$0xff]
      %v4101 = vld [vmem:[#allocation3 + $0x87] sm:$0xff]
      %v4102 = vld [vmem:[#allocation3 + $0x8f] sm:$0xff]
      %v4103 = vld [vmem:[#allocation3 + $0xa7] sm:$0xff]
      %v4104 = vld [vmem:[#allocation3 + $0xaf] sm:$0xff]
      %v4105 = vld [vmem:[#allocation3 + $0xc7] sm:$0xff]
      %v4106 = vld [vmem:[#allocation3 + $0xcf] sm:$0xff]
      %v4107 = vld [vmem:[#allocation3 + $0xe7] sm:$0xff]
      %v4108 = vld [vmem:[#allocation3 + $0xef] sm:$0xff]
      %v4109 = vld [vmem:[#allocation3 + $0x107] sm:$0xff]
      %v4110 = vld [vmem:[#allocation3 + $0x10f] sm:$0xff]
      %v4111 = vld [vmem:[#allocation3 + $0x127] sm:$0xff]
      %v4112 = vld [vmem:[#allocation3 + $0x12f] sm:$0xff]
      %v4113 = vld [vmem:[#allocation3 + $0x147] sm:$0xff]
      %v4114 = vld [vmem:[#allocation3 + $0x14f] sm:$0xff]
      %v4115 = vld [vmem:[#allocation3 + $0x167] sm:$0xff]
      %v4116 = vld [vmem:[#allocation3 + $0x16f] sm:$0xff]
      %v4117 = vld [vmem:[#allocation3 + $0x187] sm:$0xff]
      %v4118 = vld [vmem:[#allocation3 + $0x18f] sm:$0xff]
      %v4119 = vld [vmem:[#allocation3 + $0x1a7] sm:$0xff]
      %v4120 = vld [vmem:[#allocation3 + $0x1af] sm:$0xff]
      %v4121 = vld [vmem:[#allocation3 + $0x1c7] sm:$0xff]
      %v4122 = vld [vmem:[#allocation3 + $0x1cf] sm:$0xff]
      %v4123 = vld [vmem:[#allocation3 + $0x1e7] sm:$0xff]
      %v4124 = vld [vmem:[#allocation3 + $0x1ef] sm:$0xff]
      %v4125 = vld [vmem:[%s6] sm:$0xff]
      %v4126 = vld [vmem:[%s6 + $0x8] sm:$0xff]
      %v4128 = vsel %vm3066, %v4093, 0
      %v4131 = vsel %vm3066, %v4094, 0
      %v4134 = vsel %vm3066, %v4095, 0
      %v4137 = vsel %vm3066, %v4096, 0
      %v4140 = vsel %vm3066, %v4097, 0
      %v4143 = vsel %vm3066, %v4098, 0
      %v4146 = vsel %vm3066, %v4099, 0
      %v4149 = vsel %vm3066, %v4100, 0
      %v4152 = vsel %vm3066, %v4101, 0
      %v4155 = vsel %vm3066, %v4102, 0
      %v4158 = vsel %vm3066, %v4103, 0
      %v4161 = vsel %vm3066, %v4104, 0
      %v4164 = vsel %vm3066, %v4105, 0
      %v4167 = vsel %vm3066, %v4106, 0
      %v4170 = vsel %vm3066, %v4107, 0
      %v4173 = vsel %vm3066, %v4108, 0
      %v4176 = vsel %vm3066, %v4109, 0
      %v4179 = vsel %vm3066, %v4110, 0
      %v4182 = vsel %vm3066, %v4111, 0
      %v4185 = vsel %vm3066, %v4112, 0
      %v4188 = vsel %vm3066, %v4113, 0
      %v4191 = vsel %vm3066, %v4114, 0
      %v4194 = vsel %vm3066, %v4115, 0
      %v4197 = vsel %vm3066, %v4116, 0
      %v4200 = vsel %vm3066, %v4117, 0
      %v4203 = vsel %vm3066, %v4118, 0
      %v4206 = vsel %vm3066, %v4119, 0
      %v4209 = vsel %vm3066, %v4120, 0
      %v4212 = vsel %vm3066, %v4121, 0
      %v4215 = vsel %vm3066, %v4122, 0
      %v4218 = vsel %vm3066, %v4123, 0
      %v4221 = vsel %vm3066, %v4124, 0
      %4223 = vmatpush.msra.mxu0 0.0
      %4224 = vmatpush.msra.mxu0 0.0
      %4225 = vmatpush.msra.mxu0 0.0
      %4226 = vmatpush.msra.mxu0 0.0
      %4227 = vmatpush.msra.mxu0 0.0
      %4228 = vmatpush.msra.mxu0 0.0
      %4229 = vmatpush.msra.mxu0 0.0
      %4230 = vmatpush.msra.mxu0 0.0
      %4231 = vmatpush.msra.mxu0 0.0
      %4232 = vmatpush.msra.mxu0 0.0
      %4233 = vmatpush.msra.mxu0 0.0
      %4234 = vmatpush.msra.mxu0 0.0
      %4235 = vmatpush.msra.mxu0 0.0
      %4236 = vmatpush.msra.mxu0 0.0
      %4237 = vmatpush.msra.mxu0 %v4126
      %4238 = vmatpush.msra.mxu0 %v4125
      %4239 = vmatmul.f32.gmra.mxu0 %v4128
      %v4240 = vpop.f32.mrf.mxu0
      %v4241 = vadd.f32 0.0, %v4240
      %4242 = vmatmul.f32.gmra.mxu0 %v4131
      %v4243 = vpop.f32.mrf.mxu0
      %v4244 = vadd.f32 0.0, %v4243
      %4245 = vmatmul.f32.gmra.mxu0 %v4134
      %v4246 = vpop.f32.mrf.mxu0
      %v4247 = vadd.f32 0.0, %v4246
      %4248 = vmatmul.f32.gmra.mxu0 %v4137
      %v4249 = vpop.f32.mrf.mxu0
      %v4250 = vadd.f32 0.0, %v4249
      %4251 = vmatmul.f32.gmra.mxu0 %v4140
      %v4252 = vpop.f32.mrf.mxu0
      %v4253 = vadd.f32 0.0, %v4252
      %4254 = vmatmul.f32.gmra.mxu0 %v4143
      %v4255 = vpop.f32.mrf.mxu0
      %v4256 = vadd.f32 0.0, %v4255
      %4257 = vmatmul.f32.gmra.mxu0 %v4146
      %v4258 = vpop.f32.mrf.mxu0
      %v4259 = vadd.f32 0.0, %v4258
      %4260 = vmatmul.f32.gmra.mxu0 %v4149
      %v4261 = vpop.f32.mrf.mxu0
      %v4262 = vadd.f32 0.0, %v4261
      %4263 = vmatmul.f32.gmra.mxu0 %v4152
      %v4264 = vpop.f32.mrf.mxu0
      %v4265 = vadd.f32 0.0, %v4264
      %4266 = vmatmul.f32.gmra.mxu0 %v4155
      %v4267 = vpop.f32.mrf.mxu0
      %v4268 = vadd.f32 0.0, %v4267
      %4269 = vmatmul.f32.gmra.mxu0 %v4158
      %v4270 = vpop.f32.mrf.mxu0
      %v4271 = vadd.f32 0.0, %v4270
      %4272 = vmatmul.f32.gmra.mxu0 %v4161
      %v4273 = vpop.f32.mrf.mxu0
      %v4274 = vadd.f32 0.0, %v4273
      %4275 = vmatmul.f32.gmra.mxu0 %v4164
      %v4276 = vpop.f32.mrf.mxu0
      %v4277 = vadd.f32 0.0, %v4276
      %4278 = vmatmul.f32.gmra.mxu0 %v4167
      %v4279 = vpop.f32.mrf.mxu0
      %v4280 = vadd.f32 0.0, %v4279
      %4281 = vmatmul.f32.gmra.mxu0 %v4170
      %v4282 = vpop.f32.mrf.mxu0
      %v4283 = vadd.f32 0.0, %v4282
      %4284 = vmatmul.f32.gmra.mxu0 %v4173
      %v4285 = vpop.f32.mrf.mxu0
      %v4286 = vadd.f32 0.0, %v4285
      %4287 = vmatmul.f32.gmra.mxu0 %v4176
      %v4288 = vpop.f32.mrf.mxu0
      %v4289 = vadd.f32 0.0, %v4288
      %4290 = vmatmul.f32.gmra.mxu0 %v4179
      %v4291 = vpop.f32.mrf.mxu0
      %v4292 = vadd.f32 0.0, %v4291
      %4293 = vmatmul.f32.gmra.mxu0 %v4182
      %v4294 = vpop.f32.mrf.mxu0
      %v4295 = vadd.f32 0.0, %v4294
      %4296 = vmatmul.f32.gmra.mxu0 %v4185
      %v4297 = vpop.f32.mrf.mxu0
      %v4298 = vadd.f32 0.0, %v4297
      %4299 = vmatmul.f32.gmra.mxu0 %v4188
      %v4300 = vpop.f32.mrf.mxu0
      %v4301 = vadd.f32 0.0, %v4300
      %4302 = vmatmul.f32.gmra.mxu0 %v4191
      %v4303 = vpop.f32.mrf.mxu0
      %v4304 = vadd.f32 0.0, %v4303
      %4305 = vmatmul.f32.gmra.mxu0 %v4194
      %v4306 = vpop.f32.mrf.mxu0
      %v4307 = vadd.f32 0.0, %v4306
      %4308 = vmatmul.f32.gmra.mxu0 %v4197
      %v4309 = vpop.f32.mrf.mxu0
      %v4310 = vadd.f32 0.0, %v4309
      %4311 = vmatmul.f32.gmra.mxu0 %v4200
      %v4312 = vpop.f32.mrf.mxu0
      %v4313 = vadd.f32 0.0, %v4312
      %4314 = vmatmul.f32.gmra.mxu0 %v4203
      %v4315 = vpop.f32.mrf.mxu0
      %v4316 = vadd.f32 0.0, %v4315
      %4317 = vmatmul.f32.gmra.mxu0 %v4206
      %v4318 = vpop.f32.mrf.mxu0
      %v4319 = vadd.f32 0.0, %v4318
      %4320 = vmatmul.f32.gmra.mxu0 %v4209
      %v4321 = vpop.f32.mrf.mxu0
      %v4322 = vadd.f32 0.0, %v4321
      %4323 = vmatmul.f32.gmra.mxu0 %v4212
      %v4324 = vpop.f32.mrf.mxu0
      %v4325 = vadd.f32 0.0, %v4324
      %4326 = vmatmul.f32.gmra.mxu0 %v4215
      %v4327 = vpop.f32.mrf.mxu0
      %v4328 = vadd.f32 0.0, %v4327
      %4329 = vmatmul.f32.gmra.mxu0 %v4218
      %v4330 = vpop.f32.mrf.mxu0
      %v4331 = vadd.f32 0.0, %v4330
      %4332 = vmatmul.f32.gmra.mxu0 %v4221
      %v4333 = vpop.f32.mrf.mxu0
      %v4334 = vadd.f32 0.0, %v4333
      %4335 = vdwg.mxu0
      %v4336 = vadd.f32 %v4091, %v4241
      %v4337 = vadd.f32 %v4091, %v4244
      %v4338 = vadd.f32 %v4091, %v4247
      %v4339 = vadd.f32 %v4091, %v4250
      %v4340 = vadd.f32 %v4091, %v4253
      %v4341 = vadd.f32 %v4091, %v4256
      %v4342 = vadd.f32 %v4091, %v4259
      %v4343 = vadd.f32 %v4091, %v4262
      %v4344 = vadd.f32 %v4091, %v4265
      %v4345 = vadd.f32 %v4091, %v4268
      %v4346 = vadd.f32 %v4091, %v4271
      %v4347 = vadd.f32 %v4091, %v4274
      %v4348 = vadd.f32 %v4091, %v4277
      %v4349 = vadd.f32 %v4091, %v4280
      %v4350 = vadd.f32 %v4091, %v4283
      %v4351 = vadd.f32 %v4091, %v4286
      %v4352 = vadd.f32 %v4091, %v4289
      %v4353 = vadd.f32 %v4091, %v4292
      %v4354 = vadd.f32 %v4091, %v4295
      %v4355 = vadd.f32 %v4091, %v4298
      %v4356 = vadd.f32 %v4091, %v4301
      %v4357 = vadd.f32 %v4091, %v4304
      %v4358 = vadd.f32 %v4091, %v4307
      %v4359 = vadd.f32 %v4091, %v4310
      %v4360 = vadd.f32 %v4091, %v4313
      %v4361 = vadd.f32 %v4091, %v4316
      %v4362 = vadd.f32 %v4091, %v4319
      %v4363 = vadd.f32 %v4091, %v4322
      %v4364 = vadd.f32 %v4091, %v4325
      %v4365 = vadd.f32 %v4091, %v4328
      %v4366 = vadd.f32 %v4091, %v4331
      %v4367 = vadd.f32 %v4091, %v4334
      %v4368 = vld [vmem:[#allocation3 + $0x8] sm:$0xff]
      %v4369 = vld [vmem:[#allocation3 + $0x10] sm:$0xff]
      %v4370 = vld [vmem:[#allocation3 + $0x28] sm:$0xff]
      %v4371 = vld [vmem:[#allocation3 + $0x30] sm:$0xff]
      %v4372 = vld [vmem:[#allocation3 + $0x48] sm:$0xff]
      %v4373 = vld [vmem:[#allocation3 + $0x50] sm:$0xff]
      %v4374 = vld [vmem:[#allocation3 + $0x68] sm:$0xff]
      %v4375 = vld [vmem:[#allocation3 + $0x70] sm:$0xff]
      %v4376 = vld [vmem:[#allocation3 + $0x88] sm:$0xff]
      %v4377 = vld [vmem:[#allocation3 + $0x90] sm:$0xff]
      %v4378 = vld [vmem:[#allocation3 + $0xa8] sm:$0xff]
      %v4379 = vld [vmem:[#allocation3 + $0xb0] sm:$0xff]
      %v4380 = vld [vmem:[#allocation3 + $0xc8] sm:$0xff]
      %v4381 = vld [vmem:[#allocation3 + $0xd0] sm:$0xff]
      %v4382 = vld [vmem:[#allocation3 + $0xe8] sm:$0xff]
      %v4383 = vld [vmem:[#allocation3 + $0xf0] sm:$0xff]
      %v4384 = vld [vmem:[#allocation3 + $0x108] sm:$0xff]
      %v4385 = vld [vmem:[#allocation3 + $0x110] sm:$0xff]
      %v4386 = vld [vmem:[#allocation3 + $0x128] sm:$0xff]
      %v4387 = vld [vmem:[#allocation3 + $0x130] sm:$0xff]
      %v4388 = vld [vmem:[#allocation3 + $0x148] sm:$0xff]
      %v4389 = vld [vmem:[#allocation3 + $0x150] sm:$0xff]
      %v4390 = vld [vmem:[#allocation3 + $0x168] sm:$0xff]
      %v4391 = vld [vmem:[#allocation3 + $0x170] sm:$0xff]
      %v4392 = vld [vmem:[#allocation3 + $0x188] sm:$0xff]
      %v4393 = vld [vmem:[#allocation3 + $0x190] sm:$0xff]
      %v4394 = vld [vmem:[#allocation3 + $0x1a8] sm:$0xff]
      %v4395 = vld [vmem:[#allocation3 + $0x1b0] sm:$0xff]
      %v4396 = vld [vmem:[#allocation3 + $0x1c8] sm:$0xff]
      %v4397 = vld [vmem:[#allocation3 + $0x1d0] sm:$0xff]
      %v4398 = vld [vmem:[#allocation3 + $0x1e8] sm:$0xff]
      %v4399 = vld [vmem:[#allocation3 + $0x1f0] sm:$0xff]
      %v4400 = vld [vmem:[%s6 + $0x10] sm:$0xff]
      %v4401 = vld [vmem:[%s6 + $0x18] sm:$0xff]
      %v4403 = vsel %vm3066, %v4368, 0
      %v4406 = vsel %vm3066, %v4369, 0
      %v4409 = vsel %vm3066, %v4370, 0
      %v4412 = vsel %vm3066, %v4371, 0
      %v4415 = vsel %vm3066, %v4372, 0
      %v4418 = vsel %vm3066, %v4373, 0
      %v4421 = vsel %vm3066, %v4374, 0
      %v4424 = vsel %vm3066, %v4375, 0
      %v4427 = vsel %vm3066, %v4376, 0
      %v4430 = vsel %vm3066, %v4377, 0
      %v4433 = vsel %vm3066, %v4378, 0
      %v4436 = vsel %vm3066, %v4379, 0
      %v4439 = vsel %vm3066, %v4380, 0
      %v4442 = vsel %vm3066, %v4381, 0
      %v4445 = vsel %vm3066, %v4382, 0
      %v4448 = vsel %vm3066, %v4383, 0
      %v4451 = vsel %vm3066, %v4384, 0
      %v4454 = vsel %vm3066, %v4385, 0
      %v4457 = vsel %vm3066, %v4386, 0
      %v4460 = vsel %vm3066, %v4387, 0
      %v4463 = vsel %vm3066, %v4388, 0
      %v4466 = vsel %vm3066, %v4389, 0
      %v4469 = vsel %vm3066, %v4390, 0
      %v4472 = vsel %vm3066, %v4391, 0
      %v4475 = vsel %vm3066, %v4392, 0
      %v4478 = vsel %vm3066, %v4393, 0
      %v4481 = vsel %vm3066, %v4394, 0
      %v4484 = vsel %vm3066, %v4395, 0
      %v4487 = vsel %vm3066, %v4396, 0
      %v4490 = vsel %vm3066, %v4397, 0
      %v4493 = vsel %vm3066, %v4398, 0
      %v4496 = vsel %vm3066, %v4399, 0
      %4498 = vmatpush.msra.mxu0 0.0
      %4499 = vmatpush.msra.mxu0 0.0
      %4500 = vmatpush.msra.mxu0 0.0
      %4501 = vmatpush.msra.mxu0 0.0
      %4502 = vmatpush.msra.mxu0 0.0
      %4503 = vmatpush.msra.mxu0 0.0
      %4504 = vmatpush.msra.mxu0 0.0
      %4505 = vmatpush.msra.mxu0 0.0
      %4506 = vmatpush.msra.mxu0 0.0
      %4507 = vmatpush.msra.mxu0 0.0
      %4508 = vmatpush.msra.mxu0 0.0
      %4509 = vmatpush.msra.mxu0 0.0
      %4510 = vmatpush.msra.mxu0 0.0
      %4511 = vmatpush.msra.mxu0 0.0
      %4512 = vmatpush.msra.mxu0 %v4401
      %4513 = vmatpush.msra.mxu0 %v4400
      %4514 = vmatmul.f32.gmra.mxu0 %v4403
      %v4515 = vpop.f32.mrf.mxu0
      %v4516 = vadd.f32 0.0, %v4515
      %4517 = vmatmul.f32.gmra.mxu0 %v4406
      %v4518 = vpop.f32.mrf.mxu0
      %v4519 = vadd.f32 0.0, %v4518
      %4520 = vmatmul.f32.gmra.mxu0 %v4409
      %v4521 = vpop.f32.mrf.mxu0
      %v4522 = vadd.f32 0.0, %v4521
      %4523 = vmatmul.f32.gmra.mxu0 %v4412
      %v4524 = vpop.f32.mrf.mxu0
      %v4525 = vadd.f32 0.0, %v4524
      %4526 = vmatmul.f32.gmra.mxu0 %v4415
      %v4527 = vpop.f32.mrf.mxu0
      %v4528 = vadd.f32 0.0, %v4527
      %4529 = vmatmul.f32.gmra.mxu0 %v4418
      %v4530 = vpop.f32.mrf.mxu0
      %v4531 = vadd.f32 0.0, %v4530
      %4532 = vmatmul.f32.gmra.mxu0 %v4421
      %v4533 = vpop.f32.mrf.mxu0
      %v4534 = vadd.f32 0.0, %v4533
      %4535 = vmatmul.f32.gmra.mxu0 %v4424
      %v4536 = vpop.f32.mrf.mxu0
      %v4537 = vadd.f32 0.0, %v4536
      %4538 = vmatmul.f32.gmra.mxu0 %v4427
      %v4539 = vpop.f32.mrf.mxu0
      %v4540 = vadd.f32 0.0, %v4539
      %4541 = vmatmul.f32.gmra.mxu0 %v4430
      %v4542 = vpop.f32.mrf.mxu0
      %v4543 = vadd.f32 0.0, %v4542
      %4544 = vmatmul.f32.gmra.mxu0 %v4433
      %v4545 = vpop.f32.mrf.mxu0
      %v4546 = vadd.f32 0.0, %v4545
      %4547 = vmatmul.f32.gmra.mxu0 %v4436
      %v4548 = vpop.f32.mrf.mxu0
      %v4549 = vadd.f32 0.0, %v4548
      %4550 = vmatmul.f32.gmra.mxu0 %v4439
      %v4551 = vpop.f32.mrf.mxu0
      %v4552 = vadd.f32 0.0, %v4551
      %4553 = vmatmul.f32.gmra.mxu0 %v4442
      %v4554 = vpop.f32.mrf.mxu0
      %v4555 = vadd.f32 0.0, %v4554
      %4556 = vmatmul.f32.gmra.mxu0 %v4445
      %v4557 = vpop.f32.mrf.mxu0
      %v4558 = vadd.f32 0.0, %v4557
      %4559 = vmatmul.f32.gmra.mxu0 %v4448
      %v4560 = vpop.f32.mrf.mxu0
      %v4561 = vadd.f32 0.0, %v4560
      %4562 = vmatmul.f32.gmra.mxu0 %v4451
      %v4563 = vpop.f32.mrf.mxu0
      %v4564 = vadd.f32 0.0, %v4563
      %4565 = vmatmul.f32.gmra.mxu0 %v4454
      %v4566 = vpop.f32.mrf.mxu0
      %v4567 = vadd.f32 0.0, %v4566
      %4568 = vmatmul.f32.gmra.mxu0 %v4457
      %v4569 = vpop.f32.mrf.mxu0
      %v4570 = vadd.f32 0.0, %v4569
      %4571 = vmatmul.f32.gmra.mxu0 %v4460
      %v4572 = vpop.f32.mrf.mxu0
      %v4573 = vadd.f32 0.0, %v4572
      %4574 = vmatmul.f32.gmra.mxu0 %v4463
      %v4575 = vpop.f32.mrf.mxu0
      %v4576 = vadd.f32 0.0, %v4575
      %4577 = vmatmul.f32.gmra.mxu0 %v4466
      %v4578 = vpop.f32.mrf.mxu0
      %v4579 = vadd.f32 0.0, %v4578
      %4580 = vmatmul.f32.gmra.mxu0 %v4469
      %v4581 = vpop.f32.mrf.mxu0
      %v4582 = vadd.f32 0.0, %v4581
      %4583 = vmatmul.f32.gmra.mxu0 %v4472
      %v4584 = vpop.f32.mrf.mxu0
      %v4585 = vadd.f32 0.0, %v4584
      %4586 = vmatmul.f32.gmra.mxu0 %v4475
      %v4587 = vpop.f32.mrf.mxu0
      %v4588 = vadd.f32 0.0, %v4587
      %4589 = vmatmul.f32.gmra.mxu0 %v4478
      %v4590 = vpop.f32.mrf.mxu0
      %v4591 = vadd.f32 0.0, %v4590
      %4592 = vmatmul.f32.gmra.mxu0 %v4481
      %v4593 = vpop.f32.mrf.mxu0
      %v4594 = vadd.f32 0.0, %v4593
      %4595 = vmatmul.f32.gmra.mxu0 %v4484
      %v4596 = vpop.f32.mrf.mxu0
      %v4597 = vadd.f32 0.0, %v4596
      %4598 = vmatmul.f32.gmra.mxu0 %v4487
      %v4599 = vpop.f32.mrf.mxu0
      %v4600 = vadd.f32 0.0, %v4599
      %4601 = vmatmul.f32.gmra.mxu0 %v4490
      %v4602 = vpop.f32.mrf.mxu0
      %v4603 = vadd.f32 0.0, %v4602
      %4604 = vmatmul.f32.gmra.mxu0 %v4493
      %v4605 = vpop.f32.mrf.mxu0
      %v4606 = vadd.f32 0.0, %v4605
      %4607 = vmatmul.f32.gmra.mxu0 %v4496
      %v4608 = vpop.f32.mrf.mxu0
      %v4609 = vadd.f32 0.0, %v4608
      %4610 = vdwg.mxu0
      %v4611 = vadd.f32 %v4336, %v4516
      %v4612 = vadd.f32 %v4337, %v4519
      %v4613 = vadd.f32 %v4338, %v4522
      %v4614 = vadd.f32 %v4339, %v4525
      %v4615 = vadd.f32 %v4340, %v4528
      %v4616 = vadd.f32 %v4341, %v4531
      %v4617 = vadd.f32 %v4342, %v4534
      %v4618 = vadd.f32 %v4343, %v4537
      %v4619 = vadd.f32 %v4344, %v4540
      %v4620 = vadd.f32 %v4345, %v4543
      %v4621 = vadd.f32 %v4346, %v4546
      %v4622 = vadd.f32 %v4347, %v4549
      %v4623 = vadd.f32 %v4348, %v4552
      %v4624 = vadd.f32 %v4349, %v4555
      %v4625 = vadd.f32 %v4350, %v4558
      %v4626 = vadd.f32 %v4351, %v4561
      %v4627 = vadd.f32 %v4352, %v4564
      %v4628 = vadd.f32 %v4353, %v4567
      %v4629 = vadd.f32 %v4354, %v4570
      %v4630 = vadd.f32 %v4355, %v4573
      %v4631 = vadd.f32 %v4356, %v4576
      %v4632 = vadd.f32 %v4357, %v4579
      %v4633 = vadd.f32 %v4358, %v4582
      %v4634 = vadd.f32 %v4359, %v4585
      %v4635 = vadd.f32 %v4360, %v4588
      %v4636 = vadd.f32 %v4361, %v4591
      %v4637 = vadd.f32 %v4362, %v4594
      %v4638 = vadd.f32 %v4363, %v4597
      %v4639 = vadd.f32 %v4364, %v4600
      %v4640 = vadd.f32 %v4365, %v4603
      %v4641 = vadd.f32 %v4366, %v4606
      %v4642 = vadd.f32 %v4367, %v4609
      %v4643 = vld [vmem:[#allocation3 + $0x9] sm:$0xff]
      %v4644 = vld [vmem:[#allocation3 + $0x11] sm:$0xff]
      %v4645 = vld [vmem:[#allocation3 + $0x29] sm:$0xff]
      %v4646 = vld [vmem:[#allocation3 + $0x31] sm:$0xff]
      %v4647 = vld [vmem:[#allocation3 + $0x49] sm:$0xff]
      %v4648 = vld [vmem:[#allocation3 + $0x51] sm:$0xff]
      %v4649 = vld [vmem:[#allocation3 + $0x69] sm:$0xff]
      %v4650 = vld [vmem:[#allocation3 + $0x71] sm:$0xff]
      %v4651 = vld [vmem:[#allocation3 + $0x89] sm:$0xff]
      %v4652 = vld [vmem:[#allocation3 + $0x91] sm:$0xff]
      %v4653 = vld [vmem:[#allocation3 + $0xa9] sm:$0xff]
      %v4654 = vld [vmem:[#allocation3 + $0xb1] sm:$0xff]
      %v4655 = vld [vmem:[#allocation3 + $0xc9] sm:$0xff]
      %v4656 = vld [vmem:[#allocation3 + $0xd1] sm:$0xff]
      %v4657 = vld [vmem:[#allocation3 + $0xe9] sm:$0xff]
      %v4658 = vld [vmem:[#allocation3 + $0xf1] sm:$0xff]
      %v4659 = vld [vmem:[#allocation3 + $0x109] sm:$0xff]
      %v4660 = vld [vmem:[#allocation3 + $0x111] sm:$0xff]
      %v4661 = vld [vmem:[#allocation3 + $0x129] sm:$0xff]
      %v4662 = vld [vmem:[#allocation3 + $0x131] sm:$0xff]
      %v4663 = vld [vmem:[#allocation3 + $0x149] sm:$0xff]
      %v4664 = vld [vmem:[#allocation3 + $0x151] sm:$0xff]
      %v4665 = vld [vmem:[#allocation3 + $0x169] sm:$0xff]
      %v4666 = vld [vmem:[#allocation3 + $0x171] sm:$0xff]
      %v4667 = vld [vmem:[#allocation3 + $0x189] sm:$0xff]
      %v4668 = vld [vmem:[#allocation3 + $0x191] sm:$0xff]
      %v4669 = vld [vmem:[#allocation3 + $0x1a9] sm:$0xff]
      %v4670 = vld [vmem:[#allocation3 + $0x1b1] sm:$0xff]
      %v4671 = vld [vmem:[#allocation3 + $0x1c9] sm:$0xff]
      %v4672 = vld [vmem:[#allocation3 + $0x1d1] sm:$0xff]
      %v4673 = vld [vmem:[#allocation3 + $0x1e9] sm:$0xff]
      %v4674 = vld [vmem:[#allocation3 + $0x1f1] sm:$0xff]
      %v4675 = vld [vmem:[%s6 + $0x20] sm:$0xff]
      %v4676 = vld [vmem:[%s6 + $0x28] sm:$0xff]
      %v4678 = vsel %vm3066, %v4643, 0
      %v4681 = vsel %vm3066, %v4644, 0
      %v4684 = vsel %vm3066, %v4645, 0
      %v4687 = vsel %vm3066, %v4646, 0
      %v4690 = vsel %vm3066, %v4647, 0
      %v4693 = vsel %vm3066, %v4648, 0
      %v4696 = vsel %vm3066, %v4649, 0
      %v4699 = vsel %vm3066, %v4650, 0
      %v4702 = vsel %vm3066, %v4651, 0
      %v4705 = vsel %vm3066, %v4652, 0
      %v4708 = vsel %vm3066, %v4653, 0
      %v4711 = vsel %vm3066, %v4654, 0
      %v4714 = vsel %vm3066, %v4655, 0
      %v4717 = vsel %vm3066, %v4656, 0
      %v4720 = vsel %vm3066, %v4657, 0
      %v4723 = vsel %vm3066, %v4658, 0
      %v4726 = vsel %vm3066, %v4659, 0
      %v4729 = vsel %vm3066, %v4660, 0
      %v4732 = vsel %vm3066, %v4661, 0
      %v4735 = vsel %vm3066, %v4662, 0
      %v4738 = vsel %vm3066, %v4663, 0
      %v4741 = vsel %vm3066, %v4664, 0
      %v4744 = vsel %vm3066, %v4665, 0
      %v4747 = vsel %vm3066, %v4666, 0
      %v4750 = vsel %vm3066, %v4667, 0
      %v4753 = vsel %vm3066, %v4668, 0
      %v4756 = vsel %vm3066, %v4669, 0
      %v4759 = vsel %vm3066, %v4670, 0
      %v4762 = vsel %vm3066, %v4671, 0
      %v4765 = vsel %vm3066, %v4672, 0
      %v4768 = vsel %vm3066, %v4673, 0
      %v4771 = vsel %vm3066, %v4674, 0
      %4773 = vmatpush.msra.mxu0 0.0
      %4774 = vmatpush.msra.mxu0 0.0
      %4775 = vmatpush.msra.mxu0 0.0
      %4776 = vmatpush.msra.mxu0 0.0
      %4777 = vmatpush.msra.mxu0 0.0
      %4778 = vmatpush.msra.mxu0 0.0
      %4779 = vmatpush.msra.mxu0 0.0
      %4780 = vmatpush.msra.mxu0 0.0
      %4781 = vmatpush.msra.mxu0 0.0
      %4782 = vmatpush.msra.mxu0 0.0
      %4783 = vmatpush.msra.mxu0 0.0
      %4784 = vmatpush.msra.mxu0 0.0
      %4785 = vmatpush.msra.mxu0 0.0
      %4786 = vmatpush.msra.mxu0 0.0
      %4787 = vmatpush.msra.mxu0 %v4676
      %4788 = vmatpush.msra.mxu0 %v4675
      %4789 = vmatmul.f32.gmra.mxu0 %v4678
      %v4790 = vpop.f32.mrf.mxu0
      %v4791 = vadd.f32 0.0, %v4790
      %4792 = vmatmul.f32.gmra.mxu0 %v4681
      %v4793 = vpop.f32.mrf.mxu0
      %v4794 = vadd.f32 0.0, %v4793
      %4795 = vmatmul.f32.gmra.mxu0 %v4684
      %v4796 = vpop.f32.mrf.mxu0
      %v4797 = vadd.f32 0.0, %v4796
      %4798 = vmatmul.f32.gmra.mxu0 %v4687
      %v4799 = vpop.f32.mrf.mxu0
      %v4800 = vadd.f32 0.0, %v4799
      %4801 = vmatmul.f32.gmra.mxu0 %v4690
      %v4802 = vpop.f32.mrf.mxu0
      %v4803 = vadd.f32 0.0, %v4802
      %4804 = vmatmul.f32.gmra.mxu0 %v4693
      %v4805 = vpop.f32.mrf.mxu0
      %v4806 = vadd.f32 0.0, %v4805
      %4807 = vmatmul.f32.gmra.mxu0 %v4696
      %v4808 = vpop.f32.mrf.mxu0
      %v4809 = vadd.f32 0.0, %v4808
      %4810 = vmatmul.f32.gmra.mxu0 %v4699
      %v4811 = vpop.f32.mrf.mxu0
      %v4812 = vadd.f32 0.0, %v4811
      %4813 = vmatmul.f32.gmra.mxu0 %v4702
      %v4814 = vpop.f32.mrf.mxu0
      %v4815 = vadd.f32 0.0, %v4814
      %4816 = vmatmul.f32.gmra.mxu0 %v4705
      %v4817 = vpop.f32.mrf.mxu0
      %v4818 = vadd.f32 0.0, %v4817
      %4819 = vmatmul.f32.gmra.mxu0 %v4708
      %v4820 = vpop.f32.mrf.mxu0
      %v4821 = vadd.f32 0.0, %v4820
      %4822 = vmatmul.f32.gmra.mxu0 %v4711
      %v4823 = vpop.f32.mrf.mxu0
      %v4824 = vadd.f32 0.0, %v4823
      %4825 = vmatmul.f32.gmra.mxu0 %v4714
      %v4826 = vpop.f32.mrf.mxu0
      %v4827 = vadd.f32 0.0, %v4826
      %4828 = vmatmul.f32.gmra.mxu0 %v4717
      %v4829 = vpop.f32.mrf.mxu0
      %v4830 = vadd.f32 0.0, %v4829
      %4831 = vmatmul.f32.gmra.mxu0 %v4720
      %v4832 = vpop.f32.mrf.mxu0
      %v4833 = vadd.f32 0.0, %v4832
      %4834 = vmatmul.f32.gmra.mxu0 %v4723
      %v4835 = vpop.f32.mrf.mxu0
      %v4836 = vadd.f32 0.0, %v4835
      %4837 = vmatmul.f32.gmra.mxu0 %v4726
      %v4838 = vpop.f32.mrf.mxu0
      %v4839 = vadd.f32 0.0, %v4838
      %4840 = vmatmul.f32.gmra.mxu0 %v4729
      %v4841 = vpop.f32.mrf.mxu0
      %v4842 = vadd.f32 0.0, %v4841
      %4843 = vmatmul.f32.gmra.mxu0 %v4732
      %v4844 = vpop.f32.mrf.mxu0
      %v4845 = vadd.f32 0.0, %v4844
      %4846 = vmatmul.f32.gmra.mxu0 %v4735
      %v4847 = vpop.f32.mrf.mxu0
      %v4848 = vadd.f32 0.0, %v4847
      %4849 = vmatmul.f32.gmra.mxu0 %v4738
      %v4850 = vpop.f32.mrf.mxu0
      %v4851 = vadd.f32 0.0, %v4850
      %4852 = vmatmul.f32.gmra.mxu0 %v4741
      %v4853 = vpop.f32.mrf.mxu0
      %v4854 = vadd.f32 0.0, %v4853
      %4855 = vmatmul.f32.gmra.mxu0 %v4744
      %v4856 = vpop.f32.mrf.mxu0
      %v4857 = vadd.f32 0.0, %v4856
      %4858 = vmatmul.f32.gmra.mxu0 %v4747
      %v4859 = vpop.f32.mrf.mxu0
      %v4860 = vadd.f32 0.0, %v4859
      %4861 = vmatmul.f32.gmra.mxu0 %v4750
      %v4862 = vpop.f32.mrf.mxu0
      %v4863 = vadd.f32 0.0, %v4862
      %4864 = vmatmul.f32.gmra.mxu0 %v4753
      %v4865 = vpop.f32.mrf.mxu0
      %v4866 = vadd.f32 0.0, %v4865
      %4867 = vmatmul.f32.gmra.mxu0 %v4756
      %v4868 = vpop.f32.mrf.mxu0
      %v4869 = vadd.f32 0.0, %v4868
      %4870 = vmatmul.f32.gmra.mxu0 %v4759
      %v4871 = vpop.f32.mrf.mxu0
      %v4872 = vadd.f32 0.0, %v4871
      %4873 = vmatmul.f32.gmra.mxu0 %v4762
      %v4874 = vpop.f32.mrf.mxu0
      %v4875 = vadd.f32 0.0, %v4874
      %4876 = vmatmul.f32.gmra.mxu0 %v4765
      %v4877 = vpop.f32.mrf.mxu0
      %v4878 = vadd.f32 0.0, %v4877
      %4879 = vmatmul.f32.gmra.mxu0 %v4768
      %v4880 = vpop.f32.mrf.mxu0
      %v4881 = vadd.f32 0.0, %v4880
      %4882 = vmatmul.f32.gmra.mxu0 %v4771
      %v4883 = vpop.f32.mrf.mxu0
      %v4884 = vadd.f32 0.0, %v4883
      %4885 = vdwg.mxu0
      %v4886 = vadd.f32 %v4611, %v4791
      %v4887 = vadd.f32 %v4612, %v4794
      %v4888 = vadd.f32 %v4613, %v4797
      %v4889 = vadd.f32 %v4614, %v4800
      %v4890 = vadd.f32 %v4615, %v4803
      %v4891 = vadd.f32 %v4616, %v4806
      %v4892 = vadd.f32 %v4617, %v4809
      %v4893 = vadd.f32 %v4618, %v4812
      %v4894 = vadd.f32 %v4619, %v4815
      %v4895 = vadd.f32 %v4620, %v4818
      %v4896 = vadd.f32 %v4621, %v4821
      %v4897 = vadd.f32 %v4622, %v4824
      %v4898 = vadd.f32 %v4623, %v4827
      %v4899 = vadd.f32 %v4624, %v4830
      %v4900 = vadd.f32 %v4625, %v4833
      %v4901 = vadd.f32 %v4626, %v4836
      %v4902 = vadd.f32 %v4627, %v4839
      %v4903 = vadd.f32 %v4628, %v4842
      %v4904 = vadd.f32 %v4629, %v4845
      %v4905 = vadd.f32 %v4630, %v4848
      %v4906 = vadd.f32 %v4631, %v4851
      %v4907 = vadd.f32 %v4632, %v4854
      %v4908 = vadd.f32 %v4633, %v4857
      %v4909 = vadd.f32 %v4634, %v4860
      %v4910 = vadd.f32 %v4635, %v4863
      %v4911 = vadd.f32 %v4636, %v4866
      %v4912 = vadd.f32 %v4637, %v4869
      %v4913 = vadd.f32 %v4638, %v4872
      %v4914 = vadd.f32 %v4639, %v4875
      %v4915 = vadd.f32 %v4640, %v4878
      %v4916 = vadd.f32 %v4641, %v4881
      %v4917 = vadd.f32 %v4642, %v4884
      %v4918 = vld [vmem:[%s4023 + $0x7] sm:$0xff]
      %v4919 = vld [vmem:[%s4023 + $0xf] sm:$0xff]
      %v4920 = vld [vmem:[%s4023 + $0x27] sm:$0xff]
      %v4921 = vld [vmem:[%s4023 + $0x2f] sm:$0xff]
      %v4922 = vld [vmem:[%s4023 + $0x47] sm:$0xff]
      %v4923 = vld [vmem:[%s4023 + $0x4f] sm:$0xff]
      %v4924 = vld [vmem:[%s4023 + $0x67] sm:$0xff]
      %v4925 = vld [vmem:[%s4023 + $0x6f] sm:$0xff]
      %v4926 = vld [vmem:[%s4023 + $0x87] sm:$0xff]
      %v4927 = vld [vmem:[%s4023 + $0x8f] sm:$0xff]
      %v4928 = vld [vmem:[%s4023 + $0xa7] sm:$0xff]
      %v4929 = vld [vmem:[%s4023 + $0xaf] sm:$0xff]
      %v4930 = vld [vmem:[%s4023 + $0xc7] sm:$0xff]
      %v4931 = vld [vmem:[%s4023 + $0xcf] sm:$0xff]
      %v4932 = vld [vmem:[%s4023 + $0xe7] sm:$0xff]
      %v4933 = vld [vmem:[%s4023 + $0xef] sm:$0xff]
      %v4934 = vld [vmem:[%s4023 + $0x107] sm:$0xff]
      %v4935 = vld [vmem:[%s4023 + $0x10f] sm:$0xff]
      %v4936 = vld [vmem:[%s4023 + $0x127] sm:$0xff]
      %v4937 = vld [vmem:[%s4023 + $0x12f] sm:$0xff]
      %v4938 = vld [vmem:[%s4023 + $0x147] sm:$0xff]
      %v4939 = vld [vmem:[%s4023 + $0x14f] sm:$0xff]
      %v4940 = vld [vmem:[%s4023 + $0x167] sm:$0xff]
      %v4941 = vld [vmem:[%s4023 + $0x16f] sm:$0xff]
      %v4942 = vld [vmem:[%s4023 + $0x187] sm:$0xff]
      %v4943 = vld [vmem:[%s4023 + $0x18f] sm:$0xff]
      %v4944 = vld [vmem:[%s4023 + $0x1a7] sm:$0xff]
      %v4945 = vld [vmem:[%s4023 + $0x1af] sm:$0xff]
      %v4946 = vld [vmem:[%s4023 + $0x1c7] sm:$0xff]
      %v4947 = vld [vmem:[%s4023 + $0x1cf] sm:$0xff]
      %v4948 = vld [vmem:[%s4023 + $0x1e7] sm:$0xff]
      %v4949 = vld [vmem:[%s4023 + $0x1ef] sm:$0xff]
      %v4950 = vld [vmem:[%s6 + $0x30] sm:$0xff]
      %v4951 = vld [vmem:[%s6 + $0x38] sm:$0xff]
      %v4953 = vsel %vm3066, %v4918, 0
      %v4956 = vsel %vm3066, %v4919, 0
      %v4959 = vsel %vm3066, %v4920, 0
      %v4962 = vsel %vm3066, %v4921, 0
      %v4965 = vsel %vm3066, %v4922, 0
      %v4968 = vsel %vm3066, %v4923, 0
      %v4971 = vsel %vm3066, %v4924, 0
      %v4974 = vsel %vm3066, %v4925, 0
      %v4977 = vsel %vm3066, %v4926, 0
      %v4980 = vsel %vm3066, %v4927, 0
      %v4983 = vsel %vm3066, %v4928, 0
      %v4986 = vsel %vm3066, %v4929, 0
      %v4989 = vsel %vm3066, %v4930, 0
      %v4992 = vsel %vm3066, %v4931, 0
      %v4995 = vsel %vm3066, %v4932, 0
      %v4998 = vsel %vm3066, %v4933, 0
      %v5001 = vsel %vm3066, %v4934, 0
      %v5004 = vsel %vm3066, %v4935, 0
      %v5007 = vsel %vm3066, %v4936, 0
      %v5010 = vsel %vm3066, %v4937, 0
      %v5013 = vsel %vm3066, %v4938, 0
      %v5016 = vsel %vm3066, %v4939, 0
      %v5019 = vsel %vm3066, %v4940, 0
      %v5022 = vsel %vm3066, %v4941, 0
      %v5025 = vsel %vm3066, %v4942, 0
      %v5028 = vsel %vm3066, %v4943, 0
      %v5031 = vsel %vm3066, %v4944, 0
      %v5034 = vsel %vm3066, %v4945, 0
      %v5037 = vsel %vm3066, %v4946, 0
      %v5040 = vsel %vm3066, %v4947, 0
      %v5043 = vsel %vm3066, %v4948, 0
      %v5046 = vsel %vm3066, %v4949, 0
      %5048 = vmatpush.msra.mxu0 0.0
      %5049 = vmatpush.msra.mxu0 0.0
      %5050 = vmatpush.msra.mxu0 0.0
      %5051 = vmatpush.msra.mxu0 0.0
      %5052 = vmatpush.msra.mxu0 0.0
      %5053 = vmatpush.msra.mxu0 0.0
      %5054 = vmatpush.msra.mxu0 0.0
      %5055 = vmatpush.msra.mxu0 0.0
      %5056 = vmatpush.msra.mxu0 0.0
      %5057 = vmatpush.msra.mxu0 0.0
      %5058 = vmatpush.msra.mxu0 0.0
      %5059 = vmatpush.msra.mxu0 0.0
      %5060 = vmatpush.msra.mxu0 0.0
      %5061 = vmatpush.msra.mxu0 0.0
      %5062 = vmatpush.msra.mxu0 %v4951
      %5063 = vmatpush.msra.mxu0 %v4950
      %5064 = vmatmul.f32.gmra.mxu0 %v4953
      %v5065 = vpop.f32.mrf.mxu0
      %v5066 = vadd.f32 0.0, %v5065
      %5067 = vmatmul.f32.gmra.mxu0 %v4956
      %v5068 = vpop.f32.mrf.mxu0
      %v5069 = vadd.f32 0.0, %v5068
      %5070 = vmatmul.f32.gmra.mxu0 %v4959
      %v5071 = vpop.f32.mrf.mxu0
      %v5072 = vadd.f32 0.0, %v5071
      %5073 = vmatmul.f32.gmra.mxu0 %v4962
      %v5074 = vpop.f32.mrf.mxu0
      %v5075 = vadd.f32 0.0, %v5074
      %5076 = vmatmul.f32.gmra.mxu0 %v4965
      %v5077 = vpop.f32.mrf.mxu0
      %v5078 = vadd.f32 0.0, %v5077
      %5079 = vmatmul.f32.gmra.mxu0 %v4968
      %v5080 = vpop.f32.mrf.mxu0
      %v5081 = vadd.f32 0.0, %v5080
      %5082 = vmatmul.f32.gmra.mxu0 %v4971
      %v5083 = vpop.f32.mrf.mxu0
      %v5084 = vadd.f32 0.0, %v5083
      %5085 = vmatmul.f32.gmra.mxu0 %v4974
      %v5086 = vpop.f32.mrf.mxu0
      %v5087 = vadd.f32 0.0, %v5086
      %5088 = vmatmul.f32.gmra.mxu0 %v4977
      %v5089 = vpop.f32.mrf.mxu0
      %v5090 = vadd.f32 0.0, %v5089
      %5091 = vmatmul.f32.gmra.mxu0 %v4980
      %v5092 = vpop.f32.mrf.mxu0
      %v5093 = vadd.f32 0.0, %v5092
      %5094 = vmatmul.f32.gmra.mxu0 %v4983
      %v5095 = vpop.f32.mrf.mxu0
      %v5096 = vadd.f32 0.0, %v5095
      %5097 = vmatmul.f32.gmra.mxu0 %v4986
      %v5098 = vpop.f32.mrf.mxu0
      %v5099 = vadd.f32 0.0, %v5098
      %5100 = vmatmul.f32.gmra.mxu0 %v4989
      %v5101 = vpop.f32.mrf.mxu0
      %v5102 = vadd.f32 0.0, %v5101
      %5103 = vmatmul.f32.gmra.mxu0 %v4992
      %v5104 = vpop.f32.mrf.mxu0
      %v5105 = vadd.f32 0.0, %v5104
      %5106 = vmatmul.f32.gmra.mxu0 %v4995
      %v5107 = vpop.f32.mrf.mxu0
      %v5108 = vadd.f32 0.0, %v5107
      %5109 = vmatmul.f32.gmra.mxu0 %v4998
      %v5110 = vpop.f32.mrf.mxu0
      %v5111 = vadd.f32 0.0, %v5110
      %5112 = vmatmul.f32.gmra.mxu0 %v5001
      %v5113 = vpop.f32.mrf.mxu0
      %v5114 = vadd.f32 0.0, %v5113
      %5115 = vmatmul.f32.gmra.mxu0 %v5004
      %v5116 = vpop.f32.mrf.mxu0
      %v5117 = vadd.f32 0.0, %v5116
      %5118 = vmatmul.f32.gmra.mxu0 %v5007
      %v5119 = vpop.f32.mrf.mxu0
      %v5120 = vadd.f32 0.0, %v5119
      %5121 = vmatmul.f32.gmra.mxu0 %v5010
      %v5122 = vpop.f32.mrf.mxu0
      %v5123 = vadd.f32 0.0, %v5122
      %5124 = vmatmul.f32.gmra.mxu0 %v5013
      %v5125 = vpop.f32.mrf.mxu0
      %v5126 = vadd.f32 0.0, %v5125
      %5127 = vmatmul.f32.gmra.mxu0 %v5016
      %v5128 = vpop.f32.mrf.mxu0
      %v5129 = vadd.f32 0.0, %v5128
      %5130 = vmatmul.f32.gmra.mxu0 %v5019
      %v5131 = vpop.f32.mrf.mxu0
      %v5132 = vadd.f32 0.0, %v5131
      %5133 = vmatmul.f32.gmra.mxu0 %v5022
      %v5134 = vpop.f32.mrf.mxu0
      %v5135 = vadd.f32 0.0, %v5134
      %5136 = vmatmul.f32.gmra.mxu0 %v5025
      %v5137 = vpop.f32.mrf.mxu0
      %v5138 = vadd.f32 0.0, %v5137
      %5139 = vmatmul.f32.gmra.mxu0 %v5028
      %v5140 = vpop.f32.mrf.mxu0
      %v5141 = vadd.f32 0.0, %v5140
      %5142 = vmatmul.f32.gmra.mxu0 %v5031
      %v5143 = vpop.f32.mrf.mxu0
      %v5144 = vadd.f32 0.0, %v5143
      %5145 = vmatmul.f32.gmra.mxu0 %v5034
      %v5146 = vpop.f32.mrf.mxu0
      %v5147 = vadd.f32 0.0, %v5146
      %5148 = vmatmul.f32.gmra.mxu0 %v5037
      %v5149 = vpop.f32.mrf.mxu0
      %v5150 = vadd.f32 0.0, %v5149
      %5151 = vmatmul.f32.gmra.mxu0 %v5040
      %v5152 = vpop.f32.mrf.mxu0
      %v5153 = vadd.f32 0.0, %v5152
      %5154 = vmatmul.f32.gmra.mxu0 %v5043
      %v5155 = vpop.f32.mrf.mxu0
      %v5156 = vadd.f32 0.0, %v5155
      %5157 = vmatmul.f32.gmra.mxu0 %v5046
      %v5158 = vpop.f32.mrf.mxu0
      %v5159 = vadd.f32 0.0, %v5158
      %5160 = vdwg.mxu0
      %v5161 = vadd.f32 %v4886, %v5066
      %v5162 = vadd.f32 %v4887, %v5069
      %v5163 = vadd.f32 %v4888, %v5072
      %v5164 = vadd.f32 %v4889, %v5075
      %v5165 = vadd.f32 %v4890, %v5078
      %v5166 = vadd.f32 %v4891, %v5081
      %v5167 = vadd.f32 %v4892, %v5084
      %v5168 = vadd.f32 %v4893, %v5087
      %v5169 = vadd.f32 %v4894, %v5090
      %v5170 = vadd.f32 %v4895, %v5093
      %v5171 = vadd.f32 %v4896, %v5096
      %v5172 = vadd.f32 %v4897, %v5099
      %v5173 = vadd.f32 %v4898, %v5102
      %v5174 = vadd.f32 %v4899, %v5105
      %v5175 = vadd.f32 %v4900, %v5108
      %v5176 = vadd.f32 %v4901, %v5111
      %v5177 = vadd.f32 %v4902, %v5114
      %v5178 = vadd.f32 %v4903, %v5117
      %v5179 = vadd.f32 %v4904, %v5120
      %v5180 = vadd.f32 %v4905, %v5123
      %v5181 = vadd.f32 %v4906, %v5126
      %v5182 = vadd.f32 %v4907, %v5129
      %v5183 = vadd.f32 %v4908, %v5132
      %v5184 = vadd.f32 %v4909, %v5135
      %v5185 = vadd.f32 %v4910, %v5138
      %v5186 = vadd.f32 %v4911, %v5141
      %v5187 = vadd.f32 %v4912, %v5144
      %v5188 = vadd.f32 %v4913, %v5147
      %v5189 = vadd.f32 %v4914, %v5150
      %v5190 = vadd.f32 %v4915, %v5153
      %v5191 = vadd.f32 %v4916, %v5156
      %v5192 = vadd.f32 %v4917, %v5159
      %v5193 = vld [vmem:[%s4023 + $0x8] sm:$0xff]
      %v5194 = vld [vmem:[%s4023 + $0x10] sm:$0xff]
      %v5195 = vld [vmem:[%s4023 + $0x28] sm:$0xff]
      %v5196 = vld [vmem:[%s4023 + $0x30] sm:$0xff]
      %v5197 = vld [vmem:[%s4023 + $0x48] sm:$0xff]
      %v5198 = vld [vmem:[%s4023 + $0x50] sm:$0xff]
      %v5199 = vld [vmem:[%s4023 + $0x68] sm:$0xff]
      %v5200 = vld [vmem:[%s4023 + $0x70] sm:$0xff]
      %v5201 = vld [vmem:[%s4023 + $0x88] sm:$0xff]
      %v5202 = vld [vmem:[%s4023 + $0x90] sm:$0xff]
      %v5203 = vld [vmem:[%s4023 + $0xa8] sm:$0xff]
      %v5204 = vld [vmem:[%s4023 + $0xb0] sm:$0xff]
      %v5205 = vld [vmem:[%s4023 + $0xc8] sm:$0xff]
      %v5206 = vld [vmem:[%s4023 + $0xd0] sm:$0xff]
      %v5207 = vld [vmem:[%s4023 + $0xe8] sm:$0xff]
      %v5208 = vld [vmem:[%s4023 + $0xf0] sm:$0xff]
      %v5209 = vld [vmem:[%s4023 + $0x108] sm:$0xff]
      %v5210 = vld [vmem:[%s4023 + $0x110] sm:$0xff]
      %v5211 = vld [vmem:[%s4023 + $0x128] sm:$0xff]
      %v5212 = vld [vmem:[%s4023 + $0x130] sm:$0xff]
      %v5213 = vld [vmem:[%s4023 + $0x148] sm:$0xff]
      %v5214 = vld [vmem:[%s4023 + $0x150] sm:$0xff]
      %v5215 = vld [vmem:[%s4023 + $0x168] sm:$0xff]
      %v5216 = vld [vmem:[%s4023 + $0x170] sm:$0xff]
      %v5217 = vld [vmem:[%s4023 + $0x188] sm:$0xff]
      %v5218 = vld [vmem:[%s4023 + $0x190] sm:$0xff]
      %v5219 = vld [vmem:[%s4023 + $0x1a8] sm:$0xff]
      %v5220 = vld [vmem:[%s4023 + $0x1b0] sm:$0xff]
      %v5221 = vld [vmem:[%s4023 + $0x1c8] sm:$0xff]
      %v5222 = vld [vmem:[%s4023 + $0x1d0] sm:$0xff]
      %v5223 = vld [vmem:[%s4023 + $0x1e8] sm:$0xff]
      %v5224 = vld [vmem:[%s4023 + $0x1f0] sm:$0xff]
      %v5225 = vld [vmem:[%s6 + $0x40] sm:$0xff]
      %v5226 = vld [vmem:[%s6 + $0x48] sm:$0xff]
      %v5228 = vsel %vm3066, %v5193, 0
      %v5231 = vsel %vm3066, %v5194, 0
      %v5234 = vsel %vm3066, %v5195, 0
      %v5237 = vsel %vm3066, %v5196, 0
      %v5240 = vsel %vm3066, %v5197, 0
      %v5243 = vsel %vm3066, %v5198, 0
      %v5246 = vsel %vm3066, %v5199, 0
      %v5249 = vsel %vm3066, %v5200, 0
      %v5252 = vsel %vm3066, %v5201, 0
      %v5255 = vsel %vm3066, %v5202, 0
      %v5258 = vsel %vm3066, %v5203, 0
      %v5261 = vsel %vm3066, %v5204, 0
      %v5264 = vsel %vm3066, %v5205, 0
      %v5267 = vsel %vm3066, %v5206, 0
      %v5270 = vsel %vm3066, %v5207, 0
      %v5273 = vsel %vm3066, %v5208, 0
      %v5276 = vsel %vm3066, %v5209, 0
      %v5279 = vsel %vm3066, %v5210, 0
      %v5282 = vsel %vm3066, %v5211, 0
      %v5285 = vsel %vm3066, %v5212, 0
      %v5288 = vsel %vm3066, %v5213, 0
      %v5291 = vsel %vm3066, %v5214, 0
      %v5294 = vsel %vm3066, %v5215, 0
      %v5297 = vsel %vm3066, %v5216, 0
      %v5300 = vsel %vm3066, %v5217, 0
      %v5303 = vsel %vm3066, %v5218, 0
      %v5306 = vsel %vm3066, %v5219, 0
      %v5309 = vsel %vm3066, %v5220, 0
      %v5312 = vsel %vm3066, %v5221, 0
      %v5315 = vsel %vm3066, %v5222, 0
      %v5318 = vsel %vm3066, %v5223, 0
      %v5321 = vsel %vm3066, %v5224, 0
      %5323 = vmatpush.msra.mxu0 0.0
      %5324 = vmatpush.msra.mxu0 0.0
      %5325 = vmatpush.msra.mxu0 0.0
      %5326 = vmatpush.msra.mxu0 0.0
      %5327 = vmatpush.msra.mxu0 0.0
      %5328 = vmatpush.msra.mxu0 0.0
      %5329 = vmatpush.msra.mxu0 0.0
      %5330 = vmatpush.msra.mxu0 0.0
      %5331 = vmatpush.msra.mxu0 0.0
      %5332 = vmatpush.msra.mxu0 0.0
      %5333 = vmatpush.msra.mxu0 0.0
      %5334 = vmatpush.msra.mxu0 0.0
      %5335 = vmatpush.msra.mxu0 0.0
      %5336 = vmatpush.msra.mxu0 0.0
      %5337 = vmatpush.msra.mxu0 %v5226
      %5338 = vmatpush.msra.mxu0 %v5225
      %5339 = vmatmul.f32.gmra.mxu0 %v5228
      %v5340 = vpop.f32.mrf.mxu0
      %v5341 = vadd.f32 0.0, %v5340
      %5342 = vmatmul.f32.gmra.mxu0 %v5231
      %v5343 = vpop.f32.mrf.mxu0
      %v5344 = vadd.f32 0.0, %v5343
      %5345 = vmatmul.f32.gmra.mxu0 %v5234
      %v5346 = vpop.f32.mrf.mxu0
      %v5347 = vadd.f32 0.0, %v5346
      %5348 = vmatmul.f32.gmra.mxu0 %v5237
      %v5349 = vpop.f32.mrf.mxu0
      %v5350 = vadd.f32 0.0, %v5349
      %5351 = vmatmul.f32.gmra.mxu0 %v5240
      %v5352 = vpop.f32.mrf.mxu0
      %v5353 = vadd.f32 0.0, %v5352
      %5354 = vmatmul.f32.gmra.mxu0 %v5243
      %v5355 = vpop.f32.mrf.mxu0
      %v5356 = vadd.f32 0.0, %v5355
      %5357 = vmatmul.f32.gmra.mxu0 %v5246
      %v5358 = vpop.f32.mrf.mxu0
      %v5359 = vadd.f32 0.0, %v5358
      %5360 = vmatmul.f32.gmra.mxu0 %v5249
      %v5361 = vpop.f32.mrf.mxu0
      %v5362 = vadd.f32 0.0, %v5361
      %5363 = vmatmul.f32.gmra.mxu0 %v5252
      %v5364 = vpop.f32.mrf.mxu0
      %v5365 = vadd.f32 0.0, %v5364
      %5366 = vmatmul.f32.gmra.mxu0 %v5255
      %v5367 = vpop.f32.mrf.mxu0
      %v5368 = vadd.f32 0.0, %v5367
      %5369 = vmatmul.f32.gmra.mxu0 %v5258
      %v5370 = vpop.f32.mrf.mxu0
      %v5371 = vadd.f32 0.0, %v5370
      %5372 = vmatmul.f32.gmra.mxu0 %v5261
      %v5373 = vpop.f32.mrf.mxu0
      %v5374 = vadd.f32 0.0, %v5373
      %5375 = vmatmul.f32.gmra.mxu0 %v5264
      %v5376 = vpop.f32.mrf.mxu0
      %v5377 = vadd.f32 0.0, %v5376
      %5378 = vmatmul.f32.gmra.mxu0 %v5267
      %v5379 = vpop.f32.mrf.mxu0
      %v5380 = vadd.f32 0.0, %v5379
      %5381 = vmatmul.f32.gmra.mxu0 %v5270
      %v5382 = vpop.f32.mrf.mxu0
      %v5383 = vadd.f32 0.0, %v5382
      %5384 = vmatmul.f32.gmra.mxu0 %v5273
      %v5385 = vpop.f32.mrf.mxu0
      %v5386 = vadd.f32 0.0, %v5385
      %5387 = vmatmul.f32.gmra.mxu0 %v5276
      %v5388 = vpop.f32.mrf.mxu0
      %v5389 = vadd.f32 0.0, %v5388
      %5390 = vmatmul.f32.gmra.mxu0 %v5279
      %v5391 = vpop.f32.mrf.mxu0
      %v5392 = vadd.f32 0.0, %v5391
      %5393 = vmatmul.f32.gmra.mxu0 %v5282
      %v5394 = vpop.f32.mrf.mxu0
      %v5395 = vadd.f32 0.0, %v5394
      %5396 = vmatmul.f32.gmra.mxu0 %v5285
      %v5397 = vpop.f32.mrf.mxu0
      %v5398 = vadd.f32 0.0, %v5397
      %5399 = vmatmul.f32.gmra.mxu0 %v5288
      %v5400 = vpop.f32.mrf.mxu0
      %v5401 = vadd.f32 0.0, %v5400
      %5402 = vmatmul.f32.gmra.mxu0 %v5291
      %v5403 = vpop.f32.mrf.mxu0
      %v5404 = vadd.f32 0.0, %v5403
      %5405 = vmatmul.f32.gmra.mxu0 %v5294
      %v5406 = vpop.f32.mrf.mxu0
      %v5407 = vadd.f32 0.0, %v5406
      %5408 = vmatmul.f32.gmra.mxu0 %v5297
      %v5409 = vpop.f32.mrf.mxu0
      %v5410 = vadd.f32 0.0, %v5409
      %5411 = vmatmul.f32.gmra.mxu0 %v5300
      %v5412 = vpop.f32.mrf.mxu0
      %v5413 = vadd.f32 0.0, %v5412
      %5414 = vmatmul.f32.gmra.mxu0 %v5303
      %v5415 = vpop.f32.mrf.mxu0
      %v5416 = vadd.f32 0.0, %v5415
      %5417 = vmatmul.f32.gmra.mxu0 %v5306
      %v5418 = vpop.f32.mrf.mxu0
      %v5419 = vadd.f32 0.0, %v5418
      %5420 = vmatmul.f32.gmra.mxu0 %v5309
      %v5421 = vpop.f32.mrf.mxu0
      %v5422 = vadd.f32 0.0, %v5421
      %5423 = vmatmul.f32.gmra.mxu0 %v5312
      %v5424 = vpop.f32.mrf.mxu0
      %v5425 = vadd.f32 0.0, %v5424
      %5426 = vmatmul.f32.gmra.mxu0 %v5315
      %v5427 = vpop.f32.mrf.mxu0
      %v5428 = vadd.f32 0.0, %v5427
      %5429 = vmatmul.f32.gmra.mxu0 %v5318
      %v5430 = vpop.f32.mrf.mxu0
      %v5431 = vadd.f32 0.0, %v5430
      %5432 = vmatmul.f32.gmra.mxu0 %v5321
      %v5433 = vpop.f32.mrf.mxu0
      %v5434 = vadd.f32 0.0, %v5433
      %5435 = vdwg.mxu0
      %v5436 = vadd.f32 %v5161, %v5341
      %v5437 = vadd.f32 %v5162, %v5344
      %v5438 = vadd.f32 %v5163, %v5347
      %v5439 = vadd.f32 %v5164, %v5350
      %v5440 = vadd.f32 %v5165, %v5353
      %v5441 = vadd.f32 %v5166, %v5356
      %v5442 = vadd.f32 %v5167, %v5359
      %v5443 = vadd.f32 %v5168, %v5362
      %v5444 = vadd.f32 %v5169, %v5365
      %v5445 = vadd.f32 %v5170, %v5368
      %v5446 = vadd.f32 %v5171, %v5371
      %v5447 = vadd.f32 %v5172, %v5374
      %v5448 = vadd.f32 %v5173, %v5377
      %v5449 = vadd.f32 %v5174, %v5380
      %v5450 = vadd.f32 %v5175, %v5383
      %v5451 = vadd.f32 %v5176, %v5386
      %v5452 = vadd.f32 %v5177, %v5389
      %v5453 = vadd.f32 %v5178, %v5392
      %v5454 = vadd.f32 %v5179, %v5395
      %v5455 = vadd.f32 %v5180, %v5398
      %v5456 = vadd.f32 %v5181, %v5401
      %v5457 = vadd.f32 %v5182, %v5404
      %v5458 = vadd.f32 %v5183, %v5407
      %v5459 = vadd.f32 %v5184, %v5410
      %v5460 = vadd.f32 %v5185, %v5413
      %v5461 = vadd.f32 %v5186, %v5416
      %v5462 = vadd.f32 %v5187, %v5419
      %v5463 = vadd.f32 %v5188, %v5422
      %v5464 = vadd.f32 %v5189, %v5425
      %v5465 = vadd.f32 %v5190, %v5428
      %v5466 = vadd.f32 %v5191, %v5431
      %v5467 = vadd.f32 %v5192, %v5434
      %v5468 = vld [vmem:[%s4023 + $0x9] sm:$0xff]
      %v5469 = vld [vmem:[%s4023 + $0x11] sm:$0xff]
      %v5470 = vld [vmem:[%s4023 + $0x29] sm:$0xff]
      %v5471 = vld [vmem:[%s4023 + $0x31] sm:$0xff]
      %v5472 = vld [vmem:[%s4023 + $0x49] sm:$0xff]
      %v5473 = vld [vmem:[%s4023 + $0x51] sm:$0xff]
      %v5474 = vld [vmem:[%s4023 + $0x69] sm:$0xff]
      %v5475 = vld [vmem:[%s4023 + $0x71] sm:$0xff]
      %v5476 = vld [vmem:[%s4023 + $0x89] sm:$0xff]
      %v5477 = vld [vmem:[%s4023 + $0x91] sm:$0xff]
      %v5478 = vld [vmem:[%s4023 + $0xa9] sm:$0xff]
      %v5479 = vld [vmem:[%s4023 + $0xb1] sm:$0xff]
      %v5480 = vld [vmem:[%s4023 + $0xc9] sm:$0xff]
      %v5481 = vld [vmem:[%s4023 + $0xd1] sm:$0xff]
      %v5482 = vld [vmem:[%s4023 + $0xe9] sm:$0xff]
      %v5483 = vld [vmem:[%s4023 + $0xf1] sm:$0xff]
      %v5484 = vld [vmem:[%s4023 + $0x109] sm:$0xff]
      %v5485 = vld [vmem:[%s4023 + $0x111] sm:$0xff]
      %v5486 = vld [vmem:[%s4023 + $0x129] sm:$0xff]
      %v5487 = vld [vmem:[%s4023 + $0x131] sm:$0xff]
      %v5488 = vld [vmem:[%s4023 + $0x149] sm:$0xff]
      %v5489 = vld [vmem:[%s4023 + $0x151] sm:$0xff]
      %v5490 = vld [vmem:[%s4023 + $0x169] sm:$0xff]
      %v5491 = vld [vmem:[%s4023 + $0x171] sm:$0xff]
      %v5492 = vld [vmem:[%s4023 + $0x189] sm:$0xff]
      %v5493 = vld [vmem:[%s4023 + $0x191] sm:$0xff]
      %v5494 = vld [vmem:[%s4023 + $0x1a9] sm:$0xff]
      %v5495 = vld [vmem:[%s4023 + $0x1b1] sm:$0xff]
      %v5496 = vld [vmem:[%s4023 + $0x1c9] sm:$0xff]
      %v5497 = vld [vmem:[%s4023 + $0x1d1] sm:$0xff]
      %v5498 = vld [vmem:[%s4023 + $0x1e9] sm:$0xff]
      %v5499 = vld [vmem:[%s4023 + $0x1f1] sm:$0xff]
      %v5500 = vld [vmem:[%s6 + $0x50] sm:$0xff]
      %v5501 = vld [vmem:[%s6 + $0x58] sm:$0xff]
      %v5503 = vsel %vm3066, %v5468, 0
      %v5506 = vsel %vm3066, %v5469, 0
      %v5509 = vsel %vm3066, %v5470, 0
      %v5512 = vsel %vm3066, %v5471, 0
      %v5515 = vsel %vm3066, %v5472, 0
      %v5518 = vsel %vm3066, %v5473, 0
      %v5521 = vsel %vm3066, %v5474, 0
      %v5524 = vsel %vm3066, %v5475, 0
      %v5527 = vsel %vm3066, %v5476, 0
      %v5530 = vsel %vm3066, %v5477, 0
      %v5533 = vsel %vm3066, %v5478, 0
      %v5536 = vsel %vm3066, %v5479, 0
      %v5539 = vsel %vm3066, %v5480, 0
      %v5542 = vsel %vm3066, %v5481, 0
      %v5545 = vsel %vm3066, %v5482, 0
      %v5548 = vsel %vm3066, %v5483, 0
      %v5551 = vsel %vm3066, %v5484, 0
      %v5554 = vsel %vm3066, %v5485, 0
      %v5557 = vsel %vm3066, %v5486, 0
      %v5560 = vsel %vm3066, %v5487, 0
      %v5563 = vsel %vm3066, %v5488, 0
      %v5566 = vsel %vm3066, %v5489, 0
      %v5569 = vsel %vm3066, %v5490, 0
      %v5572 = vsel %vm3066, %v5491, 0
      %v5575 = vsel %vm3066, %v5492, 0
      %v5578 = vsel %vm3066, %v5493, 0
      %v5581 = vsel %vm3066, %v5494, 0
      %v5584 = vsel %vm3066, %v5495, 0
      %v5587 = vsel %vm3066, %v5496, 0
      %v5590 = vsel %vm3066, %v5497, 0
      %v5593 = vsel %vm3066, %v5498, 0
      %v5596 = vsel %vm3066, %v5499, 0
      %5598 = vmatpush.msra.mxu0 0.0
      %5599 = vmatpush.msra.mxu0 0.0
      %5600 = vmatpush.msra.mxu0 0.0
      %5601 = vmatpush.msra.mxu0 0.0
      %5602 = vmatpush.msra.mxu0 0.0
      %5603 = vmatpush.msra.mxu0 0.0
      %5604 = vmatpush.msra.mxu0 0.0
      %5605 = vmatpush.msra.mxu0 0.0
      %5606 = vmatpush.msra.mxu0 0.0
      %5607 = vmatpush.msra.mxu0 0.0
      %5608 = vmatpush.msra.mxu0 0.0
      %5609 = vmatpush.msra.mxu0 0.0
      %5610 = vmatpush.msra.mxu0 0.0
      %5611 = vmatpush.msra.mxu0 0.0
      %5612 = vmatpush.msra.mxu0 %v5501
      %5613 = vmatpush.msra.mxu0 %v5500
      %5614 = vmatmul.f32.gmra.mxu0 %v5503
      %v5615 = vpop.f32.mrf.mxu0
      %v5616 = vadd.f32 0.0, %v5615
      %5617 = vmatmul.f32.gmra.mxu0 %v5506
      %v5618 = vpop.f32.mrf.mxu0
      %v5619 = vadd.f32 0.0, %v5618
      %5620 = vmatmul.f32.gmra.mxu0 %v5509
      %v5621 = vpop.f32.mrf.mxu0
      %v5622 = vadd.f32 0.0, %v5621
      %5623 = vmatmul.f32.gmra.mxu0 %v5512
      %v5624 = vpop.f32.mrf.mxu0
      %v5625 = vadd.f32 0.0, %v5624
      %5626 = vmatmul.f32.gmra.mxu0 %v5515
      %v5627 = vpop.f32.mrf.mxu0
      %v5628 = vadd.f32 0.0, %v5627
      %5629 = vmatmul.f32.gmra.mxu0 %v5518
      %v5630 = vpop.f32.mrf.mxu0
      %v5631 = vadd.f32 0.0, %v5630
      %5632 = vmatmul.f32.gmra.mxu0 %v5521
      %v5633 = vpop.f32.mrf.mxu0
      %v5634 = vadd.f32 0.0, %v5633
      %5635 = vmatmul.f32.gmra.mxu0 %v5524
      %v5636 = vpop.f32.mrf.mxu0
      %v5637 = vadd.f32 0.0, %v5636
      %5638 = vmatmul.f32.gmra.mxu0 %v5527
      %v5639 = vpop.f32.mrf.mxu0
      %v5640 = vadd.f32 0.0, %v5639
      %5641 = vmatmul.f32.gmra.mxu0 %v5530
      %v5642 = vpop.f32.mrf.mxu0
      %v5643 = vadd.f32 0.0, %v5642
      %5644 = vmatmul.f32.gmra.mxu0 %v5533
      %v5645 = vpop.f32.mrf.mxu0
      %v5646 = vadd.f32 0.0, %v5645
      %5647 = vmatmul.f32.gmra.mxu0 %v5536
      %v5648 = vpop.f32.mrf.mxu0
      %v5649 = vadd.f32 0.0, %v5648
      %5650 = vmatmul.f32.gmra.mxu0 %v5539
      %v5651 = vpop.f32.mrf.mxu0
      %v5652 = vadd.f32 0.0, %v5651
      %5653 = vmatmul.f32.gmra.mxu0 %v5542
      %v5654 = vpop.f32.mrf.mxu0
      %v5655 = vadd.f32 0.0, %v5654
      %5656 = vmatmul.f32.gmra.mxu0 %v5545
      %v5657 = vpop.f32.mrf.mxu0
      %v5658 = vadd.f32 0.0, %v5657
      %5659 = vmatmul.f32.gmra.mxu0 %v5548
      %v5660 = vpop.f32.mrf.mxu0
      %v5661 = vadd.f32 0.0, %v5660
      %5662 = vmatmul.f32.gmra.mxu0 %v5551
      %v5663 = vpop.f32.mrf.mxu0
      %v5664 = vadd.f32 0.0, %v5663
      %5665 = vmatmul.f32.gmra.mxu0 %v5554
      %v5666 = vpop.f32.mrf.mxu0
      %v5667 = vadd.f32 0.0, %v5666
      %5668 = vmatmul.f32.gmra.mxu0 %v5557
      %v5669 = vpop.f32.mrf.mxu0
      %v5670 = vadd.f32 0.0, %v5669
      %5671 = vmatmul.f32.gmra.mxu0 %v5560
      %v5672 = vpop.f32.mrf.mxu0
      %v5673 = vadd.f32 0.0, %v5672
      %5674 = vmatmul.f32.gmra.mxu0 %v5563
      %v5675 = vpop.f32.mrf.mxu0
      %v5676 = vadd.f32 0.0, %v5675
      %5677 = vmatmul.f32.gmra.mxu0 %v5566
      %v5678 = vpop.f32.mrf.mxu0
      %v5679 = vadd.f32 0.0, %v5678
      %5680 = vmatmul.f32.gmra.mxu0 %v5569
      %v5681 = vpop.f32.mrf.mxu0
      %v5682 = vadd.f32 0.0, %v5681
      %5683 = vmatmul.f32.gmra.mxu0 %v5572
      %v5684 = vpop.f32.mrf.mxu0
      %v5685 = vadd.f32 0.0, %v5684
      %5686 = vmatmul.f32.gmra.mxu0 %v5575
      %v5687 = vpop.f32.mrf.mxu0
      %v5688 = vadd.f32 0.0, %v5687
      %5689 = vmatmul.f32.gmra.mxu0 %v5578
      %v5690 = vpop.f32.mrf.mxu0
      %v5691 = vadd.f32 0.0, %v5690
      %5692 = vmatmul.f32.gmra.mxu0 %v5581
      %v5693 = vpop.f32.mrf.mxu0
      %v5694 = vadd.f32 0.0, %v5693
      %5695 = vmatmul.f32.gmra.mxu0 %v5584
      %v5696 = vpop.f32.mrf.mxu0
      %v5697 = vadd.f32 0.0, %v5696
      %5698 = vmatmul.f32.gmra.mxu0 %v5587
      %v5699 = vpop.f32.mrf.mxu0
      %v5700 = vadd.f32 0.0, %v5699
      %5701 = vmatmul.f32.gmra.mxu0 %v5590
      %v5702 = vpop.f32.mrf.mxu0
      %v5703 = vadd.f32 0.0, %v5702
      %5704 = vmatmul.f32.gmra.mxu0 %v5593
      %v5705 = vpop.f32.mrf.mxu0
      %v5706 = vadd.f32 0.0, %v5705
      %5707 = vmatmul.f32.gmra.mxu0 %v5596
      %v5708 = vpop.f32.mrf.mxu0
      %v5709 = vadd.f32 0.0, %v5708
      %5710 = vdwg.mxu0
      %v5711 = vadd.f32 %v5436, %v5616
      %v5712 = vadd.f32 %v5437, %v5619
      %v5713 = vadd.f32 %v5438, %v5622
      %v5714 = vadd.f32 %v5439, %v5625
      %v5715 = vadd.f32 %v5440, %v5628
      %v5716 = vadd.f32 %v5441, %v5631
      %v5717 = vadd.f32 %v5442, %v5634
      %v5718 = vadd.f32 %v5443, %v5637
      %v5719 = vadd.f32 %v5444, %v5640
      %v5720 = vadd.f32 %v5445, %v5643
      %v5721 = vadd.f32 %v5446, %v5646
      %v5722 = vadd.f32 %v5447, %v5649
      %v5723 = vadd.f32 %v5448, %v5652
      %v5724 = vadd.f32 %v5449, %v5655
      %v5725 = vadd.f32 %v5450, %v5658
      %v5726 = vadd.f32 %v5451, %v5661
      %v5727 = vadd.f32 %v5452, %v5664
      %v5728 = vadd.f32 %v5453, %v5667
      %v5729 = vadd.f32 %v5454, %v5670
      %v5730 = vadd.f32 %v5455, %v5673
      %v5731 = vadd.f32 %v5456, %v5676
      %v5732 = vadd.f32 %v5457, %v5679
      %v5733 = vadd.f32 %v5458, %v5682
      %v5734 = vadd.f32 %v5459, %v5685
      %v5735 = vadd.f32 %v5460, %v5688
      %v5736 = vadd.f32 %v5461, %v5691
      %v5737 = vadd.f32 %v5462, %v5694
      %v5738 = vadd.f32 %v5463, %v5697
      %v5739 = vadd.f32 %v5464, %v5700
      %v5740 = vadd.f32 %v5465, %v5703
      %v5741 = vadd.f32 %v5466, %v5706
      %v5742 = vadd.f32 %v5467, %v5709
      %s5743 = scalar_lea.vmem [#allocation3], 64
      %v5744 = vld [vmem:[%s5743 + $0x7] sm:$0xff]
      %v5745 = vld [vmem:[%s5743 + $0xf] sm:$0xff]
      %v5746 = vld [vmem:[%s5743 + $0x27] sm:$0xff]
      %v5747 = vld [vmem:[%s5743 + $0x2f] sm:$0xff]
      %v5748 = vld [vmem:[%s5743 + $0x47] sm:$0xff]
      %v5749 = vld [vmem:[%s5743 + $0x4f] sm:$0xff]
      %v5750 = vld [vmem:[%s5743 + $0x67] sm:$0xff]
      %v5751 = vld [vmem:[%s5743 + $0x6f] sm:$0xff]
      %v5752 = vld [vmem:[%s5743 + $0x87] sm:$0xff]
      %v5753 = vld [vmem:[%s5743 + $0x8f] sm:$0xff]
      %v5754 = vld [vmem:[%s5743 + $0xa7] sm:$0xff]
      %v5755 = vld [vmem:[%s5743 + $0xaf] sm:$0xff]
      %v5756 = vld [vmem:[%s5743 + $0xc7] sm:$0xff]
      %v5757 = vld [vmem:[%s5743 + $0xcf] sm:$0xff]
      %v5758 = vld [vmem:[%s5743 + $0xe7] sm:$0xff]
      %v5759 = vld [vmem:[%s5743 + $0xef] sm:$0xff]
      %v5760 = vld [vmem:[%s5743 + $0x107] sm:$0xff]
      %v5761 = vld [vmem:[%s5743 + $0x10f] sm:$0xff]
      %v5762 = vld [vmem:[%s5743 + $0x127] sm:$0xff]
      %v5763 = vld [vmem:[%s5743 + $0x12f] sm:$0xff]
      %v5764 = vld [vmem:[%s5743 + $0x147] sm:$0xff]
      %v5765 = vld [vmem:[%s5743 + $0x14f] sm:$0xff]
      %v5766 = vld [vmem:[%s5743 + $0x167] sm:$0xff]
      %v5767 = vld [vmem:[%s5743 + $0x16f] sm:$0xff]
      %v5768 = vld [vmem:[%s5743 + $0x187] sm:$0xff]
      %v5769 = vld [vmem:[%s5743 + $0x18f] sm:$0xff]
      %v5770 = vld [vmem:[%s5743 + $0x1a7] sm:$0xff]
      %v5771 = vld [vmem:[%s5743 + $0x1af] sm:$0xff]
      %v5772 = vld [vmem:[%s5743 + $0x1c7] sm:$0xff]
      %v5773 = vld [vmem:[%s5743 + $0x1cf] sm:$0xff]
      %v5774 = vld [vmem:[%s5743 + $0x1e7] sm:$0xff]
      %v5775 = vld [vmem:[%s5743 + $0x1ef] sm:$0xff]
      %v5776 = vld [vmem:[%s6 + $0x60] sm:$0xff]
      %v5777 = vld [vmem:[%s6 + $0x68] sm:$0xff]
      %v5779 = vsel %vm3066, %v5744, 0
      %v5782 = vsel %vm3066, %v5745, 0
      %v5785 = vsel %vm3066, %v5746, 0
      %v5788 = vsel %vm3066, %v5747, 0
      %v5791 = vsel %vm3066, %v5748, 0
      %v5794 = vsel %vm3066, %v5749, 0
      %v5797 = vsel %vm3066, %v5750, 0
      %v5800 = vsel %vm3066, %v5751, 0
      %v5803 = vsel %vm3066, %v5752, 0
      %v5806 = vsel %vm3066, %v5753, 0
      %v5809 = vsel %vm3066, %v5754, 0
      %v5812 = vsel %vm3066, %v5755, 0
      %v5815 = vsel %vm3066, %v5756, 0
      %v5818 = vsel %vm3066, %v5757, 0
      %v5821 = vsel %vm3066, %v5758, 0
      %v5824 = vsel %vm3066, %v5759, 0
      %v5827 = vsel %vm3066, %v5760, 0
      %v5830 = vsel %vm3066, %v5761, 0
      %v5833 = vsel %vm3066, %v5762, 0
      %v5836 = vsel %vm3066, %v5763, 0
      %v5839 = vsel %vm3066, %v5764, 0
      %v5842 = vsel %vm3066, %v5765, 0
      %v5845 = vsel %vm3066, %v5766, 0
      %v5848 = vsel %vm3066, %v5767, 0
      %v5851 = vsel %vm3066, %v5768, 0
      %v5854 = vsel %vm3066, %v5769, 0
      %v5857 = vsel %vm3066, %v5770, 0
      %v5860 = vsel %vm3066, %v5771, 0
      %v5863 = vsel %vm3066, %v5772, 0
      %v5866 = vsel %vm3066, %v5773, 0
      %v5869 = vsel %vm3066, %v5774, 0
      %v5872 = vsel %vm3066, %v5775, 0
      %5874 = vmatpush.msra.mxu0 0.0
      %5875 = vmatpush.msra.mxu0 0.0
      %5876 = vmatpush.msra.mxu0 0.0
      %5877 = vmatpush.msra.mxu0 0.0
      %5878 = vmatpush.msra.mxu0 0.0
      %5879 = vmatpush.msra.mxu0 0.0
      %5880 = vmatpush.msra.mxu0 0.0
      %5881 = vmatpush.msra.mxu0 0.0
      %5882 = vmatpush.msra.mxu0 0.0
      %5883 = vmatpush.msra.mxu0 0.0
      %5884 = vmatpush.msra.mxu0 0.0
      %5885 = vmatpush.msra.mxu0 0.0
      %5886 = vmatpush.msra.mxu0 0.0
      %5887 = vmatpush.msra.mxu0 0.0
      %5888 = vmatpush.msra.mxu0 %v5777
      %5889 = vmatpush.msra.mxu0 %v5776
      %5890 = vmatmul.f32.gmra.mxu0 %v5779
      %v5891 = vpop.f32.mrf.mxu0
      %v5892 = vadd.f32 0.0, %v5891
      %5893 = vmatmul.f32.gmra.mxu0 %v5782
      %v5894 = vpop.f32.mrf.mxu0
      %v5895 = vadd.f32 0.0, %v5894
      %5896 = vmatmul.f32.gmra.mxu0 %v5785
      %v5897 = vpop.f32.mrf.mxu0
      %v5898 = vadd.f32 0.0, %v5897
      %5899 = vmatmul.f32.gmra.mxu0 %v5788
      %v5900 = vpop.f32.mrf.mxu0
      %v5901 = vadd.f32 0.0, %v5900
      %5902 = vmatmul.f32.gmra.mxu0 %v5791
      %v5903 = vpop.f32.mrf.mxu0
      %v5904 = vadd.f32 0.0, %v5903
      %5905 = vmatmul.f32.gmra.mxu0 %v5794
      %v5906 = vpop.f32.mrf.mxu0
      %v5907 = vadd.f32 0.0, %v5906
      %5908 = vmatmul.f32.gmra.mxu0 %v5797
      %v5909 = vpop.f32.mrf.mxu0
      %v5910 = vadd.f32 0.0, %v5909
      %5911 = vmatmul.f32.gmra.mxu0 %v5800
      %v5912 = vpop.f32.mrf.mxu0
      %v5913 = vadd.f32 0.0, %v5912
      %5914 = vmatmul.f32.gmra.mxu0 %v5803
      %v5915 = vpop.f32.mrf.mxu0
      %v5916 = vadd.f32 0.0, %v5915
      %5917 = vmatmul.f32.gmra.mxu0 %v5806
      %v5918 = vpop.f32.mrf.mxu0
      %v5919 = vadd.f32 0.0, %v5918
      %5920 = vmatmul.f32.gmra.mxu0 %v5809
      %v5921 = vpop.f32.mrf.mxu0
      %v5922 = vadd.f32 0.0, %v5921
      %5923 = vmatmul.f32.gmra.mxu0 %v5812
      %v5924 = vpop.f32.mrf.mxu0
      %v5925 = vadd.f32 0.0, %v5924
      %5926 = vmatmul.f32.gmra.mxu0 %v5815
      %v5927 = vpop.f32.mrf.mxu0
      %v5928 = vadd.f32 0.0, %v5927
      %5929 = vmatmul.f32.gmra.mxu0 %v5818
      %v5930 = vpop.f32.mrf.mxu0
      %v5931 = vadd.f32 0.0, %v5930
      %5932 = vmatmul.f32.gmra.mxu0 %v5821
      %v5933 = vpop.f32.mrf.mxu0
      %v5934 = vadd.f32 0.0, %v5933
      %5935 = vmatmul.f32.gmra.mxu0 %v5824
      %v5936 = vpop.f32.mrf.mxu0
      %v5937 = vadd.f32 0.0, %v5936
      %5938 = vmatmul.f32.gmra.mxu0 %v5827
      %v5939 = vpop.f32.mrf.mxu0
      %v5940 = vadd.f32 0.0, %v5939
      %5941 = vmatmul.f32.gmra.mxu0 %v5830
      %v5942 = vpop.f32.mrf.mxu0
      %v5943 = vadd.f32 0.0, %v5942
      %5944 = vmatmul.f32.gmra.mxu0 %v5833
      %v5945 = vpop.f32.mrf.mxu0
      %v5946 = vadd.f32 0.0, %v5945
      %5947 = vmatmul.f32.gmra.mxu0 %v5836
      %v5948 = vpop.f32.mrf.mxu0
      %v5949 = vadd.f32 0.0, %v5948
      %5950 = vmatmul.f32.gmra.mxu0 %v5839
      %v5951 = vpop.f32.mrf.mxu0
      %v5952 = vadd.f32 0.0, %v5951
      %5953 = vmatmul.f32.gmra.mxu0 %v5842
      %v5954 = vpop.f32.mrf.mxu0
      %v5955 = vadd.f32 0.0, %v5954
      %5956 = vmatmul.f32.gmra.mxu0 %v5845
      %v5957 = vpop.f32.mrf.mxu0
      %v5958 = vadd.f32 0.0, %v5957
      %5959 = vmatmul.f32.gmra.mxu0 %v5848
      %v5960 = vpop.f32.mrf.mxu0
      %v5961 = vadd.f32 0.0, %v5960
      %5962 = vmatmul.f32.gmra.mxu0 %v5851
      %v5963 = vpop.f32.mrf.mxu0
      %v5964 = vadd.f32 0.0, %v5963
      %5965 = vmatmul.f32.gmra.mxu0 %v5854
      %v5966 = vpop.f32.mrf.mxu0
      %v5967 = vadd.f32 0.0, %v5966
      %5968 = vmatmul.f32.gmra.mxu0 %v5857
      %v5969 = vpop.f32.mrf.mxu0
      %v5970 = vadd.f32 0.0, %v5969
      %5971 = vmatmul.f32.gmra.mxu0 %v5860
      %v5972 = vpop.f32.mrf.mxu0
      %v5973 = vadd.f32 0.0, %v5972
      %5974 = vmatmul.f32.gmra.mxu0 %v5863
      %v5975 = vpop.f32.mrf.mxu0
      %v5976 = vadd.f32 0.0, %v5975
      %5977 = vmatmul.f32.gmra.mxu0 %v5866
      %v5978 = vpop.f32.mrf.mxu0
      %v5979 = vadd.f32 0.0, %v5978
      %5980 = vmatmul.f32.gmra.mxu0 %v5869
      %v5981 = vpop.f32.mrf.mxu0
      %v5982 = vadd.f32 0.0, %v5981
      %5983 = vmatmul.f32.gmra.mxu0 %v5872
      %v5984 = vpop.f32.mrf.mxu0
      %v5985 = vadd.f32 0.0, %v5984
      %5986 = vdwg.mxu0
      %v5987 = vadd.f32 %v5711, %v5892
      %v5988 = vadd.f32 %v5712, %v5895
      %v5989 = vadd.f32 %v5713, %v5898
      %v5990 = vadd.f32 %v5714, %v5901
      %v5991 = vadd.f32 %v5715, %v5904
      %v5992 = vadd.f32 %v5716, %v5907
      %v5993 = vadd.f32 %v5717, %v5910
      %v5994 = vadd.f32 %v5718, %v5913
      %v5995 = vadd.f32 %v5719, %v5916
      %v5996 = vadd.f32 %v5720, %v5919
      %v5997 = vadd.f32 %v5721, %v5922
      %v5998 = vadd.f32 %v5722, %v5925
      %v5999 = vadd.f32 %v5723, %v5928
      %v6000 = vadd.f32 %v5724, %v5931
      %v6001 = vadd.f32 %v5725, %v5934
      %v6002 = vadd.f32 %v5726, %v5937
      %v6003 = vadd.f32 %v5727, %v5940
      %v6004 = vadd.f32 %v5728, %v5943
      %v6005 = vadd.f32 %v5729, %v5946
      %v6006 = vadd.f32 %v5730, %v5949
      %v6007 = vadd.f32 %v5731, %v5952
      %v6008 = vadd.f32 %v5732, %v5955
      %v6009 = vadd.f32 %v5733, %v5958
      %v6010 = vadd.f32 %v5734, %v5961
      %v6011 = vadd.f32 %v5735, %v5964
      %v6012 = vadd.f32 %v5736, %v5967
      %v6013 = vadd.f32 %v5737, %v5970
      %v6014 = vadd.f32 %v5738, %v5973
      %v6015 = vadd.f32 %v5739, %v5976
      %v6016 = vadd.f32 %v5740, %v5979
      %v6017 = vadd.f32 %v5741, %v5982
      %v6018 = vadd.f32 %v5742, %v5985
      %v6019 = vld [vmem:[%s5743 + $0x8] sm:$0xff]
      %v6020 = vld [vmem:[%s5743 + $0x10] sm:$0xff]
      %v6021 = vld [vmem:[%s5743 + $0x28] sm:$0xff]
      %v6022 = vld [vmem:[%s5743 + $0x30] sm:$0xff]
      %v6023 = vld [vmem:[%s5743 + $0x48] sm:$0xff]
      %v6024 = vld [vmem:[%s5743 + $0x50] sm:$0xff]
      %v6025 = vld [vmem:[%s5743 + $0x68] sm:$0xff]
      %v6026 = vld [vmem:[%s5743 + $0x70] sm:$0xff]
      %v6027 = vld [vmem:[%s5743 + $0x88] sm:$0xff]
      %v6028 = vld [vmem:[%s5743 + $0x90] sm:$0xff]
      %v6029 = vld [vmem:[%s5743 + $0xa8] sm:$0xff]
      %v6030 = vld [vmem:[%s5743 + $0xb0] sm:$0xff]
      %v6031 = vld [vmem:[%s5743 + $0xc8] sm:$0xff]
      %v6032 = vld [vmem:[%s5743 + $0xd0] sm:$0xff]
      %v6033 = vld [vmem:[%s5743 + $0xe8] sm:$0xff]
      %v6034 = vld [vmem:[%s5743 + $0xf0] sm:$0xff]
      %v6035 = vld [vmem:[%s5743 + $0x108] sm:$0xff]
      %v6036 = vld [vmem:[%s5743 + $0x110] sm:$0xff]
      %v6037 = vld [vmem:[%s5743 + $0x128] sm:$0xff]
      %v6038 = vld [vmem:[%s5743 + $0x130] sm:$0xff]
      %v6039 = vld [vmem:[%s5743 + $0x148] sm:$0xff]
      %v6040 = vld [vmem:[%s5743 + $0x150] sm:$0xff]
      %v6041 = vld [vmem:[%s5743 + $0x168] sm:$0xff]
      %v6042 = vld [vmem:[%s5743 + $0x170] sm:$0xff]
      %v6043 = vld [vmem:[%s5743 + $0x188] sm:$0xff]
      %v6044 = vld [vmem:[%s5743 + $0x190] sm:$0xff]
      %v6045 = vld [vmem:[%s5743 + $0x1a8] sm:$0xff]
      %v6046 = vld [vmem:[%s5743 + $0x1b0] sm:$0xff]
      %v6047 = vld [vmem:[%s5743 + $0x1c8] sm:$0xff]
      %v6048 = vld [vmem:[%s5743 + $0x1d0] sm:$0xff]
      %v6049 = vld [vmem:[%s5743 + $0x1e8] sm:$0xff]
      %v6050 = vld [vmem:[%s5743 + $0x1f0] sm:$0xff]
      %v6051 = vld [vmem:[%s6 + $0x70] sm:$0xff]
      %v6052 = vld [vmem:[%s6 + $0x78] sm:$0xff]
      %v6054 = vsel %vm3066, %v6019, 0
      %v6057 = vsel %vm3066, %v6020, 0
      %v6060 = vsel %vm3066, %v6021, 0
      %v6063 = vsel %vm3066, %v6022, 0
      %v6066 = vsel %vm3066, %v6023, 0
      %v6069 = vsel %vm3066, %v6024, 0
      %v6072 = vsel %vm3066, %v6025, 0
      %v6075 = vsel %vm3066, %v6026, 0
      %v6078 = vsel %vm3066, %v6027, 0
      %v6081 = vsel %vm3066, %v6028, 0
      %v6084 = vsel %vm3066, %v6029, 0
      %v6087 = vsel %vm3066, %v6030, 0
      %v6090 = vsel %vm3066, %v6031, 0
      %v6093 = vsel %vm3066, %v6032, 0
      %v6096 = vsel %vm3066, %v6033, 0
      %v6099 = vsel %vm3066, %v6034, 0
      %v6102 = vsel %vm3066, %v6035, 0
      %v6105 = vsel %vm3066, %v6036, 0
      %v6108 = vsel %vm3066, %v6037, 0
      %v6111 = vsel %vm3066, %v6038, 0
      %v6114 = vsel %vm3066, %v6039, 0
      %v6117 = vsel %vm3066, %v6040, 0
      %v6120 = vsel %vm3066, %v6041, 0
      %v6123 = vsel %vm3066, %v6042, 0
      %v6126 = vsel %vm3066, %v6043, 0
      %v6129 = vsel %vm3066, %v6044, 0
      %v6132 = vsel %vm3066, %v6045, 0
      %v6135 = vsel %vm3066, %v6046, 0
      %v6138 = vsel %vm3066, %v6047, 0
      %v6141 = vsel %vm3066, %v6048, 0
      %v6144 = vsel %vm3066, %v6049, 0
      %v6147 = vsel %vm3066, %v6050, 0
      %6149 = vmatpush.msra.mxu0 0.0
      %6150 = vmatpush.msra.mxu0 0.0
      %6151 = vmatpush.msra.mxu0 0.0
      %6152 = vmatpush.msra.mxu0 0.0
      %6153 = vmatpush.msra.mxu0 0.0
      %6154 = vmatpush.msra.mxu0 0.0
      %6155 = vmatpush.msra.mxu0 0.0
      %6156 = vmatpush.msra.mxu0 0.0
      %6157 = vmatpush.msra.mxu0 0.0
      %6158 = vmatpush.msra.mxu0 0.0
      %6159 = vmatpush.msra.mxu0 0.0
      %6160 = vmatpush.msra.mxu0 0.0
      %6161 = vmatpush.msra.mxu0 0.0
      %6162 = vmatpush.msra.mxu0 0.0
      %6163 = vmatpush.msra.mxu0 %v6052
      %6164 = vmatpush.msra.mxu0 %v6051
      %6165 = vmatmul.f32.gmra.mxu0 %v6054
      %v6166 = vpop.f32.mrf.mxu0
      %v6167 = vadd.f32 0.0, %v6166
      %6168 = vmatmul.f32.gmra.mxu0 %v6057
      %v6169 = vpop.f32.mrf.mxu0
      %v6170 = vadd.f32 0.0, %v6169
      %6171 = vmatmul.f32.gmra.mxu0 %v6060
      %v6172 = vpop.f32.mrf.mxu0
      %v6173 = vadd.f32 0.0, %v6172
      %6174 = vmatmul.f32.gmra.mxu0 %v6063
      %v6175 = vpop.f32.mrf.mxu0
      %v6176 = vadd.f32 0.0, %v6175
      %6177 = vmatmul.f32.gmra.mxu0 %v6066
      %v6178 = vpop.f32.mrf.mxu0
      %v6179 = vadd.f32 0.0, %v6178
      %6180 = vmatmul.f32.gmra.mxu0 %v6069
      %v6181 = vpop.f32.mrf.mxu0
      %v6182 = vadd.f32 0.0, %v6181
      %6183 = vmatmul.f32.gmra.mxu0 %v6072
      %v6184 = vpop.f32.mrf.mxu0
      %v6185 = vadd.f32 0.0, %v6184
      %6186 = vmatmul.f32.gmra.mxu0 %v6075
      %v6187 = vpop.f32.mrf.mxu0
      %v6188 = vadd.f32 0.0, %v6187
      %6189 = vmatmul.f32.gmra.mxu0 %v6078
      %v6190 = vpop.f32.mrf.mxu0
      %v6191 = vadd.f32 0.0, %v6190
      %6192 = vmatmul.f32.gmra.mxu0 %v6081
      %v6193 = vpop.f32.mrf.mxu0
      %v6194 = vadd.f32 0.0, %v6193
      %6195 = vmatmul.f32.gmra.mxu0 %v6084
      %v6196 = vpop.f32.mrf.mxu0
      %v6197 = vadd.f32 0.0, %v6196
      %6198 = vmatmul.f32.gmra.mxu0 %v6087
      %v6199 = vpop.f32.mrf.mxu0
      %v6200 = vadd.f32 0.0, %v6199
      %6201 = vmatmul.f32.gmra.mxu0 %v6090
      %v6202 = vpop.f32.mrf.mxu0
      %v6203 = vadd.f32 0.0, %v6202
      %6204 = vmatmul.f32.gmra.mxu0 %v6093
      %v6205 = vpop.f32.mrf.mxu0
      %v6206 = vadd.f32 0.0, %v6205
      %6207 = vmatmul.f32.gmra.mxu0 %v6096
      %v6208 = vpop.f32.mrf.mxu0
      %v6209 = vadd.f32 0.0, %v6208
      %6210 = vmatmul.f32.gmra.mxu0 %v6099
      %v6211 = vpop.f32.mrf.mxu0
      %v6212 = vadd.f32 0.0, %v6211
      %6213 = vmatmul.f32.gmra.mxu0 %v6102
      %v6214 = vpop.f32.mrf.mxu0
      %v6215 = vadd.f32 0.0, %v6214
      %6216 = vmatmul.f32.gmra.mxu0 %v6105
      %v6217 = vpop.f32.mrf.mxu0
      %v6218 = vadd.f32 0.0, %v6217
      %6219 = vmatmul.f32.gmra.mxu0 %v6108
      %v6220 = vpop.f32.mrf.mxu0
      %v6221 = vadd.f32 0.0, %v6220
      %6222 = vmatmul.f32.gmra.mxu0 %v6111
      %v6223 = vpop.f32.mrf.mxu0
      %v6224 = vadd.f32 0.0, %v6223
      %6225 = vmatmul.f32.gmra.mxu0 %v6114
      %v6226 = vpop.f32.mrf.mxu0
      %v6227 = vadd.f32 0.0, %v6226
      %6228 = vmatmul.f32.gmra.mxu0 %v6117
      %v6229 = vpop.f32.mrf.mxu0
      %v6230 = vadd.f32 0.0, %v6229
      %6231 = vmatmul.f32.gmra.mxu0 %v6120
      %v6232 = vpop.f32.mrf.mxu0
      %v6233 = vadd.f32 0.0, %v6232
      %6234 = vmatmul.f32.gmra.mxu0 %v6123
      %v6235 = vpop.f32.mrf.mxu0
      %v6236 = vadd.f32 0.0, %v6235
      %6237 = vmatmul.f32.gmra.mxu0 %v6126
      %v6238 = vpop.f32.mrf.mxu0
      %v6239 = vadd.f32 0.0, %v6238
      %6240 = vmatmul.f32.gmra.mxu0 %v6129
      %v6241 = vpop.f32.mrf.mxu0
      %v6242 = vadd.f32 0.0, %v6241
      %6243 = vmatmul.f32.gmra.mxu0 %v6132
      %v6244 = vpop.f32.mrf.mxu0
      %v6245 = vadd.f32 0.0, %v6244
      %6246 = vmatmul.f32.gmra.mxu0 %v6135
      %v6247 = vpop.f32.mrf.mxu0
      %v6248 = vadd.f32 0.0, %v6247
      %6249 = vmatmul.f32.gmra.mxu0 %v6138
      %v6250 = vpop.f32.mrf.mxu0
      %v6251 = vadd.f32 0.0, %v6250
      %6252 = vmatmul.f32.gmra.mxu0 %v6141
      %v6253 = vpop.f32.mrf.mxu0
      %v6254 = vadd.f32 0.0, %v6253
      %6255 = vmatmul.f32.gmra.mxu0 %v6144
      %v6256 = vpop.f32.mrf.mxu0
      %v6257 = vadd.f32 0.0, %v6256
      %6258 = vmatmul.f32.gmra.mxu0 %v6147
      %v6259 = vpop.f32.mrf.mxu0
      %v6260 = vadd.f32 0.0, %v6259
      %6261 = vdwg.mxu0
      %v6262 = vadd.f32 %v5987, %v6167
      %v6263 = vadd.f32 %v5988, %v6170
      %v6264 = vadd.f32 %v5989, %v6173
      %v6265 = vadd.f32 %v5990, %v6176
      %v6266 = vadd.f32 %v5991, %v6179
      %v6267 = vadd.f32 %v5992, %v6182
      %v6268 = vadd.f32 %v5993, %v6185
      %v6269 = vadd.f32 %v5994, %v6188
      %v6270 = vadd.f32 %v5995, %v6191
      %v6271 = vadd.f32 %v5996, %v6194
      %v6272 = vadd.f32 %v5997, %v6197
      %v6273 = vadd.f32 %v5998, %v6200
      %v6274 = vadd.f32 %v5999, %v6203
      %v6275 = vadd.f32 %v6000, %v6206
      %v6276 = vadd.f32 %v6001, %v6209
      %v6277 = vadd.f32 %v6002, %v6212
      %v6278 = vadd.f32 %v6003, %v6215
      %v6279 = vadd.f32 %v6004, %v6218
      %v6280 = vadd.f32 %v6005, %v6221
      %v6281 = vadd.f32 %v6006, %v6224
      %v6282 = vadd.f32 %v6007, %v6227
      %v6283 = vadd.f32 %v6008, %v6230
      %v6284 = vadd.f32 %v6009, %v6233
      %v6285 = vadd.f32 %v6010, %v6236
      %v6286 = vadd.f32 %v6011, %v6239
      %v6287 = vadd.f32 %v6012, %v6242
      %v6288 = vadd.f32 %v6013, %v6245
      %v6289 = vadd.f32 %v6014, %v6248
      %v6290 = vadd.f32 %v6015, %v6251
      %v6291 = vadd.f32 %v6016, %v6254
      %v6292 = vadd.f32 %v6017, %v6257
      %v6293 = vadd.f32 %v6018, %v6260
      %v6294 = vld [vmem:[%s5743 + $0x9] sm:$0xff]
      %v6295 = vld [vmem:[%s5743 + $0x11] sm:$0xff]
      %v6296 = vld [vmem:[%s5743 + $0x29] sm:$0xff]
      %v6297 = vld [vmem:[%s5743 + $0x31] sm:$0xff]
      %v6298 = vld [vmem:[%s5743 + $0x49] sm:$0xff]
      %v6299 = vld [vmem:[%s5743 + $0x51] sm:$0xff]
      %v6300 = vld [vmem:[%s5743 + $0x69] sm:$0xff]
      %v6301 = vld [vmem:[%s5743 + $0x71] sm:$0xff]
      %v6302 = vld [vmem:[%s5743 + $0x89] sm:$0xff]
      %v6303 = vld [vmem:[%s5743 + $0x91] sm:$0xff]
      %v6304 = vld [vmem:[%s5743 + $0xa9] sm:$0xff]
      %v6305 = vld [vmem:[%s5743 + $0xb1] sm:$0xff]
      %v6306 = vld [vmem:[%s5743 + $0xc9] sm:$0xff]
      %v6307 = vld [vmem:[%s5743 + $0xd1] sm:$0xff]
      %v6308 = vld [vmem:[%s5743 + $0xe9] sm:$0xff]
      %v6309 = vld [vmem:[%s5743 + $0xf1] sm:$0xff]
      %v6310 = vld [vmem:[%s5743 + $0x109] sm:$0xff]
      %v6311 = vld [vmem:[%s5743 + $0x111] sm:$0xff]
      %v6312 = vld [vmem:[%s5743 + $0x129] sm:$0xff]
      %v6313 = vld [vmem:[%s5743 + $0x131] sm:$0xff]
      %v6314 = vld [vmem:[%s5743 + $0x149] sm:$0xff]
      %v6315 = vld [vmem:[%s5743 + $0x151] sm:$0xff]
      %v6316 = vld [vmem:[%s5743 + $0x169] sm:$0xff]
      %v6317 = vld [vmem:[%s5743 + $0x171] sm:$0xff]
      %v6318 = vld [vmem:[%s5743 + $0x189] sm:$0xff]
      %v6319 = vld [vmem:[%s5743 + $0x191] sm:$0xff]
      %v6320 = vld [vmem:[%s5743 + $0x1a9] sm:$0xff]
      %v6321 = vld [vmem:[%s5743 + $0x1b1] sm:$0xff]
      %v6322 = vld [vmem:[%s5743 + $0x1c9] sm:$0xff]
      %v6323 = vld [vmem:[%s5743 + $0x1d1] sm:$0xff]
      %v6324 = vld [vmem:[%s5743 + $0x1e9] sm:$0xff]
      %v6325 = vld [vmem:[%s5743 + $0x1f1] sm:$0xff]
      %v6326 = vld [vmem:[%s6 + $0x80] sm:$0xff]
      %v6327 = vld [vmem:[%s6 + $0x88] sm:$0xff]
      %v6329 = vsel %vm3066, %v6294, 0
      %v6332 = vsel %vm3066, %v6295, 0
      %v6335 = vsel %vm3066, %v6296, 0
      %v6338 = vsel %vm3066, %v6297, 0
      %v6341 = vsel %vm3066, %v6298, 0
      %v6344 = vsel %vm3066, %v6299, 0
      %v6347 = vsel %vm3066, %v6300, 0
      %v6350 = vsel %vm3066, %v6301, 0
      %v6353 = vsel %vm3066, %v6302, 0
      %v6356 = vsel %vm3066, %v6303, 0
      %v6359 = vsel %vm3066, %v6304, 0
      %v6362 = vsel %vm3066, %v6305, 0
      %v6365 = vsel %vm3066, %v6306, 0
      %v6368 = vsel %vm3066, %v6307, 0
      %v6371 = vsel %vm3066, %v6308, 0
      %v6374 = vsel %vm3066, %v6309, 0
      %v6377 = vsel %vm3066, %v6310, 0
      %v6380 = vsel %vm3066, %v6311, 0
      %v6383 = vsel %vm3066, %v6312, 0
      %v6386 = vsel %vm3066, %v6313, 0
      %v6389 = vsel %vm3066, %v6314, 0
      %v6392 = vsel %vm3066, %v6315, 0
      %v6395 = vsel %vm3066, %v6316, 0
      %v6398 = vsel %vm3066, %v6317, 0
      %v6401 = vsel %vm3066, %v6318, 0
      %v6404 = vsel %vm3066, %v6319, 0
      %v6407 = vsel %vm3066, %v6320, 0
      %v6410 = vsel %vm3066, %v6321, 0
      %v6413 = vsel %vm3066, %v6322, 0
      %v6416 = vsel %vm3066, %v6323, 0
      %v6419 = vsel %vm3066, %v6324, 0
      %v6422 = vsel %vm3066, %v6325, 0
      %6424 = vmatpush.msra.mxu0 0.0
      %6425 = vmatpush.msra.mxu0 0.0
      %6426 = vmatpush.msra.mxu0 0.0
      %6427 = vmatpush.msra.mxu0 0.0
      %6428 = vmatpush.msra.mxu0 0.0
      %6429 = vmatpush.msra.mxu0 0.0
      %6430 = vmatpush.msra.mxu0 0.0
      %6431 = vmatpush.msra.mxu0 0.0
      %6432 = vmatpush.msra.mxu0 0.0
      %6433 = vmatpush.msra.mxu0 0.0
      %6434 = vmatpush.msra.mxu0 0.0
      %6435 = vmatpush.msra.mxu0 0.0
      %6436 = vmatpush.msra.mxu0 0.0
      %6437 = vmatpush.msra.mxu0 0.0
      %6438 = vmatpush.msra.mxu0 %v6327
      %6439 = vmatpush.msra.mxu0 %v6326
      %6440 = vmatmul.f32.gmra.mxu0 %v6329
      %v6441 = vpop.f32.mrf.mxu0
      %v6442 = vadd.f32 0.0, %v6441
      %6443 = vmatmul.f32.gmra.mxu0 %v6332
      %v6444 = vpop.f32.mrf.mxu0
      %v6445 = vadd.f32 0.0, %v6444
      %6446 = vmatmul.f32.gmra.mxu0 %v6335
      %v6447 = vpop.f32.mrf.mxu0
      %v6448 = vadd.f32 0.0, %v6447
      %6449 = vmatmul.f32.gmra.mxu0 %v6338
      %v6450 = vpop.f32.mrf.mxu0
      %v6451 = vadd.f32 0.0, %v6450
      %6452 = vmatmul.f32.gmra.mxu0 %v6341
      %v6453 = vpop.f32.mrf.mxu0
      %v6454 = vadd.f32 0.0, %v6453
      %6455 = vmatmul.f32.gmra.mxu0 %v6344
      %v6456 = vpop.f32.mrf.mxu0
      %v6457 = vadd.f32 0.0, %v6456
      %6458 = vmatmul.f32.gmra.mxu0 %v6347
      %v6459 = vpop.f32.mrf.mxu0
      %v6460 = vadd.f32 0.0, %v6459
      %6461 = vmatmul.f32.gmra.mxu0 %v6350
      %v6462 = vpop.f32.mrf.mxu0
      %v6463 = vadd.f32 0.0, %v6462
      %6464 = vmatmul.f32.gmra.mxu0 %v6353
      %v6465 = vpop.f32.mrf.mxu0
      %v6466 = vadd.f32 0.0, %v6465
      %6467 = vmatmul.f32.gmra.mxu0 %v6356
      %v6468 = vpop.f32.mrf.mxu0
      %v6469 = vadd.f32 0.0, %v6468
      %6470 = vmatmul.f32.gmra.mxu0 %v6359
      %v6471 = vpop.f32.mrf.mxu0
      %v6472 = vadd.f32 0.0, %v6471
      %6473 = vmatmul.f32.gmra.mxu0 %v6362
      %v6474 = vpop.f32.mrf.mxu0
      %v6475 = vadd.f32 0.0, %v6474
      %6476 = vmatmul.f32.gmra.mxu0 %v6365
      %v6477 = vpop.f32.mrf.mxu0
      %v6478 = vadd.f32 0.0, %v6477
      %6479 = vmatmul.f32.gmra.mxu0 %v6368
      %v6480 = vpop.f32.mrf.mxu0
      %v6481 = vadd.f32 0.0, %v6480
      %6482 = vmatmul.f32.gmra.mxu0 %v6371
      %v6483 = vpop.f32.mrf.mxu0
      %v6484 = vadd.f32 0.0, %v6483
      %6485 = vmatmul.f32.gmra.mxu0 %v6374
      %v6486 = vpop.f32.mrf.mxu0
      %v6487 = vadd.f32 0.0, %v6486
      %6488 = vmatmul.f32.gmra.mxu0 %v6377
      %v6489 = vpop.f32.mrf.mxu0
      %v6490 = vadd.f32 0.0, %v6489
      %6491 = vmatmul.f32.gmra.mxu0 %v6380
      %v6492 = vpop.f32.mrf.mxu0
      %v6493 = vadd.f32 0.0, %v6492
      %6494 = vmatmul.f32.gmra.mxu0 %v6383
      %v6495 = vpop.f32.mrf.mxu0
      %v6496 = vadd.f32 0.0, %v6495
      %6497 = vmatmul.f32.gmra.mxu0 %v6386
      %v6498 = vpop.f32.mrf.mxu0
      %v6499 = vadd.f32 0.0, %v6498
      %6500 = vmatmul.f32.gmra.mxu0 %v6389
      %v6501 = vpop.f32.mrf.mxu0
      %v6502 = vadd.f32 0.0, %v6501
      %6503 = vmatmul.f32.gmra.mxu0 %v6392
      %v6504 = vpop.f32.mrf.mxu0
      %v6505 = vadd.f32 0.0, %v6504
      %6506 = vmatmul.f32.gmra.mxu0 %v6395
      %v6507 = vpop.f32.mrf.mxu0
      %v6508 = vadd.f32 0.0, %v6507
      %6509 = vmatmul.f32.gmra.mxu0 %v6398
      %v6510 = vpop.f32.mrf.mxu0
      %v6511 = vadd.f32 0.0, %v6510
      %6512 = vmatmul.f32.gmra.mxu0 %v6401
      %v6513 = vpop.f32.mrf.mxu0
      %v6514 = vadd.f32 0.0, %v6513
      %6515 = vmatmul.f32.gmra.mxu0 %v6404
      %v6516 = vpop.f32.mrf.mxu0
      %v6517 = vadd.f32 0.0, %v6516
      %6518 = vmatmul.f32.gmra.mxu0 %v6407
      %v6519 = vpop.f32.mrf.mxu0
      %v6520 = vadd.f32 0.0, %v6519
      %6521 = vmatmul.f32.gmra.mxu0 %v6410
      %v6522 = vpop.f32.mrf.mxu0
      %v6523 = vadd.f32 0.0, %v6522
      %6524 = vmatmul.f32.gmra.mxu0 %v6413
      %v6525 = vpop.f32.mrf.mxu0
      %v6526 = vadd.f32 0.0, %v6525
      %6527 = vmatmul.f32.gmra.mxu0 %v6416
      %v6528 = vpop.f32.mrf.mxu0
      %v6529 = vadd.f32 0.0, %v6528
      %6530 = vmatmul.f32.gmra.mxu0 %v6419
      %v6531 = vpop.f32.mrf.mxu0
      %v6532 = vadd.f32 0.0, %v6531
      %6533 = vmatmul.f32.gmra.mxu0 %v6422
      %v6534 = vpop.f32.mrf.mxu0
      %v6535 = vadd.f32 0.0, %v6534
      %6536 = vdwg.mxu0
      %v6537 = vadd.f32 %v6262, %v6442
      %v6538 = vadd.f32 %v6263, %v6445
      %v6539 = vadd.f32 %v6264, %v6448
      %v6540 = vadd.f32 %v6265, %v6451
      %v6541 = vadd.f32 %v6266, %v6454
      %v6542 = vadd.f32 %v6267, %v6457
      %v6543 = vadd.f32 %v6268, %v6460
      %v6544 = vadd.f32 %v6269, %v6463
      %v6545 = vadd.f32 %v6270, %v6466
      %v6546 = vadd.f32 %v6271, %v6469
      %v6547 = vadd.f32 %v6272, %v6472
      %v6548 = vadd.f32 %v6273, %v6475
      %v6549 = vadd.f32 %v6274, %v6478
      %v6550 = vadd.f32 %v6275, %v6481
      %v6551 = vadd.f32 %v6276, %v6484
      %v6552 = vadd.f32 %v6277, %v6487
      %v6553 = vadd.f32 %v6278, %v6490
      %v6554 = vadd.f32 %v6279, %v6493
      %v6555 = vadd.f32 %v6280, %v6496
      %v6556 = vadd.f32 %v6281, %v6499
      %v6557 = vadd.f32 %v6282, %v6502
      %v6558 = vadd.f32 %v6283, %v6505
      %v6559 = vadd.f32 %v6284, %v6508
      %v6560 = vadd.f32 %v6285, %v6511
      %v6561 = vadd.f32 %v6286, %v6514
      %v6562 = vadd.f32 %v6287, %v6517
      %v6563 = vadd.f32 %v6288, %v6520
      %v6564 = vadd.f32 %v6289, %v6523
      %v6565 = vadd.f32 %v6290, %v6526
      %v6566 = vadd.f32 %v6291, %v6529
      %v6567 = vadd.f32 %v6292, %v6532
      %v6568 = vadd.f32 %v6293, %v6535
      %v6569 = vld [vmem:[%s8] sm:$0x1]
      %v6570 = vld [vmem:[%s9] sm:$0x1]
      %v6571 = vld [vmem:[%s12] sm:$0xff]
      %v6572 = vld [vmem:[%s12 + $0x8] sm:$0xff]
      %v6573 = vsel %vm3066, %v6537, 0.0
      %v6574 = vsel %vm3066, %v6538, 0.0
      %v6575 = vadd.f32 %v6573, %v6574
      %v6576 = vsel %vm3066, %v6539, 0.0
      %v6577 = vadd.f32 %v6575, %v6576
      %v6578 = vsel %vm3066, %v6540, 0.0
      %v6579 = vadd.f32 %v6577, %v6578
      %v6580 = vsel %vm3066, %v6541, 0.0
      %v6581 = vadd.f32 %v6579, %v6580
      %v6582 = vsel %vm3066, %v6542, 0.0
      %v6583 = vadd.f32 %v6581, %v6582
      %v6584 = vsel %vm3066, %v6543, 0.0
      %v6585 = vadd.f32 %v6583, %v6584
      %v6586 = vsel %vm3066, %v6544, 0.0
      %v6587 = vadd.f32 %v6585, %v6586
      %v6588 = vsel %vm3066, %v6545, 0.0
      %v6589 = vadd.f32 %v6587, %v6588
      %v6590 = vsel %vm3066, %v6546, 0.0
      %v6591 = vadd.f32 %v6589, %v6590
      %v6592 = vsel %vm3066, %v6547, 0.0
      %v6593 = vadd.f32 %v6591, %v6592
      %v6594 = vsel %vm3066, %v6548, 0.0
      %v6595 = vadd.f32 %v6593, %v6594
      %v6596 = vsel %vm3066, %v6549, 0.0
      %v6597 = vadd.f32 %v6595, %v6596
      %v6598 = vsel %vm3066, %v6550, 0.0
      %v6599 = vadd.f32 %v6597, %v6598
      %v6600 = vsel %vm3066, %v6551, 0.0
      %v6601 = vadd.f32 %v6599, %v6600
      %v6602 = vsel %vm3066, %v6552, 0.0
      %v6603 = vadd.f32 %v6601, %v6602
      %v6604 = vsel %vm3066, %v6553, 0.0
      %v6605 = vadd.f32 %v6603, %v6604
      %v6606 = vsel %vm3066, %v6554, 0.0
      %v6607 = vadd.f32 %v6605, %v6606
      %v6608 = vsel %vm3066, %v6555, 0.0
      %v6609 = vadd.f32 %v6607, %v6608
      %v6610 = vsel %vm3066, %v6556, 0.0
      %v6611 = vadd.f32 %v6609, %v6610
      %v6612 = vsel %vm3066, %v6557, 0.0
      %v6613 = vadd.f32 %v6611, %v6612
      %v6614 = vsel %vm3066, %v6558, 0.0
      %v6615 = vadd.f32 %v6613, %v6614
      %v6616 = vsel %vm3066, %v6559, 0.0
      %v6617 = vadd.f32 %v6615, %v6616
      %v6618 = vsel %vm3066, %v6560, 0.0
      %v6619 = vadd.f32 %v6617, %v6618
      %v6620 = vsel %vm3066, %v6561, 0.0
      %v6621 = vadd.f32 %v6619, %v6620
      %v6622 = vsel %vm3066, %v6562, 0.0
      %v6623 = vadd.f32 %v6621, %v6622
      %v6624 = vsel %vm3066, %v6563, 0.0
      %v6625 = vadd.f32 %v6623, %v6624
      %v6626 = vsel %vm3066, %v6564, 0.0
      %v6627 = vadd.f32 %v6625, %v6626
      %v6628 = vsel %vm3066, %v6565, 0.0
      %v6629 = vadd.f32 %v6627, %v6628
      %v6630 = vsel %vm3066, %v6566, 0.0
      %v6631 = vadd.f32 %v6629, %v6630
      %v6632 = vsel %vm3066, %v6567, 0.0
      %v6633 = vadd.f32 %v6631, %v6632
      %v6634 = vsel %vm3066, %v6568, 0.0
      %v6635 = vadd.f32 %v6633, %v6634
      %v6636 = vrot.slane %v6635, 4
      %v6637 = vadd.f32 %v6635, %v6636
      %v6638 = vrot.slane %v6637, 2
      %v6639 = vadd.f32 %v6637, %v6638
      %v6640 = vrot.slane %v6639, 1
      %v6641 = vadd.f32 %v6639, %v6640
      %v6642 = vmul.f32 %v6537, %v6537
      %v6643 = vmul.f32 %v6538, %v6538
      %v6644 = vmul.f32 %v6539, %v6539
      %v6645 = vmul.f32 %v6540, %v6540
      %v6646 = vmul.f32 %v6541, %v6541
      %v6647 = vmul.f32 %v6542, %v6542
      %v6648 = vmul.f32 %v6543, %v6543
      %v6649 = vmul.f32 %v6544, %v6544
      %v6650 = vmul.f32 %v6545, %v6545
      %v6651 = vmul.f32 %v6546, %v6546
      %v6652 = vmul.f32 %v6547, %v6547
      %v6653 = vmul.f32 %v6548, %v6548
      %v6654 = vmul.f32 %v6549, %v6549
      %v6655 = vmul.f32 %v6550, %v6550
      %v6656 = vmul.f32 %v6551, %v6551
      %v6657 = vmul.f32 %v6552, %v6552
      %v6658 = vmul.f32 %v6553, %v6553
      %v6659 = vmul.f32 %v6554, %v6554
      %v6660 = vmul.f32 %v6555, %v6555
      %v6661 = vmul.f32 %v6556, %v6556
      %v6662 = vmul.f32 %v6557, %v6557
      %v6663 = vmul.f32 %v6558, %v6558
      %v6664 = vmul.f32 %v6559, %v6559
      %v6665 = vmul.f32 %v6560, %v6560
      %v6666 = vmul.f32 %v6561, %v6561
      %v6667 = vmul.f32 %v6562, %v6562
      %v6668 = vmul.f32 %v6563, %v6563
      %v6669 = vmul.f32 %v6564, %v6564
      %v6670 = vmul.f32 %v6565, %v6565
      %v6671 = vmul.f32 %v6566, %v6566
      %v6672 = vmul.f32 %v6567, %v6567
      %v6673 = vmul.f32 %v6568, %v6568
      %v6674 = vsel %vm3066, %v6642, 0.0
      %v6675 = vsel %vm3066, %v6643, 0.0
      %v6676 = vadd.f32 %v6674, %v6675
      %v6677 = vsel %vm3066, %v6644, 0.0
      %v6678 = vadd.f32 %v6676, %v6677
      %v6679 = vsel %vm3066, %v6645, 0.0
      %v6680 = vadd.f32 %v6678, %v6679
      %v6681 = vsel %vm3066, %v6646, 0.0
      %v6682 = vadd.f32 %v6680, %v6681
      %v6683 = vsel %vm3066, %v6647, 0.0
      %v6684 = vadd.f32 %v6682, %v6683
      %v6685 = vsel %vm3066, %v6648, 0.0
      %v6686 = vadd.f32 %v6684, %v6685
      %v6687 = vsel %vm3066, %v6649, 0.0
      %v6688 = vadd.f32 %v6686, %v6687
      %v6689 = vsel %vm3066, %v6650, 0.0
      %v6690 = vadd.f32 %v6688, %v6689
      %v6691 = vsel %vm3066, %v6651, 0.0
      %v6692 = vadd.f32 %v6690, %v6691
      %v6693 = vsel %vm3066, %v6652, 0.0
      %v6694 = vadd.f32 %v6692, %v6693
      %v6695 = vsel %vm3066, %v6653, 0.0
      %v6696 = vadd.f32 %v6694, %v6695
      %v6697 = vsel %vm3066, %v6654, 0.0
      %v6698 = vadd.f32 %v6696, %v6697
      %v6699 = vsel %vm3066, %v6655, 0.0
      %v6700 = vadd.f32 %v6698, %v6699
      %v6701 = vsel %vm3066, %v6656, 0.0
      %v6702 = vadd.f32 %v6700, %v6701
      %v6703 = vsel %vm3066, %v6657, 0.0
      %v6704 = vadd.f32 %v6702, %v6703
      %v6705 = vsel %vm3066, %v6658, 0.0
      %v6706 = vadd.f32 %v6704, %v6705
      %v6707 = vsel %vm3066, %v6659, 0.0
      %v6708 = vadd.f32 %v6706, %v6707
      %v6709 = vsel %vm3066, %v6660, 0.0
      %v6710 = vadd.f32 %v6708, %v6709
      %v6711 = vsel %vm3066, %v6661, 0.0
      %v6712 = vadd.f32 %v6710, %v6711
      %v6713 = vsel %vm3066, %v6662, 0.0
      %v6714 = vadd.f32 %v6712, %v6713
      %v6715 = vsel %vm3066, %v6663, 0.0
      %v6716 = vadd.f32 %v6714, %v6715
      %v6717 = vsel %vm3066, %v6664, 0.0
      %v6718 = vadd.f32 %v6716, %v6717
      %v6719 = vsel %vm3066, %v6665, 0.0
      %v6720 = vadd.f32 %v6718, %v6719
      %v6721 = vsel %vm3066, %v6666, 0.0
      %v6722 = vadd.f32 %v6720, %v6721
      %v6723 = vsel %vm3066, %v6667, 0.0
      %v6724 = vadd.f32 %v6722, %v6723
      %v6725 = vsel %vm3066, %v6668, 0.0
      %v6726 = vadd.f32 %v6724, %v6725
      %v6727 = vsel %vm3066, %v6669, 0.0
      %v6728 = vadd.f32 %v6726, %v6727
      %v6729 = vsel %vm3066, %v6670, 0.0
      %v6730 = vadd.f32 %v6728, %v6729
      %v6731 = vsel %vm3066, %v6671, 0.0
      %v6732 = vadd.f32 %v6730, %v6731
      %v6733 = vsel %vm3066, %v6672, 0.0
      %v6734 = vadd.f32 %v6732, %v6733
      %v6735 = vsel %vm3066, %v6673, 0.0
      %v6736 = vadd.f32 %v6734, %v6735
      %v6737 = vrot.slane %v6736, 4
      %v6738 = vadd.f32 %v6736, %v6737
      %v6739 = vrot.slane %v6738, 2
      %v6740 = vadd.f32 %v6738, %v6739
      %v6741 = vrot.slane %v6740, 1
      %v6742 = vadd.f32 %v6740, %v6741
      %v6744 = vsel %vm3066, %v6641, 0
      %6746 = vmatpush.msra.mxu0 0.0
      %6747 = vmatpush.msra.mxu0 0.0
      %6748 = vmatpush.msra.mxu0 0.0
      %6749 = vmatpush.msra.mxu0 0.0
      %6750 = vmatpush.msra.mxu0 0.0
      %6751 = vmatpush.msra.mxu0 0.0
      %6752 = vmatpush.msra.mxu0 0.0
      %6753 = vmatpush.msra.mxu0 0.0
      %6754 = vmatpush.msra.mxu0 0.0
      %6755 = vmatpush.msra.mxu0 0.0
      %6756 = vmatpush.msra.mxu0 0.0
      %6757 = vmatpush.msra.mxu0 0.0
      %6758 = vmatpush.msra.mxu0 0.0
      %6759 = vmatpush.msra.mxu0 0.0
      %6760 = vmatpush.msra.mxu0 %v6572
      %6761 = vmatpush.msra.mxu0 %v6571
      %6762 = vmatmul.f32.gmra.mxu0 %v6744
      %v6763 = vpop.f32.mrf.mxu0
      %v6764 = vadd.f32 0.0, %v6763
      %6765 = vdwg.mxu0
      %v6767 = vsel %vm3066, %v6742, 0
      %6769 = vmatpush.msra.mxu0 0.0
      %6770 = vmatpush.msra.mxu0 0.0
      %6771 = vmatpush.msra.mxu0 0.0
      %6772 = vmatpush.msra.mxu0 0.0
      %6773 = vmatpush.msra.mxu0 0.0
      %6774 = vmatpush.msra.mxu0 0.0
      %6775 = vmatpush.msra.mxu0 0.0
      %6776 = vmatpush.msra.mxu0 0.0
      %6777 = vmatpush.msra.mxu0 0.0
      %6778 = vmatpush.msra.mxu0 0.0
      %6779 = vmatpush.msra.mxu0 0.0
      %6780 = vmatpush.msra.mxu0 0.0
      %6781 = vmatpush.msra.mxu0 0.0
      %6782 = vmatpush.msra.mxu0 0.0
      %6783 = vmatpush.msra.mxu0 %v6572
      %6784 = vmatpush.msra.mxu0 %v6571
      %6785 = vmatmul.f32.gmra.mxu0 %v6767
      %v6786 = vpop.f32.mrf.mxu0
      %v6787 = vadd.f32 0.0, %v6786
      %6788 = vdwg.mxu0
      %v6789 = vmul.f32 %v6764, %v6764
      %v6790 = vsub.f32 %v6787, %v6789
      %v6791 = vadd.f32 %v6790, 1e-05
      %v6792 = vrsqrt.pop %v6791
      %v6793 = vmul.f32 %v6792, %v6791
      %v6794 = vmul.f32 %v6793, %v6792
      %v6795 = vmul.f32 0.5, %v6794
      %v6796 = vsub.f32 1.5, %v6795
      %v6797 = vmul.f32 %v6792, %v6796
      %vm6798 = vweird.f32 %v6791
      %vm6799 = vweird.f32 %v6792
      %vm6800 = vmor %vm6798, %vm6799
      %v6801 = vsel %vm6800, %v6792, %v6797
      %v6802 = vmul.f32 %v6801, %v6569
      %v6803 = vmul.f32 %v6764, %v6802
      %v6804 = vsub.f32 %v6570, %v6803
      %v6805 = vperm.slane %v6802, 0
      %v6806 = vmul.f32 %v6537, %v6805
      %v6807 = vmul.f32 %v6538, %v6805
      %v6808 = vmul.f32 %v6539, %v6805
      %v6809 = vmul.f32 %v6540, %v6805
      %v6810 = vmul.f32 %v6541, %v6805
      %v6811 = vmul.f32 %v6542, %v6805
      %v6812 = vmul.f32 %v6543, %v6805
      %v6813 = vmul.f32 %v6544, %v6805
      %v6814 = vmul.f32 %v6545, %v6805
      %v6815 = vmul.f32 %v6546, %v6805
      %v6816 = vmul.f32 %v6547, %v6805
      %v6817 = vmul.f32 %v6548, %v6805
      %v6818 = vmul.f32 %v6549, %v6805
      %v6819 = vmul.f32 %v6550, %v6805
      %v6820 = vmul.f32 %v6551, %v6805
      %v6821 = vmul.f32 %v6552, %v6805
      %v6822 = vmul.f32 %v6553, %v6805
      %v6823 = vmul.f32 %v6554, %v6805
      %v6824 = vmul.f32 %v6555, %v6805
      %v6825 = vmul.f32 %v6556, %v6805
      %v6826 = vmul.f32 %v6557, %v6805
      %v6827 = vmul.f32 %v6558, %v6805
      %v6828 = vmul.f32 %v6559, %v6805
      %v6829 = vmul.f32 %v6560, %v6805
      %v6830 = vmul.f32 %v6561, %v6805
      %v6831 = vmul.f32 %v6562, %v6805
      %v6832 = vmul.f32 %v6563, %v6805
      %v6833 = vmul.f32 %v6564, %v6805
      %v6834 = vmul.f32 %v6565, %v6805
      %v6835 = vmul.f32 %v6566, %v6805
      %v6836 = vmul.f32 %v6567, %v6805
      %v6837 = vmul.f32 %v6568, %v6805
      %v6839 = vperm.slane %v6804, 0
      %v6841 = vadd.f32 %v6806, %v6839
      %v6842 = vadd.f32 %v6807, %v6839
      %v6843 = vadd.f32 %v6808, %v6839
      %v6844 = vadd.f32 %v6809, %v6839
      %v6845 = vadd.f32 %v6810, %v6839
      %v6846 = vadd.f32 %v6811, %v6839
      %v6847 = vadd.f32 %v6812, %v6839
      %v6848 = vadd.f32 %v6813, %v6839
      %v6849 = vadd.f32 %v6814, %v6839
      %v6850 = vadd.f32 %v6815, %v6839
      %v6851 = vadd.f32 %v6816, %v6839
      %v6852 = vadd.f32 %v6817, %v6839
      %v6853 = vadd.f32 %v6818, %v6839
      %v6854 = vadd.f32 %v6819, %v6839
      %v6855 = vadd.f32 %v6820, %v6839
      %v6856 = vadd.f32 %v6821, %v6839
      %v6857 = vadd.f32 %v6822, %v6839
      %v6858 = vadd.f32 %v6823, %v6839
      %v6859 = vadd.f32 %v6824, %v6839
      %v6860 = vadd.f32 %v6825, %v6839
      %v6861 = vadd.f32 %v6826, %v6839
      %v6862 = vadd.f32 %v6827, %v6839
      %v6863 = vadd.f32 %v6828, %v6839
      %v6864 = vadd.f32 %v6829, %v6839
      %v6865 = vadd.f32 %v6830, %v6839
      %v6866 = vadd.f32 %v6831, %v6839
      %v6867 = vadd.f32 %v6832, %v6839
      %v6868 = vadd.f32 %v6833, %v6839
      %v6869 = vadd.f32 %v6834, %v6839
      %v6870 = vadd.f32 %v6835, %v6839
      %v6871 = vadd.f32 %v6836, %v6839
      %v6872 = vadd.f32 %v6837, %v6839
      %v6873 = vxor.u32 %v6841, 2147483648
      %v6874 = vxor.u32 %v6842, 2147483648
      %v6875 = vxor.u32 %v6843, 2147483648
      %v6876 = vxor.u32 %v6844, 2147483648
      %v6877 = vxor.u32 %v6845, 2147483648
      %v6878 = vxor.u32 %v6846, 2147483648
      %v6879 = vxor.u32 %v6847, 2147483648
      %v6880 = vxor.u32 %v6848, 2147483648
      %v6881 = vxor.u32 %v6849, 2147483648
      %v6882 = vxor.u32 %v6850, 2147483648
      %v6883 = vxor.u32 %v6851, 2147483648
      %v6884 = vxor.u32 %v6852, 2147483648
      %v6885 = vxor.u32 %v6853, 2147483648
      %v6886 = vxor.u32 %v6854, 2147483648
      %v6887 = vxor.u32 %v6855, 2147483648
      %v6888 = vxor.u32 %v6856, 2147483648
      %v6889 = vxor.u32 %v6857, 2147483648
      %v6890 = vxor.u32 %v6858, 2147483648
      %v6891 = vxor.u32 %v6859, 2147483648
      %v6892 = vxor.u32 %v6860, 2147483648
      %v6893 = vxor.u32 %v6861, 2147483648
      %v6894 = vxor.u32 %v6862, 2147483648
      %v6895 = vxor.u32 %v6863, 2147483648
      %v6896 = vxor.u32 %v6864, 2147483648
      %v6897 = vxor.u32 %v6865, 2147483648
      %v6898 = vxor.u32 %v6866, 2147483648
      %v6899 = vxor.u32 %v6867, 2147483648
      %v6900 = vxor.u32 %v6868, 2147483648
      %v6901 = vxor.u32 %v6869, 2147483648
      %v6902 = vxor.u32 %v6870, 2147483648
      %v6903 = vxor.u32 %v6871, 2147483648
      %v6904 = vxor.u32 %v6872, 2147483648
      %v6905 = vmul.f32 %v6873, 1.442695
      %v6906 = vpow.pop %v6905
      %v6907 = vmul.f32 %v6874, 1.442695
      %v6908 = vpow.pop %v6907
      %v6909 = vmul.f32 %v6875, 1.442695
      %v6910 = vpow.pop %v6909
      %v6911 = vmul.f32 %v6876, 1.442695
      %v6912 = vpow.pop %v6911
      %v6913 = vmul.f32 %v6877, 1.442695
      %v6914 = vpow.pop %v6913
      %v6915 = vmul.f32 %v6878, 1.442695
      %v6916 = vpow.pop %v6915
      %v6917 = vmul.f32 %v6879, 1.442695
      %v6918 = vpow.pop %v6917
      %v6919 = vmul.f32 %v6880, 1.442695
      %v6920 = vpow.pop %v6919
      %v6921 = vmul.f32 %v6881, 1.442695
      %v6922 = vpow.pop %v6921
      %v6923 = vmul.f32 %v6882, 1.442695
      %v6924 = vpow.pop %v6923
      %v6925 = vmul.f32 %v6883, 1.442695
      %v6926 = vpow.pop %v6925
      %v6927 = vmul.f32 %v6884, 1.442695
      %v6928 = vpow.pop %v6927
      %v6929 = vmul.f32 %v6885, 1.442695
      %v6930 = vpow.pop %v6929
      %v6931 = vmul.f32 %v6886, 1.442695
      %v6932 = vpow.pop %v6931
      %v6933 = vmul.f32 %v6887, 1.442695
      %v6934 = vpow.pop %v6933
      %v6935 = vmul.f32 %v6888, 1.442695
      %v6936 = vpow.pop %v6935
      %v6937 = vmul.f32 %v6889, 1.442695
      %v6938 = vpow.pop %v6937
      %v6939 = vmul.f32 %v6890, 1.442695
      %v6940 = vpow.pop %v6939
      %v6941 = vmul.f32 %v6891, 1.442695
      %v6942 = vpow.pop %v6941
      %v6943 = vmul.f32 %v6892, 1.442695
      %v6944 = vpow.pop %v6943
      %v6945 = vmul.f32 %v6893, 1.442695
      %v6946 = vpow.pop %v6945
      %v6947 = vmul.f32 %v6894, 1.442695
      %v6948 = vpow.pop %v6947
      %v6949 = vmul.f32 %v6895, 1.442695
      %v6950 = vpow.pop %v6949
      %v6951 = vmul.f32 %v6896, 1.442695
      %v6952 = vpow.pop %v6951
      %v6953 = vmul.f32 %v6897, 1.442695
      %v6954 = vpow.pop %v6953
      %v6955 = vmul.f32 %v6898, 1.442695
      %v6956 = vpow.pop %v6955
      %v6957 = vmul.f32 %v6899, 1.442695
      %v6958 = vpow.pop %v6957
      %v6959 = vmul.f32 %v6900, 1.442695
      %v6960 = vpow.pop %v6959
      %v6961 = vmul.f32 %v6901, 1.442695
      %v6962 = vpow.pop %v6961
      %v6963 = vmul.f32 %v6902, 1.442695
      %v6964 = vpow.pop %v6963
      %v6965 = vmul.f32 %v6903, 1.442695
      %v6966 = vpow.pop %v6965
      %v6967 = vmul.f32 %v6904, 1.442695
      %v6968 = vpow.pop %v6967
      %v6969 = vadd.f32 %v6906, 1.0
      %v6970 = vadd.f32 %v6908, 1.0
      %v6971 = vadd.f32 %v6910, 1.0
      %v6972 = vadd.f32 %v6912, 1.0
      %v6973 = vadd.f32 %v6914, 1.0
      %v6974 = vadd.f32 %v6916, 1.0
      %v6975 = vadd.f32 %v6918, 1.0
      %v6976 = vadd.f32 %v6920, 1.0
      %v6977 = vadd.f32 %v6922, 1.0
      %v6978 = vadd.f32 %v6924, 1.0
      %v6979 = vadd.f32 %v6926, 1.0
      %v6980 = vadd.f32 %v6928, 1.0
      %v6981 = vadd.f32 %v6930, 1.0
      %v6982 = vadd.f32 %v6932, 1.0
      %v6983 = vadd.f32 %v6934, 1.0
      %v6984 = vadd.f32 %v6936, 1.0
      %v6985 = vadd.f32 %v6938, 1.0
      %v6986 = vadd.f32 %v6940, 1.0
      %v6987 = vadd.f32 %v6942, 1.0
      %v6988 = vadd.f32 %v6944, 1.0
      %v6989 = vadd.f32 %v6946, 1.0
      %v6990 = vadd.f32 %v6948, 1.0
      %v6991 = vadd.f32 %v6950, 1.0
      %v6992 = vadd.f32 %v6952, 1.0
      %v6993 = vadd.f32 %v6954, 1.0
      %v6994 = vadd.f32 %v6956, 1.0
      %v6995 = vadd.f32 %v6958, 1.0
      %v6996 = vadd.f32 %v6960, 1.0
      %v6997 = vadd.f32 %v6962, 1.0
      %v6998 = vadd.f32 %v6964, 1.0
      %v6999 = vadd.f32 %v6966, 1.0
      %v7000 = vadd.f32 %v6968, 1.0
      %v7001 = vrcp.pop %v6969
      %v7002 = vmul.f32 %v6969, %v7001
      %v7003 = vsub.f32 1.0, %v7002
      %v7004 = vmul.f32 %v7001, %v7003
      %v7005 = vadd.f32 %v7001, %v7004
      %vm7006 = vweird.f32 %v6969
      %vm7007 = vweird.f32 %v7001
      %vm7008 = vmor %vm7006, %vm7007
      %v7009 = vsel %vm7008, %v7001, %v7005
      %v7010 = vand.u32 2147483647, %v6969
      %vm7011 = vcmp.eq.f32.partialorder %v7010, 8.507059e+37
      %v7012 = vand.u32 %v6969, 2147483648
      %v7013 = vor.u32 1.1754944e-38, %v7012
      %v7014 = vsel %vm7011, %v7013, %v7009
      %v7015 = vmul.f32 1.0, %v7014
      %v7016 = vrcp.pop %v6970
      %v7017 = vmul.f32 %v6970, %v7016
      %v7018 = vsub.f32 1.0, %v7017
      %v7019 = vmul.f32 %v7016, %v7018
      %v7020 = vadd.f32 %v7016, %v7019
      %vm7021 = vweird.f32 %v6970
      %vm7022 = vweird.f32 %v7016
      %vm7023 = vmor %vm7021, %vm7022
      %v7024 = vsel %vm7023, %v7016, %v7020
      %v7025 = vand.u32 2147483647, %v6970
      %vm7026 = vcmp.eq.f32.partialorder %v7025, 8.507059e+37
      %v7027 = vand.u32 %v6970, 2147483648
      %v7028 = vor.u32 1.1754944e-38, %v7027
      %v7029 = vsel %vm7026, %v7028, %v7024
      %v7030 = vmul.f32 1.0, %v7029
      %v7031 = vrcp.pop %v6971
      %v7032 = vmul.f32 %v6971, %v7031
      %v7033 = vsub.f32 1.0, %v7032
      %v7034 = vmul.f32 %v7031, %v7033
      %v7035 = vadd.f32 %v7031, %v7034
      %vm7036 = vweird.f32 %v6971
      %vm7037 = vweird.f32 %v7031
      %vm7038 = vmor %vm7036, %vm7037
      %v7039 = vsel %vm7038, %v7031, %v7035
      %v7040 = vand.u32 2147483647, %v6971
      %vm7041 = vcmp.eq.f32.partialorder %v7040, 8.507059e+37
      %v7042 = vand.u32 %v6971, 2147483648
      %v7043 = vor.u32 1.1754944e-38, %v7042
      %v7044 = vsel %vm7041, %v7043, %v7039
      %v7045 = vmul.f32 1.0, %v7044
      %v7046 = vrcp.pop %v6972
      %v7047 = vmul.f32 %v6972, %v7046
      %v7048 = vsub.f32 1.0, %v7047
      %v7049 = vmul.f32 %v7046, %v7048
      %v7050 = vadd.f32 %v7046, %v7049
      %vm7051 = vweird.f32 %v6972
      %vm7052 = vweird.f32 %v7046
      %vm7053 = vmor %vm7051, %vm7052
      %v7054 = vsel %vm7053, %v7046, %v7050
      %v7055 = vand.u32 2147483647, %v6972
      %vm7056 = vcmp.eq.f32.partialorder %v7055, 8.507059e+37
      %v7057 = vand.u32 %v6972, 2147483648
      %v7058 = vor.u32 1.1754944e-38, %v7057
      %v7059 = vsel %vm7056, %v7058, %v7054
      %v7060 = vmul.f32 1.0, %v7059
      %v7061 = vrcp.pop %v6973
      %v7062 = vmul.f32 %v6973, %v7061
      %v7063 = vsub.f32 1.0, %v7062
      %v7064 = vmul.f32 %v7061, %v7063
      %v7065 = vadd.f32 %v7061, %v7064
      %vm7066 = vweird.f32 %v6973
      %vm7067 = vweird.f32 %v7061
      %vm7068 = vmor %vm7066, %vm7067
      %v7069 = vsel %vm7068, %v7061, %v7065
      %v7070 = vand.u32 2147483647, %v6973
      %vm7071 = vcmp.eq.f32.partialorder %v7070, 8.507059e+37
      %v7072 = vand.u32 %v6973, 2147483648
      %v7073 = vor.u32 1.1754944e-38, %v7072
      %v7074 = vsel %vm7071, %v7073, %v7069
      %v7075 = vmul.f32 1.0, %v7074
      %v7076 = vrcp.pop %v6974
      %v7077 = vmul.f32 %v6974, %v7076
      %v7078 = vsub.f32 1.0, %v7077
      %v7079 = vmul.f32 %v7076, %v7078
      %v7080 = vadd.f32 %v7076, %v7079
      %vm7081 = vweird.f32 %v6974
      %vm7082 = vweird.f32 %v7076
      %vm7083 = vmor %vm7081, %vm7082
      %v7084 = vsel %vm7083, %v7076, %v7080
      %v7085 = vand.u32 2147483647, %v6974
      %vm7086 = vcmp.eq.f32.partialorder %v7085, 8.507059e+37
      %v7087 = vand.u32 %v6974, 2147483648
      %v7088 = vor.u32 1.1754944e-38, %v7087
      %v7089 = vsel %vm7086, %v7088, %v7084
      %v7090 = vmul.f32 1.0, %v7089
      %v7091 = vrcp.pop %v6975
      %v7092 = vmul.f32 %v6975, %v7091
      %v7093 = vsub.f32 1.0, %v7092
      %v7094 = vmul.f32 %v7091, %v7093
      %v7095 = vadd.f32 %v7091, %v7094
      %vm7096 = vweird.f32 %v6975
      %vm7097 = vweird.f32 %v7091
      %vm7098 = vmor %vm7096, %vm7097
      %v7099 = vsel %vm7098, %v7091, %v7095
      %v7100 = vand.u32 2147483647, %v6975
      %vm7101 = vcmp.eq.f32.partialorder %v7100, 8.507059e+37
      %v7102 = vand.u32 %v6975, 2147483648
      %v7103 = vor.u32 1.1754944e-38, %v7102
      %v7104 = vsel %vm7101, %v7103, %v7099
      %v7105 = vmul.f32 1.0, %v7104
      %v7106 = vrcp.pop %v6976
      %v7107 = vmul.f32 %v6976, %v7106
      %v7108 = vsub.f32 1.0, %v7107
      %v7109 = vmul.f32 %v7106, %v7108
      %v7110 = vadd.f32 %v7106, %v7109
      %vm7111 = vweird.f32 %v6976
      %vm7112 = vweird.f32 %v7106
      %vm7113 = vmor %vm7111, %vm7112
      %v7114 = vsel %vm7113, %v7106, %v7110
      %v7115 = vand.u32 2147483647, %v6976
      %vm7116 = vcmp.eq.f32.partialorder %v7115, 8.507059e+37
      %v7117 = vand.u32 %v6976, 2147483648
      %v7118 = vor.u32 1.1754944e-38, %v7117
      %v7119 = vsel %vm7116, %v7118, %v7114
      %v7120 = vmul.f32 1.0, %v7119
      %v7121 = vrcp.pop %v6977
      %v7122 = vmul.f32 %v6977, %v7121
      %v7123 = vsub.f32 1.0, %v7122
      %v7124 = vmul.f32 %v7121, %v7123
      %v7125 = vadd.f32 %v7121, %v7124
      %vm7126 = vweird.f32 %v6977
      %vm7127 = vweird.f32 %v7121
      %vm7128 = vmor %vm7126, %vm7127
      %v7129 = vsel %vm7128, %v7121, %v7125
      %v7130 = vand.u32 2147483647, %v6977
      %vm7131 = vcmp.eq.f32.partialorder %v7130, 8.507059e+37
      %v7132 = vand.u32 %v6977, 2147483648
      %v7133 = vor.u32 1.1754944e-38, %v7132
      %v7134 = vsel %vm7131, %v7133, %v7129
      %v7135 = vmul.f32 1.0, %v7134
      %v7136 = vrcp.pop %v6978
      %v7137 = vmul.f32 %v6978, %v7136
      %v7138 = vsub.f32 1.0, %v7137
      %v7139 = vmul.f32 %v7136, %v7138
      %v7140 = vadd.f32 %v7136, %v7139
      %vm7141 = vweird.f32 %v6978
      %vm7142 = vweird.f32 %v7136
      %vm7143 = vmor %vm7141, %vm7142
      %v7144 = vsel %vm7143, %v7136, %v7140
      %v7145 = vand.u32 2147483647, %v6978
      %vm7146 = vcmp.eq.f32.partialorder %v7145, 8.507059e+37
      %v7147 = vand.u32 %v6978, 2147483648
      %v7148 = vor.u32 1.1754944e-38, %v7147
      %v7149 = vsel %vm7146, %v7148, %v7144
      %v7150 = vmul.f32 1.0, %v7149
      %v7151 = vrcp.pop %v6979
      %v7152 = vmul.f32 %v6979, %v7151
      %v7153 = vsub.f32 1.0, %v7152
      %v7154 = vmul.f32 %v7151, %v7153
      %v7155 = vadd.f32 %v7151, %v7154
      %vm7156 = vweird.f32 %v6979
      %vm7157 = vweird.f32 %v7151
      %vm7158 = vmor %vm7156, %vm7157
      %v7159 = vsel %vm7158, %v7151, %v7155
      %v7160 = vand.u32 2147483647, %v6979
      %vm7161 = vcmp.eq.f32.partialorder %v7160, 8.507059e+37
      %v7162 = vand.u32 %v6979, 2147483648
      %v7163 = vor.u32 1.1754944e-38, %v7162
      %v7164 = vsel %vm7161, %v7163, %v7159
      %v7165 = vmul.f32 1.0, %v7164
      %v7166 = vrcp.pop %v6980
      %v7167 = vmul.f32 %v6980, %v7166
      %v7168 = vsub.f32 1.0, %v7167
      %v7169 = vmul.f32 %v7166, %v7168
      %v7170 = vadd.f32 %v7166, %v7169
      %vm7171 = vweird.f32 %v6980
      %vm7172 = vweird.f32 %v7166
      %vm7173 = vmor %vm7171, %vm7172
      %v7174 = vsel %vm7173, %v7166, %v7170
      %v7175 = vand.u32 2147483647, %v6980
      %vm7176 = vcmp.eq.f32.partialorder %v7175, 8.507059e+37
      %v7177 = vand.u32 %v6980, 2147483648
      %v7178 = vor.u32 1.1754944e-38, %v7177
      %v7179 = vsel %vm7176, %v7178, %v7174
      %v7180 = vmul.f32 1.0, %v7179
      %v7181 = vrcp.pop %v6981
      %v7182 = vmul.f32 %v6981, %v7181
      %v7183 = vsub.f32 1.0, %v7182
      %v7184 = vmul.f32 %v7181, %v7183
      %v7185 = vadd.f32 %v7181, %v7184
      %vm7186 = vweird.f32 %v6981
      %vm7187 = vweird.f32 %v7181
      %vm7188 = vmor %vm7186, %vm7187
      %v7189 = vsel %vm7188, %v7181, %v7185
      %v7190 = vand.u32 2147483647, %v6981
      %vm7191 = vcmp.eq.f32.partialorder %v7190, 8.507059e+37
      %v7192 = vand.u32 %v6981, 2147483648
      %v7193 = vor.u32 1.1754944e-38, %v7192
      %v7194 = vsel %vm7191, %v7193, %v7189
      %v7195 = vmul.f32 1.0, %v7194
      %v7196 = vrcp.pop %v6982
      %v7197 = vmul.f32 %v6982, %v7196
      %v7198 = vsub.f32 1.0, %v7197
      %v7199 = vmul.f32 %v7196, %v7198
      %v7200 = vadd.f32 %v7196, %v7199
      %vm7201 = vweird.f32 %v6982
      %vm7202 = vweird.f32 %v7196
      %vm7203 = vmor %vm7201, %vm7202
      %v7204 = vsel %vm7203, %v7196, %v7200
      %v7205 = vand.u32 2147483647, %v6982
      %vm7206 = vcmp.eq.f32.partialorder %v7205, 8.507059e+37
      %v7207 = vand.u32 %v6982, 2147483648
      %v7208 = vor.u32 1.1754944e-38, %v7207
      %v7209 = vsel %vm7206, %v7208, %v7204
      %v7210 = vmul.f32 1.0, %v7209
      %v7211 = vrcp.pop %v6983
      %v7212 = vmul.f32 %v6983, %v7211
      %v7213 = vsub.f32 1.0, %v7212
      %v7214 = vmul.f32 %v7211, %v7213
      %v7215 = vadd.f32 %v7211, %v7214
      %vm7216 = vweird.f32 %v6983
      %vm7217 = vweird.f32 %v7211
      %vm7218 = vmor %vm7216, %vm7217
      %v7219 = vsel %vm7218, %v7211, %v7215
      %v7220 = vand.u32 2147483647, %v6983
      %vm7221 = vcmp.eq.f32.partialorder %v7220, 8.507059e+37
      %v7222 = vand.u32 %v6983, 2147483648
      %v7223 = vor.u32 1.1754944e-38, %v7222
      %v7224 = vsel %vm7221, %v7223, %v7219
      %v7225 = vmul.f32 1.0, %v7224
      %v7226 = vrcp.pop %v6984
      %v7227 = vmul.f32 %v6984, %v7226
      %v7228 = vsub.f32 1.0, %v7227
      %v7229 = vmul.f32 %v7226, %v7228
      %v7230 = vadd.f32 %v7226, %v7229
      %vm7231 = vweird.f32 %v6984
      %vm7232 = vweird.f32 %v7226
      %vm7233 = vmor %vm7231, %vm7232
      %v7234 = vsel %vm7233, %v7226, %v7230
      %v7235 = vand.u32 2147483647, %v6984
      %vm7236 = vcmp.eq.f32.partialorder %v7235, 8.507059e+37
      %v7237 = vand.u32 %v6984, 2147483648
      %v7238 = vor.u32 1.1754944e-38, %v7237
      %v7239 = vsel %vm7236, %v7238, %v7234
      %v7240 = vmul.f32 1.0, %v7239
      %v7241 = vrcp.pop %v6985
      %v7242 = vmul.f32 %v6985, %v7241
      %v7243 = vsub.f32 1.0, %v7242
      %v7244 = vmul.f32 %v7241, %v7243
      %v7245 = vadd.f32 %v7241, %v7244
      %vm7246 = vweird.f32 %v6985
      %vm7247 = vweird.f32 %v7241
      %vm7248 = vmor %vm7246, %vm7247
      %v7249 = vsel %vm7248, %v7241, %v7245
      %v7250 = vand.u32 2147483647, %v6985
      %vm7251 = vcmp.eq.f32.partialorder %v7250, 8.507059e+37
      %v7252 = vand.u32 %v6985, 2147483648
      %v7253 = vor.u32 1.1754944e-38, %v7252
      %v7254 = vsel %vm7251, %v7253, %v7249
      %v7255 = vmul.f32 1.0, %v7254
      %v7256 = vrcp.pop %v6986
      %v7257 = vmul.f32 %v6986, %v7256
      %v7258 = vsub.f32 1.0, %v7257
      %v7259 = vmul.f32 %v7256, %v7258
      %v7260 = vadd.f32 %v7256, %v7259
      %vm7261 = vweird.f32 %v6986
      %vm7262 = vweird.f32 %v7256
      %vm7263 = vmor %vm7261, %vm7262
      %v7264 = vsel %vm7263, %v7256, %v7260
      %v7265 = vand.u32 2147483647, %v6986
      %vm7266 = vcmp.eq.f32.partialorder %v7265, 8.507059e+37
      %v7267 = vand.u32 %v6986, 2147483648
      %v7268 = vor.u32 1.1754944e-38, %v7267
      %v7269 = vsel %vm7266, %v7268, %v7264
      %v7270 = vmul.f32 1.0, %v7269
      %v7271 = vrcp.pop %v6987
      %v7272 = vmul.f32 %v6987, %v7271
      %v7273 = vsub.f32 1.0, %v7272
      %v7274 = vmul.f32 %v7271, %v7273
      %v7275 = vadd.f32 %v7271, %v7274
      %vm7276 = vweird.f32 %v6987
      %vm7277 = vweird.f32 %v7271
      %vm7278 = vmor %vm7276, %vm7277
      %v7279 = vsel %vm7278, %v7271, %v7275
      %v7280 = vand.u32 2147483647, %v6987
      %vm7281 = vcmp.eq.f32.partialorder %v7280, 8.507059e+37
      %v7282 = vand.u32 %v6987, 2147483648
      %v7283 = vor.u32 1.1754944e-38, %v7282
      %v7284 = vsel %vm7281, %v7283, %v7279
      %v7285 = vmul.f32 1.0, %v7284
      %v7286 = vrcp.pop %v6988
      %v7287 = vmul.f32 %v6988, %v7286
      %v7288 = vsub.f32 1.0, %v7287
      %v7289 = vmul.f32 %v7286, %v7288
      %v7290 = vadd.f32 %v7286, %v7289
      %vm7291 = vweird.f32 %v6988
      %vm7292 = vweird.f32 %v7286
      %vm7293 = vmor %vm7291, %vm7292
      %v7294 = vsel %vm7293, %v7286, %v7290
      %v7295 = vand.u32 2147483647, %v6988
      %vm7296 = vcmp.eq.f32.partialorder %v7295, 8.507059e+37
      %v7297 = vand.u32 %v6988, 2147483648
      %v7298 = vor.u32 1.1754944e-38, %v7297
      %v7299 = vsel %vm7296, %v7298, %v7294
      %v7300 = vmul.f32 1.0, %v7299
      %v7301 = vrcp.pop %v6989
      %v7302 = vmul.f32 %v6989, %v7301
      %v7303 = vsub.f32 1.0, %v7302
      %v7304 = vmul.f32 %v7301, %v7303
      %v7305 = vadd.f32 %v7301, %v7304
      %vm7306 = vweird.f32 %v6989
      %vm7307 = vweird.f32 %v7301
      %vm7308 = vmor %vm7306, %vm7307
      %v7309 = vsel %vm7308, %v7301, %v7305
      %v7310 = vand.u32 2147483647, %v6989
      %vm7311 = vcmp.eq.f32.partialorder %v7310, 8.507059e+37
      %v7312 = vand.u32 %v6989, 2147483648
      %v7313 = vor.u32 1.1754944e-38, %v7312
      %v7314 = vsel %vm7311, %v7313, %v7309
      %v7315 = vmul.f32 1.0, %v7314
      %v7316 = vrcp.pop %v6990
      %v7317 = vmul.f32 %v6990, %v7316
      %v7318 = vsub.f32 1.0, %v7317
      %v7319 = vmul.f32 %v7316, %v7318
      %v7320 = vadd.f32 %v7316, %v7319
      %vm7321 = vweird.f32 %v6990
      %vm7322 = vweird.f32 %v7316
      %vm7323 = vmor %vm7321, %vm7322
      %v7324 = vsel %vm7323, %v7316, %v7320
      %v7325 = vand.u32 2147483647, %v6990
      %vm7326 = vcmp.eq.f32.partialorder %v7325, 8.507059e+37
      %v7327 = vand.u32 %v6990, 2147483648
      %v7328 = vor.u32 1.1754944e-38, %v7327
      %v7329 = vsel %vm7326, %v7328, %v7324
      %v7330 = vmul.f32 1.0, %v7329
      %v7331 = vrcp.pop %v6991
      %v7332 = vmul.f32 %v6991, %v7331
      %v7333 = vsub.f32 1.0, %v7332
      %v7334 = vmul.f32 %v7331, %v7333
      %v7335 = vadd.f32 %v7331, %v7334
      %vm7336 = vweird.f32 %v6991
      %vm7337 = vweird.f32 %v7331
      %vm7338 = vmor %vm7336, %vm7337
      %v7339 = vsel %vm7338, %v7331, %v7335
      %v7340 = vand.u32 2147483647, %v6991
      %vm7341 = vcmp.eq.f32.partialorder %v7340, 8.507059e+37
      %v7342 = vand.u32 %v6991, 2147483648
      %v7343 = vor.u32 1.1754944e-38, %v7342
      %v7344 = vsel %vm7341, %v7343, %v7339
      %v7345 = vmul.f32 1.0, %v7344
      %v7346 = vrcp.pop %v6992
      %v7347 = vmul.f32 %v6992, %v7346
      %v7348 = vsub.f32 1.0, %v7347
      %v7349 = vmul.f32 %v7346, %v7348
      %v7350 = vadd.f32 %v7346, %v7349
      %vm7351 = vweird.f32 %v6992
      %vm7352 = vweird.f32 %v7346
      %vm7353 = vmor %vm7351, %vm7352
      %v7354 = vsel %vm7353, %v7346, %v7350
      %v7355 = vand.u32 2147483647, %v6992
      %vm7356 = vcmp.eq.f32.partialorder %v7355, 8.507059e+37
      %v7357 = vand.u32 %v6992, 2147483648
      %v7358 = vor.u32 1.1754944e-38, %v7357
      %v7359 = vsel %vm7356, %v7358, %v7354
      %v7360 = vmul.f32 1.0, %v7359
      %v7361 = vrcp.pop %v6993
      %v7362 = vmul.f32 %v6993, %v7361
      %v7363 = vsub.f32 1.0, %v7362
      %v7364 = vmul.f32 %v7361, %v7363
      %v7365 = vadd.f32 %v7361, %v7364
      %vm7366 = vweird.f32 %v6993
      %vm7367 = vweird.f32 %v7361
      %vm7368 = vmor %vm7366, %vm7367
      %v7369 = vsel %vm7368, %v7361, %v7365
      %v7370 = vand.u32 2147483647, %v6993
      %vm7371 = vcmp.eq.f32.partialorder %v7370, 8.507059e+37
      %v7372 = vand.u32 %v6993, 2147483648
      %v7373 = vor.u32 1.1754944e-38, %v7372
      %v7374 = vsel %vm7371, %v7373, %v7369
      %v7375 = vmul.f32 1.0, %v7374
      %v7376 = vrcp.pop %v6994
      %v7377 = vmul.f32 %v6994, %v7376
      %v7378 = vsub.f32 1.0, %v7377
      %v7379 = vmul.f32 %v7376, %v7378
      %v7380 = vadd.f32 %v7376, %v7379
      %vm7381 = vweird.f32 %v6994
      %vm7382 = vweird.f32 %v7376
      %vm7383 = vmor %vm7381, %vm7382
      %v7384 = vsel %vm7383, %v7376, %v7380
      %v7385 = vand.u32 2147483647, %v6994
      %vm7386 = vcmp.eq.f32.partialorder %v7385, 8.507059e+37
      %v7387 = vand.u32 %v6994, 2147483648
      %v7388 = vor.u32 1.1754944e-38, %v7387
      %v7389 = vsel %vm7386, %v7388, %v7384
      %v7390 = vmul.f32 1.0, %v7389
      %v7391 = vrcp.pop %v6995
      %v7392 = vmul.f32 %v6995, %v7391
      %v7393 = vsub.f32 1.0, %v7392
      %v7394 = vmul.f32 %v7391, %v7393
      %v7395 = vadd.f32 %v7391, %v7394
      %vm7396 = vweird.f32 %v6995
      %vm7397 = vweird.f32 %v7391
      %vm7398 = vmor %vm7396, %vm7397
      %v7399 = vsel %vm7398, %v7391, %v7395
      %v7400 = vand.u32 2147483647, %v6995
      %vm7401 = vcmp.eq.f32.partialorder %v7400, 8.507059e+37
      %v7402 = vand.u32 %v6995, 2147483648
      %v7403 = vor.u32 1.1754944e-38, %v7402
      %v7404 = vsel %vm7401, %v7403, %v7399
      %v7405 = vmul.f32 1.0, %v7404
      %v7406 = vrcp.pop %v6996
      %v7407 = vmul.f32 %v6996, %v7406
      %v7408 = vsub.f32 1.0, %v7407
      %v7409 = vmul.f32 %v7406, %v7408
      %v7410 = vadd.f32 %v7406, %v7409
      %vm7411 = vweird.f32 %v6996
      %vm7412 = vweird.f32 %v7406
      %vm7413 = vmor %vm7411, %vm7412
      %v7414 = vsel %vm7413, %v7406, %v7410
      %v7415 = vand.u32 2147483647, %v6996
      %vm7416 = vcmp.eq.f32.partialorder %v7415, 8.507059e+37
      %v7417 = vand.u32 %v6996, 2147483648
      %v7418 = vor.u32 1.1754944e-38, %v7417
      %v7419 = vsel %vm7416, %v7418, %v7414
      %v7420 = vmul.f32 1.0, %v7419
      %v7421 = vrcp.pop %v6997
      %v7422 = vmul.f32 %v6997, %v7421
      %v7423 = vsub.f32 1.0, %v7422
      %v7424 = vmul.f32 %v7421, %v7423
      %v7425 = vadd.f32 %v7421, %v7424
      %vm7426 = vweird.f32 %v6997
      %vm7427 = vweird.f32 %v7421
      %vm7428 = vmor %vm7426, %vm7427
      %v7429 = vsel %vm7428, %v7421, %v7425
      %v7430 = vand.u32 2147483647, %v6997
      %vm7431 = vcmp.eq.f32.partialorder %v7430, 8.507059e+37
      %v7432 = vand.u32 %v6997, 2147483648
      %v7433 = vor.u32 1.1754944e-38, %v7432
      %v7434 = vsel %vm7431, %v7433, %v7429
      %v7435 = vmul.f32 1.0, %v7434
      %v7436 = vrcp.pop %v6998
      %v7437 = vmul.f32 %v6998, %v7436
      %v7438 = vsub.f32 1.0, %v7437
      %v7439 = vmul.f32 %v7436, %v7438
      %v7440 = vadd.f32 %v7436, %v7439
      %vm7441 = vweird.f32 %v6998
      %vm7442 = vweird.f32 %v7436
      %vm7443 = vmor %vm7441, %vm7442
      %v7444 = vsel %vm7443, %v7436, %v7440
      %v7445 = vand.u32 2147483647, %v6998
      %vm7446 = vcmp.eq.f32.partialorder %v7445, 8.507059e+37
      %v7447 = vand.u32 %v6998, 2147483648
      %v7448 = vor.u32 1.1754944e-38, %v7447
      %v7449 = vsel %vm7446, %v7448, %v7444
      %v7450 = vmul.f32 1.0, %v7449
      %v7451 = vrcp.pop %v6999
      %v7452 = vmul.f32 %v6999, %v7451
      %v7453 = vsub.f32 1.0, %v7452
      %v7454 = vmul.f32 %v7451, %v7453
      %v7455 = vadd.f32 %v7451, %v7454
      %vm7456 = vweird.f32 %v6999
      %vm7457 = vweird.f32 %v7451
      %vm7458 = vmor %vm7456, %vm7457
      %v7459 = vsel %vm7458, %v7451, %v7455
      %v7460 = vand.u32 2147483647, %v6999
      %vm7461 = vcmp.eq.f32.partialorder %v7460, 8.507059e+37
      %v7462 = vand.u32 %v6999, 2147483648
      %v7463 = vor.u32 1.1754944e-38, %v7462
      %v7464 = vsel %vm7461, %v7463, %v7459
      %v7465 = vmul.f32 1.0, %v7464
      %v7466 = vrcp.pop %v7000
      %v7467 = vmul.f32 %v7000, %v7466
      %v7468 = vsub.f32 1.0, %v7467
      %v7469 = vmul.f32 %v7466, %v7468
      %v7470 = vadd.f32 %v7466, %v7469
      %vm7471 = vweird.f32 %v7000
      %vm7472 = vweird.f32 %v7466
      %vm7473 = vmor %vm7471, %vm7472
      %v7474 = vsel %vm7473, %v7466, %v7470
      %v7475 = vand.u32 2147483647, %v7000
      %vm7476 = vcmp.eq.f32.partialorder %v7475, 8.507059e+37
      %v7477 = vand.u32 %v7000, 2147483648
      %v7478 = vor.u32 1.1754944e-38, %v7477
      %v7479 = vsel %vm7476, %v7478, %v7474
      %v7480 = vmul.f32 1.0, %v7479
      %v7481 = vmul.f32 %v6841, %v7015
      %v7482 = vmul.f32 %v6842, %v7030
      %v7483 = vmul.f32 %v6843, %v7045
      %v7484 = vmul.f32 %v6844, %v7060
      %v7485 = vmul.f32 %v6845, %v7075
      %v7486 = vmul.f32 %v6846, %v7090
      %v7487 = vmul.f32 %v6847, %v7105
      %v7488 = vmul.f32 %v6848, %v7120
      %v7489 = vmul.f32 %v6849, %v7135
      %v7490 = vmul.f32 %v6850, %v7150
      %v7491 = vmul.f32 %v6851, %v7165
      %v7492 = vmul.f32 %v6852, %v7180
      %v7493 = vmul.f32 %v6853, %v7195
      %v7494 = vmul.f32 %v6854, %v7210
      %v7495 = vmul.f32 %v6855, %v7225
      %v7496 = vmul.f32 %v6856, %v7240
      %v7497 = vmul.f32 %v6857, %v7255
      %v7498 = vmul.f32 %v6858, %v7270
      %v7499 = vmul.f32 %v6859, %v7285
      %v7500 = vmul.f32 %v6860, %v7300
      %v7501 = vmul.f32 %v6861, %v7315
      %v7502 = vmul.f32 %v6862, %v7330
      %v7503 = vmul.f32 %v6863, %v7345
      %v7504 = vmul.f32 %v6864, %v7360
      %v7505 = vmul.f32 %v6865, %v7375
      %v7506 = vmul.f32 %v6866, %v7390
      %v7507 = vmul.f32 %v6867, %v7405
      %v7508 = vmul.f32 %v6868, %v7420
      %v7509 = vmul.f32 %v6869, %v7435
      %v7510 = vmul.f32 %v6870, %v7450
      %v7511 = vmul.f32 %v6871, %v7465
      %v7512 = vmul.f32 %v6872, %v7480
      %v7513 = vld [vmem:[%s10] sm:$0xf]
      %v7515 = vsel %vm488, %v456, 0
      %v7518 = vsel %vm488, %v457, 0
      %v7521 = vsel %vm488, %v458, 0
      %v7524 = vsel %vm488, %v459, 0
      %v7527 = vsel %vm488, %v460, 0
      %v7530 = vsel %vm488, %v461, 0
      %v7533 = vsel %vm488, %v462, 0
      %v7536 = vsel %vm488, %v463, 0
      %v7539 = vsel %vm488, %v464, 0
      %v7542 = vsel %vm488, %v465, 0
      %v7545 = vsel %vm488, %v466, 0
      %v7548 = vsel %vm488, %v467, 0
      %v7551 = vsel %vm488, %v468, 0
      %v7554 = vsel %vm488, %v469, 0
      %v7557 = vsel %vm488, %v470, 0
      %v7560 = vsel %vm488, %v471, 0
      %v7563 = vsel %vm488, %v472, 0
      %v7566 = vsel %vm488, %v473, 0
      %v7569 = vsel %vm488, %v474, 0
      %v7572 = vsel %vm488, %v475, 0
      %v7575 = vsel %vm488, %v476, 0
      %v7578 = vsel %vm488, %v477, 0
      %v7581 = vsel %vm488, %v478, 0
      %v7584 = vsel %vm488, %v479, 0
      %v7587 = vsel %vm488, %v480, 0
      %v7590 = vsel %vm488, %v481, 0
      %v7593 = vsel %vm488, %v482, 0
      %v7596 = vsel %vm488, %v483, 0
      %v7599 = vsel %vm488, %v484, 0
      %v7602 = vsel %vm488, %v485, 0
      %v7605 = vsel %vm488, %v486, 0
      %v7608 = vsel %vm488, %v487, 0
      %v7611 = vsel %vm696, %v7513, 0
      %7613 = vmatpush.msra.mxu0 0.0
      %7614 = vmatpush.msra.mxu0 0.0
      %7615 = vmatpush.msra.mxu0 0.0
      %7616 = vmatpush.msra.mxu0 0.0
      %7617 = vmatpush.msra.mxu0 0.0
      %7618 = vmatpush.msra.mxu0 0.0
      %7619 = vmatpush.msra.mxu0 0.0
      %7620 = vmatpush.msra.mxu0 0.0
      %7621 = vmatpush.msra.mxu0 0.0
      %7622 = vmatpush.msra.mxu0 0.0
      %7623 = vmatpush.msra.mxu0 0.0
      %7624 = vmatpush.msra.mxu0 0.0
      %7625 = vmatpush.msra.mxu0 0.0
      %7626 = vmatpush.msra.mxu0 0.0
      %7627 = vmatpush.msra.mxu0 0.0
      %7628 = vmatpush.msra.mxu0 %v7611
      %7629 = vmatmul.f32.gmra.mxu0 %v7515
      %v7630 = vpop.f32.mrf.mxu0
      %v7631 = vadd.f32 0.0, %v7630
      %7632 = vmatmul.f32.gmra.mxu0 %v7518
      %v7633 = vpop.f32.mrf.mxu0
      %v7634 = vadd.f32 0.0, %v7633
      %7635 = vmatmul.f32.gmra.mxu0 %v7521
      %v7636 = vpop.f32.mrf.mxu0
      %v7637 = vadd.f32 0.0, %v7636
      %7638 = vmatmul.f32.gmra.mxu0 %v7524
      %v7639 = vpop.f32.mrf.mxu0
      %v7640 = vadd.f32 0.0, %v7639
      %7641 = vmatmul.f32.gmra.mxu0 %v7527
      %v7642 = vpop.f32.mrf.mxu0
      %v7643 = vadd.f32 0.0, %v7642
      %7644 = vmatmul.f32.gmra.mxu0 %v7530
      %v7645 = vpop.f32.mrf.mxu0
      %v7646 = vadd.f32 0.0, %v7645
      %7647 = vmatmul.f32.gmra.mxu0 %v7533
      %v7648 = vpop.f32.mrf.mxu0
      %v7649 = vadd.f32 0.0, %v7648
      %7650 = vmatmul.f32.gmra.mxu0 %v7536
      %v7651 = vpop.f32.mrf.mxu0
      %v7652 = vadd.f32 0.0, %v7651
      %7653 = vmatmul.f32.gmra.mxu0 %v7539
      %v7654 = vpop.f32.mrf.mxu0
      %v7655 = vadd.f32 0.0, %v7654
      %7656 = vmatmul.f32.gmra.mxu0 %v7542
      %v7657 = vpop.f32.mrf.mxu0
      %v7658 = vadd.f32 0.0, %v7657
      %7659 = vmatmul.f32.gmra.mxu0 %v7545
      %v7660 = vpop.f32.mrf.mxu0
      %v7661 = vadd.f32 0.0, %v7660
      %7662 = vmatmul.f32.gmra.mxu0 %v7548
      %v7663 = vpop.f32.mrf.mxu0
      %v7664 = vadd.f32 0.0, %v7663
      %7665 = vmatmul.f32.gmra.mxu0 %v7551
      %v7666 = vpop.f32.mrf.mxu0
      %v7667 = vadd.f32 0.0, %v7666
      %7668 = vmatmul.f32.gmra.mxu0 %v7554
      %v7669 = vpop.f32.mrf.mxu0
      %v7670 = vadd.f32 0.0, %v7669
      %7671 = vmatmul.f32.gmra.mxu0 %v7557
      %v7672 = vpop.f32.mrf.mxu0
      %v7673 = vadd.f32 0.0, %v7672
      %7674 = vmatmul.f32.gmra.mxu0 %v7560
      %v7675 = vpop.f32.mrf.mxu0
      %v7676 = vadd.f32 0.0, %v7675
      %7677 = vmatmul.f32.gmra.mxu0 %v7563
      %v7678 = vpop.f32.mrf.mxu0
      %v7679 = vadd.f32 0.0, %v7678
      %7680 = vmatmul.f32.gmra.mxu0 %v7566
      %v7681 = vpop.f32.mrf.mxu0
      %v7682 = vadd.f32 0.0, %v7681
      %7683 = vmatmul.f32.gmra.mxu0 %v7569
      %v7684 = vpop.f32.mrf.mxu0
      %v7685 = vadd.f32 0.0, %v7684
      %7686 = vmatmul.f32.gmra.mxu0 %v7572
      %v7687 = vpop.f32.mrf.mxu0
      %v7688 = vadd.f32 0.0, %v7687
      %7689 = vmatmul.f32.gmra.mxu0 %v7575
      %v7690 = vpop.f32.mrf.mxu0
      %v7691 = vadd.f32 0.0, %v7690
      %7692 = vmatmul.f32.gmra.mxu0 %v7578
      %v7693 = vpop.f32.mrf.mxu0
      %v7694 = vadd.f32 0.0, %v7693
      %7695 = vmatmul.f32.gmra.mxu0 %v7581
      %v7696 = vpop.f32.mrf.mxu0
      %v7697 = vadd.f32 0.0, %v7696
      %7698 = vmatmul.f32.gmra.mxu0 %v7584
      %v7699 = vpop.f32.mrf.mxu0
      %v7700 = vadd.f32 0.0, %v7699
      %7701 = vmatmul.f32.gmra.mxu0 %v7587
      %v7702 = vpop.f32.mrf.mxu0
      %v7703 = vadd.f32 0.0, %v7702
      %7704 = vmatmul.f32.gmra.mxu0 %v7590
      %v7705 = vpop.f32.mrf.mxu0
      %v7706 = vadd.f32 0.0, %v7705
      %7707 = vmatmul.f32.gmra.mxu0 %v7593
      %v7708 = vpop.f32.mrf.mxu0
      %v7709 = vadd.f32 0.0, %v7708
      %7710 = vmatmul.f32.gmra.mxu0 %v7596
      %v7711 = vpop.f32.mrf.mxu0
      %v7712 = vadd.f32 0.0, %v7711
      %7713 = vmatmul.f32.gmra.mxu0 %v7599
      %v7714 = vpop.f32.mrf.mxu0
      %v7715 = vadd.f32 0.0, %v7714
      %7716 = vmatmul.f32.gmra.mxu0 %v7602
      %v7717 = vpop.f32.mrf.mxu0
      %v7718 = vadd.f32 0.0, %v7717
      %7719 = vmatmul.f32.gmra.mxu0 %v7605
      %v7720 = vpop.f32.mrf.mxu0
      %v7721 = vadd.f32 0.0, %v7720
      %7722 = vmatmul.f32.gmra.mxu0 %v7608
      %v7723 = vpop.f32.mrf.mxu0
      %v7724 = vadd.f32 0.0, %v7723
      %7725 = vdwg.mxu0
      %v7726 = vadd.f32 %v7481, %v7631
      %v7727 = vadd.f32 %v7482, %v7634
      %v7728 = vadd.f32 %v7483, %v7637
      %v7729 = vadd.f32 %v7484, %v7640
      %v7730 = vadd.f32 %v7485, %v7643
      %v7731 = vadd.f32 %v7486, %v7646
      %v7732 = vadd.f32 %v7487, %v7649
      %v7733 = vadd.f32 %v7488, %v7652
      %v7734 = vadd.f32 %v7489, %v7655
      %v7735 = vadd.f32 %v7490, %v7658
      %v7736 = vadd.f32 %v7491, %v7661
      %v7737 = vadd.f32 %v7492, %v7664
      %v7738 = vadd.f32 %v7493, %v7667
      %v7739 = vadd.f32 %v7494, %v7670
      %v7740 = vadd.f32 %v7495, %v7673
      %v7741 = vadd.f32 %v7496, %v7676
      %v7742 = vadd.f32 %v7497, %v7679
      %v7743 = vadd.f32 %v7498, %v7682
      %v7744 = vadd.f32 %v7499, %v7685
      %v7745 = vadd.f32 %v7500, %v7688
      %v7746 = vadd.f32 %v7501, %v7691
      %v7747 = vadd.f32 %v7502, %v7694
      %v7748 = vadd.f32 %v7503, %v7697
      %v7749 = vadd.f32 %v7504, %v7700
      %v7750 = vadd.f32 %v7505, %v7703
      %v7751 = vadd.f32 %v7506, %v7706
      %v7752 = vadd.f32 %v7507, %v7709
      %v7753 = vadd.f32 %v7508, %v7712
      %v7754 = vadd.f32 %v7509, %v7715
      %v7755 = vadd.f32 %v7510, %v7718
      %v7756 = vadd.f32 %v7511, %v7721
      %v7757 = vadd.f32 %v7512, %v7724
      %v7758 = vld [vmem:[%s11] sm:$0x1]
      %v7760 = vperm.slane %v7758, 0
      %v7762 = vadd.f32 %v7726, %v7760
      %v7763 = vadd.f32 %v7727, %v7760
      %v7764 = vadd.f32 %v7728, %v7760
      %v7765 = vadd.f32 %v7729, %v7760
      %v7766 = vadd.f32 %v7730, %v7760
      %v7767 = vadd.f32 %v7731, %v7760
      %v7768 = vadd.f32 %v7732, %v7760
      %v7769 = vadd.f32 %v7733, %v7760
      %v7770 = vadd.f32 %v7734, %v7760
      %v7771 = vadd.f32 %v7735, %v7760
      %v7772 = vadd.f32 %v7736, %v7760
      %v7773 = vadd.f32 %v7737, %v7760
      %v7774 = vadd.f32 %v7738, %v7760
      %v7775 = vadd.f32 %v7739, %v7760
      %v7776 = vadd.f32 %v7740, %v7760
      %v7777 = vadd.f32 %v7741, %v7760
      %v7778 = vadd.f32 %v7742, %v7760
      %v7779 = vadd.f32 %v7743, %v7760
      %v7780 = vadd.f32 %v7744, %v7760
      %v7781 = vadd.f32 %v7745, %v7760
      %v7782 = vadd.f32 %v7746, %v7760
      %v7783 = vadd.f32 %v7747, %v7760
      %v7784 = vadd.f32 %v7748, %v7760
      %v7785 = vadd.f32 %v7749, %v7760
      %v7786 = vadd.f32 %v7750, %v7760
      %v7787 = vadd.f32 %v7751, %v7760
      %v7788 = vadd.f32 %v7752, %v7760
      %v7789 = vadd.f32 %v7753, %v7760
      %v7790 = vadd.f32 %v7754, %v7760
      %v7791 = vadd.f32 %v7755, %v7760
      %v7792 = vadd.f32 %v7756, %v7760
      %v7793 = vadd.f32 %v7757, %v7760
      %7794 = vst.msk [vmem:[%s454] sm:$0xff] %vm3066, %v7762
      %7795 = vst.msk [vmem:[%s454 + $0x8] sm:$0xff] %vm3066, %v7763
      %7796 = vst.msk [vmem:[%s454 + $0x10] sm:$0xff] %vm3066, %v7764
      %7797 = vst.msk [vmem:[%s454 + $0x18] sm:$0xff] %vm3066, %v7765
      %7798 = vst.msk [vmem:[%s454 + $0x20] sm:$0xff] %vm3066, %v7766
      %7799 = vst.msk [vmem:[%s454 + $0x28] sm:$0xff] %vm3066, %v7767
      %7800 = vst.msk [vmem:[%s454 + $0x30] sm:$0xff] %vm3066, %v7768
      %7801 = vst.msk [vmem:[%s454 + $0x38] sm:$0xff] %vm3066, %v7769
      %7802 = vst.msk [vmem:[%s454 + $0x40] sm:$0xff] %vm3066, %v7770
      %7803 = vst.msk [vmem:[%s454 + $0x48] sm:$0xff] %vm3066, %v7771
      %7804 = vst.msk [vmem:[%s454 + $0x50] sm:$0xff] %vm3066, %v7772
      %7805 = vst.msk [vmem:[%s454 + $0x58] sm:$0xff] %vm3066, %v7773
      %7806 = vst.msk [vmem:[%s454 + $0x60] sm:$0xff] %vm3066, %v7774
      %7807 = vst.msk [vmem:[%s454 + $0x68] sm:$0xff] %vm3066, %v7775
      %7808 = vst.msk [vmem:[%s454 + $0x70] sm:$0xff] %vm3066, %v7776
      %7809 = vst.msk [vmem:[%s454 + $0x78] sm:$0xff] %vm3066, %v7777
      %7810 = vst.msk [vmem:[%s454 + $0x80] sm:$0xff] %vm3066, %v7778
      %7811 = vst.msk [vmem:[%s454 + $0x88] sm:$0xff] %vm3066, %v7779
      %7812 = vst.msk [vmem:[%s454 + $0x90] sm:$0xff] %vm3066, %v7780
      %7813 = vst.msk [vmem:[%s454 + $0x98] sm:$0xff] %vm3066, %v7781
      %7814 = vst.msk [vmem:[%s454 + $0xa0] sm:$0xff] %vm3066, %v7782
      %7815 = vst.msk [vmem:[%s454 + $0xa8] sm:$0xff] %vm3066, %v7783
      %7816 = vst.msk [vmem:[%s454 + $0xb0] sm:$0xff] %vm3066, %v7784
      %7817 = vst.msk [vmem:[%s454 + $0xb8] sm:$0xff] %vm3066, %v7785
      %7818 = vst.msk [vmem:[%s454 + $0xc0] sm:$0xff] %vm3066, %v7786
      %7819 = vst.msk [vmem:[%s454 + $0xc8] sm:$0xff] %vm3066, %v7787
      %7820 = vst.msk [vmem:[%s454 + $0xd0] sm:$0xff] %vm3066, %v7788
      %7821 = vst.msk [vmem:[%s454 + $0xd8] sm:$0xff] %vm3066, %v7789
      %7822 = vst.msk [vmem:[%s454 + $0xe0] sm:$0xff] %vm3066, %v7790
      %7823 = vst.msk [vmem:[%s454 + $0xe8] sm:$0xff] %vm3066, %v7791
      %7824 = vst.msk [vmem:[%s454 + $0xf0] sm:$0xff] %vm3066, %v7792
      %7825 = vst.msk [vmem:[%s454 + $0xf8] sm:$0xff] %vm3066, %v7793
      %p7826 = scmp.lt.s32.totalorder %s24, 1
      %s7827 = scalar_select %p7826, %s24, 1
      %s7828 = smul.addr %s7827, 32
      %s7829 = smul.addr %s7828, 8
      %s7830 = scalar_lea.vmem %s13, %s7829
      // Predicated region
      $region73: #{tpu_custom_call.1} parent=71 // pred_check
        %p7831 = pneg %p325
      $region74: #{tpu_custom_call.1} parent=71 // pred_check_branch
        %7833 = sbr.rel (%p7831) target = $region76
      $region75: #{tpu_custom_call.1} parent=71 // pred_region
        _
      $region76: #{tpu_custom_call.1} parent=71 // pred_fallthru
        _
    $region72: #{tpu_custom_call.1} parent=5 // pred_fallthru
      _
    %p7834 = scmp.le.s32.totalorder 2, %s19
    // Predicated region
    $region77: #{tpu_custom_call.1} parent=5 // pred_check
      %p7835 = pneg %p7834
    $region78: #{tpu_custom_call.1} parent=5 // pred_check_branch
      %7837 = sbr.rel (%p7835) target = $region80
    $region79: #{tpu_custom_call.1} parent=5 // pred_region
      %s7838 = ssub.s32 %s19, 2
      // Predicated region
      $region81: #{tpu_custom_call.1} parent=79 // pred_check
        %p7839 = pneg %p331
      $region82: #{tpu_custom_call.1} parent=79 // pred_check_branch
        %7841 = sbr.rel (%p7839) target = $region84
      $region83: #{tpu_custom_call.1} parent=79 // pred_region
        %p7842 = scmp.lt.s32.totalorder %s25, 1
        %s7843 = scalar_select %p7842, %s25, 1
        %s7844 = smul.addr %s7843, 32
        %s7845 = smul.addr %s7844, 8
        %s7846 = scalar_lea.vmem %s13, %s7845
      $region84: #{tpu_custom_call.1} parent=79 // pred_fallthru
        _
    $region80: #{tpu_custom_call.1} parent=5 // pred_fallthru
      _
  $region6: #{tpu_custom_call.1} parent=0 // loop_footer
    %s23 = sadd.s32 1, %s19
  $region7: #{tpu_custom_call.1} parent=0 // loop_footer_branch
    %18 = sbr.rel target = $region3
  $region8: #{tpu_custom_call.1} parent=0 // loop_exit
    _

</llo_original>
